<compile_context>
chip_gen: v7x
topology: tpu7x:2x2x1
jax: 0.10.0
libtpu: 0.0.40
codegen_flags: <defaults>
</compile_context>

<pallas_src>
import functools

import jax
import jax.numpy as jnp
import numpy as np
from jax import lax
from jax.experimental import pallas as pl
from jax.experimental.pallas import tpu as pltpu


# ----------------------------------------------------------------------------
# Small helpers
# ----------------------------------------------------------------------------
def _round_up(n, m):
    return ((n + m - 1) // m) * m


def _pad_dim(a, axis, new_size):
    if a.shape[axis] == new_size:
        return a
    pad = [(0, 0)] * a.ndim
    pad[axis] = (0, new_size - a.shape[axis])
    return jnp.pad(a, pad)


def _pad_gate_axis(w, h, hp, axis):
    """Pad a 4*h gate axis (PyTorch gate order i,f,g,o, each of width h) to 4*hp."""
    if hp == h:
        return w
    shape = list(w.shape)
    w = w.reshape(shape[:axis] + [4, h] + shape[axis + 1:])
    w = _pad_dim(w, axis + 1, hp)
    return w.reshape(shape[:axis] + [4 * hp] + shape[axis + 1:])


def _num_tensorcores():
    """Best-effort TensorCores-per-chip (2 on v7x); conservative fallback of 1."""
    try:
        info = pltpu.get_tpu_info()
    except Exception:
        return 1
    for name in ("num_cores", "core_count", "num_tensorcores", "tensorcore_count",
                 "cores_per_chip", "num_tensor_cores"):
        v = getattr(info, name, None)
        if isinstance(v, int) and 1 <= v <= 8:
            return v
    return 1


def _vmem_limit_bytes(est_bytes):
    """Scoped-VMEM limit sized from the real footprint (v5e default 16MiB is too small at
    production H; v7x physical VMEM is only 64MiB)."""
    cap = 64 << 20
    try:
        cap = int(pltpu.get_tpu_info().vmem_capacity_bytes) - (4 << 20)
    except Exception:
        pass
    cap = max(cap, 32 << 20)
    want = max(32 << 20, int(1.25 * est_bytes) + (2 << 20))
    return int(min(cap, want))


# ----------------------------------------------------------------------------
# Fused kernel: hoisted layer-0 x-projection + 2-layer LSTM recurrence + deferred FC.
# ----------------------------------------------------------------------------
def _make_charlstm_kernel(*, Tc, Bb, Hp, Vp, T_true, T_pad, cdt):
    H4 = 4 * Hp
    needs_mask = (T_pad != T_true)
    f32 = jnp.float32

    def kernel(x_ref, wih0_ref, b0_ref, whh0_ref, w1cat_ref, b1_ref,
               wfc_ref, bfc_ref, h0_ref, c0_ref,
               out_ref, hT_ref, cT_ref,
               gx_sc, h1all_sc, h0_sc, c0_sc, h1_sc, c1_sc):
        t_blk = pl.program_id(1)

        # Initialize the persistent per-core state at the first time block.
        @pl.when(t_blk == 0)
        def _():
            h0_sc[...] = h0_ref[0].astype(f32)
            c0_sc[...] = c0_ref[0].astype(f32)
            h1_sc[...] = h0_ref[1].astype(f32)
            c1_sc[...] = c0_ref[1].astype(f32)

        # Hoisted layer-0 input projection for the whole time block: ONE MXU GEMM, VMEM only.
        gx_sc[...] = (jnp.dot(x_ref[...].astype(cdt), wih0_ref[...],
                              preferred_element_type=f32) + b0_ref[...])

        # Hoist the layer-1 bias broadcast out of the unrolled serial loop.
        b1_full = jnp.broadcast_to(b1_ref[...], (Bb, H4))

        def cell(gates, c_prev):
            # Gate boundaries are multiples of Hp (128-lane aligned) -> free vreg slices.
            i_g = jax.nn.sigmoid(gates[:, 0 * Hp:1 * Hp])
            f_g = jax.nn.sigmoid(gates[:, 1 * Hp:2 * Hp])
            g_g = jnp.tanh(gates[:, 2 * Hp:3 * Hp])
            o_g = jax.nn.sigmoid(gates[:, 3 * Hp:4 * Hp])
            c_new = f_g * c_prev + i_g * g_g
            return o_g * jnp.tanh(c_new), c_new

        def rows(t):  # Bb is a multiple of 8, so starts are sublane-aligned.
            return pl.ds(pl.multiple_of(t * Bb, 8), Bb)

        def step(t, carry):
            # Layer 0: only the recurrent half of the gates (x-part is in gx_sc).
            g0 = gx_sc[rows(t), :] + jnp.dot(h0_sc[...].astype(cdt), whh0_ref[...],
                                             preferred_element_type=f32)
            h0_new, c0_new = cell(g0, c0_sc[...])
            # Layer 1: single fused matmul over concat([h0_t, h1_{t-1}]) (K = 2*Hp).
            h01 = jnp.concatenate([h0_new.astype(cdt), h1_sc[...].astype(cdt)], axis=-1)
            g1 = jnp.dot(h01, w1cat_ref[...], preferred_element_type=f32) + b1_full
            h1_new, c1_new = cell(g1, c1_sc[...])

            if needs_mask:  # freeze state on padded tail timesteps (T not divisible by Tc)
                valid = (t_blk * Tc + t) < T_true
                h0_new = jnp.where(valid, h0_new, h0_sc[...])
                c0_new = jnp.where(valid, c0_new, c0_sc[...])
                h1_new = jnp.where(valid, h1_new, h1_sc[...])
                c1_new = jnp.where(valid, c1_new, c1_sc[...])

            h0_sc[...] = h0_new
            c0_sc[...] = c0_new
            h1_sc[...] = h1_new
            c1_sc[...] = c1_new
            h1all_sc[rows(t), :] = h1_new       # staged FC input, consumed after the loop
            return carry

        unroll = Tc if Bb <= 64 else min(Tc, 4)
        lax.fori_loop(0, Tc, step, 0, unroll=unroll)

        # Deferred FC: one GEMM over all Tc timesteps of this block, lane-dense store.
        logits = (jnp.dot(h1all_sc[...].astype(cdt), wfc_ref[...],
                          preferred_element_type=f32) + bfc_ref[...])
        out_ref[...] = logits.astype(out_ref.dtype)

        @pl.when(t_blk == pl.num_programs(1) - 1)
        def _():
            hT_ref[0] = h0_sc[...].astype(hT_ref.dtype)
            hT_ref[1] = h1_sc[...].astype(hT_ref.dtype)
            cT_ref[0] = c0_sc[...].astype(cT_ref.dtype)
            cT_ref[1] = c1_sc[...].astype(cT_ref.dtype)

    return kernel


# ----------------------------------------------------------------------------
# CharLSTM forward (Pallas path)
# ----------------------------------------------------------------------------
def charlstm_forward(params, x_btd, hidden, *, time_block=16,
                     compute_dtype=jnp.bfloat16, single_buffer_weights=True):
    """x_btd: (B, T, vocab); hidden = (h0, c0) each (n_layers, B, H).
    Returns (out (B*T, vocab), (h_n, c_n))."""
    h0_all, c0_all = hidden
    n_layers, _, H = h0_all.shape
    assert n_layers == 2, "fused kernel implements the module default n_layers=2"
    B, T, V = x_btd.shape
    cdt = compute_dtype

    Hp = _round_up(H, 128)          # lane-aligned gate boundaries
    Vp = _round_up(V, 128)          # lane-dense FC output stores
    H4 = 4 * Hp

    # Batch split across TensorCores only on multi-core chips (v7x); per-core batch padded
    # to a multiple of 8 sublanes so all blocks/slices are aligned.
    num_cores = _num_tensorcores()
    nb = num_cores if (num_cores > 1 and B >= 8 * num_cores) else 1
    B_p = _round_up(B, 8 * nb)
    Bb = B_p // nb

    # Time blocking (amortizes ~0.35us/grid-step); non-divisible T handled by masking.
    Tc = max(1, min(int(time_block), T))
    nt = -(-T // Tc)
    T_pad = nt * Tc

    p0, p1 = params["lstm"][0], params["lstm"][1]

    # Weights in right-multiply layout, gate-wise padded H -> Hp (gate order i,f,g,o kept).
    wih0T = _pad_gate_axis(p0["w_ih"].T, H, Hp, 1).astype(cdt)                     # (V, 4Hp)
    whh0T = _pad_dim(_pad_gate_axis(p0["w_hh"].T, H, Hp, 1), 0, Hp).astype(cdt)    # (Hp, 4Hp)
    b0 = _pad_gate_axis((p0["b_ih"] + p0["b_hh"]).reshape(1, 4 * H), H, Hp, 1).astype(jnp.float32)
    # Layer 1: fuse the two matmuls into one (2Hp, 4Hp) weight.
    wih1T = _pad_dim(_pad_gate_axis(p1["w_ih"].T, H, Hp, 1), 0, Hp)
    whh1T = _pad_dim(_pad_gate_axis(p1["w_hh"].T, H, Hp, 1), 0, Hp)
    w1cat = jnp.concatenate([wih1T, whh1T], axis=0).astype(cdt)                    # (2Hp, 4Hp)
    b1 = _pad_gate_axis((p1["b_ih"] + p1["b_hh"]).reshape(1, 4 * H), H, Hp, 1).astype(jnp.float32)
    wfcT = _pad_dim(_pad_dim(params["fc"]["w"].T, 0, Hp), 1, Vp).astype(cdt)       # (Hp, Vp)
    bfc = _pad_dim(params["fc"]["b"].reshape(1, V), 1, Vp).astype(jnp.float32)     # (1, Vp)

    # x -> time-major, padded (time/batch), flattened to 2-D rows ordered (core, t, b) so
    # every in-kernel access is an aligned 2-D tile (no in-kernel reshape/transpose).
    # (The only wrapper transpose left is of the small (B,T,V) input; the large 4H-wide
    #  gx0 tensor and the big output transpose round trip are gone.)
    x_tbd = jnp.pad(jnp.transpose(x_btd, (1, 0, 2)),
                    ((0, T_pad - T), (0, B_p - B), (0, 0))).astype(cdt)            # (T_pad, B_p, V)
    if nb == 1:
        x_flat = x_tbd.reshape(T_pad * B_p, V)
    else:
        x_flat = (x_tbd.reshape(T_pad, nb, Bb, V).transpose(1, 0, 2, 3)
                  .reshape(nb * T_pad * Bb, V))

    h0_p = jnp.pad(h0_all.astype(jnp.float32), ((0, 0), (0, B_p - B), (0, Hp - H)))
    c0_p = jnp.pad(c0_all.astype(jnp.float32), ((0, 0), (0, B_p - B), (0, Hp - H)))

    out_dtype = x_btd.dtype
    rows_blk = Tc * Bb
    n_rows = nb * T_pad * Bb

    # VMEM footprint estimate -> explicit scoped-VMEM limit.
    cbytes = np.dtype(cdt).itemsize
    iobytes = np.dtype(out_dtype).itemsize
    w_bytes = (V * H4 + Hp * H4 + 2 * Hp * H4 + Hp * Vp) * cbytes + (2 * H4 + Vp) * 4
    blk_bytes = (rows_blk * V * cbytes + rows_blk * Vp * iobytes
                 + 2 * 2 * Bb * Hp * 4 + 2 * 2 * Bb * Hp * iobytes)
    scratch_bytes = (rows_blk * H4 + rows_blk * Hp + 4 * Bb * Hp) * 4

    def build(single_buf):
        est = (1 if single_buf else 2) * w_bytes + 2 * blk_bytes + scratch_bytes
        vmem_limit = _vmem_limit_bytes(est)
        wkw = dict(pipeline_mode=pl.Buffered(1)) if single_buf else {}

        def wspec(shape):  # grid-invariant weights/biases (optionally single-buffered)
            return pl.BlockSpec(shape, lambda b, t: (0,) * len(shape), **wkw)

        kernel = _make_charlstm_kernel(Tc=Tc, Bb=Bb, Hp=Hp, Vp=Vp,
                                       T_true=T, T_pad=T_pad, cdt=cdt)
        return pl.pallas_call(
            kernel,
            out_shape=(jax.ShapeDtypeStruct((n_rows, Vp), out_dtype),
                       jax.ShapeDtypeStruct((2, B_p, Hp), out_dtype),
                       jax.ShapeDtypeStruct((2, B_p, Hp), out_dtype)),
            grid_spec=pltpu.PrefetchScalarGridSpec(
                num_scalar_prefetch=0,
                grid=(nb, nt),
                in_specs=[
                    pl.BlockSpec((rows_blk, V), lambda b, t: (b * nt + t, 0)),   # x
                    wspec((V, H4)),        # wih0T
                    wspec((1, H4)),        # b0
                    wspec((Hp, H4)),       # whh0T
                    wspec((2 * Hp, H4)),   # w1cat
                    wspec((1, H4)),        # b1
                    wspec((Hp, Vp)),       # wfcT
                    wspec((1, Vp)),        # bfc
                    pl.BlockSpec((2, Bb, Hp), lambda b, t: (0, b, 0)),           # h0
                    pl.BlockSpec((2, Bb, Hp), lambda b, t: (0, b, 0)),           # c0
                ],
                out_specs=[
                    pl.BlockSpec((rows_blk, Vp), lambda b, t: (b * nt + t, 0)),  # logits
                    pl.BlockSpec((2, Bb, Hp), lambda b, t: (0, b, 0)),           # h_n
                    pl.BlockSpec((2, Bb, Hp), lambda b, t: (0, b, 0)),           # c_n
                ],
                scratch_shapes=[
                    pltpu.VMEM((rows_blk, H4), jnp.float32),   # hoisted layer-0 gates
                    pltpu.VMEM((rows_blk, Hp), jnp.float32),   # staged layer-1 h (FC input)
                    pltpu.VMEM((Bb, Hp), jnp.float32),         # h, layer 0
                    pltpu.VMEM((Bb, Hp), jnp.float32),         # c, layer 0
                    pltpu.VMEM((Bb, Hp), jnp.float32),         # h, layer 1
                    pltpu.VMEM((Bb, Hp), jnp.float32),         # c, layer 1
                ]),
            compiler_params=pltpu.CompilerParams(
                dimension_semantics=("parallel", "arbitrary"),
                vmem_limit_bytes=vmem_limit),
        )

    args = (x_flat, wih0T, b0, whh0T, w1cat, b1, wfcT, bfc, h0_p, c0_p)
    try:
        outs = build(single_buffer_weights)(*args)
        outs = jax.block_until_ready(outs)
    except Exception:
        if not single_buffer_weights:
            raise
        # pl.Buffered(1) single-buffering not supported by this JAX/Mosaic build ->
        # fall back to default double buffering (identical semantics).
        outs = build(False)(*args)
    out_flat, h_n_p, c_n_p = outs

    if nb == 1:
        out_tbv = out_flat.reshape(T_pad, B_p, Vp)
    else:
        out_tbv = (out_flat.reshape(nb, T_pad, Bb, Vp).transpose(1, 0, 2, 3)
                   .reshape(T_pad, B_p, Vp))
    # One fused XLA copy: drop time/batch/lane padding, go batch-major, flatten rows (b*T + t).
    out = jnp.transpose(out_tbv[:T, :B, :V], (1, 0, 2)).reshape(B * T, V)
    h_n = h_n_p[:, :B, :H]
    c_n = c_n_p[:, :B, :H]
    return out, (h_n, c_n)


# ----------------------------------------------------------------------------
# Pure-JAX reference (for verification)
# ----------------------------------------------------------------------------
def charlstm_reference(params, x_btd, hidden):
    h0_all, c0_all = hidden
    n_layers = h0_all.shape[0]
    H = h0_all.shape[-1]

    def layer_step(p, carry, x_t):
        h, c = carry
        gates = x_t @ p["w_ih"].T + p["b_ih"] + h @ p["w_hh"].T + p["b_hh"]
        i_g, f_g, g_g, o_g = jnp.split(gates, 4, axis=-1)
        i_g = jax.nn.sigmoid(i_g)
        f_g = jax.nn.sigmoid(f_g)
        g_g = jnp.tanh(g_g)
        o_g = jax.nn.sigmoid(o_g)
        c_new = f_g * c + i_g * g_g
        h_new = o_g * jnp.tanh(c_new)
        return (h_new, c_new), h_new

    x_tbd = jnp.transpose(x_btd, (1, 0, 2))
    layer_in = x_tbd
    h_fs, c_fs = [], []
    for l in range(n_layers):
        p = params["lstm"][l]
        (hT, cT), y = lax.scan(functools.partial(layer_step, p),
                               (h0_all[l], c0_all[l]), layer_in)
        layer_in = y
        h_fs.append(hT)
        c_fs.append(cT)
    r_output = jnp.transpose(layer_in, (1, 0, 2))
    flat = r_output.reshape(-1, H)
    out = flat @ params["fc"]["w"].T + params["fc"]["b"]
    return out, (jnp.stack(h_fs), jnp.stack(c_fs))


# ----------------------------------------------------------------------------
# Deterministic parameter init (shapes match nn.LSTM / nn.Linear)
# ----------------------------------------------------------------------------
def init_params(key, vocab, n_hidden, n_layers):
    params = {"lstm": [], "fc": {}}
    scale = 1.0 / np.sqrt(n_hidden)
    for l in range(n_layers):
        d_in = vocab if l == 0 else n_hidden
        key, k1, k2, k3, k4 = jax.random.split(key, 5)
        params["lstm"].append({
            "w_ih": jax.random.uniform(k1, (4 * n_hidden, d_in), jnp.float32, -scale, scale),
            "w_hh": jax.random.uniform(k2, (4 * n_hidden, n_hidden), jnp.float32, -scale, scale),
            "b_ih": jax.random.uniform(k3, (4 * n_hidden,), jnp.float32, -scale, scale),
            "b_hh": jax.random.uniform(k4, (4 * n_hidden,), jnp.float32, -scale, scale),
        })
    key, k1, k2 = jax.random.split(key, 3)
    params["fc"]["w"] = jax.random.uniform(k1, (vocab, n_hidden), jnp.float32, -scale, scale)
    params["fc"]["b"] = jax.random.uniform(k2, (vocab,), jnp.float32, -scale, scale)
    return params


if __name__ == "__main__":
    # Small shapes: vocab (len(tokens)) = 16, hidden = 32, layers = 2, batch = 2, seq = 8
    VOCAB, HIDDEN, LAYERS, BATCH, SEQ = 16, 32, 2, 2, 8

    key = jax.random.PRNGKey(0)
    key, kp, kx = jax.random.split(key, 3)
    params = init_params(kp, VOCAB, HIDDEN, LAYERS)

    # Character-feature input (B, T, vocab), zero-init hidden like init_hidden().
    x = jax.random.normal(kx, (BATCH, SEQ, VOCAB), jnp.float32)
    h0 = jnp.zeros((LAYERS, BATCH, HIDDEN), jnp.float32)
    c0 = jnp.zeros((LAYERS, BATCH, HIDDEN), jnp.float32)

    out_ref, (h_ref, c_ref) = charlstm_reference(params, x, (h0, c0))

    # f32 path, time_block=3: T=8 is padded to 9 -> 3 time blocks; exercises the
    # cross-block state carry AND the padded-tail masking. Near-exact vs reference.
    out, (h_n, c_n) = charlstm_forward(params, x, (h0, c0),
                                       time_block=3, compute_dtype=jnp.float32)
    out, h_n, c_n = jax.block_until_ready((out, h_n, c_n))
    np.testing.assert_allclose(np.asarray(out), np.asarray(out_ref), atol=2e-4, rtol=2e-4)
    np.testing.assert_allclose(np.asarray(h_n), np.asarray(h_ref), atol=2e-4, rtol=2e-4)
    np.testing.assert_allclose(np.asarray(c_n), np.asarray(c_ref), atol=2e-4, rtol=2e-4)
    assert out.shape == (BATCH * SEQ, VOCAB)
    assert h_n.shape == (LAYERS, BATCH, HIDDEN) and c_n.shape == (LAYERS, BATCH, HIDDEN)

    # Default performance path: bf16 matmul inputs/weights, f32 accumulation and state.
    # Only a precision change vs the reference -> relaxed tolerances.
    out_bf, (h_bf, c_bf) = charlstm_forward(params, x, (h0, c0))
    out_bf, h_bf, c_bf = jax.block_until_ready((out_bf, h_bf, c_bf))
    np.testing.assert_allclose(np.asarray(out_bf), np.asarray(out_ref), atol=1e-1, rtol=1e-1)
    np.testing.assert_allclose(np.asarray(h_bf), np.asarray(h_ref), atol=1e-1, rtol=1e-1)
    np.testing.assert_allclose(np.asarray(c_bf), np.asarray(c_ref), atol=1e-1, rtol=1e-1)

    print("KERNEL_OK")
</pallas_src>

<mosaic_0001>
module attributes {stable_mosaic.version = 11 : i64} {
  func.func @kernel(%arg0: i32, %arg1: i32, %arg2: memref<24x16xf32, #tpu.memory_space<vmem>>, %arg3: memref<16x512xf32, #tpu.memory_space<vmem>>, %arg4: memref<1x512xf32, #tpu.memory_space<vmem>>, %arg5: memref<128x512xf32, #tpu.memory_space<vmem>>, %arg6: memref<256x512xf32, #tpu.memory_space<vmem>>, %arg7: memref<1x512xf32, #tpu.memory_space<vmem>>, %arg8: memref<128x128xf32, #tpu.memory_space<vmem>>, %arg9: memref<1x128xf32, #tpu.memory_space<vmem>>, %arg10: memref<2x8x128xf32, #tpu.memory_space<vmem>>, %arg11: memref<2x8x128xf32, #tpu.memory_space<vmem>>, %arg12: memref<24x128xf32, #tpu.memory_space<vmem>>, %arg13: memref<2x8x128xf32, #tpu.memory_space<vmem>>, %arg14: memref<2x8x128xf32, #tpu.memory_space<vmem>>, %arg15: memref<24x512xf32, #tpu.memory_space<vmem>>, %arg16: memref<24x128xf32, #tpu.memory_space<vmem>>, %arg17: memref<8x128xf32, #tpu.memory_space<vmem>>, %arg18: memref<8x128xf32, #tpu.memory_space<vmem>>, %arg19: memref<8x128xf32, #tpu.memory_space<vmem>>, %arg20: memref<8x128xf32, #tpu.memory_space<vmem>>) attributes {dimension_semantics = [#tpu.dimension_semantics<parallel>, #tpu.dimension_semantics<arbitrary>], iteration_bounds = array<i64: 1, 3>, scalar_prefetch = 0 : i64, scratch_operands = 6 : i64, tpu.core_type = #tpu.core_type<tc>, window_params = [{transform_indices = @transform_0, window_bounds = array<i64: 24, 16>}, {pipeline_mode = #tpu.pipeline_mode<synchronous>, transform_indices = @transform_1, window_bounds = array<i64: 16, 512>}, {pipeline_mode = #tpu.pipeline_mode<synchronous>, transform_indices = @transform_2, window_bounds = array<i64: 1, 512>}, {pipeline_mode = #tpu.pipeline_mode<synchronous>, transform_indices = @transform_3, window_bounds = array<i64: 128, 512>}, {pipeline_mode = #tpu.pipeline_mode<synchronous>, transform_indices = @transform_4, window_bounds = array<i64: 256, 512>}, {pipeline_mode = #tpu.pipeline_mode<synchronous>, transform_indices = @transform_5, window_bounds = array<i64: 1, 512>}, {pipeline_mode = #tpu.pipeline_mode<synchronous>, transform_indices = @transform_6, window_bounds = array<i64: 128, 128>}, {pipeline_mode = #tpu.pipeline_mode<synchronous>, transform_indices = @transform_7, window_bounds = array<i64: 1, 128>}, {transform_indices = @transform_8, window_bounds = array<i64: 2, 8, 128>}, {transform_indices = @transform_9, window_bounds = array<i64: 2, 8, 128>}, {transform_indices = @transform_10, window_bounds = array<i64: 24, 128>}, {transform_indices = @transform_11, window_bounds = array<i64: 2, 8, 128>}, {transform_indices = @transform_12, window_bounds = array<i64: 2, 8, 128>}]} {
    %c0_i32 = arith.constant 0 : i32
    %0 = arith.cmpi eq, %arg1, %c0_i32 : i32
    %1 = arith.extui %0 : i1 to i32
    %c0_i32_0 = arith.constant 0 : i32
    %2 = arith.cmpi ne, %1, %c0_i32_0 : i32
    scf.if %2 {
      %c0_147 = arith.constant 0 : index
      %c0_148 = arith.constant 0 : index
      %c0_149 = arith.constant 0 : index
      %275 = vector.load %arg10[%c0_147, %c0_148, %c0_149] : memref<2x8x128xf32, #tpu.memory_space<vmem>>, vector<1x8x128xf32>
      %276 = vector.shape_cast %275 : vector<1x8x128xf32> to vector<8x128xf32>
      %c0_150 = arith.constant 0 : index
      %c0_151 = arith.constant 0 : index
      %277 = vector.load %arg17[%c0_150, %c0_151] : memref<8x128xf32, #tpu.memory_space<vmem>>, vector<8x128xf32>
      tpu.vector_store %arg17[%c0_150, %c0_151], %276 {strides = array<i32>} : memref<8x128xf32, #tpu.memory_space<vmem>>, vector<8x128xf32>,
      %c0_152 = arith.constant 0 : index
      %c0_153 = arith.constant 0 : index
      %c0_154 = arith.constant 0 : index
      %278 = vector.load %arg11[%c0_152, %c0_153, %c0_154] : memref<2x8x128xf32, #tpu.memory_space<vmem>>, vector<1x8x128xf32>
      %279 = vector.shape_cast %278 : vector<1x8x128xf32> to vector<8x128xf32>
      %c0_155 = arith.constant 0 : index
      %c0_156 = arith.constant 0 : index
      %280 = vector.load %arg18[%c0_155, %c0_156] : memref<8x128xf32, #tpu.memory_space<vmem>>, vector<8x128xf32>
      tpu.vector_store %arg18[%c0_155, %c0_156], %279 {strides = array<i32>} : memref<8x128xf32, #tpu.memory_space<vmem>>, vector<8x128xf32>,
      %c1 = arith.constant 1 : index
      %c0_157 = arith.constant 0 : index
      %c0_158 = arith.constant 0 : index
      %281 = vector.load %arg10[%c1, %c0_157, %c0_158] : memref<2x8x128xf32, #tpu.memory_space<vmem>>, vector<1x8x128xf32>
      %282 = vector.shape_cast %281 : vector<1x8x128xf32> to vector<8x128xf32>
      %c0_159 = arith.constant 0 : index
      %c0_160 = arith.constant 0 : index
      %283 = vector.load %arg19[%c0_159, %c0_160] : memref<8x128xf32, #tpu.memory_space<vmem>>, vector<8x128xf32>
      tpu.vector_store %arg19[%c0_159, %c0_160], %282 {strides = array<i32>} : memref<8x128xf32, #tpu.memory_space<vmem>>, vector<8x128xf32>,
      %c1_161 = arith.constant 1 : index
      %c0_162 = arith.constant 0 : index
      %c0_163 = arith.constant 0 : index
      %284 = vector.load %arg11[%c1_161, %c0_162, %c0_163] : memref<2x8x128xf32, #tpu.memory_space<vmem>>, vector<1x8x128xf32>
      %285 = vector.shape_cast %284 : vector<1x8x128xf32> to vector<8x128xf32>
      %c0_164 = arith.constant 0 : index
      %c0_165 = arith.constant 0 : index
      %286 = vector.load %arg20[%c0_164, %c0_165] : memref<8x128xf32, #tpu.memory_space<vmem>>, vector<8x128xf32>
      tpu.vector_store %arg20[%c0_164, %c0_165], %285 {strides = array<i32>} : memref<8x128xf32, #tpu.memory_space<vmem>>, vector<8x128xf32>,
    } else {
    }
    %c0 = arith.constant 0 : index
    %c0_1 = arith.constant 0 : index
    %3 = vector.load %arg2[%c0, %c0_1] : memref<24x16xf32, #tpu.memory_space<vmem>>, vector<24x16xf32>
    %c0_2 = arith.constant 0 : index
    %c0_3 = arith.constant 0 : index
    %4 = vector.load %arg3[%c0_2, %c0_3] : memref<16x512xf32, #tpu.memory_space<vmem>>, vector<16x512xf32>
    %cst = arith.constant dense<0.000000e+00> : vector<24x512xf32>
    %5 = tpu.matmul %3, %4, %cst {dimension_numbers = #tpu.dot_dimension_numbers<[1], [0], [0], [1], [0, 0, 1, 1], [], []>} : vector<24x16xf32>, vector<16x512xf32>, vector<24x512xf32> -> vector<24x512xf32>
    %c0_4 = arith.constant 0 : index
    %c0_5 = arith.constant 0 : index
    %6 = vector.load %arg4[%c0_4, %c0_5] : memref<1x512xf32, #tpu.memory_space<vmem>>, vector<1x512xf32>
    %7 = vector.broadcast %6 : vector<1x512xf32> to vector<24x512xf32>
    %8 = arith.addf %5, %7 : vector<24x512xf32>
    %c0_6 = arith.constant 0 : index
    %c0_7 = arith.constant 0 : index
    %9 = vector.load %arg15[%c0_6, %c0_7] : memref<24x512xf32, #tpu.memory_space<vmem>>, vector<24x512xf32>
    tpu.vector_store %arg15[%c0_6, %c0_7], %8 {strides = array<i32>} : memref<24x512xf32, #tpu.memory_space<vmem>>, vector<24x512xf32>,
    %c0_8 = arith.constant 0 : index
    %c0_9 = arith.constant 0 : index
    %10 = vector.load %arg7[%c0_8, %c0_9] : memref<1x512xf32, #tpu.memory_space<vmem>>, vector<1x512xf32>
    %11 = vector.shape_cast %10 : vector<1x512xf32> to vector<1x512xf32>
    %12 = vector.broadcast %11 : vector<1x512xf32> to vector<8x512xf32>
    %c0_i32_10 = arith.constant 0 : i32
    %c8_i32 = arith.constant 8 : i32
    %13 = arith.muli %c0_i32_10, %c8_i32 : i32
    %14 = tpu.assume_multiple %13, 8 : i32
    %15 = arith.index_cast %14 : i32 to index
    %c0_11 = arith.constant 0 : index
    %16 = vector.load %arg15[%15, %c0_11] : memref<24x512xf32, #tpu.memory_space<vmem>>, vector<8x512xf32>
    %c0_12 = arith.constant 0 : index
    %c0_13 = arith.constant 0 : index
    %17 = vector.load %arg17[%c0_12, %c0_13] : memref<8x128xf32, #tpu.memory_space<vmem>>, vector<8x128xf32>
    %c0_14 = arith.constant 0 : index
    %c0_15 = arith.constant 0 : index
    %18 = vector.load %arg5[%c0_14, %c0_15] : memref<128x512xf32, #tpu.memory_space<vmem>>, vector<128x512xf32>
    %cst_16 = arith.constant dense<0.000000e+00> : vector<8x512xf32>
    %19 = tpu.matmul %17, %18, %cst_16 {dimension_numbers = #tpu.dot_dimension_numbers<[1], [0], [0], [1], [0, 0, 1, 1], [], []>} : vector<8x128xf32>, vector<128x512xf32>, vector<8x512xf32> -> vector<8x512xf32>
    %20 = arith.addf %16, %19 : vector<8x512xf32>
    %c0_17 = arith.constant 0 : index
    %c0_18 = arith.constant 0 : index
    %21 = vector.load %arg18[%c0_17, %c0_18] : memref<8x128xf32, #tpu.memory_space<vmem>>, vector<8x128xf32>
    %22 = vector.extract_strided_slice %20 {offsets = [0, 0], sizes = [8, 128], strides = [1, 1]} : vector<8x512xf32> to vector<8x128xf32>
    %23 = arith.negf %22 : vector<8x128xf32>
    %24 = math.exp %23 : vector<8x128xf32>
    %cst_19 = arith.constant 1.000000e+00 : f32
    %25 = vector.broadcast %cst_19 : f32 to vector<8x128xf32>
    %26 = arith.addf %25, %24 : vector<8x128xf32>
    %27 = arith.divf %25, %26 : vector<8x128xf32>
    %28 = vector.extract_strided_slice %20 {offsets = [0, 128], sizes = [8, 128], strides = [1, 1]} : vector<8x512xf32> to vector<8x128xf32>
    %29 = arith.negf %28 : vector<8x128xf32>
    %30 = math.exp %29 : vector<8x128xf32>
    %cst_20 = arith.constant 1.000000e+00 : f32
    %31 = vector.broadcast %cst_20 : f32 to vector<8x128xf32>
    %32 = arith.addf %31, %30 : vector<8x128xf32>
    %33 = arith.divf %31, %32 : vector<8x128xf32>
    %34 = vector.extract_strided_slice %20 {offsets = [0, 256], sizes = [8, 128], strides = [1, 1]} : vector<8x512xf32> to vector<8x128xf32>
    %35 = math.tanh %34 : vector<8x128xf32>
    %36 = vector.extract_strided_slice %20 {offsets = [0, 384], sizes = [8, 128], strides = [1, 1]} : vector<8x512xf32> to vector<8x128xf32>
    %37 = arith.negf %36 : vector<8x128xf32>
    %38 = math.exp %37 : vector<8x128xf32>
    %cst_21 = arith.constant 1.000000e+00 : f32
    %39 = vector.broadcast %cst_21 : f32 to vector<8x128xf32>
    %40 = arith.addf %39, %38 : vector<8x128xf32>
    %41 = arith.divf %39, %40 : vector<8x128xf32>
    %42 = arith.mulf %33, %21 : vector<8x128xf32>
    %43 = arith.mulf %27, %35 : vector<8x128xf32>
    %44 = arith.addf %42, %43 : vector<8x128xf32>
    %45 = math.tanh %44 : vector<8x128xf32>
    %46 = arith.mulf %41, %45 : vector<8x128xf32>
    %c0_22 = arith.constant 0 : index
    %c0_23 = arith.constant 0 : index
    %47 = vector.load %arg19[%c0_22, %c0_23] : memref<8x128xf32, #tpu.memory_space<vmem>>, vector<8x128xf32>
    %48 = tpu.concatenate %46, %47 in 1 : vector<8x128xf32>, vector<8x128xf32> -> vector<8x256xf32>
    %c0_24 = arith.constant 0 : index
    %c0_25 = arith.constant 0 : index
    %49 = vector.load %arg6[%c0_24, %c0_25] : memref<256x512xf32, #tpu.memory_space<vmem>>, vector<256x512xf32>
    %cst_26 = arith.constant dense<0.000000e+00> : vector<8x512xf32>
    %50 = tpu.matmul %48, %49, %cst_26 {dimension_numbers = #tpu.dot_dimension_numbers<[1], [0], [0], [1], [0, 0, 1, 1], [], []>} : vector<8x256xf32>, vector<256x512xf32>, vector<8x512xf32> -> vector<8x512xf32>
    %51 = arith.addf %50, %12 : vector<8x512xf32>
    %c0_27 = arith.constant 0 : index
    %c0_28 = arith.constant 0 : index
    %52 = vector.load %arg20[%c0_27, %c0_28] : memref<8x128xf32, #tpu.memory_space<vmem>>, vector<8x128xf32>
    %53 = vector.extract_strided_slice %51 {offsets = [0, 0], sizes = [8, 128], strides = [1, 1]} : vector<8x512xf32> to vector<8x128xf32>
    %54 = arith.negf %53 : vector<8x128xf32>
    %55 = math.exp %54 : vector<8x128xf32>
    %cst_29 = arith.constant 1.000000e+00 : f32
    %56 = vector.broadcast %cst_29 : f32 to vector<8x128xf32>
    %57 = arith.addf %56, %55 : vector<8x128xf32>
    %58 = arith.divf %56, %57 : vector<8x128xf32>
    %59 = vector.extract_strided_slice %51 {offsets = [0, 128], sizes = [8, 128], strides = [1, 1]} : vector<8x512xf32> to vector<8x128xf32>
    %60 = arith.negf %59 : vector<8x128xf32>
    %61 = math.exp %60 : vector<8x128xf32>
    %cst_30 = arith.constant 1.000000e+00 : f32
    %62 = vector.broadcast %cst_30 : f32 to vector<8x128xf32>
    %63 = arith.addf %62, %61 : vector<8x128xf32>
    %64 = arith.divf %62, %63 : vector<8x128xf32>
    %65 = vector.extract_strided_slice %51 {offsets = [0, 256], sizes = [8, 128], strides = [1, 1]} : vector<8x512xf32> to vector<8x128xf32>
    %66 = math.tanh %65 : vector<8x128xf32>
    %67 = vector.extract_strided_slice %51 {offsets = [0, 384], sizes = [8, 128], strides = [1, 1]} : vector<8x512xf32> to vector<8x128xf32>
    %68 = arith.negf %67 : vector<8x128xf32>
    %69 = math.exp %68 : vector<8x128xf32>
    %cst_31 = arith.constant 1.000000e+00 : f32
    %70 = vector.broadcast %cst_31 : f32 to vector<8x128xf32>
    %71 = arith.addf %70, %69 : vector<8x128xf32>
    %72 = arith.divf %70, %71 : vector<8x128xf32>
    %73 = arith.mulf %64, %52 : vector<8x128xf32>
    %74 = arith.mulf %58, %66 : vector<8x128xf32>
    %75 = arith.addf %73, %74 : vector<8x128xf32>
    %76 = math.tanh %75 : vector<8x128xf32>
    %77 = arith.mulf %72, %76 : vector<8x128xf32>
    %c3_i32 = arith.constant 3 : i32
    %78 = arith.muli %arg1, %c3_i32 : i32
    %79 = arith.addi %78, %c0_i32_10 : i32
    %c8_i32_32 = arith.constant 8 : i32
    %80 = arith.cmpi slt, %79, %c8_i32_32 : i32
    %c0_33 = arith.constant 0 : index
    %c0_34 = arith.constant 0 : index
    %81 = vector.load %arg17[%c0_33, %c0_34] : memref<8x128xf32, #tpu.memory_space<vmem>>, vector<8x128xf32>
    %82 = arith.select %80, %46, %81 : vector<8x128xf32>
    %c0_35 = arith.constant 0 : index
    %c0_36 = arith.constant 0 : index
    %83 = vector.load %arg18[%c0_35, %c0_36] : memref<8x128xf32, #tpu.memory_space<vmem>>, vector<8x128xf32>
    %84 = arith.select %80, %44, %83 : vector<8x128xf32>
    %c0_37 = arith.constant 0 : index
    %c0_38 = arith.constant 0 : index
    %85 = vector.load %arg19[%c0_37, %c0_38] : memref<8x128xf32, #tpu.memory_space<vmem>>, vector<8x128xf32>
    %86 = arith.select %80, %77, %85 : vector<8x128xf32>
    %c0_39 = arith.constant 0 : index
    %c0_40 = arith.constant 0 : index
    %87 = vector.load %arg20[%c0_39, %c0_40] : memref<8x128xf32, #tpu.memory_space<vmem>>, vector<8x128xf32>
    %88 = arith.select %80, %75, %87 : vector<8x128xf32>
    %c0_41 = arith.constant 0 : index
    %c0_42 = arith.constant 0 : index
    %89 = vector.load %arg17[%c0_41, %c0_42] : memref<8x128xf32, #tpu.memory_space<vmem>>, vector<8x128xf32>
    tpu.vector_store %arg17[%c0_41, %c0_42], %82 {strides = array<i32>} : memref<8x128xf32, #tpu.memory_space<vmem>>, vector<8x128xf32>,
    %c0_43 = arith.constant 0 : index
    %c0_44 = arith.constant 0 : index
    %90 = vector.load %arg18[%c0_43, %c0_44] : memref<8x128xf32, #tpu.memory_space<vmem>>, vector<8x128xf32>
    tpu.vector_store %arg18[%c0_43, %c0_44], %84 {strides = array<i32>} : memref<8x128xf32, #tpu.memory_space<vmem>>, vector<8x128xf32>,
    %c0_45 = arith.constant 0 : index
    %c0_46 = arith.constant 0 : index
    %91 = vector.load %arg19[%c0_45, %c0_46] : memref<8x128xf32, #tpu.memory_space<vmem>>, vector<8x128xf32>
    tpu.vector_store %arg19[%c0_45, %c0_46], %86 {strides = array<i32>} : memref<8x128xf32, #tpu.memory_space<vmem>>, vector<8x128xf32>,
    %c0_47 = arith.constant 0 : index
    %c0_48 = arith.constant 0 : index
    %92 = vector.load %arg20[%c0_47, %c0_48] : memref<8x128xf32, #tpu.memory_space<vmem>>, vector<8x128xf32>
    tpu.vector_store %arg20[%c0_47, %c0_48], %88 {strides = array<i32>} : memref<8x128xf32, #tpu.memory_space<vmem>>, vector<8x128xf32>,
    %c8_i32_49 = arith.constant 8 : i32
    %93 = arith.muli %c0_i32_10, %c8_i32_49 : i32
    %94 = tpu.assume_multiple %93, 8 : i32
    %95 = arith.index_cast %94 : i32 to index
    %c0_50 = arith.constant 0 : index
    %96 = vector.load %arg16[%95, %c0_50] : memref<24x128xf32, #tpu.memory_space<vmem>>, vector<8x128xf32>
    tpu.vector_store %arg16[%95, %c0_50], %86 {strides = array<i32>} : memref<24x128xf32, #tpu.memory_space<vmem>>, vector<8x128xf32>,
    %c1_i32 = arith.constant 1 : i32
    %c8_i32_51 = arith.constant 8 : i32
    %97 = arith.muli %c1_i32, %c8_i32_51 : i32
    %98 = tpu.assume_multiple %97, 8 : i32
    %99 = arith.index_cast %98 : i32 to index
    %c0_52 = arith.constant 0 : index
    %100 = vector.load %arg15[%99, %c0_52] : memref<24x512xf32, #tpu.memory_space<vmem>>, vector<8x512xf32>
    %c0_53 = arith.constant 0 : index
    %c0_54 = arith.constant 0 : index
    %101 = vector.load %arg17[%c0_53, %c0_54] : memref<8x128xf32, #tpu.memory_space<vmem>>, vector<8x128xf32>
    %c0_55 = arith.constant 0 : index
    %c0_56 = arith.constant 0 : index
    %102 = vector.load %arg5[%c0_55, %c0_56] : memref<128x512xf32, #tpu.memory_space<vmem>>, vector<128x512xf32>
    %cst_57 = arith.constant dense<0.000000e+00> : vector<8x512xf32>
    %103 = tpu.matmul %101, %102, %cst_57 {dimension_numbers = #tpu.dot_dimension_numbers<[1], [0], [0], [1], [0, 0, 1, 1], [], []>} : vector<8x128xf32>, vector<128x512xf32>, vector<8x512xf32> -> vector<8x512xf32>
    %104 = arith.addf %100, %103 : vector<8x512xf32>
    %c0_58 = arith.constant 0 : index
    %c0_59 = arith.constant 0 : index
    %105 = vector.load %arg18[%c0_58, %c0_59] : memref<8x128xf32, #tpu.memory_space<vmem>>, vector<8x128xf32>
    %106 = vector.extract_strided_slice %104 {offsets = [0, 0], sizes = [8, 128], strides = [1, 1]} : vector<8x512xf32> to vector<8x128xf32>
    %107 = arith.negf %106 : vector<8x128xf32>
    %108 = math.exp %107 : vector<8x128xf32>
    %cst_60 = arith.constant 1.000000e+00 : f32
    %109 = vector.broadcast %cst_60 : f32 to vector<8x128xf32>
    %110 = arith.addf %109, %108 : vector<8x128xf32>
    %111 = arith.divf %109, %110 : vector<8x128xf32>
    %112 = vector.extract_strided_slice %104 {offsets = [0, 128], sizes = [8, 128], strides = [1, 1]} : vector<8x512xf32> to vector<8x128xf32>
    %113 = arith.negf %112 : vector<8x128xf32>
    %114 = math.exp %113 : vector<8x128xf32>
    %cst_61 = arith.constant 1.000000e+00 : f32
    %115 = vector.broadcast %cst_61 : f32 to vector<8x128xf32>
    %116 = arith.addf %115, %114 : vector<8x128xf32>
    %117 = arith.divf %115, %116 : vector<8x128xf32>
    %118 = vector.extract_strided_slice %104 {offsets = [0, 256], sizes = [8, 128], strides = [1, 1]} : vector<8x512xf32> to vector<8x128xf32>
    %119 = math.tanh %118 : vector<8x128xf32>
    %120 = vector.extract_strided_slice %104 {offsets = [0, 384], sizes = [8, 128], strides = [1, 1]} : vector<8x512xf32> to vector<8x128xf32>
    %121 = arith.negf %120 : vector<8x128xf32>
    %122 = math.exp %121 : vector<8x128xf32>
    %cst_62 = arith.constant 1.000000e+00 : f32
    %123 = vector.broadcast %cst_62 : f32 to vector<8x128xf32>
    %124 = arith.addf %123, %122 : vector<8x128xf32>
    %125 = arith.divf %123, %124 : vector<8x128xf32>
    %126 = arith.mulf %117, %105 : vector<8x128xf32>
    %127 = arith.mulf %111, %119 : vector<8x128xf32>
    %128 = arith.addf %126, %127 : vector<8x128xf32>
    %129 = math.tanh %128 : vector<8x128xf32>
    %130 = arith.mulf %125, %129 : vector<8x128xf32>
    %c0_63 = arith.constant 0 : index
    %c0_64 = arith.constant 0 : index
    %131 = vector.load %arg19[%c0_63, %c0_64] : memref<8x128xf32, #tpu.memory_space<vmem>>, vector<8x128xf32>
    %132 = tpu.concatenate %130, %131 in 1 : vector<8x128xf32>, vector<8x128xf32> -> vector<8x256xf32>
    %c0_65 = arith.constant 0 : index
    %c0_66 = arith.constant 0 : index
    %133 = vector.load %arg6[%c0_65, %c0_66] : memref<256x512xf32, #tpu.memory_space<vmem>>, vector<256x512xf32>
    %cst_67 = arith.constant dense<0.000000e+00> : vector<8x512xf32>
    %134 = tpu.matmul %132, %133, %cst_67 {dimension_numbers = #tpu.dot_dimension_numbers<[1], [0], [0], [1], [0, 0, 1, 1], [], []>} : vector<8x256xf32>, vector<256x512xf32>, vector<8x512xf32> -> vector<8x512xf32>
    %135 = arith.addf %134, %12 : vector<8x512xf32>
    %c0_68 = arith.constant 0 : index
    %c0_69 = arith.constant 0 : index
    %136 = vector.load %arg20[%c0_68, %c0_69] : memref<8x128xf32, #tpu.memory_space<vmem>>, vector<8x128xf32>
    %137 = vector.extract_strided_slice %135 {offsets = [0, 0], sizes = [8, 128], strides = [1, 1]} : vector<8x512xf32> to vector<8x128xf32>
    %138 = arith.negf %137 : vector<8x128xf32>
    %139 = math.exp %138 : vector<8x128xf32>
    %cst_70 = arith.constant 1.000000e+00 : f32
    %140 = vector.broadcast %cst_70 : f32 to vector<8x128xf32>
    %141 = arith.addf %140, %139 : vector<8x128xf32>
    %142 = arith.divf %140, %141 : vector<8x128xf32>
    %143 = vector.extract_strided_slice %135 {offsets = [0, 128], sizes = [8, 128], strides = [1, 1]} : vector<8x512xf32> to vector<8x128xf32>
    %144 = arith.negf %143 : vector<8x128xf32>
    %145 = math.exp %144 : vector<8x128xf32>
    %cst_71 = arith.constant 1.000000e+00 : f32
    %146 = vector.broadcast %cst_71 : f32 to vector<8x128xf32>
    %147 = arith.addf %146, %145 : vector<8x128xf32>
    %148 = arith.divf %146, %147 : vector<8x128xf32>
    %149 = vector.extract_strided_slice %135 {offsets = [0, 256], sizes = [8, 128], strides = [1, 1]} : vector<8x512xf32> to vector<8x128xf32>
    %150 = math.tanh %149 : vector<8x128xf32>
    %151 = vector.extract_strided_slice %135 {offsets = [0, 384], sizes = [8, 128], strides = [1, 1]} : vector<8x512xf32> to vector<8x128xf32>
    %152 = arith.negf %151 : vector<8x128xf32>
    %153 = math.exp %152 : vector<8x128xf32>
    %cst_72 = arith.constant 1.000000e+00 : f32
    %154 = vector.broadcast %cst_72 : f32 to vector<8x128xf32>
    %155 = arith.addf %154, %153 : vector<8x128xf32>
    %156 = arith.divf %154, %155 : vector<8x128xf32>
    %157 = arith.mulf %148, %136 : vector<8x128xf32>
    %158 = arith.mulf %142, %150 : vector<8x128xf32>
    %159 = arith.addf %157, %158 : vector<8x128xf32>
    %160 = math.tanh %159 : vector<8x128xf32>
    %161 = arith.mulf %156, %160 : vector<8x128xf32>
    %c3_i32_73 = arith.constant 3 : i32
    %162 = arith.muli %arg1, %c3_i32_73 : i32
    %163 = arith.addi %162, %c1_i32 : i32
    %c8_i32_74 = arith.constant 8 : i32
    %164 = arith.cmpi slt, %163, %c8_i32_74 : i32
    %c0_75 = arith.constant 0 : index
    %c0_76 = arith.constant 0 : index
    %165 = vector.load %arg17[%c0_75, %c0_76] : memref<8x128xf32, #tpu.memory_space<vmem>>, vector<8x128xf32>
    %166 = arith.select %164, %130, %165 : vector<8x128xf32>
    %c0_77 = arith.constant 0 : index
    %c0_78 = arith.constant 0 : index
    %167 = vector.load %arg18[%c0_77, %c0_78] : memref<8x128xf32, #tpu.memory_space<vmem>>, vector<8x128xf32>
    %168 = arith.select %164, %128, %167 : vector<8x128xf32>
    %c0_79 = arith.constant 0 : index
    %c0_80 = arith.constant 0 : index
    %169 = vector.load %arg19[%c0_79, %c0_80] : memref<8x128xf32, #tpu.memory_space<vmem>>, vector<8x128xf32>
    %170 = arith.select %164, %161, %169 : vector<8x128xf32>
    %c0_81 = arith.constant 0 : index
    %c0_82 = arith.constant 0 : index
    %171 = vector.load %arg20[%c0_81, %c0_82] : memref<8x128xf32, #tpu.memory_space<vmem>>, vector<8x128xf32>
    %172 = arith.select %164, %159, %171 : vector<8x128xf32>
    %c0_83 = arith.constant 0 : index
    %c0_84 = arith.constant 0 : index
    %173 = vector.load %arg17[%c0_83, %c0_84] : memref<8x128xf32, #tpu.memory_space<vmem>>, vector<8x128xf32>
    tpu.vector_store %arg17[%c0_83, %c0_84], %166 {strides = array<i32>} : memref<8x128xf32, #tpu.memory_space<vmem>>, vector<8x128xf32>,
    %c0_85 = arith.constant 0 : index
    %c0_86 = arith.constant 0 : index
    %174 = vector.load %arg18[%c0_85, %c0_86] : memref<8x128xf32, #tpu.memory_space<vmem>>, vector<8x128xf32>
    tpu.vector_store %arg18[%c0_85, %c0_86], %168 {strides = array<i32>} : memref<8x128xf32, #tpu.memory_space<vmem>>, vector<8x128xf32>,
    %c0_87 = arith.constant 0 : index
    %c0_88 = arith.constant 0 : index
    %175 = vector.load %arg19[%c0_87, %c0_88] : memref<8x128xf32, #tpu.memory_space<vmem>>, vector<8x128xf32>
    tpu.vector_store %arg19[%c0_87, %c0_88], %170 {strides = array<i32>} : memref<8x128xf32, #tpu.memory_space<vmem>>, vector<8x128xf32>,
    %c0_89 = arith.constant 0 : index
    %c0_90 = arith.constant 0 : index
    %176 = vector.load %arg20[%c0_89, %c0_90] : memref<8x128xf32, #tpu.memory_space<vmem>>, vector<8x128xf32>
    tpu.vector_store %arg20[%c0_89, %c0_90], %172 {strides = array<i32>} : memref<8x128xf32, #tpu.memory_space<vmem>>, vector<8x128xf32>,
    %c8_i32_91 = arith.constant 8 : i32
    %177 = arith.muli %c1_i32, %c8_i32_91 : i32
    %178 = tpu.assume_multiple %177, 8 : i32
    %179 = arith.index_cast %178 : i32 to index
    %c0_92 = arith.constant 0 : index
    %180 = vector.load %arg16[%179, %c0_92] : memref<24x128xf32, #tpu.memory_space<vmem>>, vector<8x128xf32>
    tpu.vector_store %arg16[%179, %c0_92], %170 {strides = array<i32>} : memref<24x128xf32, #tpu.memory_space<vmem>>, vector<8x128xf32>,
    %c2_i32 = arith.constant 2 : i32
    %c8_i32_93 = arith.constant 8 : i32
    %181 = arith.muli %c2_i32, %c8_i32_93 : i32
    %182 = tpu.assume_multiple %181, 8 : i32
    %183 = arith.index_cast %182 : i32 to index
    %c0_94 = arith.constant 0 : index
    %184 = vector.load %arg15[%183, %c0_94] : memref<24x512xf32, #tpu.memory_space<vmem>>, vector<8x512xf32>
    %c0_95 = arith.constant 0 : index
    %c0_96 = arith.constant 0 : index
    %185 = vector.load %arg17[%c0_95, %c0_96] : memref<8x128xf32, #tpu.memory_space<vmem>>, vector<8x128xf32>
    %c0_97 = arith.constant 0 : index
    %c0_98 = arith.constant 0 : index
    %186 = vector.load %arg5[%c0_97, %c0_98] : memref<128x512xf32, #tpu.memory_space<vmem>>, vector<128x512xf32>
    %cst_99 = arith.constant dense<0.000000e+00> : vector<8x512xf32>
    %187 = tpu.matmul %185, %186, %cst_99 {dimension_numbers = #tpu.dot_dimension_numbers<[1], [0], [0], [1], [0, 0, 1, 1], [], []>} : vector<8x128xf32>, vector<128x512xf32>, vector<8x512xf32> -> vector<8x512xf32>
    %188 = arith.addf %184, %187 : vector<8x512xf32>
    %c0_100 = arith.constant 0 : index
    %c0_101 = arith.constant 0 : index
    %189 = vector.load %arg18[%c0_100, %c0_101] : memref<8x128xf32, #tpu.memory_space<vmem>>, vector<8x128xf32>
    %190 = vector.extract_strided_slice %188 {offsets = [0, 0], sizes = [8, 128], strides = [1, 1]} : vector<8x512xf32> to vector<8x128xf32>
    %191 = arith.negf %190 : vector<8x128xf32>
    %192 = math.exp %191 : vector<8x128xf32>
    %cst_102 = arith.constant 1.000000e+00 : f32
    %193 = vector.broadcast %cst_102 : f32 to vector<8x128xf32>
    %194 = arith.addf %193, %192 : vector<8x128xf32>
    %195 = arith.divf %193, %194 : vector<8x128xf32>
    %196 = vector.extract_strided_slice %188 {offsets = [0, 128], sizes = [8, 128], strides = [1, 1]} : vector<8x512xf32> to vector<8x128xf32>
    %197 = arith.negf %196 : vector<8x128xf32>
    %198 = math.exp %197 : vector<8x128xf32>
    %cst_103 = arith.constant 1.000000e+00 : f32
    %199 = vector.broadcast %cst_103 : f32 to vector<8x128xf32>
    %200 = arith.addf %199, %198 : vector<8x128xf32>
    %201 = arith.divf %199, %200 : vector<8x128xf32>
    %202 = vector.extract_strided_slice %188 {offsets = [0, 256], sizes = [8, 128], strides = [1, 1]} : vector<8x512xf32> to vector<8x128xf32>
    %203 = math.tanh %202 : vector<8x128xf32>
    %204 = vector.extract_strided_slice %188 {offsets = [0, 384], sizes = [8, 128], strides = [1, 1]} : vector<8x512xf32> to vector<8x128xf32>
    %205 = arith.negf %204 : vector<8x128xf32>
    %206 = math.exp %205 : vector<8x128xf32>
    %cst_104 = arith.constant 1.000000e+00 : f32
    %207 = vector.broadcast %cst_104 : f32 to vector<8x128xf32>
    %208 = arith.addf %207, %206 : vector<8x128xf32>
    %209 = arith.divf %207, %208 : vector<8x128xf32>
    %210 = arith.mulf %201, %189 : vector<8x128xf32>
    %211 = arith.mulf %195, %203 : vector<8x128xf32>
    %212 = arith.addf %210, %211 : vector<8x128xf32>
    %213 = math.tanh %212 : vector<8x128xf32>
    %214 = arith.mulf %209, %213 : vector<8x128xf32>
    %c0_105 = arith.constant 0 : index
    %c0_106 = arith.constant 0 : index
    %215 = vector.load %arg19[%c0_105, %c0_106] : memref<8x128xf32, #tpu.memory_space<vmem>>, vector<8x128xf32>
    %216 = tpu.concatenate %214, %215 in 1 : vector<8x128xf32>, vector<8x128xf32> -> vector<8x256xf32>
    %c0_107 = arith.constant 0 : index
    %c0_108 = arith.constant 0 : index
    %217 = vector.load %arg6[%c0_107, %c0_108] : memref<256x512xf32, #tpu.memory_space<vmem>>, vector<256x512xf32>
    %cst_109 = arith.constant dense<0.000000e+00> : vector<8x512xf32>
    %218 = tpu.matmul %216, %217, %cst_109 {dimension_numbers = #tpu.dot_dimension_numbers<[1], [0], [0], [1], [0, 0, 1, 1], [], []>} : vector<8x256xf32>, vector<256x512xf32>, vector<8x512xf32> -> vector<8x512xf32>
    %219 = arith.addf %218, %12 : vector<8x512xf32>
    %c0_110 = arith.constant 0 : index
    %c0_111 = arith.constant 0 : index
    %220 = vector.load %arg20[%c0_110, %c0_111] : memref<8x128xf32, #tpu.memory_space<vmem>>, vector<8x128xf32>
    %221 = vector.extract_strided_slice %219 {offsets = [0, 0], sizes = [8, 128], strides = [1, 1]} : vector<8x512xf32> to vector<8x128xf32>
    %222 = arith.negf %221 : vector<8x128xf32>
    %223 = math.exp %222 : vector<8x128xf32>
    %cst_112 = arith.constant 1.000000e+00 : f32
    %224 = vector.broadcast %cst_112 : f32 to vector<8x128xf32>
    %225 = arith.addf %224, %223 : vector<8x128xf32>
    %226 = arith.divf %224, %225 : vector<8x128xf32>
    %227 = vector.extract_strided_slice %219 {offsets = [0, 128], sizes = [8, 128], strides = [1, 1]} : vector<8x512xf32> to vector<8x128xf32>
    %228 = arith.negf %227 : vector<8x128xf32>
    %229 = math.exp %228 : vector<8x128xf32>
    %cst_113 = arith.constant 1.000000e+00 : f32
    %230 = vector.broadcast %cst_113 : f32 to vector<8x128xf32>
    %231 = arith.addf %230, %229 : vector<8x128xf32>
    %232 = arith.divf %230, %231 : vector<8x128xf32>
    %233 = vector.extract_strided_slice %219 {offsets = [0, 256], sizes = [8, 128], strides = [1, 1]} : vector<8x512xf32> to vector<8x128xf32>
    %234 = math.tanh %233 : vector<8x128xf32>
    %235 = vector.extract_strided_slice %219 {offsets = [0, 384], sizes = [8, 128], strides = [1, 1]} : vector<8x512xf32> to vector<8x128xf32>
    %236 = arith.negf %235 : vector<8x128xf32>
    %237 = math.exp %236 : vector<8x128xf32>
    %cst_114 = arith.constant 1.000000e+00 : f32
    %238 = vector.broadcast %cst_114 : f32 to vector<8x128xf32>
    %239 = arith.addf %238, %237 : vector<8x128xf32>
    %240 = arith.divf %238, %239 : vector<8x128xf32>
    %241 = arith.mulf %232, %220 : vector<8x128xf32>
    %242 = arith.mulf %226, %234 : vector<8x128xf32>
    %243 = arith.addf %241, %242 : vector<8x128xf32>
    %244 = math.tanh %243 : vector<8x128xf32>
    %245 = arith.mulf %240, %244 : vector<8x128xf32>
    %c3_i32_115 = arith.constant 3 : i32
    %246 = arith.muli %arg1, %c3_i32_115 : i32
    %247 = arith.addi %246, %c2_i32 : i32
    %c8_i32_116 = arith.constant 8 : i32
    %248 = arith.cmpi slt, %247, %c8_i32_116 : i32
    %c0_117 = arith.constant 0 : index
    %c0_118 = arith.constant 0 : index
    %249 = vector.load %arg17[%c0_117, %c0_118] : memref<8x128xf32, #tpu.memory_space<vmem>>, vector<8x128xf32>
    %250 = arith.select %248, %214, %249 : vector<8x128xf32>
    %c0_119 = arith.constant 0 : index
    %c0_120 = arith.constant 0 : index
    %251 = vector.load %arg18[%c0_119, %c0_120] : memref<8x128xf32, #tpu.memory_space<vmem>>, vector<8x128xf32>
    %252 = arith.select %248, %212, %251 : vector<8x128xf32>
    %c0_121 = arith.constant 0 : index
    %c0_122 = arith.constant 0 : index
    %253 = vector.load %arg19[%c0_121, %c0_122] : memref<8x128xf32, #tpu.memory_space<vmem>>, vector<8x128xf32>
    %254 = arith.select %248, %245, %253 : vector<8x128xf32>
    %c0_123 = arith.constant 0 : index
    %c0_124 = arith.constant 0 : index
    %255 = vector.load %arg20[%c0_123, %c0_124] : memref<8x128xf32, #tpu.memory_space<vmem>>, vector<8x128xf32>
    %256 = arith.select %248, %243, %255 : vector<8x128xf32>
    %c0_125 = arith.constant 0 : index
    %c0_126 = arith.constant 0 : index
    %257 = vector.load %arg17[%c0_125, %c0_126] : memref<8x128xf32, #tpu.memory_space<vmem>>, vector<8x128xf32>
    tpu.vector_store %arg17[%c0_125, %c0_126], %250 {strides = array<i32>} : memref<8x128xf32, #tpu.memory_space<vmem>>, vector<8x128xf32>,
    %c0_127 = arith.constant 0 : index
    %c0_128 = arith.constant 0 : index
    %258 = vector.load %arg18[%c0_127, %c0_128] : memref<8x128xf32, #tpu.memory_space<vmem>>, vector<8x128xf32>
    tpu.vector_store %arg18[%c0_127, %c0_128], %252 {strides = array<i32>} : memref<8x128xf32, #tpu.memory_space<vmem>>, vector<8x128xf32>,
    %c0_129 = arith.constant 0 : index
    %c0_130 = arith.constant 0 : index
    %259 = vector.load %arg19[%c0_129, %c0_130] : memref<8x128xf32, #tpu.memory_space<vmem>>, vector<8x128xf32>
    tpu.vector_store %arg19[%c0_129, %c0_130], %254 {strides = array<i32>} : memref<8x128xf32, #tpu.memory_space<vmem>>, vector<8x128xf32>,
    %c0_131 = arith.constant 0 : index
    %c0_132 = arith.constant 0 : index
    %260 = vector.load %arg20[%c0_131, %c0_132] : memref<8x128xf32, #tpu.memory_space<vmem>>, vector<8x128xf32>
    tpu.vector_store %arg20[%c0_131, %c0_132], %256 {strides = array<i32>} : memref<8x128xf32, #tpu.memory_space<vmem>>, vector<8x128xf32>,
    %c8_i32_133 = arith.constant 8 : i32
    %261 = arith.muli %c2_i32, %c8_i32_133 : i32
    %262 = tpu.assume_multiple %261, 8 : i32
    %263 = arith.index_cast %262 : i32 to index
    %c0_134 = arith.constant 0 : index
    %264 = vector.load %arg16[%263, %c0_134] : memref<24x128xf32, #tpu.memory_space<vmem>>, vector<8x128xf32>
    tpu.vector_store %arg16[%263, %c0_134], %254 {strides = array<i32>} : memref<24x128xf32, #tpu.memory_space<vmem>>, vector<8x128xf32>,
    %c3_i32_135 = arith.constant 3 : i32
    %c0_136 = arith.constant 0 : index
    %c0_137 = arith.constant 0 : index
    %265 = vector.load %arg16[%c0_136, %c0_137] : memref<24x128xf32, #tpu.memory_space<vmem>>, vector<24x128xf32>
    %c0_138 = arith.constant 0 : index
    %c0_139 = arith.constant 0 : index
    %266 = vector.load %arg8[%c0_138, %c0_139] : memref<128x128xf32, #tpu.memory_space<vmem>>, vector<128x128xf32>
    %cst_140 = arith.constant dense<0.000000e+00> : vector<24x128xf32>
    %267 = tpu.matmul %265, %266, %cst_140 {dimension_numbers = #tpu.dot_dimension_numbers<[1], [0], [0], [1], [0, 0, 1, 1], [], []>} : vector<24x128xf32>, vector<128x128xf32>, vector<24x128xf32> -> vector<24x128xf32>
    %c0_141 = arith.constant 0 : index
    %c0_142 = arith.constant 0 : index
    %268 = vector.load %arg9[%c0_141, %c0_142] : memref<1x128xf32, #tpu.memory_space<vmem>>, vector<1x128xf32>
    %269 = vector.broadcast %268 : vector<1x128xf32> to vector<24x128xf32>
    %270 = arith.addf %267, %269 : vector<24x128xf32>
    %c0_143 = arith.constant 0 : index
    %c0_144 = arith.constant 0 : index
    %271 = vector.load %arg12[%c0_143, %c0_144] : memref<24x128xf32, #tpu.memory_space<vmem>>, vector<24x128xf32>
    tpu.vector_store %arg12[%c0_143, %c0_144], %270 {strides = array<i32>} : memref<24x128xf32, #tpu.memory_space<vmem>>, vector<24x128xf32>,
    %c2_i32_145 = arith.constant 2 : i32
    %272 = arith.cmpi eq, %arg1, %c2_i32_145 : i32
    %273 = arith.extui %272 : i1 to i32
    %c0_i32_146 = arith.constant 0 : i32
    %274 = arith.cmpi ne, %273, %c0_i32_146 : i32
    scf.if %274 {
      %c0_147 = arith.constant 0 : index
      %c0_148 = arith.constant 0 : index
      %275 = vector.load %arg17[%c0_147, %c0_148] : memref<8x128xf32, #tpu.memory_space<vmem>>, vector<8x128xf32>
      %c0_149 = arith.constant 0 : index
      %c0_150 = arith.constant 0 : index
      %c0_151 = arith.constant 0 : index
      %276 = vector.load %arg13[%c0_149, %c0_150, %c0_151] : memref<2x8x128xf32, #tpu.memory_space<vmem>>, vector<1x8x128xf32>
      %277 = vector.shape_cast %276 : vector<1x8x128xf32> to vector<8x128xf32>
      %278 = vector.shape_cast %275 : vector<8x128xf32> to vector<1x8x128xf32>
      tpu.vector_store %arg13[%c0_149, %c0_150, %c0_151], %278 {strides = array<i32>} : memref<2x8x128xf32, #tpu.memory_space<vmem>>, vector<1x8x128xf32>,
      %c0_152 = arith.constant 0 : index
      %c0_153 = arith.constant 0 : index
      %279 = vector.load %arg19[%c0_152, %c0_153] : memref<8x128xf32, #tpu.memory_space<vmem>>, vector<8x128xf32>
      %c1 = arith.constant 1 : index
      %c0_154 = arith.constant 0 : index
      %c0_155 = arith.constant 0 : index
      %280 = vector.load %arg13[%c1, %c0_154, %c0_155] : memref<2x8x128xf32, #tpu.memory_space<vmem>>, vector<1x8x128xf32>
      %281 = vector.shape_cast %280 : vector<1x8x128xf32> to vector<8x128xf32>
      %282 = vector.shape_cast %279 : vector<8x128xf32> to vector<1x8x128xf32>
      tpu.vector_store %arg13[%c1, %c0_154, %c0_155], %282 {strides = array<i32>} : memref<2x8x128xf32, #tpu.memory_space<vmem>>, vector<1x8x128xf32>,
      %c0_156 = arith.constant 0 : index
      %c0_157 = arith.constant 0 : index
      %283 = vector.load %arg18[%c0_156, %c0_157] : memref<8x128xf32, #tpu.memory_space<vmem>>, vector<8x128xf32>
      %c0_158 = arith.constant 0 : index
      %c0_159 = arith.constant 0 : index
      %c0_160 = arith.constant 0 : index
      %284 = vector.load %arg14[%c0_158, %c0_159, %c0_160] : memref<2x8x128xf32, #tpu.memory_space<vmem>>, vector<1x8x128xf32>
      %285 = vector.shape_cast %284 : vector<1x8x128xf32> to vector<8x128xf32>
      %286 = vector.shape_cast %283 : vector<8x128xf32> to vector<1x8x128xf32>
      tpu.vector_store %arg14[%c0_158, %c0_159, %c0_160], %286 {strides = array<i32>} : memref<2x8x128xf32, #tpu.memory_space<vmem>>, vector<1x8x128xf32>,
      %c0_161 = arith.constant 0 : index
      %c0_162 = arith.constant 0 : index
      %287 = vector.load %arg20[%c0_161, %c0_162] : memref<8x128xf32, #tpu.memory_space<vmem>>, vector<8x128xf32>
      %c1_163 = arith.constant 1 : index
      %c0_164 = arith.constant 0 : index
      %c0_165 = arith.constant 0 : index
      %288 = vector.load %arg14[%c1_163, %c0_164, %c0_165] : memref<2x8x128xf32, #tpu.memory_space<vmem>>, vector<1x8x128xf32>
      %289 = vector.shape_cast %288 : vector<1x8x128xf32> to vector<8x128xf32>
      %290 = vector.shape_cast %287 : vector<8x128xf32> to vector<1x8x128xf32>
      tpu.vector_store %arg14[%c1_163, %c0_164, %c0_165], %290 {strides = array<i32>} : memref<2x8x128xf32, #tpu.memory_space<vmem>>, vector<1x8x128xf32>,
    } else {
    }
    return
  }
  func.func @transform_0(%arg0: i32, %arg1: i32) -> (i32, i32) {
    %c3_i32 = arith.constant 3 : i32
    %0 = arith.muli %arg0, %c3_i32 : i32
    %1 = arith.addi %0, %arg1 : i32
    %c0_i32 = arith.constant 0 : i32
    %c0_i32_0 = arith.constant 0 : i32
    return %1, %c0_i32 : i32, i32
  }
  func.func @transform_1(%arg0: i32, %arg1: i32) -> (i32, i32) {
    %c0_i32 = arith.constant 0 : i32
    %c0_i32_0 = arith.constant 0 : i32
    %c0_i32_1 = arith.constant 0 : i32
    return %c0_i32, %c0_i32_0 : i32, i32
  }
  func.func @transform_2(%arg0: i32, %arg1: i32) -> (i32, i32) {
    %c0_i32 = arith.constant 0 : i32
    %c0_i32_0 = arith.constant 0 : i32
    %c0_i32_1 = arith.constant 0 : i32
    return %c0_i32, %c0_i32_0 : i32, i32
  }
  func.func @transform_3(%arg0: i32, %arg1: i32) -> (i32, i32) {
    %c0_i32 = arith.constant 0 : i32
    %c0_i32_0 = arith.constant 0 : i32
    %c0_i32_1 = arith.constant 0 : i32
    return %c0_i32, %c0_i32_0 : i32, i32
  }
  func.func @transform_4(%arg0: i32, %arg1: i32) -> (i32, i32) {
    %c0_i32 = arith.constant 0 : i32
    %c0_i32_0 = arith.constant 0 : i32
    %c0_i32_1 = arith.constant 0 : i32
    return %c0_i32, %c0_i32_0 : i32, i32
  }
  func.func @transform_5(%arg0: i32, %arg1: i32) -> (i32, i32) {
    %c0_i32 = arith.constant 0 : i32
    %c0_i32_0 = arith.constant 0 : i32
    %c0_i32_1 = arith.constant 0 : i32
    return %c0_i32, %c0_i32_0 : i32, i32
  }
  func.func @transform_6(%arg0: i32, %arg1: i32) -> (i32, i32) {
    %c0_i32 = arith.constant 0 : i32
    %c0_i32_0 = arith.constant 0 : i32
    %c0_i32_1 = arith.constant 0 : i32
    return %c0_i32, %c0_i32_0 : i32, i32
  }
  func.func @transform_7(%arg0: i32, %arg1: i32) -> (i32, i32) {
    %c0_i32 = arith.constant 0 : i32
    %c0_i32_0 = arith.constant 0 : i32
    %c0_i32_1 = arith.constant 0 : i32
    return %c0_i32, %c0_i32_0 : i32, i32
  }
  func.func @transform_8(%arg0: i32, %arg1: i32) -> (i32, i32, i32) {
    %c0_i32 = arith.constant 0 : i32
    %c0_i32_0 = arith.constant 0 : i32
    %c0_i32_1 = arith.constant 0 : i32
    return %c0_i32, %arg0, %c0_i32_0 : i32, i32, i32
  }
  func.func @transform_9(%arg0: i32, %arg1: i32) -> (i32, i32, i32) {
    %c0_i32 = arith.constant 0 : i32
    %c0_i32_0 = arith.constant 0 : i32
    %c0_i32_1 = arith.constant 0 : i32
    return %c0_i32, %arg0, %c0_i32_0 : i32, i32, i32
  }
  func.func @transform_10(%arg0: i32, %arg1: i32) -> (i32, i32) {
    %c3_i32 = arith.constant 3 : i32
    %0 = arith.muli %arg0, %c3_i32 : i32
    %1 = arith.addi %0, %arg1 : i32
    %c0_i32 = arith.constant 0 : i32
    %c0_i32_0 = arith.constant 0 : i32
    return %1, %c0_i32 : i32, i32
  }
  func.func @transform_11(%arg0: i32, %arg1: i32) -> (i32, i32, i32) {
    %c0_i32 = arith.constant 0 : i32
    %c0_i32_0 = arith.constant 0 : i32
    %c0_i32_1 = arith.constant 0 : i32
    return %c0_i32, %arg0, %c0_i32_0 : i32, i32, i32
  }
  func.func @transform_12(%arg0: i32, %arg1: i32) -> (i32, i32, i32) {
    %c0_i32 = arith.constant 0 : i32
    %c0_i32_0 = arith.constant 0 : i32
    %c0_i32_1 = arith.constant 0 : i32
    return %c0_i32, %arg0, %c0_i32_0 : i32, i32, i32
  }
}

module attributes {stable_mosaic.version = 11 : i64} {
  func.func @kernel(%arg0: i32, %arg1: i32, %arg2: memref<24x16xf32, #tpu.memory_space<vmem>>, %arg3: memref<16x512xf32, #tpu.memory_space<vmem>>, %arg4: memref<1x512xf32, #tpu.memory_space<vmem>>, %arg5: memref<128x512xf32, #tpu.memory_space<vmem>>, %arg6: memref<256x512xf32, #tpu.memory_space<vmem>>, %arg7: memref<1x512xf32, #tpu.memory_space<vmem>>, %arg8: memref<128x128xf32, #tpu.memory_space<vmem>>, %arg9: memref<1x128xf32, #tpu.memory_space<vmem>>, %arg10: memref<2x8x128xf32, #tpu.memory_space<vmem>>, %arg11: memref<2x8x128xf32, #tpu.memory_space<vmem>>, %arg12: memref<24x128xf32, #tpu.memory_space<vmem>>, %arg13: memref<2x8x128xf32, #tpu.memory_space<vmem>>, %arg14: memref<2x8x128xf32, #tpu.memory_space<vmem>>, %arg15: memref<24x512xf32, #tpu.memory_space<vmem>>, %arg16: memref<24x128xf32, #tpu.memory_space<vmem>>, %arg17: memref<8x128xf32, #tpu.memory_space<vmem>>, %arg18: memref<8x128xf32, #tpu.memory_space<vmem>>, %arg19: memref<8x128xf32, #tpu.memory_space<vmem>>, %arg20: memref<8x128xf32, #tpu.memory_space<vmem>>) attributes {dimension_semantics = [#tpu.dimension_semantics<parallel>, #tpu.dimension_semantics<arbitrary>], iteration_bounds = array<i64: 1, 3>, scalar_prefetch = 0 : i64, scratch_operands = 6 : i64, tpu.core_type = #tpu.core_type<tc>, window_params = [{transform_indices = @transform_0, window_bounds = array<i64: 24, 16>}, {pipeline_mode = #tpu.pipeline_mode<synchronous>, transform_indices = @transform_1, window_bounds = array<i64: 16, 512>}, {pipeline_mode = #tpu.pipeline_mode<synchronous>, transform_indices = @transform_2, window_bounds = array<i64: 1, 512>}, {pipeline_mode = #tpu.pipeline_mode<synchronous>, transform_indices = @transform_3, window_bounds = array<i64: 128, 512>}, {pipeline_mode = #tpu.pipeline_mode<synchronous>, transform_indices = @transform_4, window_bounds = array<i64: 256, 512>}, {pipeline_mode = #tpu.pipeline_mode<synchronous>, transform_indices = @transform_5, window_bounds = array<i64: 1, 512>}, {pipeline_mode = #tpu.pipeline_mode<synchronous>, transform_indices = @transform_6, window_bounds = array<i64: 128, 128>}, {pipeline_mode = #tpu.pipeline_mode<synchronous>, transform_indices = @transform_7, window_bounds = array<i64: 1, 128>}, {transform_indices = @transform_8, window_bounds = array<i64: 2, 8, 128>}, {transform_indices = @transform_9, window_bounds = array<i64: 2, 8, 128>}, {transform_indices = @transform_10, window_bounds = array<i64: 24, 128>}, {transform_indices = @transform_11, window_bounds = array<i64: 2, 8, 128>}, {transform_indices = @transform_12, window_bounds = array<i64: 2, 8, 128>}]} {
    %c0_i32 = arith.constant 0 : i32
    %0 = arith.cmpi eq, %arg1, %c0_i32 : i32
    %1 = arith.extui %0 : i1 to i32
    %c0_i32_0 = arith.constant 0 : i32
    %2 = arith.cmpi ne, %1, %c0_i32_0 : i32
    scf.if %2 {
      %c0_147 = arith.constant 0 : index
      %c0_148 = arith.constant 0 : index
      %c0_149 = arith.constant 0 : index
      %275 = vector.load %arg10[%c0_147, %c0_148, %c0_149] : memref<2x8x128xf32, #tpu.memory_space<vmem>>, vector<1x8x128xf32>
      %276 = vector.shape_cast %275 : vector<1x8x128xf32> to vector<8x128xf32>
      %c0_150 = arith.constant 0 : index
      %c0_151 = arith.constant 0 : index
      %277 = vector.load %arg17[%c0_150, %c0_151] : memref<8x128xf32, #tpu.memory_space<vmem>>, vector<8x128xf32>
      tpu.vector_store %arg17[%c0_150, %c0_151], %276 {strides = array<i32>} : memref<8x128xf32, #tpu.memory_space<vmem>>, vector<8x128xf32>,
      %c0_152 = arith.constant 0 : index
      %c0_153 = arith.constant 0 : index
      %c0_154 = arith.constant 0 : index
      %278 = vector.load %arg11[%c0_152, %c0_153, %c0_154] : memref<2x8x128xf32, #tpu.memory_space<vmem>>, vector<1x8x128xf32>
      %279 = vector.shape_cast %278 : vector<1x8x128xf32> to vector<8x128xf32>
      %c0_155 = arith.constant 0 : index
      %c0_156 = arith.constant 0 : index
      %280 = vector.load %arg18[%c0_155, %c0_156] : memref<8x128xf32, #tpu.memory_space<vmem>>, vector<8x128xf32>
      tpu.vector_store %arg18[%c0_155, %c0_156], %279 {strides = array<i32>} : memref<8x128xf32, #tpu.memory_space<vmem>>, vector<8x128xf32>,
      %c1 = arith.constant 1 : index
      %c0_157 = arith.constant 0 : index
      %c0_158 = arith.constant 0 : index
      %281 = vector.load %arg10[%c1, %c0_157, %c0_158] : memref<2x8x128xf32, #tpu.memory_space<vmem>>, vector<1x8x128xf32>
      %282 = vector.shape_cast %281 : vector<1x8x128xf32> to vector<8x128xf32>
      %c0_159 = arith.constant 0 : index
      %c0_160 = arith.constant 0 : index
      %283 = vector.load %arg19[%c0_159, %c0_160] : memref<8x128xf32, #tpu.memory_space<vmem>>, vector<8x128xf32>
      tpu.vector_store %arg19[%c0_159, %c0_160], %282 {strides = array<i32>} : memref<8x128xf32, #tpu.memory_space<vmem>>, vector<8x128xf32>,
      %c1_161 = arith.constant 1 : index
      %c0_162 = arith.constant 0 : index
      %c0_163 = arith.constant 0 : index
      %284 = vector.load %arg11[%c1_161, %c0_162, %c0_163] : memref<2x8x128xf32, #tpu.memory_space<vmem>>, vector<1x8x128xf32>
      %285 = vector.shape_cast %284 : vector<1x8x128xf32> to vector<8x128xf32>
      %c0_164 = arith.constant 0 : index
      %c0_165 = arith.constant 0 : index
      %286 = vector.load %arg20[%c0_164, %c0_165] : memref<8x128xf32, #tpu.memory_space<vmem>>, vector<8x128xf32>
      tpu.vector_store %arg20[%c0_164, %c0_165], %285 {strides = array<i32>} : memref<8x128xf32, #tpu.memory_space<vmem>>, vector<8x128xf32>,
    } else {
    }
    %c0 = arith.constant 0 : index
    %c0_1 = arith.constant 0 : index
    %3 = vector.load %arg2[%c0, %c0_1] : memref<24x16xf32, #tpu.memory_space<vmem>>, vector<24x16xf32>
    %c0_2 = arith.constant 0 : index
    %c0_3 = arith.constant 0 : index
    %4 = vector.load %arg3[%c0_2, %c0_3] : memref<16x512xf32, #tpu.memory_space<vmem>>, vector<16x512xf32>
    %cst = arith.constant dense<0.000000e+00> : vector<24x512xf32>
    %5 = tpu.matmul %3, %4, %cst {dimension_numbers = #tpu.dot_dimension_numbers<[1], [0], [0], [1], [0, 0, 1, 1], [], []>} : vector<24x16xf32>, vector<16x512xf32>, vector<24x512xf32> -> vector<24x512xf32>
    %c0_4 = arith.constant 0 : index
    %c0_5 = arith.constant 0 : index
    %6 = vector.load %arg4[%c0_4, %c0_5] : memref<1x512xf32, #tpu.memory_space<vmem>>, vector<1x512xf32>
    %7 = vector.broadcast %6 : vector<1x512xf32> to vector<24x512xf32>
    %8 = arith.addf %5, %7 : vector<24x512xf32>
    %c0_6 = arith.constant 0 : index
    %c0_7 = arith.constant 0 : index
    %9 = vector.load %arg15[%c0_6, %c0_7] : memref<24x512xf32, #tpu.memory_space<vmem>>, vector<24x512xf32>
    tpu.vector_store %arg15[%c0_6, %c0_7], %8 {strides = array<i32>} : memref<24x512xf32, #tpu.memory_space<vmem>>, vector<24x512xf32>,
    %c0_8 = arith.constant 0 : index
    %c0_9 = arith.constant 0 : index
    %10 = vector.load %arg7[%c0_8, %c0_9] : memref<1x512xf32, #tpu.memory_space<vmem>>, vector<1x512xf32>
    %11 = vector.shape_cast %10 : vector<1x512xf32> to vector<1x512xf32>
    %12 = vector.broadcast %11 : vector<1x512xf32> to vector<8x512xf32>
    %c0_i32_10 = arith.constant 0 : i32
    %c8_i32 = arith.constant 8 : i32
    %13 = arith.muli %c0_i32_10, %c8_i32 : i32
    %14 = tpu.assume_multiple %13, 8 : i32
    %15 = arith.index_cast %14 : i32 to index
    %c0_11 = arith.constant 0 : index
    %16 = vector.load %arg15[%15, %c0_11] : memref<24x512xf32, #tpu.memory_space<vmem>>, vector<8x512xf32>
    %c0_12 = arith.constant 0 : index
    %c0_13 = arith.constant 0 : index
    %17 = vector.load %arg17[%c0_12, %c0_13] : memref<8x128xf32, #tpu.memory_space<vmem>>, vector<8x128xf32>
    %c0_14 = arith.constant 0 : index
    %c0_15 = arith.constant 0 : index
    %18 = vector.load %arg5[%c0_14, %c0_15] : memref<128x512xf32, #tpu.memory_space<vmem>>, vector<128x512xf32>
    %cst_16 = arith.constant dense<0.000000e+00> : vector<8x512xf32>
    %19 = tpu.matmul %17, %18, %cst_16 {dimension_numbers = #tpu.dot_dimension_numbers<[1], [0], [0], [1], [0, 0, 1, 1], [], []>} : vector<8x128xf32>, vector<128x512xf32>, vector<8x512xf32> -> vector<8x512xf32>
    %20 = arith.addf %16, %19 : vector<8x512xf32>
    %c0_17 = arith.constant 0 : index
    %c0_18 = arith.constant 0 : index
    %21 = vector.load %arg18[%c0_17, %c0_18] : memref<8x128xf32, #tpu.memory_space<vmem>>, vector<8x128xf32>
    %22 = vector.extract_strided_slice %20 {offsets = [0, 0], sizes = [8, 128], strides = [1, 1]} : vector<8x512xf32> to vector<8x128xf32>
    %23 = arith.negf %22 : vector<8x128xf32>
    %24 = math.exp %23 : vector<8x128xf32>
    %cst_19 = arith.constant 1.000000e+00 : f32
    %25 = vector.broadcast %cst_19 : f32 to vector<8x128xf32>
    %26 = arith.addf %25, %24 : vector<8x128xf32>
    %27 = arith.divf %25, %26 : vector<8x128xf32>
    %28 = vector.extract_strided_slice %20 {offsets = [0, 128], sizes = [8, 128], strides = [1, 1]} : vector<8x512xf32> to vector<8x128xf32>
    %29 = arith.negf %28 : vector<8x128xf32>
    %30 = math.exp %29 : vector<8x128xf32>
    %cst_20 = arith.constant 1.000000e+00 : f32
    %31 = vector.broadcast %cst_20 : f32 to vector<8x128xf32>
    %32 = arith.addf %31, %30 : vector<8x128xf32>
    %33 = arith.divf %31, %32 : vector<8x128xf32>
    %34 = vector.extract_strided_slice %20 {offsets = [0, 256], sizes = [8, 128], strides = [1, 1]} : vector<8x512xf32> to vector<8x128xf32>
    %35 = math.tanh %34 : vector<8x128xf32>
    %36 = vector.extract_strided_slice %20 {offsets = [0, 384], sizes = [8, 128], strides = [1, 1]} : vector<8x512xf32> to vector<8x128xf32>
    %37 = arith.negf %36 : vector<8x128xf32>
    %38 = math.exp %37 : vector<8x128xf32>
    %cst_21 = arith.constant 1.000000e+00 : f32
    %39 = vector.broadcast %cst_21 : f32 to vector<8x128xf32>
    %40 = arith.addf %39, %38 : vector<8x128xf32>
    %41 = arith.divf %39, %40 : vector<8x128xf32>
    %42 = arith.mulf %33, %21 : vector<8x128xf32>
    %43 = arith.mulf %27, %35 : vector<8x128xf32>
    %44 = arith.addf %42, %43 : vector<8x128xf32>
    %45 = math.tanh %44 : vector<8x128xf32>
    %46 = arith.mulf %41, %45 : vector<8x128xf32>
    %c0_22 = arith.constant 0 : index
    %c0_23 = arith.constant 0 : index
    %47 = vector.load %arg19[%c0_22, %c0_23] : memref<8x128xf32, #tpu.memory_space<vmem>>, vector<8x128xf32>
    %48 = tpu.concatenate %46, %47 in 1 : vector<8x128xf32>, vector<8x128xf32> -> vector<8x256xf32>
    %c0_24 = arith.constant 0 : index
    %c0_25 = arith.constant 0 : index
    %49 = vector.load %arg6[%c0_24, %c0_25] : memref<256x512xf32, #tpu.memory_space<vmem>>, vector<256x512xf32>
    %cst_26 = arith.constant dense<0.000000e+00> : vector<8x512xf32>
    %50 = tpu.matmul %48, %49, %cst_26 {dimension_numbers = #tpu.dot_dimension_numbers<[1], [0], [0], [1], [0, 0, 1, 1], [], []>} : vector<8x256xf32>, vector<256x512xf32>, vector<8x512xf32> -> vector<8x512xf32>
    %51 = arith.addf %50, %12 : vector<8x512xf32>
    %c0_27 = arith.constant 0 : index
    %c0_28 = arith.constant 0 : index
    %52 = vector.load %arg20[%c0_27, %c0_28] : memref<8x128xf32, #tpu.memory_space<vmem>>, vector<8x128xf32>
    %53 = vector.extract_strided_slice %51 {offsets = [0, 0], sizes = [8, 128], strides = [1, 1]} : vector<8x512xf32> to vector<8x128xf32>
    %54 = arith.negf %53 : vector<8x128xf32>
    %55 = math.exp %54 : vector<8x128xf32>
    %cst_29 = arith.constant 1.000000e+00 : f32
    %56 = vector.broadcast %cst_29 : f32 to vector<8x128xf32>
    %57 = arith.addf %56, %55 : vector<8x128xf32>
    %58 = arith.divf %56, %57 : vector<8x128xf32>
    %59 = vector.extract_strided_slice %51 {offsets = [0, 128], sizes = [8, 128], strides = [1, 1]} : vector<8x512xf32> to vector<8x128xf32>
    %60 = arith.negf %59 : vector<8x128xf32>
    %61 = math.exp %60 : vector<8x128xf32>
    %cst_30 = arith.constant 1.000000e+00 : f32
    %62 = vector.broadcast %cst_30 : f32 to vector<8x128xf32>
    %63 = arith.addf %62, %61 : vector<8x128xf32>
    %64 = arith.divf %62, %63 : vector<8x128xf32>
    %65 = vector.extract_strided_slice %51 {offsets = [0, 256], sizes = [8, 128], strides = [1, 1]} : vector<8x512xf32> to vector<8x128xf32>
    %66 = math.tanh %65 : vector<8x128xf32>
    %67 = vector.extract_strided_slice %51 {offsets = [0, 384], sizes = [8, 128], strides = [1, 1]} : vector<8x512xf32> to vector<8x128xf32>
    %68 = arith.negf %67 : vector<8x128xf32>
    %69 = math.exp %68 : vector<8x128xf32>
    %cst_31 = arith.constant 1.000000e+00 : f32
    %70 = vector.broadcast %cst_31 : f32 to vector<8x128xf32>
    %71 = arith.addf %70, %69 : vector<8x128xf32>
    %72 = arith.divf %70, %71 : vector<8x128xf32>
    %73 = arith.mulf %64, %52 : vector<8x128xf32>
    %74 = arith.mulf %58, %66 : vector<8x128xf32>
    %75 = arith.addf %73, %74 : vector<8x128xf32>
    %76 = math.tanh %75 : vector<8x128xf32>
    %77 = arith.mulf %72, %76 : vector<8x128xf32>
    %c3_i32 = arith.constant 3 : i32
    %78 = arith.muli %arg1, %c3_i32 : i32
    %79 = arith.addi %78, %c0_i32_10 : i32
    %c8_i32_32 = arith.constant 8 : i32
    %80 = arith.cmpi slt, %79, %c8_i32_32 : i32
    %c0_33 = arith.constant 0 : index
    %c0_34 = arith.constant 0 : index
    %81 = vector.load %arg17[%c0_33, %c0_34] : memref<8x128xf32, #tpu.memory_space<vmem>>, vector<8x128xf32>
    %82 = arith.select %80, %46, %81 : vector<8x128xf32>
    %c0_35 = arith.constant 0 : index
    %c0_36 = arith.constant 0 : index
    %83 = vector.load %arg18[%c0_35, %c0_36] : memref<8x128xf32, #tpu.memory_space<vmem>>, vector<8x128xf32>
    %84 = arith.select %80, %44, %83 : vector<8x128xf32>
    %c0_37 = arith.constant 0 : index
    %c0_38 = arith.constant 0 : index
    %85 = vector.load %arg19[%c0_37, %c0_38] : memref<8x128xf32, #tpu.memory_space<vmem>>, vector<8x128xf32>
    %86 = arith.select %80, %77, %85 : vector<8x128xf32>
    %c0_39 = arith.constant 0 : index
    %c0_40 = arith.constant 0 : index
    %87 = vector.load %arg20[%c0_39, %c0_40] : memref<8x128xf32, #tpu.memory_space<vmem>>, vector<8x128xf32>
    %88 = arith.select %80, %75, %87 : vector<8x128xf32>
    %c0_41 = arith.constant 0 : index
    %c0_42 = arith.constant 0 : index
    %89 = vector.load %arg17[%c0_41, %c0_42] : memref<8x128xf32, #tpu.memory_space<vmem>>, vector<8x128xf32>
    tpu.vector_store %arg17[%c0_41, %c0_42], %82 {strides = array<i32>} : memref<8x128xf32, #tpu.memory_space<vmem>>, vector<8x128xf32>,
    %c0_43 = arith.constant 0 : index
    %c0_44 = arith.constant 0 : index
    %90 = vector.load %arg18[%c0_43, %c0_44] : memref<8x128xf32, #tpu.memory_space<vmem>>, vector<8x128xf32>
    tpu.vector_store %arg18[%c0_43, %c0_44], %84 {strides = array<i32>} : memref<8x128xf32, #tpu.memory_space<vmem>>, vector<8x128xf32>,
    %c0_45 = arith.constant 0 : index
    %c0_46 = arith.constant 0 : index
    %91 = vector.load %arg19[%c0_45, %c0_46] : memref<8x128xf32, #tpu.memory_space<vmem>>, vector<8x128xf32>
    tpu.vector_store %arg19[%c0_45, %c0_46], %86 {strides = array<i32>} : memref<8x128xf32, #tpu.memory_space<vmem>>, vector<8x128xf32>,
    %c0_47 = arith.constant 0 : index
    %c0_48 = arith.constant 0 : index
    %92 = vector.load %arg20[%c0_47, %c0_48] : memref<8x128xf32, #tpu.memory_space<vmem>>, vector<8x128xf32>
    tpu.vector_store %arg20[%c0_47, %c0_48], %88 {strides = array<i32>} : memref<8x128xf32, #tpu.memory_space<vmem>>, vector<8x128xf32>,
    %c8_i32_49 = arith.constant 8 : i32
    %93 = arith.muli %c0_i32_10, %c8_i32_49 : i32
    %94 = tpu.assume_multiple %93, 8 : i32
    %95 = arith.index_cast %94 : i32 to index
    %c0_50 = arith.constant 0 : index
    %96 = vector.load %arg16[%95, %c0_50] : memref<24x128xf32, #tpu.memory_space<vmem>>, vector<8x128xf32>
    tpu.vector_store %arg16[%95, %c0_50], %86 {strides = array<i32>} : memref<24x128xf32, #tpu.memory_space<vmem>>, vector<8x128xf32>,
    %c1_i32 = arith.constant 1 : i32
    %c8_i32_51 = arith.constant 8 : i32
    %97 = arith.muli %c1_i32, %c8_i32_51 : i32
    %98 = tpu.assume_multiple %97, 8 : i32
    %99 = arith.index_cast %98 : i32 to index
    %c0_52 = arith.constant 0 : index
    %100 = vector.load %arg15[%99, %c0_52] : memref<24x512xf32, #tpu.memory_space<vmem>>, vector<8x512xf32>
    %c0_53 = arith.constant 0 : index
    %c0_54 = arith.constant 0 : index
    %101 = vector.load %arg17[%c0_53, %c0_54] : memref<8x128xf32, #tpu.memory_space<vmem>>, vector<8x128xf32>
    %c0_55 = arith.constant 0 : index
    %c0_56 = arith.constant 0 : index
    %102 = vector.load %arg5[%c0_55, %c0_56] : memref<128x512xf32, #tpu.memory_space<vmem>>, vector<128x512xf32>
    %cst_57 = arith.constant dense<0.000000e+00> : vector<8x512xf32>
    %103 = tpu.matmul %101, %102, %cst_57 {dimension_numbers = #tpu.dot_dimension_numbers<[1], [0], [0], [1], [0, 0, 1, 1], [], []>} : vector<8x128xf32>, vector<128x512xf32>, vector<8x512xf32> -> vector<8x512xf32>
    %104 = arith.addf %100, %103 : vector<8x512xf32>
    %c0_58 = arith.constant 0 : index
    %c0_59 = arith.constant 0 : index
    %105 = vector.load %arg18[%c0_58, %c0_59] : memref<8x128xf32, #tpu.memory_space<vmem>>, vector<8x128xf32>
    %106 = vector.extract_strided_slice %104 {offsets = [0, 0], sizes = [8, 128], strides = [1, 1]} : vector<8x512xf32> to vector<8x128xf32>
    %107 = arith.negf %106 : vector<8x128xf32>
    %108 = math.exp %107 : vector<8x128xf32>
    %cst_60 = arith.constant 1.000000e+00 : f32
    %109 = vector.broadcast %cst_60 : f32 to vector<8x128xf32>
    %110 = arith.addf %109, %108 : vector<8x128xf32>
    %111 = arith.divf %109, %110 : vector<8x128xf32>
    %112 = vector.extract_strided_slice %104 {offsets = [0, 128], sizes = [8, 128], strides = [1, 1]} : vector<8x512xf32> to vector<8x128xf32>
    %113 = arith.negf %112 : vector<8x128xf32>
    %114 = math.exp %113 : vector<8x128xf32>
    %cst_61 = arith.constant 1.000000e+00 : f32
    %115 = vector.broadcast %cst_61 : f32 to vector<8x128xf32>
    %116 = arith.addf %115, %114 : vector<8x128xf32>
    %117 = arith.divf %115, %116 : vector<8x128xf32>
    %118 = vector.extract_strided_slice %104 {offsets = [0, 256], sizes = [8, 128], strides = [1, 1]} : vector<8x512xf32> to vector<8x128xf32>
    %119 = math.tanh %118 : vector<8x128xf32>
    %120 = vector.extract_strided_slice %104 {offsets = [0, 384], sizes = [8, 128], strides = [1, 1]} : vector<8x512xf32> to vector<8x128xf32>
    %121 = arith.negf %120 : vector<8x128xf32>
    %122 = math.exp %121 : vector<8x128xf32>
    %cst_62 = arith.constant 1.000000e+00 : f32
    %123 = vector.broadcast %cst_62 : f32 to vector<8x128xf32>
    %124 = arith.addf %123, %122 : vector<8x128xf32>
    %125 = arith.divf %123, %124 : vector<8x128xf32>
    %126 = arith.mulf %117, %105 : vector<8x128xf32>
    %127 = arith.mulf %111, %119 : vector<8x128xf32>
    %128 = arith.addf %126, %127 : vector<8x128xf32>
    %129 = math.tanh %128 : vector<8x128xf32>
    %130 = arith.mulf %125, %129 : vector<8x128xf32>
    %c0_63 = arith.constant 0 : index
    %c0_64 = arith.constant 0 : index
    %131 = vector.load %arg19[%c0_63, %c0_64] : memref<8x128xf32, #tpu.memory_space<vmem>>, vector<8x128xf32>
    %132 = tpu.concatenate %130, %131 in 1 : vector<8x128xf32>, vector<8x128xf32> -> vector<8x256xf32>
    %c0_65 = arith.constant 0 : index
    %c0_66 = arith.constant 0 : index
    %133 = vector.load %arg6[%c0_65, %c0_66] : memref<256x512xf32, #tpu.memory_space<vmem>>, vector<256x512xf32>
    %cst_67 = arith.constant dense<0.000000e+00> : vector<8x512xf32>
    %134 = tpu.matmul %132, %133, %cst_67 {dimension_numbers = #tpu.dot_dimension_numbers<[1], [0], [0], [1], [0, 0, 1, 1], [], []>} : vector<8x256xf32>, vector<256x512xf32>, vector<8x512xf32> -> vector<8x512xf32>
    %135 = arith.addf %134, %12 : vector<8x512xf32>
    %c0_68 = arith.constant 0 : index
    %c0_69 = arith.constant 0 : index
    %136 = vector.load %arg20[%c0_68, %c0_69] : memref<8x128xf32, #tpu.memory_space<vmem>>, vector<8x128xf32>
    %137 = vector.extract_strided_slice %135 {offsets = [0, 0], sizes = [8, 128], strides = [1, 1]} : vector<8x512xf32> to vector<8x128xf32>
    %138 = arith.negf %137 : vector<8x128xf32>
    %139 = math.exp %138 : vector<8x128xf32>
    %cst_70 = arith.constant 1.000000e+00 : f32
    %140 = vector.broadcast %cst_70 : f32 to vector<8x128xf32>
    %141 = arith.addf %140, %139 : vector<8x128xf32>
    %142 = arith.divf %140, %141 : vector<8x128xf32>
    %143 = vector.extract_strided_slice %135 {offsets = [0, 128], sizes = [8, 128], strides = [1, 1]} : vector<8x512xf32> to vector<8x128xf32>
    %144 = arith.negf %143 : vector<8x128xf32>
    %145 = math.exp %144 : vector<8x128xf32>
    %cst_71 = arith.constant 1.000000e+00 : f32
    %146 = vector.broadcast %cst_71 : f32 to vector<8x128xf32>
    %147 = arith.addf %146, %145 : vector<8x128xf32>
    %148 = arith.divf %146, %147 : vector<8x128xf32>
    %149 = vector.extract_strided_slice %135 {offsets = [0, 256], sizes = [8, 128], strides = [1, 1]} : vector<8x512xf32> to vector<8x128xf32>
    %150 = math.tanh %149 : vector<8x128xf32>
    %151 = vector.extract_strided_slice %135 {offsets = [0, 384], sizes = [8, 128], strides = [1, 1]} : vector<8x512xf32> to vector<8x128xf32>
    %152 = arith.negf %151 : vector<8x128xf32>
    %153 = math.exp %152 : vector<8x128xf32>
    %cst_72 = arith.constant 1.000000e+00 : f32
    %154 = vector.broadcast %cst_72 : f32 to vector<8x128xf32>
    %155 = arith.addf %154, %153 : vector<8x128xf32>
    %156 = arith.divf %154, %155 : vector<8x128xf32>
    %157 = arith.mulf %148, %136 : vector<8x128xf32>
    %158 = arith.mulf %142, %150 : vector<8x128xf32>
    %159 = arith.addf %157, %158 : vector<8x128xf32>
    %160 = math.tanh %159 : vector<8x128xf32>
    %161 = arith.mulf %156, %160 : vector<8x128xf32>
    %c3_i32_73 = arith.constant 3 : i32
    %162 = arith.muli %arg1, %c3_i32_73 : i32
    %163 = arith.addi %162, %c1_i32 : i32
    %c8_i32_74 = arith.constant 8 : i32
    %164 = arith.cmpi slt, %163, %c8_i32_74 : i32
    %c0_75 = arith.constant 0 : index
    %c0_76 = arith.constant 0 : index
    %165 = vector.load %arg17[%c0_75, %c0_76] : memref<8x128xf32, #tpu.memory_space<vmem>>, vector<8x128xf32>
    %166 = arith.select %164, %130, %165 : vector<8x128xf32>
    %c0_77 = arith.constant 0 : index
    %c0_78 = arith.constant 0 : index
    %167 = vector.load %arg18[%c0_77, %c0_78] : memref<8x128xf32, #tpu.memory_space<vmem>>, vector<8x128xf32>
    %168 = arith.select %164, %128, %167 : vector<8x128xf32>
    %c0_79 = arith.constant 0 : index
    %c0_80 = arith.constant 0 : index
    %169 = vector.load %arg19[%c0_79, %c0_80] : memref<8x128xf32, #tpu.memory_space<vmem>>, vector<8x128xf32>
    %170 = arith.select %164, %161, %169 : vector<8x128xf32>
    %c0_81 = arith.constant 0 : index
    %c0_82 = arith.constant 0 : index
    %171 = vector.load %arg20[%c0_81, %c0_82] : memref<8x128xf32, #tpu.memory_space<vmem>>, vector<8x128xf32>
    %172 = arith.select %164, %159, %171 : vector<8x128xf32>
    %c0_83 = arith.constant 0 : index
    %c0_84 = arith.constant 0 : index
    %173 = vector.load %arg17[%c0_83, %c0_84] : memref<8x128xf32, #tpu.memory_space<vmem>>, vector<8x128xf32>
    tpu.vector_store %arg17[%c0_83, %c0_84], %166 {strides = array<i32>} : memref<8x128xf32, #tpu.memory_space<vmem>>, vector<8x128xf32>,
    %c0_85 = arith.constant 0 : index
    %c0_86 = arith.constant 0 : index
    %174 = vector.load %arg18[%c0_85, %c0_86] : memref<8x128xf32, #tpu.memory_space<vmem>>, vector<8x128xf32>
    tpu.vector_store %arg18[%c0_85, %c0_86], %168 {strides = array<i32>} : memref<8x128xf32, #tpu.memory_space<vmem>>, vector<8x128xf32>,
    %c0_87 = arith.constant 0 : index
    %c0_88 = arith.constant 0 : index
    %175 = vector.load %arg19[%c0_87, %c0_88] : memref<8x128xf32, #tpu.memory_space<vmem>>, vector<8x128xf32>
    tpu.vector_store %arg19[%c0_87, %c0_88], %170 {strides = array<i32>} : memref<8x128xf32, #tpu.memory_space<vmem>>, vector<8x128xf32>,
    %c0_89 = arith.constant 0 : index
    %c0_90 = arith.constant 0 : index
    %176 = vector.load %arg20[%c0_89, %c0_90] : memref<8x128xf32, #tpu.memory_space<vmem>>, vector<8x128xf32>
    tpu.vector_store %arg20[%c0_89, %c0_90], %172 {strides = array<i32>} : memref<8x128xf32, #tpu.memory_space<vmem>>, vector<8x128xf32>,
    %c8_i32_91 = arith.constant 8 : i32
    %177 = arith.muli %c1_i32, %c8_i32_91 : i32
    %178 = tpu.assume_multiple %177, 8 : i32
    %179 = arith.index_cast %178 : i32 to index
    %c0_92 = arith.constant 0 : index
    %180 = vector.load %arg16[%179, %c0_92] : memref<24x128xf32, #tpu.memory_space<vmem>>, vector<8x128xf32>
    tpu.vector_store %arg16[%179, %c0_92], %170 {strides = array<i32>} : memref<24x128xf32, #tpu.memory_space<vmem>>, vector<8x128xf32>,
    %c2_i32 = arith.constant 2 : i32
    %c8_i32_93 = arith.constant 8 : i32
    %181 = arith.muli %c2_i32, %c8_i32_93 : i32
    %182 = tpu.assume_multiple %181, 8 : i32
    %183 = arith.index_cast %182 : i32 to index
    %c0_94 = arith.constant 0 : index
    %184 = vector.load %arg15[%183, %c0_94] : memref<24x512xf32, #tpu.memory_space<vmem>>, vector<8x512xf32>
    %c0_95 = arith.constant 0 : index
    %c0_96 = arith.constant 0 : index
    %185 = vector.load %arg17[%c0_95, %c0_96] : memref<8x128xf32, #tpu.memory_space<vmem>>, vector<8x128xf32>
    %c0_97 = arith.constant 0 : index
    %c0_98 = arith.constant 0 : index
    %186 = vector.load %arg5[%c0_97, %c0_98] : memref<128x512xf32, #tpu.memory_space<vmem>>, vector<128x512xf32>
    %cst_99 = arith.constant dense<0.000000e+00> : vector<8x512xf32>
    %187 = tpu.matmul %185, %186, %cst_99 {dimension_numbers = #tpu.dot_dimension_numbers<[1], [0], [0], [1], [0, 0, 1, 1], [], []>} : vector<8x128xf32>, vector<128x512xf32>, vector<8x512xf32> -> vector<8x512xf32>
    %188 = arith.addf %184, %187 : vector<8x512xf32>
    %c0_100 = arith.constant 0 : index
    %c0_101 = arith.constant 0 : index
    %189 = vector.load %arg18[%c0_100, %c0_101] : memref<8x128xf32, #tpu.memory_space<vmem>>, vector<8x128xf32>
    %190 = vector.extract_strided_slice %188 {offsets = [0, 0], sizes = [8, 128], strides = [1, 1]} : vector<8x512xf32> to vector<8x128xf32>
    %191 = arith.negf %190 : vector<8x128xf32>
    %192 = math.exp %191 : vector<8x128xf32>
    %cst_102 = arith.constant 1.000000e+00 : f32
    %193 = vector.broadcast %cst_102 : f32 to vector<8x128xf32>
    %194 = arith.addf %193, %192 : vector<8x128xf32>
    %195 = arith.divf %193, %194 : vector<8x128xf32>
    %196 = vector.extract_strided_slice %188 {offsets = [0, 128], sizes = [8, 128], strides = [1, 1]} : vector<8x512xf32> to vector<8x128xf32>
    %197 = arith.negf %196 : vector<8x128xf32>
    %198 = math.exp %197 : vector<8x128xf32>
    %cst_103 = arith.constant 1.000000e+00 : f32
    %199 = vector.broadcast %cst_103 : f32 to vector<8x128xf32>
    %200 = arith.addf %199, %198 : vector<8x128xf32>
    %201 = arith.divf %199, %200 : vector<8x128xf32>
    %202 = vector.extract_strided_slice %188 {offsets = [0, 256], sizes = [8, 128], strides = [1, 1]} : vector<8x512xf32> to vector<8x128xf32>
    %203 = math.tanh %202 : vector<8x128xf32>
    %204 = vector.extract_strided_slice %188 {offsets = [0, 384], sizes = [8, 128], strides = [1, 1]} : vector<8x512xf32> to vector<8x128xf32>
    %205 = arith.negf %204 : vector<8x128xf32>
    %206 = math.exp %205 : vector<8x128xf32>
    %cst_104 = arith.constant 1.000000e+00 : f32
    %207 = vector.broadcast %cst_104 : f32 to vector<8x128xf32>
    %208 = arith.addf %207, %206 : vector<8x128xf32>
    %209 = arith.divf %207, %208 : vector<8x128xf32>
    %210 = arith.mulf %201, %189 : vector<8x128xf32>
    %211 = arith.mulf %195, %203 : vector<8x128xf32>
    %212 = arith.addf %210, %211 : vector<8x128xf32>
    %213 = math.tanh %212 : vector<8x128xf32>
    %214 = arith.mulf %209, %213 : vector<8x128xf32>
    %c0_105 = arith.constant 0 : index
    %c0_106 = arith.constant 0 : index
    %215 = vector.load %arg19[%c0_105, %c0_106] : memref<8x128xf32, #tpu.memory_space<vmem>>, vector<8x128xf32>
    %216 = tpu.concatenate %214, %215 in 1 : vector<8x128xf32>, vector<8x128xf32> -> vector<8x256xf32>
    %c0_107 = arith.constant 0 : index
    %c0_108 = arith.constant 0 : index
    %217 = vector.load %arg6[%c0_107, %c0_108] : memref<256x512xf32, #tpu.memory_space<vmem>>, vector<256x512xf32>
    %cst_109 = arith.constant dense<0.000000e+00> : vector<8x512xf32>
    %218 = tpu.matmul %216, %217, %cst_109 {dimension_numbers = #tpu.dot_dimension_numbers<[1], [0], [0], [1], [0, 0, 1, 1], [], []>} : vector<8x256xf32>, vector<256x512xf32>, vector<8x512xf32> -> vector<8x512xf32>
    %219 = arith.addf %218, %12 : vector<8x512xf32>
    %c0_110 = arith.constant 0 : index
    %c0_111 = arith.constant 0 : index
    %220 = vector.load %arg20[%c0_110, %c0_111] : memref<8x128xf32, #tpu.memory_space<vmem>>, vector<8x128xf32>
    %221 = vector.extract_strided_slice %219 {offsets = [0, 0], sizes = [8, 128], strides = [1, 1]} : vector<8x512xf32> to vector<8x128xf32>
    %222 = arith.negf %221 : vector<8x128xf32>
    %223 = math.exp %222 : vector<8x128xf32>
    %cst_112 = arith.constant 1.000000e+00 : f32
    %224 = vector.broadcast %cst_112 : f32 to vector<8x128xf32>
    %225 = arith.addf %224, %223 : vector<8x128xf32>
    %226 = arith.divf %224, %225 : vector<8x128xf32>
    %227 = vector.extract_strided_slice %219 {offsets = [0, 128], sizes = [8, 128], strides = [1, 1]} : vector<8x512xf32> to vector<8x128xf32>
    %228 = arith.negf %227 : vector<8x128xf32>
    %229 = math.exp %228 : vector<8x128xf32>
    %cst_113 = arith.constant 1.000000e+00 : f32
    %230 = vector.broadcast %cst_113 : f32 to vector<8x128xf32>
    %231 = arith.addf %230, %229 : vector<8x128xf32>
    %232 = arith.divf %230, %231 : vector<8x128xf32>
    %233 = vector.extract_strided_slice %219 {offsets = [0, 256], sizes = [8, 128], strides = [1, 1]} : vector<8x512xf32> to vector<8x128xf32>
    %234 = math.tanh %233 : vector<8x128xf32>
    %235 = vector.extract_strided_slice %219 {offsets = [0, 384], sizes = [8, 128], strides = [1, 1]} : vector<8x512xf32> to vector<8x128xf32>
    %236 = arith.negf %235 : vector<8x128xf32>
    %237 = math.exp %236 : vector<8x128xf32>
    %cst_114 = arith.constant 1.000000e+00 : f32
    %238 = vector.broadcast %cst_114 : f32 to vector<8x128xf32>
    %239 = arith.addf %238, %237 : vector<8x128xf32>
    %240 = arith.divf %238, %239 : vector<8x128xf32>
    %241 = arith.mulf %232, %220 : vector<8x128xf32>
    %242 = arith.mulf %226, %234 : vector<8x128xf32>
    %243 = arith.addf %241, %242 : vector<8x128xf32>
    %244 = math.tanh %243 : vector<8x128xf32>
    %245 = arith.mulf %240, %244 : vector<8x128xf32>
    %c3_i32_115 = arith.constant 3 : i32
    %246 = arith.muli %arg1, %c3_i32_115 : i32
    %247 = arith.addi %246, %c2_i32 : i32
    %c8_i32_116 = arith.constant 8 : i32
    %248 = arith.cmpi slt, %247, %c8_i32_116 : i32
    %c0_117 = arith.constant 0 : index
    %c0_118 = arith.constant 0 : index
    %249 = vector.load %arg17[%c0_117, %c0_118] : memref<8x128xf32, #tpu.memory_space<vmem>>, vector<8x128xf32>
    %250 = arith.select %248, %214, %249 : vector<8x128xf32>
    %c0_119 = arith.constant 0 : index
    %c0_120 = arith.constant 0 : index
    %251 = vector.load %arg18[%c0_119, %c0_120] : memref<8x128xf32, #tpu.memory_space<vmem>>, vector<8x128xf32>
    %252 = arith.select %248, %212, %251 : vector<8x128xf32>
    %c0_121 = arith.constant 0 : index
    %c0_122 = arith.constant 0 : index
    %253 = vector.load %arg19[%c0_121, %c0_122] : memref<8x128xf32, #tpu.memory_space<vmem>>, vector<8x128xf32>
    %254 = arith.select %248, %245, %253 : vector<8x128xf32>
    %c0_123 = arith.constant 0 : index
    %c0_124 = arith.constant 0 : index
    %255 = vector.load %arg20[%c0_123, %c0_124] : memref<8x128xf32, #tpu.memory_space<vmem>>, vector<8x128xf32>
    %256 = arith.select %248, %243, %255 : vector<8x128xf32>
    %c0_125 = arith.constant 0 : index
    %c0_126 = arith.constant 0 : index
    %257 = vector.load %arg17[%c0_125, %c0_126] : memref<8x128xf32, #tpu.memory_space<vmem>>, vector<8x128xf32>
    tpu.vector_store %arg17[%c0_125, %c0_126], %250 {strides = array<i32>} : memref<8x128xf32, #tpu.memory_space<vmem>>, vector<8x128xf32>,
    %c0_127 = arith.constant 0 : index
    %c0_128 = arith.constant 0 : index
    %258 = vector.load %arg18[%c0_127, %c0_128] : memref<8x128xf32, #tpu.memory_space<vmem>>, vector<8x128xf32>
    tpu.vector_store %arg18[%c0_127, %c0_128], %252 {strides = array<i32>} : memref<8x128xf32, #tpu.memory_space<vmem>>, vector<8x128xf32>,
    %c0_129 = arith.constant 0 : index
    %c0_130 = arith.constant 0 : index
    %259 = vector.load %arg19[%c0_129, %c0_130] : memref<8x128xf32, #tpu.memory_space<vmem>>, vector<8x128xf32>
    tpu.vector_store %arg19[%c0_129, %c0_130], %254 {strides = array<i32>} : memref<8x128xf32, #tpu.memory_space<vmem>>, vector<8x128xf32>,
    %c0_131 = arith.constant 0 : index
    %c0_132 = arith.constant 0 : index
    %260 = vector.load %arg20[%c0_131, %c0_132] : memref<8x128xf32, #tpu.memory_space<vmem>>, vector<8x128xf32>
    tpu.vector_store %arg20[%c0_131, %c0_132], %256 {strides = array<i32>} : memref<8x128xf32, #tpu.memory_space<vmem>>, vector<8x128xf32>,
    %c8_i32_133 = arith.constant 8 : i32
    %261 = arith.muli %c2_i32, %c8_i32_133 : i32
    %262 = tpu.assume_multiple %261, 8 : i32
    %263 = arith.index_cast %262 : i32 to index
    %c0_134 = arith.constant 0 : index
    %264 = vector.load %arg16[%263, %c0_134] : memref<24x128xf32, #tpu.memory_space<vmem>>, vector<8x128xf32>
    tpu.vector_store %arg16[%263, %c0_134], %254 {strides = array<i32>} : memref<24x128xf32, #tpu.memory_space<vmem>>, vector<8x128xf32>,
    %c3_i32_135 = arith.constant 3 : i32
    %c0_136 = arith.constant 0 : index
    %c0_137 = arith.constant 0 : index
    %265 = vector.load %arg16[%c0_136, %c0_137] : memref<24x128xf32, #tpu.memory_space<vmem>>, vector<24x128xf32>
    %c0_138 = arith.constant 0 : index
    %c0_139 = arith.constant 0 : index
    %266 = vector.load %arg8[%c0_138, %c0_139] : memref<128x128xf32, #tpu.memory_space<vmem>>, vector<128x128xf32>
    %cst_140 = arith.constant dense<0.000000e+00> : vector<24x128xf32>
    %267 = tpu.matmul %265, %266, %cst_140 {dimension_numbers = #tpu.dot_dimension_numbers<[1], [0], [0], [1], [0, 0, 1, 1], [], []>} : vector<24x128xf32>, vector<128x128xf32>, vector<24x128xf32> -> vector<24x128xf32>
    %c0_141 = arith.constant 0 : index
    %c0_142 = arith.constant 0 : index
    %268 = vector.load %arg9[%c0_141, %c0_142] : memref<1x128xf32, #tpu.memory_space<vmem>>, vector<1x128xf32>
    %269 = vector.broadcast %268 : vector<1x128xf32> to vector<24x128xf32>
    %270 = arith.addf %267, %269 : vector<24x128xf32>
    %c0_143 = arith.constant 0 : index
    %c0_144 = arith.constant 0 : index
    %271 = vector.load %arg12[%c0_143, %c0_144] : memref<24x128xf32, #tpu.memory_space<vmem>>, vector<24x128xf32>
    tpu.vector_store %arg12[%c0_143, %c0_144], %270 {strides = array<i32>} : memref<24x128xf32, #tpu.memory_space<vmem>>, vector<24x128xf32>,
    %c2_i32_145 = arith.constant 2 : i32
    %272 = arith.cmpi eq, %arg1, %c2_i32_145 : i32
    %273 = arith.extui %272 : i1 to i32
    %c0_i32_146 = arith.constant 0 : i32
    %274 = arith.cmpi ne, %273, %c0_i32_146 : i32
    scf.if %274 {
      %c0_147 = arith.constant 0 : index
      %c0_148 = arith.constant 0 : index
      %275 = vector.load %arg17[%c0_147, %c0_148] : memref<8x128xf32, #tpu.memory_space<vmem>>, vector<8x128xf32>
      %c0_149 = arith.constant 0 : index
      %c0_150 = arith.constant 0 : index
      %c0_151 = arith.constant 0 : index
      %276 = vector.load %arg13[%c0_149, %c0_150, %c0_151] : memref<2x8x128xf32, #tpu.memory_space<vmem>>, vector<1x8x128xf32>
      %277 = vector.shape_cast %276 : vector<1x8x128xf32> to vector<8x128xf32>
      %278 = vector.shape_cast %275 : vector<8x128xf32> to vector<1x8x128xf32>
      tpu.vector_store %arg13[%c0_149, %c0_150, %c0_151], %278 {strides = array<i32>} : memref<2x8x128xf32, #tpu.memory_space<vmem>>, vector<1x8x128xf32>,
      %c0_152 = arith.constant 0 : index
      %c0_153 = arith.constant 0 : index
      %279 = vector.load %arg19[%c0_152, %c0_153] : memref<8x128xf32, #tpu.memory_space<vmem>>, vector<8x128xf32>
      %c1 = arith.constant 1 : index
      %c0_154 = arith.constant 0 : index
      %c0_155 = arith.constant 0 : index
      %280 = vector.load %arg13[%c1, %c0_154, %c0_155] : memref<2x8x128xf32, #tpu.memory_space<vmem>>, vector<1x8x128xf32>
      %281 = vector.shape_cast %280 : vector<1x8x128xf32> to vector<8x128xf32>
      %282 = vector.shape_cast %279 : vector<8x128xf32> to vector<1x8x128xf32>
      tpu.vector_store %arg13[%c1, %c0_154, %c0_155], %282 {strides = array<i32>} : memref<2x8x128xf32, #tpu.memory_space<vmem>>, vector<1x8x128xf32>,
      %c0_156 = arith.constant 0 : index
      %c0_157 = arith.constant 0 : index
      %283 = vector.load %arg18[%c0_156, %c0_157] : memref<8x128xf32, #tpu.memory_space<vmem>>, vector<8x128xf32>
      %c0_158 = arith.constant 0 : index
      %c0_159 = arith.constant 0 : index
      %c0_160 = arith.constant 0 : index
      %284 = vector.load %arg14[%c0_158, %c0_159, %c0_160] : memref<2x8x128xf32, #tpu.memory_space<vmem>>, vector<1x8x128xf32>
      %285 = vector.shape_cast %284 : vector<1x8x128xf32> to vector<8x128xf32>
      %286 = vector.shape_cast %283 : vector<8x128xf32> to vector<1x8x128xf32>
      tpu.vector_store %arg14[%c0_158, %c0_159, %c0_160], %286 {strides = array<i32>} : memref<2x8x128xf32, #tpu.memory_space<vmem>>, vector<1x8x128xf32>,
      %c0_161 = arith.constant 0 : index
      %c0_162 = arith.constant 0 : index
      %287 = vector.load %arg20[%c0_161, %c0_162] : memref<8x128xf32, #tpu.memory_space<vmem>>, vector<8x128xf32>
      %c1_163 = arith.constant 1 : index
      %c0_164 = arith.constant 0 : index
      %c0_165 = arith.constant 0 : index
      %288 = vector.load %arg14[%c1_163, %c0_164, %c0_165] : memref<2x8x128xf32, #tpu.memory_space<vmem>>, vector<1x8x128xf32>
      %289 = vector.shape_cast %288 : vector<1x8x128xf32> to vector<8x128xf32>
      %290 = vector.shape_cast %287 : vector<8x128xf32> to vector<1x8x128xf32>
      tpu.vector_store %arg14[%c1_163, %c0_164, %c0_165], %290 {strides = array<i32>} : memref<2x8x128xf32, #tpu.memory_space<vmem>>, vector<1x8x128xf32>,
    } else {
    }
    return
  }
  func.func @transform_0(%arg0: i32, %arg1: i32) -> (i32, i32) {
    %c3_i32 = arith.constant 3 : i32
    %0 = arith.muli %arg0, %c3_i32 : i32
    %1 = arith.addi %0, %arg1 : i32
    %c0_i32 = arith.constant 0 : i32
    %c0_i32_0 = arith.constant 0 : i32
    return %1, %c0_i32 : i32, i32
  }
  func.func @transform_1(%arg0: i32, %arg1: i32) -> (i32, i32) {
    %c0_i32 = arith.constant 0 : i32
    %c0_i32_0 = arith.constant 0 : i32
    %c0_i32_1 = arith.constant 0 : i32
    return %c0_i32, %c0_i32_0 : i32, i32
  }
  func.func @transform_2(%arg0: i32, %arg1: i32) -> (i32, i32) {
    %c0_i32 = arith.constant 0 : i32
    %c0_i32_0 = arith.constant 0 : i32
    %c0_i32_1 = arith.constant 0 : i32
    return %c0_i32, %c0_i32_0 : i32, i32
  }
  func.func @transform_3(%arg0: i32, %arg1: i32) -> (i32, i32) {
    %c0_i32 = arith.constant 0 : i32
    %c0_i32_0 = arith.constant 0 : i32
    %c0_i32_1 = arith.constant 0 : i32
    return %c0_i32, %c0_i32_0 : i32, i32
  }
  func.func @transform_4(%arg0: i32, %arg1: i32) -> (i32, i32) {
    %c0_i32 = arith.constant 0 : i32
    %c0_i32_0 = arith.constant 0 : i32
    %c0_i32_1 = arith.constant 0 : i32
    return %c0_i32, %c0_i32_0 : i32, i32
  }
  func.func @transform_5(%arg0: i32, %arg1: i32) -> (i32, i32) {
    %c0_i32 = arith.constant 0 : i32
    %c0_i32_0 = arith.constant 0 : i32
    %c0_i32_1 = arith.constant 0 : i32
    return %c0_i32, %c0_i32_0 : i32, i32
  }
  func.func @transform_6(%arg0: i32, %arg1: i32) -> (i32, i32) {
    %c0_i32 = arith.constant 0 : i32
    %c0_i32_0 = arith.constant 0 : i32
    %c0_i32_1 = arith.constant 0 : i32
    return %c0_i32, %c0_i32_0 : i32, i32
  }
  func.func @transform_7(%arg0: i32, %arg1: i32) -> (i32, i32) {
    %c0_i32 = arith.constant 0 : i32
    %c0_i32_0 = arith.constant 0 : i32
    %c0_i32_1 = arith.constant 0 : i32
    return %c0_i32, %c0_i32_0 : i32, i32
  }
  func.func @transform_8(%arg0: i32, %arg1: i32) -> (i32, i32, i32) {
    %c0_i32 = arith.constant 0 : i32
    %c0_i32_0 = arith.constant 0 : i32
    %c0_i32_1 = arith.constant 0 : i32
    return %c0_i32, %arg0, %c0_i32_0 : i32, i32, i32
  }
  func.func @transform_9(%arg0: i32, %arg1: i32) -> (i32, i32, i32) {
    %c0_i32 = arith.constant 0 : i32
    %c0_i32_0 = arith.constant 0 : i32
    %c0_i32_1 = arith.constant 0 : i32
    return %c0_i32, %arg0, %c0_i32_0 : i32, i32, i32
  }
  func.func @transform_10(%arg0: i32, %arg1: i32) -> (i32, i32) {
    %c3_i32 = arith.constant 3 : i32
    %0 = arith.muli %arg0, %c3_i32 : i32
    %1 = arith.addi %0, %arg1 : i32
    %c0_i32 = arith.constant 0 : i32
    %c0_i32_0 = arith.constant 0 : i32
    return %1, %c0_i32 : i32, i32
  }
  func.func @transform_11(%arg0: i32, %arg1: i32) -> (i32, i32, i32) {
    %c0_i32 = arith.constant 0 : i32
    %c0_i32_0 = arith.constant 0 : i32
    %c0_i32_1 = arith.constant 0 : i32
    return %c0_i32, %arg0, %c0_i32_0 : i32, i32, i32
  }
  func.func @transform_12(%arg0: i32, %arg1: i32) -> (i32, i32, i32) {
    %c0_i32 = arith.constant 0 : i32
    %c0_i32_0 = arith.constant 0 : i32
    %c0_i32_1 = arith.constant 0 : i32
    return %c0_i32, %arg0, %c0_i32_0 : i32, i32, i32
  }
}

</mosaic_0001>

<llo_original>
// kernel: tpu_custom_call.1
$region0: #{tpu_custom_call.1}
  #allocation0 [shape = 'u32[]', space=smem, size = 0x4, offset = 0x4, fixed_abs, tag = 'smem constant byte address 0x4 - core index']
  #allocation1 [shape = 'u32[144,128]{1,0:T(1,128)}', space=vmem, size = 0x12000, scoped, tag = 'internal scratch']
  #allocation2 [shape = 'f32[24,512]{1,0:T(8,128)}', space=vmem, size = 0xc000, scoped, tag = 'scratch operand']
  #allocation3 [shape = 'f32[24,128]{1,0:T(8,128)}', space=vmem, size = 0x3000, scoped, tag = 'scratch operand']
  #allocation4 [shape = 'f32[8,128]{1,0:T(8,128)}', space=vmem, size = 0x1000, scoped, tag = 'scratch operand']
  #allocation5 [shape = 'f32[8,128]{1,0:T(8,128)}', space=vmem, size = 0x1000, scoped, tag = 'scratch operand']
  #allocation6 [shape = 'f32[8,128]{1,0:T(8,128)}', space=vmem, size = 0x1000, scoped, tag = 'scratch operand']
  #allocation7 [shape = 'f32[8,128]{1,0:T(8,128)}', space=vmem, size = 0x1000, scoped, tag = 'scratch operand']
  %s0 = inlined_call_operand.vmem [shape: f32[72,16], index: 0, kind: input, shape index: {}]
  %s1 = inlined_call_operand.vmem [shape: f32[16,512], index: 1, kind: input, shape index: {}]
  %s2 = inlined_call_operand.hbm [shape: f32[1,512], index: 2, kind: input, shape index: {}]
  %s3 = inlined_call_operand.hbm [shape: f32[128,512], index: 3, kind: input, shape index: {}]
  %s4 = inlined_call_operand.hbm [shape: f32[256,512], index: 4, kind: input, shape index: {}]
  %s5 = inlined_call_operand.vmem [shape: f32[1,512], index: 5, kind: input, shape index: {}]
  %s6 = inlined_call_operand.hbm [shape: f32[128,128], index: 6, kind: input, shape index: {}]
  %s7 = inlined_call_operand.vmem [shape: f32[1,128], index: 7, kind: input, shape index: {}]
  %s8 = inlined_call_operand.vmem [shape: f32[2,8,128], index: 8, kind: input, shape index: {}]
  %s9 = inlined_call_operand.vmem [shape: f32[2,8,128], index: 9, kind: input, shape index: {}]
  %s10 = inlined_call_operand.hbm [shape: f32[72,128], index: 10, kind: output, shape index: {0}]
  %s11 = inlined_call_operand.hbm [shape: f32[2,8,128], index: 11, kind: output, shape index: {1}]
  %s12 = inlined_call_operand.hbm [shape: f32[2,8,128], index: 12, kind: output, shape index: {2}]
  %13 = xla_tuple %s10, %s11, %s12
  %s14 = sld [smem:[#allocation0]]
  $region113: #{tpu_custom_call.1} parent=0
    _
  %s16 = ssub.s32 1, %s14
  %s17 = scalar_select 0, %s16, %s14
  $region1: #{tpu_custom_call.1} parent=0
    #allocation8 [shape = 'u8[2048]{0}', space=vmem, size = 0x800, scoped, tag = 'input window, operand 2, single buffered']
    #allocation9 [shape = 's32[2]{0}', space=sflag, size = 0x8, scoped, tag = 'scoped memory for tpu_custom_call.1']
    #allocation10 [shape = 's32[2]{0}', space=sflag, size = 0x8, scoped, tag = 'scoped memory for tpu_custom_call.1']
    #allocation11 [shape = 'u8[262144]{0}', space=vmem, size = 0x40000, scoped, tag = 'input window, operand 3, single buffered']
    #allocation12 [shape = 's32[1]{0}', space=sflag, size = 0x4, scoped, tag = 'scoped memory for tpu_custom_call.1']
    #allocation13 [shape = 'u8[524288]{0}', space=vmem, size = 0x80000, scoped, tag = 'input window, operand 4, single buffered']
    #allocation14 [shape = 'u8[65536]{0}', space=vmem, size = 0x10000, scoped, tag = 'input window, operand 6, single buffered']
    #allocation15 [shape = 's32[1]{0}', space=sflag, size = 0x4, scoped, tag = 'scoped memory for tpu_custom_call.1']
    #allocation16 [shape = 'u8[24576]{0}', space=vmem, size = 0x6000, scoped, tag = 'output window, operand 0']
    #allocation17 [shape = 'u8[8192]{0}', space=vmem, size = 0x2000, scoped, tag = 'output window, operand 1, single buffered']
    #allocation18 [shape = 's32[1]{0}', space=sflag, size = 0x4, scoped, tag = 'scoped memory for tpu_custom_call.1']
    #allocation19 [shape = 'u8[8192]{0}', space=vmem, size = 0x2000, scoped, tag = 'output window, operand 2, single buffered']
    %18 = vsyncpa [#allocation9], 0
    %19 = vsyncpa [#allocation12], 0
    %20 = vsyncpa [#allocation15], 0
    %21 = vsyncpa [#allocation10], 0
    %s22 = scalar_lea.sflag [#allocation10], 1
    %23 = vsyncpa %s22, 0
    %24 = vsyncpa [#allocation18], 0
    loop: start=0, step=1, limit=5
    $region2: #{tpu_custom_call.1} parent=1 // loop_pre_header
      _
    $region3: #{tpu_custom_call.1} parent=1 // loop_header
      %s26 = sphi 0, %s30
      %p27 = scmp.ge.s32.totalorder %s26, 5
      %s33 = sphi 0, %s45
      %s34 = sphi 0, %s41
      %s35 = sphi 0, %s33
      %s36 = sphi 0, %s34
      %s37 = sphi 0, %s35
      %s38 = sphi 0, %s36
      %s52 = sphi 0, %s54
      %s55 = sphi 0, %s52
      %s56 = sphi 0, %s55
      %s72 = sphi 0, %s56
      %s76 = sphi 0, %s76
      %s78 = sphi 0, %s76
      %s79 = sphi 0, %s78
      %s93 = sphi 0, %s79
      %s97 = sphi 0, %s97
      %s99 = sphi 0, %s97
      %s100 = sphi 0, %s99
      %s114 = sphi 0, %s100
      %s118 = sphi 0, %s118
      %s120 = sphi 0, %s118
      %s121 = sphi 0, %s120
      %s135 = sphi 0, %s121
      %s139 = sphi 0, %s139
      %s141 = sphi 0, %s139
      %s142 = sphi 0, %s141
      %s156 = sphi 0, %s142
      %s160 = sphi 0, %s160
      %s162 = sphi 0, %s160
      %s163 = sphi 0, %s162
      %s177 = sphi 0, %s163
      %s181 = sphi 0, %s181
      %s183 = sphi 0, %s181
      %s184 = sphi 0, %s183
      %s198 = sphi 0, %s184
      %s202 = sphi 0, %s202
      %s204 = sphi 0, %s202
      %s205 = sphi 0, %s204
      %s219 = sphi 0, %s205
      %s225 = sphi 0, %s227
      %s228 = sphi 0, %s225
      %s229 = sphi 0, %s228
      %s245 = sphi 0, %s229
      %s251 = sphi 0, %s253
      %s254 = sphi 0, %s251
      %s255 = sphi 0, %s254
      %s271 = sphi 0, %s255
      %s281 = sphi 0, %s283
      %s284 = sphi 0, %s281
      %s285 = sphi 0, %s284
      %s301 = sphi 0, %s285
      %s307 = sphi 0, %s309
      %s310 = sphi 0, %s307
      %s311 = sphi 0, %s310
      %s327 = sphi 0, %s311
      %s333 = sphi 0, %s335
      %s336 = sphi 0, %s333
      %s337 = sphi 0, %s336
      %s353 = sphi 0, %s337
    $region4: #{tpu_custom_call.1} parent=1 // loop_header_branch
      %29 = sbr.rel (%p27) target = $region8
    $region5: #{tpu_custom_call.1} parent=1 // loop_body
      %s31 = ssub.s32 %s26, 1
      %s32 = ssub.s32 %s26, 2
      %s39 = sadd.s32 1, %s34
      %p40 = scmp.ge.s32.totalorder %s39, 3
      %s41 = scalar_select %p40, 0, %s39
      %s42 = sadd.s32 1, %s33
      %s43 = scalar_select %p40, %s42, %s33
      %p44 = scmp.ge.s32.totalorder %s43, 1
      %s45 = scalar_select %p44, 0, %s43
      %s46 = smul.u32 %s33, 3
      %s47 = sadd.s32 %s46, %s34
      %s48 = smul.u32 %s45, 3
      %s49 = sadd.s32 %s48, %s41
      %s50 = ssub.s32 %s47, %s49
      %p51 = scmp.eq.s32.totalorder %s50, 0
      %s53 = sadd.s32 %s52, 1
      %s54 = scalar_select %p51, %s52, %s53
      %p57 = pneg %p51
      %p58 = scmp.eq.s32.totalorder %s26, 2
      %p59 = por %p57, %p58
      %p60 = scmp.ne.s32.totalorder %s52, %s55
      %p61 = scmp.eq.s32.totalorder %s26, 0
      %p62 = por %p60, %p61
      %p63 = scmp.ne.s32.totalorder %s52, %s55
      %p64 = scmp.eq.s32.totalorder %s31, 2
      %p65 = por %p63, %p64
      %p66 = scmp.ne.s32.totalorder %s55, %s56
      %p67 = scmp.eq.s32.totalorder %s31, 0
      %p68 = por %p66, %p67
      %p69 = scmp.ne.s32.totalorder %s55, %s56
      %p70 = scmp.eq.s32.totalorder %s32, 2
      %p71 = por %p69, %p70
      %p73 = scmp.ne.s32.totalorder %s56, %s72
      %p74 = scmp.eq.s32.totalorder %s32, 0
      %p75 = por %p73, %p74
      %s77 = sadd.s32 %s76, 1
      %p80 = scmp.eq.s32.totalorder %s26, 2
      %p81 = scmp.ne.s32.totalorder %s76, %s78
      %p82 = scmp.eq.s32.totalorder %s26, 0
      %p83 = por %p81, %p82
      %p84 = scmp.ne.s32.totalorder %s76, %s78
      %p85 = scmp.eq.s32.totalorder %s31, 2
      %p86 = por %p84, %p85
      %p87 = scmp.ne.s32.totalorder %s78, %s79
      %p88 = scmp.eq.s32.totalorder %s31, 0
      %p89 = por %p87, %p88
      %p90 = scmp.ne.s32.totalorder %s78, %s79
      %p91 = scmp.eq.s32.totalorder %s32, 2
      %p92 = por %p90, %p91
      %p94 = scmp.ne.s32.totalorder %s79, %s93
      %p95 = scmp.eq.s32.totalorder %s32, 0
      %p96 = por %p94, %p95
      %s98 = sadd.s32 %s97, 1
      %p101 = scmp.eq.s32.totalorder %s26, 2
      %p102 = scmp.ne.s32.totalorder %s97, %s99
      %p103 = scmp.eq.s32.totalorder %s26, 0
      %p104 = por %p102, %p103
      %p105 = scmp.ne.s32.totalorder %s97, %s99
      %p106 = scmp.eq.s32.totalorder %s31, 2
      %p107 = por %p105, %p106
      %p108 = scmp.ne.s32.totalorder %s99, %s100
      %p109 = scmp.eq.s32.totalorder %s31, 0
      %p110 = por %p108, %p109
      %p111 = scmp.ne.s32.totalorder %s99, %s100
      %p112 = scmp.eq.s32.totalorder %s32, 2
      %p113 = por %p111, %p112
      %p115 = scmp.ne.s32.totalorder %s100, %s114
      %p116 = scmp.eq.s32.totalorder %s32, 0
      %p117 = por %p115, %p116
      %s119 = sadd.s32 %s118, 1
      %p122 = scmp.eq.s32.totalorder %s26, 2
      %p123 = scmp.ne.s32.totalorder %s118, %s120
      %p124 = scmp.eq.s32.totalorder %s26, 0
      %p125 = por %p123, %p124
      %p126 = scmp.ne.s32.totalorder %s118, %s120
      %p127 = scmp.eq.s32.totalorder %s31, 2
      %p128 = por %p126, %p127
      %p129 = scmp.ne.s32.totalorder %s120, %s121
      %p130 = scmp.eq.s32.totalorder %s31, 0
      %p131 = por %p129, %p130
      %p132 = scmp.ne.s32.totalorder %s120, %s121
      %p133 = scmp.eq.s32.totalorder %s32, 2
      %p134 = por %p132, %p133
      %p136 = scmp.ne.s32.totalorder %s121, %s135
      %p137 = scmp.eq.s32.totalorder %s32, 0
      %p138 = por %p136, %p137
      %s140 = sadd.s32 %s139, 1
      %p143 = scmp.eq.s32.totalorder %s26, 2
      %p144 = scmp.ne.s32.totalorder %s139, %s141
      %p145 = scmp.eq.s32.totalorder %s26, 0
      %p146 = por %p144, %p145
      %p147 = scmp.ne.s32.totalorder %s139, %s141
      %p148 = scmp.eq.s32.totalorder %s31, 2
      %p149 = por %p147, %p148
      %p150 = scmp.ne.s32.totalorder %s141, %s142
      %p151 = scmp.eq.s32.totalorder %s31, 0
      %p152 = por %p150, %p151
      %p153 = scmp.ne.s32.totalorder %s141, %s142
      %p154 = scmp.eq.s32.totalorder %s32, 2
      %p155 = por %p153, %p154
      %p157 = scmp.ne.s32.totalorder %s142, %s156
      %p158 = scmp.eq.s32.totalorder %s32, 0
      %p159 = por %p157, %p158
      %s161 = sadd.s32 %s160, 1
      %p164 = scmp.eq.s32.totalorder %s26, 2
      %p165 = scmp.ne.s32.totalorder %s160, %s162
      %p166 = scmp.eq.s32.totalorder %s26, 0
      %p167 = por %p165, %p166
      %p168 = scmp.ne.s32.totalorder %s160, %s162
      %p169 = scmp.eq.s32.totalorder %s31, 2
      %p170 = por %p168, %p169
      %p171 = scmp.ne.s32.totalorder %s162, %s163
      %p172 = scmp.eq.s32.totalorder %s31, 0
      %p173 = por %p171, %p172
      %p174 = scmp.ne.s32.totalorder %s162, %s163
      %p175 = scmp.eq.s32.totalorder %s32, 2
      %p176 = por %p174, %p175
      %p178 = scmp.ne.s32.totalorder %s163, %s177
      %p179 = scmp.eq.s32.totalorder %s32, 0
      %p180 = por %p178, %p179
      %s182 = sadd.s32 %s181, 1
      %p185 = scmp.eq.s32.totalorder %s26, 2
      %p186 = scmp.ne.s32.totalorder %s181, %s183
      %p187 = scmp.eq.s32.totalorder %s26, 0
      %p188 = por %p186, %p187
      %p189 = scmp.ne.s32.totalorder %s181, %s183
      %p190 = scmp.eq.s32.totalorder %s31, 2
      %p191 = por %p189, %p190
      %p192 = scmp.ne.s32.totalorder %s183, %s184
      %p193 = scmp.eq.s32.totalorder %s31, 0
      %p194 = por %p192, %p193
      %p195 = scmp.ne.s32.totalorder %s183, %s184
      %p196 = scmp.eq.s32.totalorder %s32, 2
      %p197 = por %p195, %p196
      %p199 = scmp.ne.s32.totalorder %s184, %s198
      %p200 = scmp.eq.s32.totalorder %s32, 0
      %p201 = por %p199, %p200
      %s203 = sadd.s32 %s202, 1
      %p206 = scmp.eq.s32.totalorder %s26, 2
      %p207 = scmp.ne.s32.totalorder %s202, %s204
      %p208 = scmp.eq.s32.totalorder %s26, 0
      %p209 = por %p207, %p208
      %p210 = scmp.ne.s32.totalorder %s202, %s204
      %p211 = scmp.eq.s32.totalorder %s31, 2
      %p212 = por %p210, %p211
      %p213 = scmp.ne.s32.totalorder %s204, %s205
      %p214 = scmp.eq.s32.totalorder %s31, 0
      %p215 = por %p213, %p214
      %p216 = scmp.ne.s32.totalorder %s204, %s205
      %p217 = scmp.eq.s32.totalorder %s32, 2
      %p218 = por %p216, %p217
      %p220 = scmp.ne.s32.totalorder %s205, %s219
      %p221 = scmp.eq.s32.totalorder %s32, 0
      %p222 = por %p220, %p221
      %s223 = ssub.s32 %s33, %s45
      %p224 = scmp.eq.s32.totalorder %s223, 0
      %s226 = sadd.s32 %s225, 1
      %s227 = scalar_select %p224, %s225, %s226
      %p230 = pneg %p224
      %p231 = scmp.eq.s32.totalorder %s26, 2
      %p232 = por %p230, %p231
      %p233 = scmp.ne.s32.totalorder %s225, %s228
      %p234 = scmp.eq.s32.totalorder %s26, 0
      %p235 = por %p233, %p234
      %p236 = scmp.ne.s32.totalorder %s225, %s228
      %p237 = scmp.eq.s32.totalorder %s31, 2
      %p238 = por %p236, %p237
      %p239 = scmp.ne.s32.totalorder %s228, %s229
      %p240 = scmp.eq.s32.totalorder %s31, 0
      %p241 = por %p239, %p240
      %p242 = scmp.ne.s32.totalorder %s228, %s229
      %p243 = scmp.eq.s32.totalorder %s32, 2
      %p244 = por %p242, %p243
      %p246 = scmp.ne.s32.totalorder %s229, %s245
      %p247 = scmp.eq.s32.totalorder %s32, 0
      %p248 = por %p246, %p247
      %s249 = ssub.s32 %s33, %s45
      %p250 = scmp.eq.s32.totalorder %s249, 0
      %s252 = sadd.s32 %s251, 1
      %s253 = scalar_select %p250, %s251, %s252
      %p256 = pneg %p250
      %p257 = scmp.eq.s32.totalorder %s26, 2
      %p258 = por %p256, %p257
      %p259 = scmp.ne.s32.totalorder %s251, %s254
      %p260 = scmp.eq.s32.totalorder %s26, 0
      %p261 = por %p259, %p260
      %p262 = scmp.ne.s32.totalorder %s251, %s254
      %p263 = scmp.eq.s32.totalorder %s31, 2
      %p264 = por %p262, %p263
      %p265 = scmp.ne.s32.totalorder %s254, %s255
      %p266 = scmp.eq.s32.totalorder %s31, 0
      %p267 = por %p265, %p266
      %p268 = scmp.ne.s32.totalorder %s254, %s255
      %p269 = scmp.eq.s32.totalorder %s32, 2
      %p270 = por %p268, %p269
      %p272 = scmp.ne.s32.totalorder %s255, %s271
      %p273 = scmp.eq.s32.totalorder %s32, 0
      %p274 = por %p272, %p273
      %s275 = smul.u32 %s33, 3
      %s276 = sadd.s32 %s275, %s34
      %s277 = smul.u32 %s45, 3
      %s278 = sadd.s32 %s277, %s41
      %s279 = ssub.s32 %s276, %s278
      %p280 = scmp.eq.s32.totalorder %s279, 0
      %s282 = sadd.s32 %s281, 1
      %s283 = scalar_select %p280, %s281, %s282
      %p286 = pneg %p280
      %p287 = scmp.eq.s32.totalorder %s26, 2
      %p288 = por %p286, %p287
      %p289 = scmp.ne.s32.totalorder %s281, %s284
      %p290 = scmp.eq.s32.totalorder %s26, 0
      %p291 = por %p289, %p290
      %p292 = scmp.ne.s32.totalorder %s281, %s284
      %p293 = scmp.eq.s32.totalorder %s31, 2
      %p294 = por %p292, %p293
      %p295 = scmp.ne.s32.totalorder %s284, %s285
      %p296 = scmp.eq.s32.totalorder %s31, 0
      %p297 = por %p295, %p296
      %p298 = scmp.ne.s32.totalorder %s284, %s285
      %p299 = scmp.eq.s32.totalorder %s32, 2
      %p300 = por %p298, %p299
      %p302 = scmp.ne.s32.totalorder %s285, %s301
      %p303 = scmp.eq.s32.totalorder %s32, 0
      %p304 = por %p302, %p303
      %s305 = ssub.s32 %s33, %s45
      %p306 = scmp.eq.s32.totalorder %s305, 0
      %s308 = sadd.s32 %s307, 1
      %s309 = scalar_select %p306, %s307, %s308
      %p312 = pneg %p306
      %p313 = scmp.eq.s32.totalorder %s26, 2
      %p314 = por %p312, %p313
      %p315 = scmp.ne.s32.totalorder %s307, %s310
      %p316 = scmp.eq.s32.totalorder %s26, 0
      %p317 = por %p315, %p316
      %p318 = scmp.ne.s32.totalorder %s307, %s310
      %p319 = scmp.eq.s32.totalorder %s31, 2
      %p320 = por %p318, %p319
      %p321 = scmp.ne.s32.totalorder %s310, %s311
      %p322 = scmp.eq.s32.totalorder %s31, 0
      %p323 = por %p321, %p322
      %p324 = scmp.ne.s32.totalorder %s310, %s311
      %p325 = scmp.eq.s32.totalorder %s32, 2
      %p326 = por %p324, %p325
      %p328 = scmp.ne.s32.totalorder %s311, %s327
      %p329 = scmp.eq.s32.totalorder %s32, 0
      %p330 = por %p328, %p329
      %s331 = ssub.s32 %s33, %s45
      %p332 = scmp.eq.s32.totalorder %s331, 0
      %s334 = sadd.s32 %s333, 1
      %s335 = scalar_select %p332, %s333, %s334
      %p338 = pneg %p332
      %p339 = scmp.eq.s32.totalorder %s26, 2
      %p340 = por %p338, %p339
      %p341 = scmp.ne.s32.totalorder %s333, %s336
      %p342 = scmp.eq.s32.totalorder %s26, 0
      %p343 = por %p341, %p342
      %p344 = scmp.ne.s32.totalorder %s333, %s336
      %p345 = scmp.eq.s32.totalorder %s31, 2
      %p346 = por %p344, %p345
      %p347 = scmp.ne.s32.totalorder %s336, %s337
      %p348 = scmp.eq.s32.totalorder %s31, 0
      %p349 = por %p347, %p348
      %p350 = scmp.ne.s32.totalorder %s336, %s337
      %p351 = scmp.eq.s32.totalorder %s32, 2
      %p352 = por %p350, %p351
      %p354 = scmp.ne.s32.totalorder %s337, %s353
      %p355 = scmp.eq.s32.totalorder %s32, 0
      %p356 = por %p354, %p355
      %p357 = scmp.le.s32.totalorder 1, %s26
      %p358 = scmp.lt.s32.totalorder %s26, 4
      %p359 = pnand %p357, %p358
      %p360 = pneg %p359
      // Predicated region
      $region9: #{tpu_custom_call.1} parent=5 // pred_check
        _
      $region10: #{tpu_custom_call.1} parent=5 // pred_check_branch
        %362 = sbr.rel (%p359) target = $region12
      $region11: #{tpu_custom_call.1} parent=5 // pred_region
        %s363 = ssub.s32 %s26, 1
        // Predicated region
        $region13: #{tpu_custom_call.1} parent=11 // pred_check
          %p364 = pneg %p89
        $region14: #{tpu_custom_call.1} parent=11 // pred_check_branch
          %366 = sbr.rel (%p364) target = $region16
        $region15: #{tpu_custom_call.1} parent=11 // pred_region
          _
        $region16: #{tpu_custom_call.1} parent=11 // pred_fallthru
          _
        // Predicated region
        $region17: #{tpu_custom_call.1} parent=11 // pred_check
          %p367 = pneg %p110
        $region18: #{tpu_custom_call.1} parent=11 // pred_check_branch
          %369 = sbr.rel (%p367) target = $region20
        $region19: #{tpu_custom_call.1} parent=11 // pred_region
          %s371 = ssub.s32 64, 64
          %372 = vsyncadd [#allocation9], %s371
          %s374 = sshll.u32 [#allocation8], 4
          %s375 = int_to_ptr.vmem [resolvable:$true] %s374
          %377 = dma.hbm_to_vmem [thread:$0]  %s2, 64, %s375, [#allocation9]
        $region20: #{tpu_custom_call.1} parent=11 // pred_fallthru
          _
        // Predicated region
        $region21: #{tpu_custom_call.1} parent=11 // pred_check
          %p378 = pneg %p131
        $region22: #{tpu_custom_call.1} parent=11 // pred_check_branch
          %380 = sbr.rel (%p378) target = $region24
        $region23: #{tpu_custom_call.1} parent=11 // pred_region
          %s382 = ssub.s32 8192, 8192
          %383 = vsyncadd [#allocation12], %s382
          %s384 = sshll.u32 [#allocation11], 4
          %s385 = int_to_ptr.vmem [resolvable:$true] %s384
          %390 = dma.hbm_to_vmem [thread:$0]  %s3, 8192, %s385, [#allocation12], 512, 512, 32
        $region24: #{tpu_custom_call.1} parent=11 // pred_fallthru
          _
        // Predicated region
        $region25: #{tpu_custom_call.1} parent=11 // pred_check
          %p391 = pneg %p152
        $region26: #{tpu_custom_call.1} parent=11 // pred_check_branch
          %393 = sbr.rel (%p391) target = $region28
        $region27: #{tpu_custom_call.1} parent=11 // pred_region
          %s395 = ssub.s32 16384, 16384
          %396 = vsyncadd [#allocation12], %s395
          %s397 = sshll.u32 [#allocation13], 4
          %s398 = int_to_ptr.vmem [resolvable:$true] %s397
          %403 = dma.hbm_to_vmem [thread:$0]  %s4, 16384, %s398, [#allocation12], 512, 512, 32
        $region28: #{tpu_custom_call.1} parent=11 // pred_fallthru
          _
        // Predicated region
        $region29: #{tpu_custom_call.1} parent=11 // pred_check
          %p404 = pneg %p173
        $region30: #{tpu_custom_call.1} parent=11 // pred_check_branch
          %406 = sbr.rel (%p404) target = $region32
        $region31: #{tpu_custom_call.1} parent=11 // pred_region
          _
        $region32: #{tpu_custom_call.1} parent=11 // pred_fallthru
          _
        // Predicated region
        $region33: #{tpu_custom_call.1} parent=11 // pred_check
          %p407 = pneg %p194
        $region34: #{tpu_custom_call.1} parent=11 // pred_check_branch
          %409 = sbr.rel (%p407) target = $region36
        $region35: #{tpu_custom_call.1} parent=11 // pred_region
          %s411 = ssub.s32 2048, 2048
          %412 = vsyncadd [#allocation15], %s411
          %s413 = sshll.u32 [#allocation14], 4
          %s414 = int_to_ptr.vmem [resolvable:$true] %s413
          %419 = dma.hbm_to_vmem [thread:$0]  %s6, 2048, %s414, [#allocation15], 128, 128, 8
        $region36: #{tpu_custom_call.1} parent=11 // pred_fallthru
          _
        // Predicated region
        $region37: #{tpu_custom_call.1} parent=11 // pred_check
          %p420 = pneg %p215
        $region38: #{tpu_custom_call.1} parent=11 // pred_check_branch
          %422 = sbr.rel (%p420) target = $region40
        $region39: #{tpu_custom_call.1} parent=11 // pred_region
          _
        $region40: #{tpu_custom_call.1} parent=11 // pred_fallthru
          _
        // Predicated region
        $region41: #{tpu_custom_call.1} parent=11 // pred_check
          %p423 = pneg %p241
        $region42: #{tpu_custom_call.1} parent=11 // pred_check_branch
          %425 = sbr.rel (%p423) target = $region44
        $region43: #{tpu_custom_call.1} parent=11 // pred_region
          %p426 = scmp.lt.s32.totalorder %s35, 0
          %s427 = scalar_select %p426, %s35, 0
          %s428 = smul.addr %s427, 8
          %s429 = scalar_lea.vmem %s8, %s428
        $region44: #{tpu_custom_call.1} parent=11 // pred_fallthru
          _
        // Predicated region
        $region45: #{tpu_custom_call.1} parent=11 // pred_check
          %p430 = pneg %p267
        $region46: #{tpu_custom_call.1} parent=11 // pred_check_branch
          %432 = sbr.rel (%p430) target = $region48
        $region47: #{tpu_custom_call.1} parent=11 // pred_region
          %p433 = scmp.lt.s32.totalorder %s35, 0
          %s434 = scalar_select %p433, %s35, 0
          %s435 = smul.addr %s434, 8
          %s436 = scalar_lea.vmem %s9, %s435
        $region48: #{tpu_custom_call.1} parent=11 // pred_fallthru
          _
      $region12: #{tpu_custom_call.1} parent=5 // pred_fallthru
        _
      %p437 = scmp.lt.s32.totalorder %s26, 3
      // Predicated region
      $region49: #{tpu_custom_call.1} parent=5 // pred_check
        %p438 = pneg %p437
      $region50: #{tpu_custom_call.1} parent=5 // pred_check_branch
        %440 = sbr.rel (%p438) target = $region52
      $region51: #{tpu_custom_call.1} parent=5 // pred_region
        // Predicated region
        $region53: #{tpu_custom_call.1} parent=51 // pred_check
          %p441 = pneg %p62
        $region54: #{tpu_custom_call.1} parent=51 // pred_check_branch
          %443 = sbr.rel (%p441) target = $region56
        $region55: #{tpu_custom_call.1} parent=51 // pred_region
          %s444 = smul.u32 %s33, 3
          %s445 = sadd.s32 %s444, %s34
          %s446 = smul.u32 3, %s445
          %p447 = scmp.lt.s32.totalorder %s446, 8
          %s448 = scalar_select %p447, %s446, 8
          %s449 = smul.addr %s448, 8
          %s450 = scalar_lea.vmem %s0, %s449
          %s451 = smul.u32 %s33, 3
          %s452 = sadd.s32 %s451, %s34
          %s453 = smul.u32 3, %s452
        $region56: #{tpu_custom_call.1} parent=51 // pred_fallthru
          _
      $region52: #{tpu_custom_call.1} parent=5 // pred_fallthru
        _
      %p454 = scmp.le.s32.totalorder 1, %s26
      %p455 = scmp.lt.s32.totalorder %s26, 4
      %p456 = pnand %p454, %p455
      %p457 = pneg %p456
      // Predicated region
      $region57: #{tpu_custom_call.1} parent=5 // pred_check
        _
      $region58: #{tpu_custom_call.1} parent=5 // pred_check_branch
        %459 = sbr.rel (%p456) target = $region60
      $region59: #{tpu_custom_call.1} parent=5 // pred_region
        %s460 = ssub.s32 %s26, 1
        // Predicated region
        $region61: #{tpu_custom_call.1} parent=59 // pred_check
          %p461 = pneg %p110
        $region62: #{tpu_custom_call.1} parent=59 // pred_check_branch
          %463 = sbr.rel (%p461) target = $region64
        $region63: #{tpu_custom_call.1} parent=59 // pred_region
          %464 = dma.done [#allocation9], 64
        $region64: #{tpu_custom_call.1} parent=59 // pred_fallthru
          _
        // Predicated region
        $region65: #{tpu_custom_call.1} parent=59 // pred_check
          %p465 = pneg %p131
        $region66: #{tpu_custom_call.1} parent=59 // pred_check_branch
          %467 = sbr.rel (%p465) target = $region68
        $region67: #{tpu_custom_call.1} parent=59 // pred_region
          %468 = dma.done [#allocation12], 8192
        $region68: #{tpu_custom_call.1} parent=59 // pred_fallthru
          _
        // Predicated region
        $region69: #{tpu_custom_call.1} parent=59 // pred_check
          %p469 = pneg %p152
        $region70: #{tpu_custom_call.1} parent=59 // pred_check_branch
          %471 = sbr.rel (%p469) target = $region72
        $region71: #{tpu_custom_call.1} parent=59 // pred_region
          %472 = dma.done [#allocation12], 16384
        $region72: #{tpu_custom_call.1} parent=59 // pred_fallthru
          _
        // Predicated region
        $region73: #{tpu_custom_call.1} parent=59 // pred_check
          %p473 = pneg %p194
        $region74: #{tpu_custom_call.1} parent=59 // pred_check_branch
          %475 = sbr.rel (%p473) target = $region76
        $region75: #{tpu_custom_call.1} parent=59 // pred_region
          %476 = dma.done [#allocation15], 2048
        $region76: #{tpu_custom_call.1} parent=59 // pred_fallthru
          _
        %s477 = smul.u32 %s35, 3
        %s478 = sadd.s32 %s477, %s36
        %s479 = smul.u32 3, %s478
        %p480 = scmp.lt.s32.totalorder %s479, 8
        %s481 = scalar_select %p480, %s479, 8
        %s482 = smul.addr %s481, 8
        %s483 = scalar_lea.vmem %s0, %s482
        %p484 = pneg %p68
        %p485 = pneg %p65
        %p486 = pneg %p89
        %p487 = pneg %p86
        %p488 = pneg %p110
        %p489 = pneg %p107
        %p490 = pneg %p131
        %p491 = pneg %p128
        %p492 = pneg %p152
        %p493 = pneg %p149
        %p494 = pneg %p173
        %p495 = pneg %p170
        %p496 = pneg %p194
        %p497 = pneg %p191
        %p498 = pneg %p215
        %p499 = pneg %p212
        %p500 = scmp.lt.s32.totalorder %s35, 0
        %s501 = scalar_select %p500, %s35, 0
        %s502 = smul.addr %s501, 8
        %s503 = scalar_lea.vmem %s8, %s502
        %p504 = pneg %p241
        %p505 = pneg %p238
        %p506 = scmp.lt.s32.totalorder %s35, 0
        %s507 = scalar_select %p506, %s35, 0
        %s508 = smul.addr %s507, 8
        %s509 = scalar_lea.vmem %s9, %s508
        %p510 = pneg %p267
        %p511 = pneg %p264
        %p512 = pneg %p297
        %p513 = pneg %p294
        %s514 = sand.u32 %s284, 1
        %s515 = scalar_lea.sflag [#allocation10], %s514
        %s516 = sand.u32 %s284, 1
        %s517 = smul.addr %s516, 24
        %s518 = scalar_lea.vmem [#allocation16], %s517
        %p519 = pneg %p323
        %p520 = pneg %p320
        %p521 = pneg %p349
        %p522 = pneg %p346
        %s523 = smul.u32 %s35, 3
        %s524 = sadd.s32 %s523, %s36
        %s525 = smul.u32 3, %s524
        %p526 = scmp.lt.s32.totalorder %s525, 8
        %s527 = scalar_select %p526, %s525, 8
        %s528 = smul.addr %s527, 8
        %s529 = scalar_lea.vmem %s0, %s528
        %s530 = smul.u32 %s35, 3
        %s531 = sadd.s32 %s530, %s36
        %s532 = smul.u32 3, %s531
        %p533 = scmp.lt.s32.totalorder %s35, 0
        %s534 = scalar_select %p533, %s35, 0
        %s535 = smul.addr %s534, 8
        %s536 = scalar_lea.vmem %s8, %s535
        %p537 = scmp.lt.s32.totalorder %s35, 0
        %s538 = scalar_select %p537, %s35, 0
        %s539 = smul.addr %s538, 8
        %s540 = scalar_lea.vmem %s9, %s539
        %s541 = smul.u32 %s35, 3
        %s542 = sadd.s32 %s541, %s36
        %s543 = smul.u32 3, %s542
        %p544 = scmp.eq.s32.totalorder %s36, 0
        // Predicated region
        $region77: #{tpu_custom_call.1} parent=59 // pred_check
          %p545 = pneg %p544
        $region78: #{tpu_custom_call.1} parent=59 // pred_check_branch
          %547 = sbr.rel (%p545) target = $region80
        $region79: #{tpu_custom_call.1} parent=59 // pred_region
          %v548 = vld [vmem:[%s536] sm:$0xff]
          %549 = vst [vmem:[#allocation4] sm:$0xff] %v548
          %v550 = vld [vmem:[%s540] sm:$0xff]
          %551 = vst [vmem:[#allocation5] sm:$0xff] %v550
          %s552 = scalar_lea.vmem %s536, 8
          %v553 = vld [vmem:[%s552] sm:$0xff]
          %554 = vst [vmem:[#allocation6] sm:$0xff] %v553
          %s555 = scalar_lea.vmem %s540, 8
          %v556 = vld [vmem:[%s555] sm:$0xff]
          %557 = vst [vmem:[#allocation7] sm:$0xff] %v556
        $region80: #{tpu_custom_call.1} parent=59 // pred_fallthru
          _
        %v558 = vld [vmem:[%s529] sm:$0xff]
        %v559 = vld [vmem:[%s529 + $0x8] sm:$0xff]
        %v560 = vld [vmem:[%s529 + $0x10] sm:$0xff]
        %v561 = vld [vmem:[%s1] sm:$0xff]
        %v562 = vld [vmem:[%s1 + $0x8] sm:$0xff]
        %v563 = vld [vmem:[%s1 + $0x10] sm:$0xff]
        %v564 = vld [vmem:[%s1 + $0x18] sm:$0xff]
        %v565 = vld [vmem:[%s1 + $0x20] sm:$0xff]
        %v566 = vld [vmem:[%s1 + $0x28] sm:$0xff]
        %v567 = vld [vmem:[%s1 + $0x30] sm:$0xff]
        %v568 = vld [vmem:[%s1 + $0x38] sm:$0xff]
        %v569 = vld [vmem:[#allocation8] sm:$0xf]
        %v571 = vlaneseq
        %v572 = vshrl.u32 %v571, 7
        %v573 = vsub.s32 0, %v572
        %v574 = vrot.slane %v569, %v573
        %v575 = vlaneseq
        %v576 = vshrl.u32 %v575, 7
        %v577 = vsub.s32 1, %v576
        %v578 = vrot.slane %v569, %v577
        %v579 = vlaneseq
        %v580 = vshrl.u32 %v579, 7
        %v581 = vsub.s32 2, %v580
        %v582 = vrot.slane %v569, %v581
        %v583 = vlaneseq
        %v584 = vshrl.u32 %v583, 7
        %v585 = vsub.s32 3, %v584
        %v586 = vrot.slane %v569, %v585
        %vm591 = vcmask 130048
        %v593 = vsel %vm591, %v558, 0
        %v596 = vsel %vm591, %v559, 0
        %v599 = vsel %vm591, %v560, 0
        %601 = vmatprep.subr.mxu0 %v562
        %602 = vmatpush1.msra.mxu0 %v561
        %603 = vmatprep.subr.mxu0 %v566
        %604 = vmatpush1.msra.mxu0 %v565
        %605 = vmatprep.subr.mxu0 0.0
        %606 = vmatpush1.msra.mxu0 0.0
        %607 = vmatprep.subr.mxu0 0.0
        %608 = vmatpush1.msra.mxu0 0.0
        %609 = vmatprep.subr.mxu0 0.0
        %610 = vmatpush1.msra.mxu0 0.0
        %611 = vmatprep.subr.mxu0 0.0
        %612 = vmatpush1.msra.mxu0 0.0
        %613 = vmatprep.subr.mxu0 0.0
        %614 = vmatpush1.msra.mxu0 0.0
        %615 = vmatprep.subr.mxu0 0.0
        %616 = vmatpush1.msra.mxu0 0.0
        %617 = vmatprep.subr.mxu0 0.0
        %618 = vmatpush1.msra.mxu0 0.0
        %619 = vmatprep.subr.mxu0 0.0
        %620 = vmatpush1.msra.mxu0 0.0
        %621 = vmatprep.subr.mxu0 0.0
        %622 = vmatpush1.msra.mxu0 0.0
        %623 = vmatprep.subr.mxu0 0.0
        %624 = vmatpush1.msra.mxu0 0.0
        %625 = vmatprep.subr.mxu0 0.0
        %626 = vmatpush1.msra.mxu0 0.0
        %627 = vmatprep.subr.mxu0 0.0
        %628 = vmatpush1.msra.mxu0 0.0
        %629 = vmatprep.subr.mxu0 0.0
        %630 = vmatpush1.msra.mxu0 0.0
        %631 = vmatprep.subr.mxu0 0.0
        %632 = vmatpush1.msra.mxu0 0.0
        %633 = vmatprep.subr.mxu0 0.0
        %634 = vmatpush1.msra.mxu0 0.0
        %635 = vmatprep.subr.mxu0 0.0
        %636 = vmatpush1.msra.mxu0 0.0
        %637 = vmatprep.subr.mxu0 0.0
        %638 = vmatpush1.msra.mxu0 0.0
        %639 = vmatprep.subr.mxu0 0.0
        %640 = vmatpush1.msra.mxu0 0.0
        %641 = vmatprep.subr.mxu0 0.0
        %642 = vmatpush1.msra.mxu0 0.0
        %643 = vmatprep.subr.mxu0 0.0
        %644 = vmatpush1.msra.mxu0 0.0
        %645 = vmatprep.subr.mxu0 0.0
        %646 = vmatpush1.msra.mxu0 0.0
        %647 = vmatprep.subr.mxu0 0.0
        %648 = vmatpush1.msra.mxu0 0.0
        %649 = vmatprep.subr.mxu0 0.0
        %650 = vmatpush1.msra.mxu0 0.0
        %651 = vmatprep.subr.mxu0 0.0
        %652 = vmatpush1.msra.mxu0 0.0
        %653 = vmatprep.subr.mxu0 0.0
        %654 = vmatpush1.msra.mxu0 0.0
        %655 = vmatprep.subr.mxu0 0.0
        %656 = vmatpush1.msra.mxu0 0.0
        %657 = vmatprep.subr.mxu0 0.0
        %658 = vmatpush1.msra.mxu0 0.0
        %659 = vmatprep.subr.mxu0 0.0
        %660 = vmatpush1.msra.mxu0 0.0
        %661 = vmatprep.subr.mxu0 0.0
        %662 = vmatpush1.msra.mxu0 0.0
        %663 = vmatprep.subr.mxu0 0.0
        %664 = vmatpush1.msra.mxu0 0.0
        %665 = vmatprep.mubr.f32.mxu0 0.0
        %666 = vmatmul.mubr.f32.gmra.mrb[0].mxu0 %v593
        %v667 = vpop.f32.mrb[0].mxu0
        %v668 = vadd.f32 %v574, %v667
        %v669 = vpop.f32.mrb[0].mxu0
        %v670 = vadd.f32 %v578, %v669
        %671 = vmatprep.mubr.f32.mxu0 0.0
        %672 = vmatmul.mubr.f32.gmra.mrb[0].mxu0 %v596
        %v673 = vpop.f32.mrb[0].mxu0
        %v674 = vadd.f32 %v574, %v673
        %v675 = vpop.f32.mrb[0].mxu0
        %v676 = vadd.f32 %v578, %v675
        %677 = vmatprep.mubr.f32.mxu0 0.0
        %678 = vmatmul.mubr.f32.gmra.mrb[0].mxu0 %v599
        %v679 = vpop.f32.mrb[0].mxu0
        %v680 = vadd.f32 %v574, %v679
        %v681 = vpop.f32.mrb[0].mxu0
        %v682 = vadd.f32 %v578, %v681
        %683 = vdwg.mxu0
        %684 = vmatprep.subr.mxu0 %v564
        %685 = vmatpush1.msra.mxu0 %v563
        %686 = vmatprep.subr.mxu0 %v568
        %687 = vmatpush1.msra.mxu0 %v567
        %688 = vmatprep.subr.mxu0 0.0
        %689 = vmatpush1.msra.mxu0 0.0
        %690 = vmatprep.subr.mxu0 0.0
        %691 = vmatpush1.msra.mxu0 0.0
        %692 = vmatprep.subr.mxu0 0.0
        %693 = vmatpush1.msra.mxu0 0.0
        %694 = vmatprep.subr.mxu0 0.0
        %695 = vmatpush1.msra.mxu0 0.0
        %696 = vmatprep.subr.mxu0 0.0
        %697 = vmatpush1.msra.mxu0 0.0
        %698 = vmatprep.subr.mxu0 0.0
        %699 = vmatpush1.msra.mxu0 0.0
        %700 = vmatprep.subr.mxu0 0.0
        %701 = vmatpush1.msra.mxu0 0.0
        %702 = vmatprep.subr.mxu0 0.0
        %703 = vmatpush1.msra.mxu0 0.0
        %704 = vmatprep.subr.mxu0 0.0
        %705 = vmatpush1.msra.mxu0 0.0
        %706 = vmatprep.subr.mxu0 0.0
        %707 = vmatpush1.msra.mxu0 0.0
        %708 = vmatprep.subr.mxu0 0.0
        %709 = vmatpush1.msra.mxu0 0.0
        %710 = vmatprep.subr.mxu0 0.0
        %711 = vmatpush1.msra.mxu0 0.0
        %712 = vmatprep.subr.mxu0 0.0
        %713 = vmatpush1.msra.mxu0 0.0
        %714 = vmatprep.subr.mxu0 0.0
        %715 = vmatpush1.msra.mxu0 0.0
        %716 = vmatprep.subr.mxu0 0.0
        %717 = vmatpush1.msra.mxu0 0.0
        %718 = vmatprep.subr.mxu0 0.0
        %719 = vmatpush1.msra.mxu0 0.0
        %720 = vmatprep.subr.mxu0 0.0
        %721 = vmatpush1.msra.mxu0 0.0
        %722 = vmatprep.subr.mxu0 0.0
        %723 = vmatpush1.msra.mxu0 0.0
        %724 = vmatprep.subr.mxu0 0.0
        %725 = vmatpush1.msra.mxu0 0.0
        %726 = vmatprep.subr.mxu0 0.0
        %727 = vmatpush1.msra.mxu0 0.0
        %728 = vmatprep.subr.mxu0 0.0
        %729 = vmatpush1.msra.mxu0 0.0
        %730 = vmatprep.subr.mxu0 0.0
        %731 = vmatpush1.msra.mxu0 0.0
        %732 = vmatprep.subr.mxu0 0.0
        %733 = vmatpush1.msra.mxu0 0.0
        %734 = vmatprep.subr.mxu0 0.0
        %735 = vmatpush1.msra.mxu0 0.0
        %736 = vmatprep.subr.mxu0 0.0
        %737 = vmatpush1.msra.mxu0 0.0
        %738 = vmatprep.subr.mxu0 0.0
        %739 = vmatpush1.msra.mxu0 0.0
        %740 = vmatprep.subr.mxu0 0.0
        %741 = vmatpush1.msra.mxu0 0.0
        %742 = vmatprep.subr.mxu0 0.0
        %743 = vmatpush1.msra.mxu0 0.0
        %744 = vmatprep.subr.mxu0 0.0
        %745 = vmatpush1.msra.mxu0 0.0
        %746 = vmatprep.subr.mxu0 0.0
        %747 = vmatpush1.msra.mxu0 0.0
        %748 = vmatprep.mubr.f32.mxu0 0.0
        %749 = vmatmul.mubr.f32.gmra.mrb[0].mxu0 %v593
        %v750 = vpop.f32.mrb[0].mxu0
        %v751 = vadd.f32 %v582, %v750
        %v752 = vpop.f32.mrb[0].mxu0
        %v753 = vadd.f32 %v586, %v752
        %754 = vmatprep.mubr.f32.mxu0 0.0
        %755 = vmatmul.mubr.f32.gmra.mrb[0].mxu0 %v596
        %v756 = vpop.f32.mrb[0].mxu0
        %v757 = vadd.f32 %v582, %v756
        %v758 = vpop.f32.mrb[0].mxu0
        %v759 = vadd.f32 %v586, %v758
        %760 = vmatprep.mubr.f32.mxu0 0.0
        %761 = vmatmul.mubr.f32.gmra.mrb[0].mxu0 %v599
        %v762 = vpop.f32.mrb[0].mxu0
        %v763 = vadd.f32 %v582, %v762
        %v764 = vpop.f32.mrb[0].mxu0
        %v765 = vadd.f32 %v586, %v764
        %766 = vdwg.mxu0
        %767 = vst [vmem:[#allocation2] sm:$0xff] %v668
        %768 = vst [vmem:[#allocation2 + $0x8] sm:$0xff] %v670
        %769 = vst [vmem:[#allocation2 + $0x10] sm:$0xff] %v751
        %770 = vst [vmem:[#allocation2 + $0x18] sm:$0xff] %v753
        %771 = vst [vmem:[#allocation2 + $0x20] sm:$0xff] %v674
        %772 = vst [vmem:[#allocation2 + $0x28] sm:$0xff] %v676
        %773 = vst [vmem:[#allocation2 + $0x30] sm:$0xff] %v757
        %774 = vst [vmem:[#allocation2 + $0x38] sm:$0xff] %v759
        %775 = vst [vmem:[#allocation2 + $0x40] sm:$0xff] %v680
        %776 = vst [vmem:[#allocation2 + $0x48] sm:$0xff] %v682
        %777 = vst [vmem:[#allocation2 + $0x50] sm:$0xff] %v763
        %778 = vst [vmem:[#allocation2 + $0x58] sm:$0xff] %v765
        %v779 = vld [vmem:[%s5] sm:$0xf]
        %v781 = vlaneseq
        %v782 = vshrl.u32 %v781, 7
        %v783 = vsub.s32 0, %v782
        %v784 = vrot.slane %v779, %v783
        %v785 = vlaneseq
        %v786 = vshrl.u32 %v785, 7
        %v787 = vsub.s32 1, %v786
        %v788 = vrot.slane %v779, %v787
        %v789 = vlaneseq
        %v790 = vshrl.u32 %v789, 7
        %v791 = vsub.s32 2, %v790
        %v792 = vrot.slane %v779, %v791
        %v793 = vlaneseq
        %v794 = vshrl.u32 %v793, 7
        %v795 = vsub.s32 3, %v794
        %v796 = vrot.slane %v779, %v795
        %s801 = smul.u32 0, 4
        %s802 = smul.addr %s801, 8
        %s803 = scalar_lea.vmem [#allocation2], %s802
        %v804 = vld [vmem:[%s803] sm:$0xff]
        %v805 = vld [vmem:[%s803 + $0x8] sm:$0xff]
        %v806 = vld [vmem:[%s803 + $0x10] sm:$0xff]
        %v807 = vld [vmem:[%s803 + $0x18] sm:$0xff]
        %v808 = vld [vmem:[#allocation4] sm:$0xff]
        %v809 = vld [vmem:[#allocation11] sm:$0xff]
        %v810 = vld [vmem:[#allocation11 + $0x8] sm:$0xff]
        %v811 = vld [vmem:[#allocation11 + $0x10] sm:$0xff]
        %v812 = vld [vmem:[#allocation11 + $0x18] sm:$0xff]
        %v813 = vld [vmem:[#allocation11 + $0x20] sm:$0xff]
        %v814 = vld [vmem:[#allocation11 + $0x28] sm:$0xff]
        %v815 = vld [vmem:[#allocation11 + $0x30] sm:$0xff]
        %v816 = vld [vmem:[#allocation11 + $0x38] sm:$0xff]
        %v817 = vld [vmem:[#allocation11 + $0x40] sm:$0xff]
        %v818 = vld [vmem:[#allocation11 + $0x48] sm:$0xff]
        %v819 = vld [vmem:[#allocation11 + $0x50] sm:$0xff]
        %v820 = vld [vmem:[#allocation11 + $0x58] sm:$0xff]
        %v821 = vld [vmem:[#allocation11 + $0x60] sm:$0xff]
        %v822 = vld [vmem:[#allocation11 + $0x68] sm:$0xff]
        %v823 = vld [vmem:[#allocation11 + $0x70] sm:$0xff]
        %v824 = vld [vmem:[#allocation11 + $0x78] sm:$0xff]
        %v825 = vld [vmem:[#allocation11 + $0x80] sm:$0xff]
        %v826 = vld [vmem:[#allocation11 + $0x88] sm:$0xff]
        %v827 = vld [vmem:[#allocation11 + $0x90] sm:$0xff]
        %v828 = vld [vmem:[#allocation11 + $0x98] sm:$0xff]
        %v829 = vld [vmem:[#allocation11 + $0xa0] sm:$0xff]
        %v830 = vld [vmem:[#allocation11 + $0xa8] sm:$0xff]
        %v831 = vld [vmem:[#allocation11 + $0xb0] sm:$0xff]
        %v832 = vld [vmem:[#allocation11 + $0xb8] sm:$0xff]
        %v833 = vld [vmem:[#allocation11 + $0xc0] sm:$0xff]
        %v834 = vld [vmem:[#allocation11 + $0xc8] sm:$0xff]
        %v835 = vld [vmem:[#allocation11 + $0xd0] sm:$0xff]
        %v836 = vld [vmem:[#allocation11 + $0xd8] sm:$0xff]
        %v837 = vld [vmem:[#allocation11 + $0xe0] sm:$0xff]
        %v838 = vld [vmem:[#allocation11 + $0xe8] sm:$0xff]
        %v839 = vld [vmem:[#allocation11 + $0xf0] sm:$0xff]
        %v840 = vld [vmem:[#allocation11 + $0xf8] sm:$0xff]
        %v841 = vld [vmem:[#allocation11 + $0x100] sm:$0xff]
        %v842 = vld [vmem:[#allocation11 + $0x108] sm:$0xff]
        %v843 = vld [vmem:[#allocation11 + $0x110] sm:$0xff]
        %v844 = vld [vmem:[#allocation11 + $0x118] sm:$0xff]
        %v845 = vld [vmem:[#allocation11 + $0x120] sm:$0xff]
        %v846 = vld [vmem:[#allocation11 + $0x128] sm:$0xff]
        %v847 = vld [vmem:[#allocation11 + $0x130] sm:$0xff]
        %v848 = vld [vmem:[#allocation11 + $0x138] sm:$0xff]
        %v849 = vld [vmem:[#allocation11 + $0x140] sm:$0xff]
        %v850 = vld [vmem:[#allocation11 + $0x148] sm:$0xff]
        %v851 = vld [vmem:[#allocation11 + $0x150] sm:$0xff]
        %v852 = vld [vmem:[#allocation11 + $0x158] sm:$0xff]
        %v853 = vld [vmem:[#allocation11 + $0x160] sm:$0xff]
        %v854 = vld [vmem:[#allocation11 + $0x168] sm:$0xff]
        %v855 = vld [vmem:[#allocation11 + $0x170] sm:$0xff]
        %v856 = vld [vmem:[#allocation11 + $0x178] sm:$0xff]
        %v857 = vld [vmem:[#allocation11 + $0x180] sm:$0xff]
        %v858 = vld [vmem:[#allocation11 + $0x188] sm:$0xff]
        %v859 = vld [vmem:[#allocation11 + $0x190] sm:$0xff]
        %v860 = vld [vmem:[#allocation11 + $0x198] sm:$0xff]
        %v861 = vld [vmem:[#allocation11 + $0x1a0] sm:$0xff]
        %v862 = vld [vmem:[#allocation11 + $0x1a8] sm:$0xff]
        %v863 = vld [vmem:[#allocation11 + $0x1b0] sm:$0xff]
        %v864 = vld [vmem:[#allocation11 + $0x1b8] sm:$0xff]
        %v865 = vld [vmem:[#allocation11 + $0x1c0] sm:$0xff]
        %v866 = vld [vmem:[#allocation11 + $0x1c8] sm:$0xff]
        %v867 = vld [vmem:[#allocation11 + $0x1d0] sm:$0xff]
        %v868 = vld [vmem:[#allocation11 + $0x1d8] sm:$0xff]
        %v869 = vld [vmem:[#allocation11 + $0x1e0] sm:$0xff]
        %v870 = vld [vmem:[#allocation11 + $0x1e8] sm:$0xff]
        %v871 = vld [vmem:[#allocation11 + $0x1f0] sm:$0xff]
        %v872 = vld [vmem:[#allocation11 + $0x1f8] sm:$0xff]
        %873 = vmatprep.subr.mxu0 %v810
        %874 = vmatpush1.msra.mxu0 %v809
        %875 = vmatprep.subr.mxu0 %v814
        %876 = vmatpush1.msra.mxu0 %v813
        %877 = vmatprep.subr.mxu0 %v818
        %878 = vmatpush1.msra.mxu0 %v817
        %879 = vmatprep.subr.mxu0 %v822
        %880 = vmatpush1.msra.mxu0 %v821
        %881 = vmatprep.subr.mxu0 %v826
        %882 = vmatpush1.msra.mxu0 %v825
        %883 = vmatprep.subr.mxu0 %v830
        %884 = vmatpush1.msra.mxu0 %v829
        %885 = vmatprep.subr.mxu0 %v834
        %886 = vmatpush1.msra.mxu0 %v833
        %887 = vmatprep.subr.mxu0 %v838
        %888 = vmatpush1.msra.mxu0 %v837
        %889 = vmatprep.subr.mxu0 %v842
        %890 = vmatpush1.msra.mxu0 %v841
        %891 = vmatprep.subr.mxu0 %v846
        %892 = vmatpush1.msra.mxu0 %v845
        %893 = vmatprep.subr.mxu0 %v850
        %894 = vmatpush1.msra.mxu0 %v849
        %895 = vmatprep.subr.mxu0 %v854
        %896 = vmatpush1.msra.mxu0 %v853
        %897 = vmatprep.subr.mxu0 %v858
        %898 = vmatpush1.msra.mxu0 %v857
        %899 = vmatprep.subr.mxu0 %v862
        %900 = vmatpush1.msra.mxu0 %v861
        %901 = vmatprep.subr.mxu0 %v866
        %902 = vmatpush1.msra.mxu0 %v865
        %903 = vmatprep.subr.mxu0 %v870
        %904 = vmatpush1.msra.mxu0 %v869
        %905 = vmatprep.subr.mxu0 0.0
        %906 = vmatpush1.msra.mxu0 0.0
        %907 = vmatprep.subr.mxu0 0.0
        %908 = vmatpush1.msra.mxu0 0.0
        %909 = vmatprep.subr.mxu0 0.0
        %910 = vmatpush1.msra.mxu0 0.0
        %911 = vmatprep.subr.mxu0 0.0
        %912 = vmatpush1.msra.mxu0 0.0
        %913 = vmatprep.subr.mxu0 0.0
        %914 = vmatpush1.msra.mxu0 0.0
        %915 = vmatprep.subr.mxu0 0.0
        %916 = vmatpush1.msra.mxu0 0.0
        %917 = vmatprep.subr.mxu0 0.0
        %918 = vmatpush1.msra.mxu0 0.0
        %919 = vmatprep.subr.mxu0 0.0
        %920 = vmatpush1.msra.mxu0 0.0
        %921 = vmatprep.subr.mxu0 0.0
        %922 = vmatpush1.msra.mxu0 0.0
        %923 = vmatprep.subr.mxu0 0.0
        %924 = vmatpush1.msra.mxu0 0.0
        %925 = vmatprep.subr.mxu0 0.0
        %926 = vmatpush1.msra.mxu0 0.0
        %927 = vmatprep.subr.mxu0 0.0
        %928 = vmatpush1.msra.mxu0 0.0
        %929 = vmatprep.subr.mxu0 0.0
        %930 = vmatpush1.msra.mxu0 0.0
        %931 = vmatprep.subr.mxu0 0.0
        %932 = vmatpush1.msra.mxu0 0.0
        %933 = vmatprep.subr.mxu0 0.0
        %934 = vmatpush1.msra.mxu0 0.0
        %935 = vmatprep.subr.mxu0 0.0
        %936 = vmatpush1.msra.mxu0 0.0
        %937 = vmatprep.mubr.f32.mxu0 0.0
        %938 = vmatmul.mubr.f32.gmra.mrb[0].mxu0 %v808
        %v939 = vpop.f32.mrb[0].mxu0
        %v940 = vadd.f32 0.0, %v939
        %v941 = vpop.f32.mrb[0].mxu0
        %v942 = vadd.f32 0.0, %v941
        %943 = vdwg.mxu0
        %944 = vmatprep.subr.mxu0 %v812
        %945 = vmatpush1.msra.mxu0 %v811
        %946 = vmatprep.subr.mxu0 %v816
        %947 = vmatpush1.msra.mxu0 %v815
        %948 = vmatprep.subr.mxu0 %v820
        %949 = vmatpush1.msra.mxu0 %v819
        %950 = vmatprep.subr.mxu0 %v824
        %951 = vmatpush1.msra.mxu0 %v823
        %952 = vmatprep.subr.mxu0 %v828
        %953 = vmatpush1.msra.mxu0 %v827
        %954 = vmatprep.subr.mxu0 %v832
        %955 = vmatpush1.msra.mxu0 %v831
        %956 = vmatprep.subr.mxu0 %v836
        %957 = vmatpush1.msra.mxu0 %v835
        %958 = vmatprep.subr.mxu0 %v840
        %959 = vmatpush1.msra.mxu0 %v839
        %960 = vmatprep.subr.mxu0 %v844
        %961 = vmatpush1.msra.mxu0 %v843
        %962 = vmatprep.subr.mxu0 %v848
        %963 = vmatpush1.msra.mxu0 %v847
        %964 = vmatprep.subr.mxu0 %v852
        %965 = vmatpush1.msra.mxu0 %v851
        %966 = vmatprep.subr.mxu0 %v856
        %967 = vmatpush1.msra.mxu0 %v855
        %968 = vmatprep.subr.mxu0 %v860
        %969 = vmatpush1.msra.mxu0 %v859
        %970 = vmatprep.subr.mxu0 %v864
        %971 = vmatpush1.msra.mxu0 %v863
        %972 = vmatprep.subr.mxu0 %v868
        %973 = vmatpush1.msra.mxu0 %v867
        %974 = vmatprep.subr.mxu0 %v872
        %975 = vmatpush1.msra.mxu0 %v871
        %976 = vmatprep.subr.mxu0 0.0
        %977 = vmatpush1.msra.mxu0 0.0
        %978 = vmatprep.subr.mxu0 0.0
        %979 = vmatpush1.msra.mxu0 0.0
        %980 = vmatprep.subr.mxu0 0.0
        %981 = vmatpush1.msra.mxu0 0.0
        %982 = vmatprep.subr.mxu0 0.0
        %983 = vmatpush1.msra.mxu0 0.0
        %984 = vmatprep.subr.mxu0 0.0
        %985 = vmatpush1.msra.mxu0 0.0
        %986 = vmatprep.subr.mxu0 0.0
        %987 = vmatpush1.msra.mxu0 0.0
        %988 = vmatprep.subr.mxu0 0.0
        %989 = vmatpush1.msra.mxu0 0.0
        %990 = vmatprep.subr.mxu0 0.0
        %991 = vmatpush1.msra.mxu0 0.0
        %992 = vmatprep.subr.mxu0 0.0
        %993 = vmatpush1.msra.mxu0 0.0
        %994 = vmatprep.subr.mxu0 0.0
        %995 = vmatpush1.msra.mxu0 0.0
        %996 = vmatprep.subr.mxu0 0.0
        %997 = vmatpush1.msra.mxu0 0.0
        %998 = vmatprep.subr.mxu0 0.0
        %999 = vmatpush1.msra.mxu0 0.0
        %1000 = vmatprep.subr.mxu0 0.0
        %1001 = vmatpush1.msra.mxu0 0.0
        %1002 = vmatprep.subr.mxu0 0.0
        %1003 = vmatpush1.msra.mxu0 0.0
        %1004 = vmatprep.subr.mxu0 0.0
        %1005 = vmatpush1.msra.mxu0 0.0
        %1006 = vmatprep.subr.mxu0 0.0
        %1007 = vmatpush1.msra.mxu0 0.0
        %1008 = vmatprep.mubr.f32.mxu0 0.0
        %1009 = vmatmul.mubr.f32.gmra.mrb[0].mxu0 %v808
        %v1010 = vpop.f32.mrb[0].mxu0
        %v1011 = vadd.f32 0.0, %v1010
        %v1012 = vpop.f32.mrb[0].mxu0
        %v1013 = vadd.f32 0.0, %v1012
        %1014 = vdwg.mxu0
        %v1015 = vadd.f32 %v804, %v940
        %v1016 = vadd.f32 %v805, %v942
        %v1017 = vadd.f32 %v806, %v1011
        %v1018 = vadd.f32 %v807, %v1013
        %v1019 = vld [vmem:[#allocation5] sm:$0xff]
        %v1020 = vxor.u32 %v1015, 2147483648
        %v1021 = vmul.f32 %v1020, 1.442695
        %v1022 = vpow.pop %v1021
        %v1023 = vadd.f32 %v1022, 1.0
        %v1024 = vrcp.pop %v1023
        %v1025 = vmul.f32 1.0, %v1024
        %v1026 = vxor.u32 %v1016, 2147483648
        %v1027 = vmul.f32 %v1026, 1.442695
        %v1028 = vpow.pop %v1027
        %v1029 = vadd.f32 %v1028, 1.0
        %v1030 = vrcp.pop %v1029
        %v1031 = vmul.f32 1.0, %v1030
        %v1032 = vtanh.pop %v1017
        %v1033 = vxor.u32 %v1018, 2147483648
        %v1034 = vmul.f32 %v1033, 1.442695
        %v1035 = vpow.pop %v1034
        %v1036 = vadd.f32 %v1035, 1.0
        %v1037 = vrcp.pop %v1036
        %v1038 = vmul.f32 1.0, %v1037
        %v1039 = vmul.f32 %v1031, %v1019
        %v1040 = vmul.f32 %v1025, %v1032
        %v1041 = vadd.f32 %v1039, %v1040
        %v1042 = vtanh.pop %v1041
        %v1043 = vmul.f32 %v1038, %v1042
        %v1044 = vld [vmem:[#allocation6] sm:$0xff]
        %v1045 = vld [vmem:[#allocation13] sm:$0xff]
        %v1046 = vld [vmem:[#allocation13 + $0x8] sm:$0xff]
        %v1047 = vld [vmem:[#allocation13 + $0x10] sm:$0xff]
        %v1048 = vld [vmem:[#allocation13 + $0x18] sm:$0xff]
        %v1049 = vld [vmem:[#allocation13 + $0x20] sm:$0xff]
        %v1050 = vld [vmem:[#allocation13 + $0x28] sm:$0xff]
        %v1051 = vld [vmem:[#allocation13 + $0x30] sm:$0xff]
        %v1052 = vld [vmem:[#allocation13 + $0x38] sm:$0xff]
        %v1053 = vld [vmem:[#allocation13 + $0x40] sm:$0xff]
        %v1054 = vld [vmem:[#allocation13 + $0x48] sm:$0xff]
        %v1055 = vld [vmem:[#allocation13 + $0x50] sm:$0xff]
        %v1056 = vld [vmem:[#allocation13 + $0x58] sm:$0xff]
        %v1057 = vld [vmem:[#allocation13 + $0x60] sm:$0xff]
        %v1058 = vld [vmem:[#allocation13 + $0x68] sm:$0xff]
        %v1059 = vld [vmem:[#allocation13 + $0x70] sm:$0xff]
        %v1060 = vld [vmem:[#allocation13 + $0x78] sm:$0xff]
        %v1061 = vld [vmem:[#allocation13 + $0x80] sm:$0xff]
        %v1062 = vld [vmem:[#allocation13 + $0x88] sm:$0xff]
        %v1063 = vld [vmem:[#allocation13 + $0x90] sm:$0xff]
        %v1064 = vld [vmem:[#allocation13 + $0x98] sm:$0xff]
        %v1065 = vld [vmem:[#allocation13 + $0xa0] sm:$0xff]
        %v1066 = vld [vmem:[#allocation13 + $0xa8] sm:$0xff]
        %v1067 = vld [vmem:[#allocation13 + $0xb0] sm:$0xff]
        %v1068 = vld [vmem:[#allocation13 + $0xb8] sm:$0xff]
        %v1069 = vld [vmem:[#allocation13 + $0xc0] sm:$0xff]
        %v1070 = vld [vmem:[#allocation13 + $0xc8] sm:$0xff]
        %v1071 = vld [vmem:[#allocation13 + $0xd0] sm:$0xff]
        %v1072 = vld [vmem:[#allocation13 + $0xd8] sm:$0xff]
        %v1073 = vld [vmem:[#allocation13 + $0xe0] sm:$0xff]
        %v1074 = vld [vmem:[#allocation13 + $0xe8] sm:$0xff]
        %v1075 = vld [vmem:[#allocation13 + $0xf0] sm:$0xff]
        %v1076 = vld [vmem:[#allocation13 + $0xf8] sm:$0xff]
        %v1077 = vld [vmem:[#allocation13 + $0x100] sm:$0xff]
        %v1078 = vld [vmem:[#allocation13 + $0x108] sm:$0xff]
        %v1079 = vld [vmem:[#allocation13 + $0x110] sm:$0xff]
        %v1080 = vld [vmem:[#allocation13 + $0x118] sm:$0xff]
        %v1081 = vld [vmem:[#allocation13 + $0x120] sm:$0xff]
        %v1082 = vld [vmem:[#allocation13 + $0x128] sm:$0xff]
        %v1083 = vld [vmem:[#allocation13 + $0x130] sm:$0xff]
        %v1084 = vld [vmem:[#allocation13 + $0x138] sm:$0xff]
        %v1085 = vld [vmem:[#allocation13 + $0x140] sm:$0xff]
        %v1086 = vld [vmem:[#allocation13 + $0x148] sm:$0xff]
        %v1087 = vld [vmem:[#allocation13 + $0x150] sm:$0xff]
        %v1088 = vld [vmem:[#allocation13 + $0x158] sm:$0xff]
        %v1089 = vld [vmem:[#allocation13 + $0x160] sm:$0xff]
        %v1090 = vld [vmem:[#allocation13 + $0x168] sm:$0xff]
        %v1091 = vld [vmem:[#allocation13 + $0x170] sm:$0xff]
        %v1092 = vld [vmem:[#allocation13 + $0x178] sm:$0xff]
        %v1093 = vld [vmem:[#allocation13 + $0x180] sm:$0xff]
        %v1094 = vld [vmem:[#allocation13 + $0x188] sm:$0xff]
        %v1095 = vld [vmem:[#allocation13 + $0x190] sm:$0xff]
        %v1096 = vld [vmem:[#allocation13 + $0x198] sm:$0xff]
        %v1097 = vld [vmem:[#allocation13 + $0x1a0] sm:$0xff]
        %v1098 = vld [vmem:[#allocation13 + $0x1a8] sm:$0xff]
        %v1099 = vld [vmem:[#allocation13 + $0x1b0] sm:$0xff]
        %v1100 = vld [vmem:[#allocation13 + $0x1b8] sm:$0xff]
        %v1101 = vld [vmem:[#allocation13 + $0x1c0] sm:$0xff]
        %v1102 = vld [vmem:[#allocation13 + $0x1c8] sm:$0xff]
        %v1103 = vld [vmem:[#allocation13 + $0x1d0] sm:$0xff]
        %v1104 = vld [vmem:[#allocation13 + $0x1d8] sm:$0xff]
        %v1105 = vld [vmem:[#allocation13 + $0x1e0] sm:$0xff]
        %v1106 = vld [vmem:[#allocation13 + $0x1e8] sm:$0xff]
        %v1107 = vld [vmem:[#allocation13 + $0x1f0] sm:$0xff]
        %v1108 = vld [vmem:[#allocation13 + $0x1f8] sm:$0xff]
        %v1109 = vld [vmem:[#allocation13 + $0x200] sm:$0xff]
        %v1110 = vld [vmem:[#allocation13 + $0x208] sm:$0xff]
        %v1111 = vld [vmem:[#allocation13 + $0x210] sm:$0xff]
        %v1112 = vld [vmem:[#allocation13 + $0x218] sm:$0xff]
        %v1113 = vld [vmem:[#allocation13 + $0x220] sm:$0xff]
        %v1114 = vld [vmem:[#allocation13 + $0x228] sm:$0xff]
        %v1115 = vld [vmem:[#allocation13 + $0x230] sm:$0xff]
        %v1116 = vld [vmem:[#allocation13 + $0x238] sm:$0xff]
        %v1117 = vld [vmem:[#allocation13 + $0x240] sm:$0xff]
        %v1118 = vld [vmem:[#allocation13 + $0x248] sm:$0xff]
        %v1119 = vld [vmem:[#allocation13 + $0x250] sm:$0xff]
        %v1120 = vld [vmem:[#allocation13 + $0x258] sm:$0xff]
        %v1121 = vld [vmem:[#allocation13 + $0x260] sm:$0xff]
        %v1122 = vld [vmem:[#allocation13 + $0x268] sm:$0xff]
        %v1123 = vld [vmem:[#allocation13 + $0x270] sm:$0xff]
        %v1124 = vld [vmem:[#allocation13 + $0x278] sm:$0xff]
        %v1125 = vld [vmem:[#allocation13 + $0x280] sm:$0xff]
        %v1126 = vld [vmem:[#allocation13 + $0x288] sm:$0xff]
        %v1127 = vld [vmem:[#allocation13 + $0x290] sm:$0xff]
        %v1128 = vld [vmem:[#allocation13 + $0x298] sm:$0xff]
        %v1129 = vld [vmem:[#allocation13 + $0x2a0] sm:$0xff]
        %v1130 = vld [vmem:[#allocation13 + $0x2a8] sm:$0xff]
        %v1131 = vld [vmem:[#allocation13 + $0x2b0] sm:$0xff]
        %v1132 = vld [vmem:[#allocation13 + $0x2b8] sm:$0xff]
        %v1133 = vld [vmem:[#allocation13 + $0x2c0] sm:$0xff]
        %v1134 = vld [vmem:[#allocation13 + $0x2c8] sm:$0xff]
        %v1135 = vld [vmem:[#allocation13 + $0x2d0] sm:$0xff]
        %v1136 = vld [vmem:[#allocation13 + $0x2d8] sm:$0xff]
        %v1137 = vld [vmem:[#allocation13 + $0x2e0] sm:$0xff]
        %v1138 = vld [vmem:[#allocation13 + $0x2e8] sm:$0xff]
        %v1139 = vld [vmem:[#allocation13 + $0x2f0] sm:$0xff]
        %v1140 = vld [vmem:[#allocation13 + $0x2f8] sm:$0xff]
        %v1141 = vld [vmem:[#allocation13 + $0x300] sm:$0xff]
        %v1142 = vld [vmem:[#allocation13 + $0x308] sm:$0xff]
        %v1143 = vld [vmem:[#allocation13 + $0x310] sm:$0xff]
        %v1144 = vld [vmem:[#allocation13 + $0x318] sm:$0xff]
        %v1145 = vld [vmem:[#allocation13 + $0x320] sm:$0xff]
        %v1146 = vld [vmem:[#allocation13 + $0x328] sm:$0xff]
        %v1147 = vld [vmem:[#allocation13 + $0x330] sm:$0xff]
        %v1148 = vld [vmem:[#allocation13 + $0x338] sm:$0xff]
        %v1149 = vld [vmem:[#allocation13 + $0x340] sm:$0xff]
        %v1150 = vld [vmem:[#allocation13 + $0x348] sm:$0xff]
        %v1151 = vld [vmem:[#allocation13 + $0x350] sm:$0xff]
        %v1152 = vld [vmem:[#allocation13 + $0x358] sm:$0xff]
        %v1153 = vld [vmem:[#allocation13 + $0x360] sm:$0xff]
        %v1154 = vld [vmem:[#allocation13 + $0x368] sm:$0xff]
        %v1155 = vld [vmem:[#allocation13 + $0x370] sm:$0xff]
        %v1156 = vld [vmem:[#allocation13 + $0x378] sm:$0xff]
        %v1157 = vld [vmem:[#allocation13 + $0x380] sm:$0xff]
        %v1158 = vld [vmem:[#allocation13 + $0x388] sm:$0xff]
        %v1159 = vld [vmem:[#allocation13 + $0x390] sm:$0xff]
        %v1160 = vld [vmem:[#allocation13 + $0x398] sm:$0xff]
        %v1161 = vld [vmem:[#allocation13 + $0x3a0] sm:$0xff]
        %v1162 = vld [vmem:[#allocation13 + $0x3a8] sm:$0xff]
        %v1163 = vld [vmem:[#allocation13 + $0x3b0] sm:$0xff]
        %v1164 = vld [vmem:[#allocation13 + $0x3b8] sm:$0xff]
        %v1165 = vld [vmem:[#allocation13 + $0x3c0] sm:$0xff]
        %v1166 = vld [vmem:[#allocation13 + $0x3c8] sm:$0xff]
        %v1167 = vld [vmem:[#allocation13 + $0x3d0] sm:$0xff]
        %v1168 = vld [vmem:[#allocation13 + $0x3d8] sm:$0xff]
        %v1169 = vld [vmem:[#allocation13 + $0x3e0] sm:$0xff]
        %v1170 = vld [vmem:[#allocation13 + $0x3e8] sm:$0xff]
        %v1171 = vld [vmem:[#allocation13 + $0x3f0] sm:$0xff]
        %v1172 = vld [vmem:[#allocation13 + $0x3f8] sm:$0xff]
        %1173 = vmatprep.subr.mxu0 %v1046
        %1174 = vmatpush1.msra.mxu0 %v1045
        %1175 = vmatprep.subr.mxu0 %v1050
        %1176 = vmatpush1.msra.mxu0 %v1049
        %1177 = vmatprep.subr.mxu0 %v1054
        %1178 = vmatpush1.msra.mxu0 %v1053
        %1179 = vmatprep.subr.mxu0 %v1058
        %1180 = vmatpush1.msra.mxu0 %v1057
        %1181 = vmatprep.subr.mxu0 %v1062
        %1182 = vmatpush1.msra.mxu0 %v1061
        %1183 = vmatprep.subr.mxu0 %v1066
        %1184 = vmatpush1.msra.mxu0 %v1065
        %1185 = vmatprep.subr.mxu0 %v1070
        %1186 = vmatpush1.msra.mxu0 %v1069
        %1187 = vmatprep.subr.mxu0 %v1074
        %1188 = vmatpush1.msra.mxu0 %v1073
        %1189 = vmatprep.subr.mxu0 %v1078
        %1190 = vmatpush1.msra.mxu0 %v1077
        %1191 = vmatprep.subr.mxu0 %v1082
        %1192 = vmatpush1.msra.mxu0 %v1081
        %1193 = vmatprep.subr.mxu0 %v1086
        %1194 = vmatpush1.msra.mxu0 %v1085
        %1195 = vmatprep.subr.mxu0 %v1090
        %1196 = vmatpush1.msra.mxu0 %v1089
        %1197 = vmatprep.subr.mxu0 %v1094
        %1198 = vmatpush1.msra.mxu0 %v1093
        %1199 = vmatprep.subr.mxu0 %v1098
        %1200 = vmatpush1.msra.mxu0 %v1097
        %1201 = vmatprep.subr.mxu0 %v1102
        %1202 = vmatpush1.msra.mxu0 %v1101
        %1203 = vmatprep.subr.mxu0 %v1106
        %1204 = vmatpush1.msra.mxu0 %v1105
        %1205 = vmatprep.subr.mxu0 %v1110
        %1206 = vmatpush1.msra.mxu0 %v1109
        %1207 = vmatprep.subr.mxu0 %v1114
        %1208 = vmatpush1.msra.mxu0 %v1113
        %1209 = vmatprep.subr.mxu0 %v1118
        %1210 = vmatpush1.msra.mxu0 %v1117
        %1211 = vmatprep.subr.mxu0 %v1122
        %1212 = vmatpush1.msra.mxu0 %v1121
        %1213 = vmatprep.subr.mxu0 %v1126
        %1214 = vmatpush1.msra.mxu0 %v1125
        %1215 = vmatprep.subr.mxu0 %v1130
        %1216 = vmatpush1.msra.mxu0 %v1129
        %1217 = vmatprep.subr.mxu0 %v1134
        %1218 = vmatpush1.msra.mxu0 %v1133
        %1219 = vmatprep.subr.mxu0 %v1138
        %1220 = vmatpush1.msra.mxu0 %v1137
        %1221 = vmatprep.subr.mxu0 %v1142
        %1222 = vmatpush1.msra.mxu0 %v1141
        %1223 = vmatprep.subr.mxu0 %v1146
        %1224 = vmatpush1.msra.mxu0 %v1145
        %1225 = vmatprep.subr.mxu0 %v1150
        %1226 = vmatpush1.msra.mxu0 %v1149
        %1227 = vmatprep.subr.mxu0 %v1154
        %1228 = vmatpush1.msra.mxu0 %v1153
        %1229 = vmatprep.subr.mxu0 %v1158
        %1230 = vmatpush1.msra.mxu0 %v1157
        %1231 = vmatprep.subr.mxu0 %v1162
        %1232 = vmatpush1.msra.mxu0 %v1161
        %1233 = vmatprep.subr.mxu0 %v1166
        %1234 = vmatpush1.msra.mxu0 %v1165
        %1235 = vmatprep.subr.mxu0 %v1170
        %1236 = vmatpush1.msra.mxu0 %v1169
        %1237 = vmatprep.mubr.f32.mxu0 %v1044
        %1238 = vmatmul.mubr.f32.gmra.mrb[0].mxu0 %v1043
        %v1239 = vpop.f32.mrb[0].mxu0
        %v1240 = vadd.f32 %v784, %v1239
        %v1241 = vpop.f32.mrb[0].mxu0
        %v1242 = vadd.f32 %v788, %v1241
        %1243 = vdwg.mxu0
        %1244 = vmatprep.subr.mxu0 %v1048
        %1245 = vmatpush1.msra.mxu0 %v1047
        %1246 = vmatprep.subr.mxu0 %v1052
        %1247 = vmatpush1.msra.mxu0 %v1051
        %1248 = vmatprep.subr.mxu0 %v1056
        %1249 = vmatpush1.msra.mxu0 %v1055
        %1250 = vmatprep.subr.mxu0 %v1060
        %1251 = vmatpush1.msra.mxu0 %v1059
        %1252 = vmatprep.subr.mxu0 %v1064
        %1253 = vmatpush1.msra.mxu0 %v1063
        %1254 = vmatprep.subr.mxu0 %v1068
        %1255 = vmatpush1.msra.mxu0 %v1067
        %1256 = vmatprep.subr.mxu0 %v1072
        %1257 = vmatpush1.msra.mxu0 %v1071
        %1258 = vmatprep.subr.mxu0 %v1076
        %1259 = vmatpush1.msra.mxu0 %v1075
        %1260 = vmatprep.subr.mxu0 %v1080
        %1261 = vmatpush1.msra.mxu0 %v1079
        %1262 = vmatprep.subr.mxu0 %v1084
        %1263 = vmatpush1.msra.mxu0 %v1083
        %1264 = vmatprep.subr.mxu0 %v1088
        %1265 = vmatpush1.msra.mxu0 %v1087
        %1266 = vmatprep.subr.mxu0 %v1092
        %1267 = vmatpush1.msra.mxu0 %v1091
        %1268 = vmatprep.subr.mxu0 %v1096
        %1269 = vmatpush1.msra.mxu0 %v1095
        %1270 = vmatprep.subr.mxu0 %v1100
        %1271 = vmatpush1.msra.mxu0 %v1099
        %1272 = vmatprep.subr.mxu0 %v1104
        %1273 = vmatpush1.msra.mxu0 %v1103
        %1274 = vmatprep.subr.mxu0 %v1108
        %1275 = vmatpush1.msra.mxu0 %v1107
        %1276 = vmatprep.subr.mxu0 %v1112
        %1277 = vmatpush1.msra.mxu0 %v1111
        %1278 = vmatprep.subr.mxu0 %v1116
        %1279 = vmatpush1.msra.mxu0 %v1115
        %1280 = vmatprep.subr.mxu0 %v1120
        %1281 = vmatpush1.msra.mxu0 %v1119
        %1282 = vmatprep.subr.mxu0 %v1124
        %1283 = vmatpush1.msra.mxu0 %v1123
        %1284 = vmatprep.subr.mxu0 %v1128
        %1285 = vmatpush1.msra.mxu0 %v1127
        %1286 = vmatprep.subr.mxu0 %v1132
        %1287 = vmatpush1.msra.mxu0 %v1131
        %1288 = vmatprep.subr.mxu0 %v1136
        %1289 = vmatpush1.msra.mxu0 %v1135
        %1290 = vmatprep.subr.mxu0 %v1140
        %1291 = vmatpush1.msra.mxu0 %v1139
        %1292 = vmatprep.subr.mxu0 %v1144
        %1293 = vmatpush1.msra.mxu0 %v1143
        %1294 = vmatprep.subr.mxu0 %v1148
        %1295 = vmatpush1.msra.mxu0 %v1147
        %1296 = vmatprep.subr.mxu0 %v1152
        %1297 = vmatpush1.msra.mxu0 %v1151
        %1298 = vmatprep.subr.mxu0 %v1156
        %1299 = vmatpush1.msra.mxu0 %v1155
        %1300 = vmatprep.subr.mxu0 %v1160
        %1301 = vmatpush1.msra.mxu0 %v1159
        %1302 = vmatprep.subr.mxu0 %v1164
        %1303 = vmatpush1.msra.mxu0 %v1163
        %1304 = vmatprep.subr.mxu0 %v1168
        %1305 = vmatpush1.msra.mxu0 %v1167
        %1306 = vmatprep.subr.mxu0 %v1172
        %1307 = vmatpush1.msra.mxu0 %v1171
        %1308 = vmatprep.mubr.f32.mxu0 %v1044
        %1309 = vmatmul.mubr.f32.gmra.mrb[0].mxu0 %v1043
        %v1310 = vpop.f32.mrb[0].mxu0
        %v1311 = vadd.f32 %v792, %v1310
        %v1312 = vpop.f32.mrb[0].mxu0
        %v1313 = vadd.f32 %v796, %v1312
        %1314 = vdwg.mxu0
        %v1315 = vld [vmem:[#allocation7] sm:$0xff]
        %v1316 = vxor.u32 %v1240, 2147483648
        %v1317 = vmul.f32 %v1316, 1.442695
        %v1318 = vpow.pop %v1317
        %v1319 = vadd.f32 %v1318, 1.0
        %v1320 = vrcp.pop %v1319
        %v1321 = vmul.f32 1.0, %v1320
        %v1322 = vxor.u32 %v1242, 2147483648
        %v1323 = vmul.f32 %v1322, 1.442695
        %v1324 = vpow.pop %v1323
        %v1325 = vadd.f32 %v1324, 1.0
        %v1326 = vrcp.pop %v1325
        %v1327 = vmul.f32 1.0, %v1326
        %v1328 = vtanh.pop %v1311
        %v1329 = vxor.u32 %v1313, 2147483648
        %v1330 = vmul.f32 %v1329, 1.442695
        %v1331 = vpow.pop %v1330
        %v1332 = vadd.f32 %v1331, 1.0
        %v1333 = vrcp.pop %v1332
        %v1334 = vmul.f32 1.0, %v1333
        %v1335 = vmul.f32 %v1327, %v1315
        %v1336 = vmul.f32 %v1321, %v1328
        %v1337 = vadd.f32 %v1335, %v1336
        %v1338 = vtanh.pop %v1337
        %v1339 = vmul.f32 %v1334, %v1338
        %s1340 = smul.u32 %s36, 3
        %p1341 = scmp.lt.s32.totalorder %s1340, 8
        %s1342 = scalar_select %p1341, 1, 0
        %v1343 = vstv %s1342
        %vm1344 = vcmp.eq.s32.totalorder %v1343, 1
        %v1345 = vsel %vm1344, %v1043, %v808
        %v1346 = vsel %vm1344, %v1041, %v1019
        %v1347 = vsel %vm1344, %v1339, %v1044
        %v1348 = vsel %vm1344, %v1337, %v1315
        %1349 = vst [vmem:[#allocation4] sm:$0xff] %v1345
        %1350 = vst [vmem:[#allocation5] sm:$0xff] %v1346
        %1351 = vst [vmem:[#allocation6] sm:$0xff] %v1347
        %1352 = vst [vmem:[#allocation7] sm:$0xff] %v1348
        %1353 = vst [vmem:[#allocation3] sm:$0xff] %v1347
        %s1354 = smul.u32 1, 4
        %s1355 = smul.addr %s1354, 8
        %s1356 = scalar_lea.vmem [#allocation2], %s1355
        %v1357 = vld [vmem:[%s1356] sm:$0xff]
        %v1358 = vld [vmem:[%s1356 + $0x8] sm:$0xff]
        %v1359 = vld [vmem:[%s1356 + $0x10] sm:$0xff]
        %v1360 = vld [vmem:[%s1356 + $0x18] sm:$0xff]
        %v1361 = vld [vmem:[#allocation4] sm:$0xff]
        %v1362 = vld [vmem:[#allocation11] sm:$0xff]
        %v1363 = vld [vmem:[#allocation11 + $0x8] sm:$0xff]
        %v1364 = vld [vmem:[#allocation11 + $0x10] sm:$0xff]
        %v1365 = vld [vmem:[#allocation11 + $0x18] sm:$0xff]
        %v1366 = vld [vmem:[#allocation11 + $0x20] sm:$0xff]
        %v1367 = vld [vmem:[#allocation11 + $0x28] sm:$0xff]
        %v1368 = vld [vmem:[#allocation11 + $0x30] sm:$0xff]
        %v1369 = vld [vmem:[#allocation11 + $0x38] sm:$0xff]
        %v1370 = vld [vmem:[#allocation11 + $0x40] sm:$0xff]
        %v1371 = vld [vmem:[#allocation11 + $0x48] sm:$0xff]
        %v1372 = vld [vmem:[#allocation11 + $0x50] sm:$0xff]
        %v1373 = vld [vmem:[#allocation11 + $0x58] sm:$0xff]
        %v1374 = vld [vmem:[#allocation11 + $0x60] sm:$0xff]
        %v1375 = vld [vmem:[#allocation11 + $0x68] sm:$0xff]
        %v1376 = vld [vmem:[#allocation11 + $0x70] sm:$0xff]
        %v1377 = vld [vmem:[#allocation11 + $0x78] sm:$0xff]
        %v1378 = vld [vmem:[#allocation11 + $0x80] sm:$0xff]
        %v1379 = vld [vmem:[#allocation11 + $0x88] sm:$0xff]
        %v1380 = vld [vmem:[#allocation11 + $0x90] sm:$0xff]
        %v1381 = vld [vmem:[#allocation11 + $0x98] sm:$0xff]
        %v1382 = vld [vmem:[#allocation11 + $0xa0] sm:$0xff]
        %v1383 = vld [vmem:[#allocation11 + $0xa8] sm:$0xff]
        %v1384 = vld [vmem:[#allocation11 + $0xb0] sm:$0xff]
        %v1385 = vld [vmem:[#allocation11 + $0xb8] sm:$0xff]
        %v1386 = vld [vmem:[#allocation11 + $0xc0] sm:$0xff]
        %v1387 = vld [vmem:[#allocation11 + $0xc8] sm:$0xff]
        %v1388 = vld [vmem:[#allocation11 + $0xd0] sm:$0xff]
        %v1389 = vld [vmem:[#allocation11 + $0xd8] sm:$0xff]
        %v1390 = vld [vmem:[#allocation11 + $0xe0] sm:$0xff]
        %v1391 = vld [vmem:[#allocation11 + $0xe8] sm:$0xff]
        %v1392 = vld [vmem:[#allocation11 + $0xf0] sm:$0xff]
        %v1393 = vld [vmem:[#allocation11 + $0xf8] sm:$0xff]
        %v1394 = vld [vmem:[#allocation11 + $0x100] sm:$0xff]
        %v1395 = vld [vmem:[#allocation11 + $0x108] sm:$0xff]
        %v1396 = vld [vmem:[#allocation11 + $0x110] sm:$0xff]
        %v1397 = vld [vmem:[#allocation11 + $0x118] sm:$0xff]
        %v1398 = vld [vmem:[#allocation11 + $0x120] sm:$0xff]
        %v1399 = vld [vmem:[#allocation11 + $0x128] sm:$0xff]
        %v1400 = vld [vmem:[#allocation11 + $0x130] sm:$0xff]
        %v1401 = vld [vmem:[#allocation11 + $0x138] sm:$0xff]
        %v1402 = vld [vmem:[#allocation11 + $0x140] sm:$0xff]
        %v1403 = vld [vmem:[#allocation11 + $0x148] sm:$0xff]
        %v1404 = vld [vmem:[#allocation11 + $0x150] sm:$0xff]
        %v1405 = vld [vmem:[#allocation11 + $0x158] sm:$0xff]
        %v1406 = vld [vmem:[#allocation11 + $0x160] sm:$0xff]
        %v1407 = vld [vmem:[#allocation11 + $0x168] sm:$0xff]
        %v1408 = vld [vmem:[#allocation11 + $0x170] sm:$0xff]
        %v1409 = vld [vmem:[#allocation11 + $0x178] sm:$0xff]
        %v1410 = vld [vmem:[#allocation11 + $0x180] sm:$0xff]
        %v1411 = vld [vmem:[#allocation11 + $0x188] sm:$0xff]
        %v1412 = vld [vmem:[#allocation11 + $0x190] sm:$0xff]
        %v1413 = vld [vmem:[#allocation11 + $0x198] sm:$0xff]
        %v1414 = vld [vmem:[#allocation11 + $0x1a0] sm:$0xff]
        %v1415 = vld [vmem:[#allocation11 + $0x1a8] sm:$0xff]
        %v1416 = vld [vmem:[#allocation11 + $0x1b0] sm:$0xff]
        %v1417 = vld [vmem:[#allocation11 + $0x1b8] sm:$0xff]
        %v1418 = vld [vmem:[#allocation11 + $0x1c0] sm:$0xff]
        %v1419 = vld [vmem:[#allocation11 + $0x1c8] sm:$0xff]
        %v1420 = vld [vmem:[#allocation11 + $0x1d0] sm:$0xff]
        %v1421 = vld [vmem:[#allocation11 + $0x1d8] sm:$0xff]
        %v1422 = vld [vmem:[#allocation11 + $0x1e0] sm:$0xff]
        %v1423 = vld [vmem:[#allocation11 + $0x1e8] sm:$0xff]
        %v1424 = vld [vmem:[#allocation11 + $0x1f0] sm:$0xff]
        %v1425 = vld [vmem:[#allocation11 + $0x1f8] sm:$0xff]
        %1426 = vmatprep.subr.mxu0 %v1363
        %1427 = vmatpush1.msra.mxu0 %v1362
        %1428 = vmatprep.subr.mxu0 %v1367
        %1429 = vmatpush1.msra.mxu0 %v1366
        %1430 = vmatprep.subr.mxu0 %v1371
        %1431 = vmatpush1.msra.mxu0 %v1370
        %1432 = vmatprep.subr.mxu0 %v1375
        %1433 = vmatpush1.msra.mxu0 %v1374
        %1434 = vmatprep.subr.mxu0 %v1379
        %1435 = vmatpush1.msra.mxu0 %v1378
        %1436 = vmatprep.subr.mxu0 %v1383
        %1437 = vmatpush1.msra.mxu0 %v1382
        %1438 = vmatprep.subr.mxu0 %v1387
        %1439 = vmatpush1.msra.mxu0 %v1386
        %1440 = vmatprep.subr.mxu0 %v1391
        %1441 = vmatpush1.msra.mxu0 %v1390
        %1442 = vmatprep.subr.mxu0 %v1395
        %1443 = vmatpush1.msra.mxu0 %v1394
        %1444 = vmatprep.subr.mxu0 %v1399
        %1445 = vmatpush1.msra.mxu0 %v1398
        %1446 = vmatprep.subr.mxu0 %v1403
        %1447 = vmatpush1.msra.mxu0 %v1402
        %1448 = vmatprep.subr.mxu0 %v1407
        %1449 = vmatpush1.msra.mxu0 %v1406
        %1450 = vmatprep.subr.mxu0 %v1411
        %1451 = vmatpush1.msra.mxu0 %v1410
        %1452 = vmatprep.subr.mxu0 %v1415
        %1453 = vmatpush1.msra.mxu0 %v1414
        %1454 = vmatprep.subr.mxu0 %v1419
        %1455 = vmatpush1.msra.mxu0 %v1418
        %1456 = vmatprep.subr.mxu0 %v1423
        %1457 = vmatpush1.msra.mxu0 %v1422
        %1458 = vmatprep.subr.mxu0 0.0
        %1459 = vmatpush1.msra.mxu0 0.0
        %1460 = vmatprep.subr.mxu0 0.0
        %1461 = vmatpush1.msra.mxu0 0.0
        %1462 = vmatprep.subr.mxu0 0.0
        %1463 = vmatpush1.msra.mxu0 0.0
        %1464 = vmatprep.subr.mxu0 0.0
        %1465 = vmatpush1.msra.mxu0 0.0
        %1466 = vmatprep.subr.mxu0 0.0
        %1467 = vmatpush1.msra.mxu0 0.0
        %1468 = vmatprep.subr.mxu0 0.0
        %1469 = vmatpush1.msra.mxu0 0.0
        %1470 = vmatprep.subr.mxu0 0.0
        %1471 = vmatpush1.msra.mxu0 0.0
        %1472 = vmatprep.subr.mxu0 0.0
        %1473 = vmatpush1.msra.mxu0 0.0
        %1474 = vmatprep.subr.mxu0 0.0
        %1475 = vmatpush1.msra.mxu0 0.0
        %1476 = vmatprep.subr.mxu0 0.0
        %1477 = vmatpush1.msra.mxu0 0.0
        %1478 = vmatprep.subr.mxu0 0.0
        %1479 = vmatpush1.msra.mxu0 0.0
        %1480 = vmatprep.subr.mxu0 0.0
        %1481 = vmatpush1.msra.mxu0 0.0
        %1482 = vmatprep.subr.mxu0 0.0
        %1483 = vmatpush1.msra.mxu0 0.0
        %1484 = vmatprep.subr.mxu0 0.0
        %1485 = vmatpush1.msra.mxu0 0.0
        %1486 = vmatprep.subr.mxu0 0.0
        %1487 = vmatpush1.msra.mxu0 0.0
        %1488 = vmatprep.subr.mxu0 0.0
        %1489 = vmatpush1.msra.mxu0 0.0
        %1490 = vmatprep.mubr.f32.mxu0 0.0
        %1491 = vmatmul.mubr.f32.gmra.mrb[0].mxu0 %v1361
        %v1492 = vpop.f32.mrb[0].mxu0
        %v1493 = vadd.f32 0.0, %v1492
        %v1494 = vpop.f32.mrb[0].mxu0
        %v1495 = vadd.f32 0.0, %v1494
        %1496 = vdwg.mxu0
        %1497 = vmatprep.subr.mxu0 %v1365
        %1498 = vmatpush1.msra.mxu0 %v1364
        %1499 = vmatprep.subr.mxu0 %v1369
        %1500 = vmatpush1.msra.mxu0 %v1368
        %1501 = vmatprep.subr.mxu0 %v1373
        %1502 = vmatpush1.msra.mxu0 %v1372
        %1503 = vmatprep.subr.mxu0 %v1377
        %1504 = vmatpush1.msra.mxu0 %v1376
        %1505 = vmatprep.subr.mxu0 %v1381
        %1506 = vmatpush1.msra.mxu0 %v1380
        %1507 = vmatprep.subr.mxu0 %v1385
        %1508 = vmatpush1.msra.mxu0 %v1384
        %1509 = vmatprep.subr.mxu0 %v1389
        %1510 = vmatpush1.msra.mxu0 %v1388
        %1511 = vmatprep.subr.mxu0 %v1393
        %1512 = vmatpush1.msra.mxu0 %v1392
        %1513 = vmatprep.subr.mxu0 %v1397
        %1514 = vmatpush1.msra.mxu0 %v1396
        %1515 = vmatprep.subr.mxu0 %v1401
        %1516 = vmatpush1.msra.mxu0 %v1400
        %1517 = vmatprep.subr.mxu0 %v1405
        %1518 = vmatpush1.msra.mxu0 %v1404
        %1519 = vmatprep.subr.mxu0 %v1409
        %1520 = vmatpush1.msra.mxu0 %v1408
        %1521 = vmatprep.subr.mxu0 %v1413
        %1522 = vmatpush1.msra.mxu0 %v1412
        %1523 = vmatprep.subr.mxu0 %v1417
        %1524 = vmatpush1.msra.mxu0 %v1416
        %1525 = vmatprep.subr.mxu0 %v1421
        %1526 = vmatpush1.msra.mxu0 %v1420
        %1527 = vmatprep.subr.mxu0 %v1425
        %1528 = vmatpush1.msra.mxu0 %v1424
        %1529 = vmatprep.subr.mxu0 0.0
        %1530 = vmatpush1.msra.mxu0 0.0
        %1531 = vmatprep.subr.mxu0 0.0
        %1532 = vmatpush1.msra.mxu0 0.0
        %1533 = vmatprep.subr.mxu0 0.0
        %1534 = vmatpush1.msra.mxu0 0.0
        %1535 = vmatprep.subr.mxu0 0.0
        %1536 = vmatpush1.msra.mxu0 0.0
        %1537 = vmatprep.subr.mxu0 0.0
        %1538 = vmatpush1.msra.mxu0 0.0
        %1539 = vmatprep.subr.mxu0 0.0
        %1540 = vmatpush1.msra.mxu0 0.0
        %1541 = vmatprep.subr.mxu0 0.0
        %1542 = vmatpush1.msra.mxu0 0.0
        %1543 = vmatprep.subr.mxu0 0.0
        %1544 = vmatpush1.msra.mxu0 0.0
        %1545 = vmatprep.subr.mxu0 0.0
        %1546 = vmatpush1.msra.mxu0 0.0
        %1547 = vmatprep.subr.mxu0 0.0
        %1548 = vmatpush1.msra.mxu0 0.0
        %1549 = vmatprep.subr.mxu0 0.0
        %1550 = vmatpush1.msra.mxu0 0.0
        %1551 = vmatprep.subr.mxu0 0.0
        %1552 = vmatpush1.msra.mxu0 0.0
        %1553 = vmatprep.subr.mxu0 0.0
        %1554 = vmatpush1.msra.mxu0 0.0
        %1555 = vmatprep.subr.mxu0 0.0
        %1556 = vmatpush1.msra.mxu0 0.0
        %1557 = vmatprep.subr.mxu0 0.0
        %1558 = vmatpush1.msra.mxu0 0.0
        %1559 = vmatprep.subr.mxu0 0.0
        %1560 = vmatpush1.msra.mxu0 0.0
        %1561 = vmatprep.mubr.f32.mxu0 0.0
        %1562 = vmatmul.mubr.f32.gmra.mrb[0].mxu0 %v1361
        %v1563 = vpop.f32.mrb[0].mxu0
        %v1564 = vadd.f32 0.0, %v1563
        %v1565 = vpop.f32.mrb[0].mxu0
        %v1566 = vadd.f32 0.0, %v1565
        %1567 = vdwg.mxu0
        %v1568 = vadd.f32 %v1357, %v1493
        %v1569 = vadd.f32 %v1358, %v1495
        %v1570 = vadd.f32 %v1359, %v1564
        %v1571 = vadd.f32 %v1360, %v1566
        %v1572 = vld [vmem:[#allocation5] sm:$0xff]
        %v1573 = vxor.u32 %v1568, 2147483648
        %v1574 = vmul.f32 %v1573, 1.442695
        %v1575 = vpow.pop %v1574
        %v1576 = vadd.f32 %v1575, 1.0
        %v1577 = vrcp.pop %v1576
        %v1578 = vmul.f32 1.0, %v1577
        %v1579 = vxor.u32 %v1569, 2147483648
        %v1580 = vmul.f32 %v1579, 1.442695
        %v1581 = vpow.pop %v1580
        %v1582 = vadd.f32 %v1581, 1.0
        %v1583 = vrcp.pop %v1582
        %v1584 = vmul.f32 1.0, %v1583
        %v1585 = vtanh.pop %v1570
        %v1586 = vxor.u32 %v1571, 2147483648
        %v1587 = vmul.f32 %v1586, 1.442695
        %v1588 = vpow.pop %v1587
        %v1589 = vadd.f32 %v1588, 1.0
        %v1590 = vrcp.pop %v1589
        %v1591 = vmul.f32 1.0, %v1590
        %v1592 = vmul.f32 %v1584, %v1572
        %v1593 = vmul.f32 %v1578, %v1585
        %v1594 = vadd.f32 %v1592, %v1593
        %v1595 = vtanh.pop %v1594
        %v1596 = vmul.f32 %v1591, %v1595
        %v1597 = vld [vmem:[#allocation6] sm:$0xff]
        %v1598 = vld [vmem:[#allocation13] sm:$0xff]
        %v1599 = vld [vmem:[#allocation13 + $0x8] sm:$0xff]
        %v1600 = vld [vmem:[#allocation13 + $0x10] sm:$0xff]
        %v1601 = vld [vmem:[#allocation13 + $0x18] sm:$0xff]
        %v1602 = vld [vmem:[#allocation13 + $0x20] sm:$0xff]
        %v1603 = vld [vmem:[#allocation13 + $0x28] sm:$0xff]
        %v1604 = vld [vmem:[#allocation13 + $0x30] sm:$0xff]
        %v1605 = vld [vmem:[#allocation13 + $0x38] sm:$0xff]
        %v1606 = vld [vmem:[#allocation13 + $0x40] sm:$0xff]
        %v1607 = vld [vmem:[#allocation13 + $0x48] sm:$0xff]
        %v1608 = vld [vmem:[#allocation13 + $0x50] sm:$0xff]
        %v1609 = vld [vmem:[#allocation13 + $0x58] sm:$0xff]
        %v1610 = vld [vmem:[#allocation13 + $0x60] sm:$0xff]
        %v1611 = vld [vmem:[#allocation13 + $0x68] sm:$0xff]
        %v1612 = vld [vmem:[#allocation13 + $0x70] sm:$0xff]
        %v1613 = vld [vmem:[#allocation13 + $0x78] sm:$0xff]
        %v1614 = vld [vmem:[#allocation13 + $0x80] sm:$0xff]
        %v1615 = vld [vmem:[#allocation13 + $0x88] sm:$0xff]
        %v1616 = vld [vmem:[#allocation13 + $0x90] sm:$0xff]
        %v1617 = vld [vmem:[#allocation13 + $0x98] sm:$0xff]
        %v1618 = vld [vmem:[#allocation13 + $0xa0] sm:$0xff]
        %v1619 = vld [vmem:[#allocation13 + $0xa8] sm:$0xff]
        %v1620 = vld [vmem:[#allocation13 + $0xb0] sm:$0xff]
        %v1621 = vld [vmem:[#allocation13 + $0xb8] sm:$0xff]
        %v1622 = vld [vmem:[#allocation13 + $0xc0] sm:$0xff]
        %v1623 = vld [vmem:[#allocation13 + $0xc8] sm:$0xff]
        %v1624 = vld [vmem:[#allocation13 + $0xd0] sm:$0xff]
        %v1625 = vld [vmem:[#allocation13 + $0xd8] sm:$0xff]
        %v1626 = vld [vmem:[#allocation13 + $0xe0] sm:$0xff]
        %v1627 = vld [vmem:[#allocation13 + $0xe8] sm:$0xff]
        %v1628 = vld [vmem:[#allocation13 + $0xf0] sm:$0xff]
        %v1629 = vld [vmem:[#allocation13 + $0xf8] sm:$0xff]
        %v1630 = vld [vmem:[#allocation13 + $0x100] sm:$0xff]
        %v1631 = vld [vmem:[#allocation13 + $0x108] sm:$0xff]
        %v1632 = vld [vmem:[#allocation13 + $0x110] sm:$0xff]
        %v1633 = vld [vmem:[#allocation13 + $0x118] sm:$0xff]
        %v1634 = vld [vmem:[#allocation13 + $0x120] sm:$0xff]
        %v1635 = vld [vmem:[#allocation13 + $0x128] sm:$0xff]
        %v1636 = vld [vmem:[#allocation13 + $0x130] sm:$0xff]
        %v1637 = vld [vmem:[#allocation13 + $0x138] sm:$0xff]
        %v1638 = vld [vmem:[#allocation13 + $0x140] sm:$0xff]
        %v1639 = vld [vmem:[#allocation13 + $0x148] sm:$0xff]
        %v1640 = vld [vmem:[#allocation13 + $0x150] sm:$0xff]
        %v1641 = vld [vmem:[#allocation13 + $0x158] sm:$0xff]
        %v1642 = vld [vmem:[#allocation13 + $0x160] sm:$0xff]
        %v1643 = vld [vmem:[#allocation13 + $0x168] sm:$0xff]
        %v1644 = vld [vmem:[#allocation13 + $0x170] sm:$0xff]
        %v1645 = vld [vmem:[#allocation13 + $0x178] sm:$0xff]
        %v1646 = vld [vmem:[#allocation13 + $0x180] sm:$0xff]
        %v1647 = vld [vmem:[#allocation13 + $0x188] sm:$0xff]
        %v1648 = vld [vmem:[#allocation13 + $0x190] sm:$0xff]
        %v1649 = vld [vmem:[#allocation13 + $0x198] sm:$0xff]
        %v1650 = vld [vmem:[#allocation13 + $0x1a0] sm:$0xff]
        %v1651 = vld [vmem:[#allocation13 + $0x1a8] sm:$0xff]
        %v1652 = vld [vmem:[#allocation13 + $0x1b0] sm:$0xff]
        %v1653 = vld [vmem:[#allocation13 + $0x1b8] sm:$0xff]
        %v1654 = vld [vmem:[#allocation13 + $0x1c0] sm:$0xff]
        %v1655 = vld [vmem:[#allocation13 + $0x1c8] sm:$0xff]
        %v1656 = vld [vmem:[#allocation13 + $0x1d0] sm:$0xff]
        %v1657 = vld [vmem:[#allocation13 + $0x1d8] sm:$0xff]
        %v1658 = vld [vmem:[#allocation13 + $0x1e0] sm:$0xff]
        %v1659 = vld [vmem:[#allocation13 + $0x1e8] sm:$0xff]
        %v1660 = vld [vmem:[#allocation13 + $0x1f0] sm:$0xff]
        %v1661 = vld [vmem:[#allocation13 + $0x1f8] sm:$0xff]
        %v1662 = vld [vmem:[#allocation13 + $0x200] sm:$0xff]
        %v1663 = vld [vmem:[#allocation13 + $0x208] sm:$0xff]
        %v1664 = vld [vmem:[#allocation13 + $0x210] sm:$0xff]
        %v1665 = vld [vmem:[#allocation13 + $0x218] sm:$0xff]
        %v1666 = vld [vmem:[#allocation13 + $0x220] sm:$0xff]
        %v1667 = vld [vmem:[#allocation13 + $0x228] sm:$0xff]
        %v1668 = vld [vmem:[#allocation13 + $0x230] sm:$0xff]
        %v1669 = vld [vmem:[#allocation13 + $0x238] sm:$0xff]
        %v1670 = vld [vmem:[#allocation13 + $0x240] sm:$0xff]
        %v1671 = vld [vmem:[#allocation13 + $0x248] sm:$0xff]
        %v1672 = vld [vmem:[#allocation13 + $0x250] sm:$0xff]
        %v1673 = vld [vmem:[#allocation13 + $0x258] sm:$0xff]
        %v1674 = vld [vmem:[#allocation13 + $0x260] sm:$0xff]
        %v1675 = vld [vmem:[#allocation13 + $0x268] sm:$0xff]
        %v1676 = vld [vmem:[#allocation13 + $0x270] sm:$0xff]
        %v1677 = vld [vmem:[#allocation13 + $0x278] sm:$0xff]
        %v1678 = vld [vmem:[#allocation13 + $0x280] sm:$0xff]
        %v1679 = vld [vmem:[#allocation13 + $0x288] sm:$0xff]
        %v1680 = vld [vmem:[#allocation13 + $0x290] sm:$0xff]
        %v1681 = vld [vmem:[#allocation13 + $0x298] sm:$0xff]
        %v1682 = vld [vmem:[#allocation13 + $0x2a0] sm:$0xff]
        %v1683 = vld [vmem:[#allocation13 + $0x2a8] sm:$0xff]
        %v1684 = vld [vmem:[#allocation13 + $0x2b0] sm:$0xff]
        %v1685 = vld [vmem:[#allocation13 + $0x2b8] sm:$0xff]
        %v1686 = vld [vmem:[#allocation13 + $0x2c0] sm:$0xff]
        %v1687 = vld [vmem:[#allocation13 + $0x2c8] sm:$0xff]
        %v1688 = vld [vmem:[#allocation13 + $0x2d0] sm:$0xff]
        %v1689 = vld [vmem:[#allocation13 + $0x2d8] sm:$0xff]
        %v1690 = vld [vmem:[#allocation13 + $0x2e0] sm:$0xff]
        %v1691 = vld [vmem:[#allocation13 + $0x2e8] sm:$0xff]
        %v1692 = vld [vmem:[#allocation13 + $0x2f0] sm:$0xff]
        %v1693 = vld [vmem:[#allocation13 + $0x2f8] sm:$0xff]
        %v1694 = vld [vmem:[#allocation13 + $0x300] sm:$0xff]
        %v1695 = vld [vmem:[#allocation13 + $0x308] sm:$0xff]
        %v1696 = vld [vmem:[#allocation13 + $0x310] sm:$0xff]
        %v1697 = vld [vmem:[#allocation13 + $0x318] sm:$0xff]
        %v1698 = vld [vmem:[#allocation13 + $0x320] sm:$0xff]
        %v1699 = vld [vmem:[#allocation13 + $0x328] sm:$0xff]
        %v1700 = vld [vmem:[#allocation13 + $0x330] sm:$0xff]
        %v1701 = vld [vmem:[#allocation13 + $0x338] sm:$0xff]
        %v1702 = vld [vmem:[#allocation13 + $0x340] sm:$0xff]
        %v1703 = vld [vmem:[#allocation13 + $0x348] sm:$0xff]
        %v1704 = vld [vmem:[#allocation13 + $0x350] sm:$0xff]
        %v1705 = vld [vmem:[#allocation13 + $0x358] sm:$0xff]
        %v1706 = vld [vmem:[#allocation13 + $0x360] sm:$0xff]
        %v1707 = vld [vmem:[#allocation13 + $0x368] sm:$0xff]
        %v1708 = vld [vmem:[#allocation13 + $0x370] sm:$0xff]
        %v1709 = vld [vmem:[#allocation13 + $0x378] sm:$0xff]
        %v1710 = vld [vmem:[#allocation13 + $0x380] sm:$0xff]
        %v1711 = vld [vmem:[#allocation13 + $0x388] sm:$0xff]
        %v1712 = vld [vmem:[#allocation13 + $0x390] sm:$0xff]
        %v1713 = vld [vmem:[#allocation13 + $0x398] sm:$0xff]
        %v1714 = vld [vmem:[#allocation13 + $0x3a0] sm:$0xff]
        %v1715 = vld [vmem:[#allocation13 + $0x3a8] sm:$0xff]
        %v1716 = vld [vmem:[#allocation13 + $0x3b0] sm:$0xff]
        %v1717 = vld [vmem:[#allocation13 + $0x3b8] sm:$0xff]
        %v1718 = vld [vmem:[#allocation13 + $0x3c0] sm:$0xff]
        %v1719 = vld [vmem:[#allocation13 + $0x3c8] sm:$0xff]
        %v1720 = vld [vmem:[#allocation13 + $0x3d0] sm:$0xff]
        %v1721 = vld [vmem:[#allocation13 + $0x3d8] sm:$0xff]
        %v1722 = vld [vmem:[#allocation13 + $0x3e0] sm:$0xff]
        %v1723 = vld [vmem:[#allocation13 + $0x3e8] sm:$0xff]
        %v1724 = vld [vmem:[#allocation13 + $0x3f0] sm:$0xff]
        %v1725 = vld [vmem:[#allocation13 + $0x3f8] sm:$0xff]
        %1726 = vmatprep.subr.mxu0 %v1599
        %1727 = vmatpush1.msra.mxu0 %v1598
        %1728 = vmatprep.subr.mxu0 %v1603
        %1729 = vmatpush1.msra.mxu0 %v1602
        %1730 = vmatprep.subr.mxu0 %v1607
        %1731 = vmatpush1.msra.mxu0 %v1606
        %1732 = vmatprep.subr.mxu0 %v1611
        %1733 = vmatpush1.msra.mxu0 %v1610
        %1734 = vmatprep.subr.mxu0 %v1615
        %1735 = vmatpush1.msra.mxu0 %v1614
        %1736 = vmatprep.subr.mxu0 %v1619
        %1737 = vmatpush1.msra.mxu0 %v1618
        %1738 = vmatprep.subr.mxu0 %v1623
        %1739 = vmatpush1.msra.mxu0 %v1622
        %1740 = vmatprep.subr.mxu0 %v1627
        %1741 = vmatpush1.msra.mxu0 %v1626
        %1742 = vmatprep.subr.mxu0 %v1631
        %1743 = vmatpush1.msra.mxu0 %v1630
        %1744 = vmatprep.subr.mxu0 %v1635
        %1745 = vmatpush1.msra.mxu0 %v1634
        %1746 = vmatprep.subr.mxu0 %v1639
        %1747 = vmatpush1.msra.mxu0 %v1638
        %1748 = vmatprep.subr.mxu0 %v1643
        %1749 = vmatpush1.msra.mxu0 %v1642
        %1750 = vmatprep.subr.mxu0 %v1647
        %1751 = vmatpush1.msra.mxu0 %v1646
        %1752 = vmatprep.subr.mxu0 %v1651
        %1753 = vmatpush1.msra.mxu0 %v1650
        %1754 = vmatprep.subr.mxu0 %v1655
        %1755 = vmatpush1.msra.mxu0 %v1654
        %1756 = vmatprep.subr.mxu0 %v1659
        %1757 = vmatpush1.msra.mxu0 %v1658
        %1758 = vmatprep.subr.mxu0 %v1663
        %1759 = vmatpush1.msra.mxu0 %v1662
        %1760 = vmatprep.subr.mxu0 %v1667
        %1761 = vmatpush1.msra.mxu0 %v1666
        %1762 = vmatprep.subr.mxu0 %v1671
        %1763 = vmatpush1.msra.mxu0 %v1670
        %1764 = vmatprep.subr.mxu0 %v1675
        %1765 = vmatpush1.msra.mxu0 %v1674
        %1766 = vmatprep.subr.mxu0 %v1679
        %1767 = vmatpush1.msra.mxu0 %v1678
        %1768 = vmatprep.subr.mxu0 %v1683
        %1769 = vmatpush1.msra.mxu0 %v1682
        %1770 = vmatprep.subr.mxu0 %v1687
        %1771 = vmatpush1.msra.mxu0 %v1686
        %1772 = vmatprep.subr.mxu0 %v1691
        %1773 = vmatpush1.msra.mxu0 %v1690
        %1774 = vmatprep.subr.mxu0 %v1695
        %1775 = vmatpush1.msra.mxu0 %v1694
        %1776 = vmatprep.subr.mxu0 %v1699
        %1777 = vmatpush1.msra.mxu0 %v1698
        %1778 = vmatprep.subr.mxu0 %v1703
        %1779 = vmatpush1.msra.mxu0 %v1702
        %1780 = vmatprep.subr.mxu0 %v1707
        %1781 = vmatpush1.msra.mxu0 %v1706
        %1782 = vmatprep.subr.mxu0 %v1711
        %1783 = vmatpush1.msra.mxu0 %v1710
        %1784 = vmatprep.subr.mxu0 %v1715
        %1785 = vmatpush1.msra.mxu0 %v1714
        %1786 = vmatprep.subr.mxu0 %v1719
        %1787 = vmatpush1.msra.mxu0 %v1718
        %1788 = vmatprep.subr.mxu0 %v1723
        %1789 = vmatpush1.msra.mxu0 %v1722
        %1790 = vmatprep.mubr.f32.mxu0 %v1597
        %1791 = vmatmul.mubr.f32.gmra.mrb[0].mxu0 %v1596
        %v1792 = vpop.f32.mrb[0].mxu0
        %v1793 = vadd.f32 %v784, %v1792
        %v1794 = vpop.f32.mrb[0].mxu0
        %v1795 = vadd.f32 %v788, %v1794
        %1796 = vdwg.mxu0
        %1797 = vmatprep.subr.mxu0 %v1601
        %1798 = vmatpush1.msra.mxu0 %v1600
        %1799 = vmatprep.subr.mxu0 %v1605
        %1800 = vmatpush1.msra.mxu0 %v1604
        %1801 = vmatprep.subr.mxu0 %v1609
        %1802 = vmatpush1.msra.mxu0 %v1608
        %1803 = vmatprep.subr.mxu0 %v1613
        %1804 = vmatpush1.msra.mxu0 %v1612
        %1805 = vmatprep.subr.mxu0 %v1617
        %1806 = vmatpush1.msra.mxu0 %v1616
        %1807 = vmatprep.subr.mxu0 %v1621
        %1808 = vmatpush1.msra.mxu0 %v1620
        %1809 = vmatprep.subr.mxu0 %v1625
        %1810 = vmatpush1.msra.mxu0 %v1624
        %1811 = vmatprep.subr.mxu0 %v1629
        %1812 = vmatpush1.msra.mxu0 %v1628
        %1813 = vmatprep.subr.mxu0 %v1633
        %1814 = vmatpush1.msra.mxu0 %v1632
        %1815 = vmatprep.subr.mxu0 %v1637
        %1816 = vmatpush1.msra.mxu0 %v1636
        %1817 = vmatprep.subr.mxu0 %v1641
        %1818 = vmatpush1.msra.mxu0 %v1640
        %1819 = vmatprep.subr.mxu0 %v1645
        %1820 = vmatpush1.msra.mxu0 %v1644
        %1821 = vmatprep.subr.mxu0 %v1649
        %1822 = vmatpush1.msra.mxu0 %v1648
        %1823 = vmatprep.subr.mxu0 %v1653
        %1824 = vmatpush1.msra.mxu0 %v1652
        %1825 = vmatprep.subr.mxu0 %v1657
        %1826 = vmatpush1.msra.mxu0 %v1656
        %1827 = vmatprep.subr.mxu0 %v1661
        %1828 = vmatpush1.msra.mxu0 %v1660
        %1829 = vmatprep.subr.mxu0 %v1665
        %1830 = vmatpush1.msra.mxu0 %v1664
        %1831 = vmatprep.subr.mxu0 %v1669
        %1832 = vmatpush1.msra.mxu0 %v1668
        %1833 = vmatprep.subr.mxu0 %v1673
        %1834 = vmatpush1.msra.mxu0 %v1672
        %1835 = vmatprep.subr.mxu0 %v1677
        %1836 = vmatpush1.msra.mxu0 %v1676
        %1837 = vmatprep.subr.mxu0 %v1681
        %1838 = vmatpush1.msra.mxu0 %v1680
        %1839 = vmatprep.subr.mxu0 %v1685
        %1840 = vmatpush1.msra.mxu0 %v1684
        %1841 = vmatprep.subr.mxu0 %v1689
        %1842 = vmatpush1.msra.mxu0 %v1688
        %1843 = vmatprep.subr.mxu0 %v1693
        %1844 = vmatpush1.msra.mxu0 %v1692
        %1845 = vmatprep.subr.mxu0 %v1697
        %1846 = vmatpush1.msra.mxu0 %v1696
        %1847 = vmatprep.subr.mxu0 %v1701
        %1848 = vmatpush1.msra.mxu0 %v1700
        %1849 = vmatprep.subr.mxu0 %v1705
        %1850 = vmatpush1.msra.mxu0 %v1704
        %1851 = vmatprep.subr.mxu0 %v1709
        %1852 = vmatpush1.msra.mxu0 %v1708
        %1853 = vmatprep.subr.mxu0 %v1713
        %1854 = vmatpush1.msra.mxu0 %v1712
        %1855 = vmatprep.subr.mxu0 %v1717
        %1856 = vmatpush1.msra.mxu0 %v1716
        %1857 = vmatprep.subr.mxu0 %v1721
        %1858 = vmatpush1.msra.mxu0 %v1720
        %1859 = vmatprep.subr.mxu0 %v1725
        %1860 = vmatpush1.msra.mxu0 %v1724
        %1861 = vmatprep.mubr.f32.mxu0 %v1597
        %1862 = vmatmul.mubr.f32.gmra.mrb[0].mxu0 %v1596
        %v1863 = vpop.f32.mrb[0].mxu0
        %v1864 = vadd.f32 %v792, %v1863
        %v1865 = vpop.f32.mrb[0].mxu0
        %v1866 = vadd.f32 %v796, %v1865
        %1867 = vdwg.mxu0
        %v1868 = vld [vmem:[#allocation7] sm:$0xff]
        %v1869 = vxor.u32 %v1793, 2147483648
        %v1870 = vmul.f32 %v1869, 1.442695
        %v1871 = vpow.pop %v1870
        %v1872 = vadd.f32 %v1871, 1.0
        %v1873 = vrcp.pop %v1872
        %v1874 = vmul.f32 1.0, %v1873
        %v1875 = vxor.u32 %v1795, 2147483648
        %v1876 = vmul.f32 %v1875, 1.442695
        %v1877 = vpow.pop %v1876
        %v1878 = vadd.f32 %v1877, 1.0
        %v1879 = vrcp.pop %v1878
        %v1880 = vmul.f32 1.0, %v1879
        %v1881 = vtanh.pop %v1864
        %v1882 = vxor.u32 %v1866, 2147483648
        %v1883 = vmul.f32 %v1882, 1.442695
        %v1884 = vpow.pop %v1883
        %v1885 = vadd.f32 %v1884, 1.0
        %v1886 = vrcp.pop %v1885
        %v1887 = vmul.f32 1.0, %v1886
        %v1888 = vmul.f32 %v1880, %v1868
        %v1889 = vmul.f32 %v1874, %v1881
        %v1890 = vadd.f32 %v1888, %v1889
        %v1891 = vtanh.pop %v1890
        %v1892 = vmul.f32 %v1887, %v1891
        %s1893 = sadd.s32 %s1340, 1
        %p1894 = scmp.lt.s32.totalorder %s1893, 8
        %s1895 = scalar_select %p1894, 1, 0
        %v1896 = vstv %s1895
        %vm1897 = vcmp.eq.s32.totalorder %v1896, 1
        %v1898 = vsel %vm1897, %v1596, %v1361
        %v1899 = vsel %vm1897, %v1594, %v1572
        %v1900 = vsel %vm1897, %v1892, %v1597
        %v1901 = vsel %vm1897, %v1890, %v1868
        %1902 = vst [vmem:[#allocation4] sm:$0xff] %v1898
        %1903 = vst [vmem:[#allocation5] sm:$0xff] %v1899
        %1904 = vst [vmem:[#allocation6] sm:$0xff] %v1900
        %1905 = vst [vmem:[#allocation7] sm:$0xff] %v1901
        %s1906 = scalar_lea.vmem [#allocation3], 8
        %1907 = vst [vmem:[%s1906] sm:$0xff] %v1900
        %s1908 = smul.u32 2, 4
        %s1909 = smul.addr %s1908, 8
        %s1910 = scalar_lea.vmem [#allocation2], %s1909
        %v1911 = vld [vmem:[%s1910] sm:$0xff]
        %v1912 = vld [vmem:[%s1910 + $0x8] sm:$0xff]
        %v1913 = vld [vmem:[%s1910 + $0x10] sm:$0xff]
        %v1914 = vld [vmem:[%s1910 + $0x18] sm:$0xff]
        %v1915 = vld [vmem:[#allocation4] sm:$0xff]
        %v1916 = vld [vmem:[#allocation11] sm:$0xff]
        %v1917 = vld [vmem:[#allocation11 + $0x8] sm:$0xff]
        %v1918 = vld [vmem:[#allocation11 + $0x10] sm:$0xff]
        %v1919 = vld [vmem:[#allocation11 + $0x18] sm:$0xff]
        %v1920 = vld [vmem:[#allocation11 + $0x20] sm:$0xff]
        %v1921 = vld [vmem:[#allocation11 + $0x28] sm:$0xff]
        %v1922 = vld [vmem:[#allocation11 + $0x30] sm:$0xff]
        %v1923 = vld [vmem:[#allocation11 + $0x38] sm:$0xff]
        %v1924 = vld [vmem:[#allocation11 + $0x40] sm:$0xff]
        %v1925 = vld [vmem:[#allocation11 + $0x48] sm:$0xff]
        %v1926 = vld [vmem:[#allocation11 + $0x50] sm:$0xff]
        %v1927 = vld [vmem:[#allocation11 + $0x58] sm:$0xff]
        %v1928 = vld [vmem:[#allocation11 + $0x60] sm:$0xff]
        %v1929 = vld [vmem:[#allocation11 + $0x68] sm:$0xff]
        %v1930 = vld [vmem:[#allocation11 + $0x70] sm:$0xff]
        %v1931 = vld [vmem:[#allocation11 + $0x78] sm:$0xff]
        %v1932 = vld [vmem:[#allocation11 + $0x80] sm:$0xff]
        %v1933 = vld [vmem:[#allocation11 + $0x88] sm:$0xff]
        %v1934 = vld [vmem:[#allocation11 + $0x90] sm:$0xff]
        %v1935 = vld [vmem:[#allocation11 + $0x98] sm:$0xff]
        %v1936 = vld [vmem:[#allocation11 + $0xa0] sm:$0xff]
        %v1937 = vld [vmem:[#allocation11 + $0xa8] sm:$0xff]
        %v1938 = vld [vmem:[#allocation11 + $0xb0] sm:$0xff]
        %v1939 = vld [vmem:[#allocation11 + $0xb8] sm:$0xff]
        %v1940 = vld [vmem:[#allocation11 + $0xc0] sm:$0xff]
        %v1941 = vld [vmem:[#allocation11 + $0xc8] sm:$0xff]
        %v1942 = vld [vmem:[#allocation11 + $0xd0] sm:$0xff]
        %v1943 = vld [vmem:[#allocation11 + $0xd8] sm:$0xff]
        %v1944 = vld [vmem:[#allocation11 + $0xe0] sm:$0xff]
        %v1945 = vld [vmem:[#allocation11 + $0xe8] sm:$0xff]
        %v1946 = vld [vmem:[#allocation11 + $0xf0] sm:$0xff]
        %v1947 = vld [vmem:[#allocation11 + $0xf8] sm:$0xff]
        %v1948 = vld [vmem:[#allocation11 + $0x100] sm:$0xff]
        %v1949 = vld [vmem:[#allocation11 + $0x108] sm:$0xff]
        %v1950 = vld [vmem:[#allocation11 + $0x110] sm:$0xff]
        %v1951 = vld [vmem:[#allocation11 + $0x118] sm:$0xff]
        %v1952 = vld [vmem:[#allocation11 + $0x120] sm:$0xff]
        %v1953 = vld [vmem:[#allocation11 + $0x128] sm:$0xff]
        %v1954 = vld [vmem:[#allocation11 + $0x130] sm:$0xff]
        %v1955 = vld [vmem:[#allocation11 + $0x138] sm:$0xff]
        %v1956 = vld [vmem:[#allocation11 + $0x140] sm:$0xff]
        %v1957 = vld [vmem:[#allocation11 + $0x148] sm:$0xff]
        %v1958 = vld [vmem:[#allocation11 + $0x150] sm:$0xff]
        %v1959 = vld [vmem:[#allocation11 + $0x158] sm:$0xff]
        %v1960 = vld [vmem:[#allocation11 + $0x160] sm:$0xff]
        %v1961 = vld [vmem:[#allocation11 + $0x168] sm:$0xff]
        %v1962 = vld [vmem:[#allocation11 + $0x170] sm:$0xff]
        %v1963 = vld [vmem:[#allocation11 + $0x178] sm:$0xff]
        %v1964 = vld [vmem:[#allocation11 + $0x180] sm:$0xff]
        %v1965 = vld [vmem:[#allocation11 + $0x188] sm:$0xff]
        %v1966 = vld [vmem:[#allocation11 + $0x190] sm:$0xff]
        %v1967 = vld [vmem:[#allocation11 + $0x198] sm:$0xff]
        %v1968 = vld [vmem:[#allocation11 + $0x1a0] sm:$0xff]
        %v1969 = vld [vmem:[#allocation11 + $0x1a8] sm:$0xff]
        %v1970 = vld [vmem:[#allocation11 + $0x1b0] sm:$0xff]
        %v1971 = vld [vmem:[#allocation11 + $0x1b8] sm:$0xff]
        %v1972 = vld [vmem:[#allocation11 + $0x1c0] sm:$0xff]
        %v1973 = vld [vmem:[#allocation11 + $0x1c8] sm:$0xff]
        %v1974 = vld [vmem:[#allocation11 + $0x1d0] sm:$0xff]
        %v1975 = vld [vmem:[#allocation11 + $0x1d8] sm:$0xff]
        %v1976 = vld [vmem:[#allocation11 + $0x1e0] sm:$0xff]
        %v1977 = vld [vmem:[#allocation11 + $0x1e8] sm:$0xff]
        %v1978 = vld [vmem:[#allocation11 + $0x1f0] sm:$0xff]
        %v1979 = vld [vmem:[#allocation11 + $0x1f8] sm:$0xff]
        %1980 = vmatprep.subr.mxu0 %v1917
        %1981 = vmatpush1.msra.mxu0 %v1916
        %1982 = vmatprep.subr.mxu0 %v1921
        %1983 = vmatpush1.msra.mxu0 %v1920
        %1984 = vmatprep.subr.mxu0 %v1925
        %1985 = vmatpush1.msra.mxu0 %v1924
        %1986 = vmatprep.subr.mxu0 %v1929
        %1987 = vmatpush1.msra.mxu0 %v1928
        %1988 = vmatprep.subr.mxu0 %v1933
        %1989 = vmatpush1.msra.mxu0 %v1932
        %1990 = vmatprep.subr.mxu0 %v1937
        %1991 = vmatpush1.msra.mxu0 %v1936
        %1992 = vmatprep.subr.mxu0 %v1941
        %1993 = vmatpush1.msra.mxu0 %v1940
        %1994 = vmatprep.subr.mxu0 %v1945
        %1995 = vmatpush1.msra.mxu0 %v1944
        %1996 = vmatprep.subr.mxu0 %v1949
        %1997 = vmatpush1.msra.mxu0 %v1948
        %1998 = vmatprep.subr.mxu0 %v1953
        %1999 = vmatpush1.msra.mxu0 %v1952
        %2000 = vmatprep.subr.mxu0 %v1957
        %2001 = vmatpush1.msra.mxu0 %v1956
        %2002 = vmatprep.subr.mxu0 %v1961
        %2003 = vmatpush1.msra.mxu0 %v1960
        %2004 = vmatprep.subr.mxu0 %v1965
        %2005 = vmatpush1.msra.mxu0 %v1964
        %2006 = vmatprep.subr.mxu0 %v1969
        %2007 = vmatpush1.msra.mxu0 %v1968
        %2008 = vmatprep.subr.mxu0 %v1973
        %2009 = vmatpush1.msra.mxu0 %v1972
        %2010 = vmatprep.subr.mxu0 %v1977
        %2011 = vmatpush1.msra.mxu0 %v1976
        %2012 = vmatprep.subr.mxu0 0.0
        %2013 = vmatpush1.msra.mxu0 0.0
        %2014 = vmatprep.subr.mxu0 0.0
        %2015 = vmatpush1.msra.mxu0 0.0
        %2016 = vmatprep.subr.mxu0 0.0
        %2017 = vmatpush1.msra.mxu0 0.0
        %2018 = vmatprep.subr.mxu0 0.0
        %2019 = vmatpush1.msra.mxu0 0.0
        %2020 = vmatprep.subr.mxu0 0.0
        %2021 = vmatpush1.msra.mxu0 0.0
        %2022 = vmatprep.subr.mxu0 0.0
        %2023 = vmatpush1.msra.mxu0 0.0
        %2024 = vmatprep.subr.mxu0 0.0
        %2025 = vmatpush1.msra.mxu0 0.0
        %2026 = vmatprep.subr.mxu0 0.0
        %2027 = vmatpush1.msra.mxu0 0.0
        %2028 = vmatprep.subr.mxu0 0.0
        %2029 = vmatpush1.msra.mxu0 0.0
        %2030 = vmatprep.subr.mxu0 0.0
        %2031 = vmatpush1.msra.mxu0 0.0
        %2032 = vmatprep.subr.mxu0 0.0
        %2033 = vmatpush1.msra.mxu0 0.0
        %2034 = vmatprep.subr.mxu0 0.0
        %2035 = vmatpush1.msra.mxu0 0.0
        %2036 = vmatprep.subr.mxu0 0.0
        %2037 = vmatpush1.msra.mxu0 0.0
        %2038 = vmatprep.subr.mxu0 0.0
        %2039 = vmatpush1.msra.mxu0 0.0
        %2040 = vmatprep.subr.mxu0 0.0
        %2041 = vmatpush1.msra.mxu0 0.0
        %2042 = vmatprep.subr.mxu0 0.0
        %2043 = vmatpush1.msra.mxu0 0.0
        %2044 = vmatprep.mubr.f32.mxu0 0.0
        %2045 = vmatmul.mubr.f32.gmra.mrb[0].mxu0 %v1915
        %v2046 = vpop.f32.mrb[0].mxu0
        %v2047 = vadd.f32 0.0, %v2046
        %v2048 = vpop.f32.mrb[0].mxu0
        %v2049 = vadd.f32 0.0, %v2048
        %2050 = vdwg.mxu0
        %2051 = vmatprep.subr.mxu0 %v1919
        %2052 = vmatpush1.msra.mxu0 %v1918
        %2053 = vmatprep.subr.mxu0 %v1923
        %2054 = vmatpush1.msra.mxu0 %v1922
        %2055 = vmatprep.subr.mxu0 %v1927
        %2056 = vmatpush1.msra.mxu0 %v1926
        %2057 = vmatprep.subr.mxu0 %v1931
        %2058 = vmatpush1.msra.mxu0 %v1930
        %2059 = vmatprep.subr.mxu0 %v1935
        %2060 = vmatpush1.msra.mxu0 %v1934
        %2061 = vmatprep.subr.mxu0 %v1939
        %2062 = vmatpush1.msra.mxu0 %v1938
        %2063 = vmatprep.subr.mxu0 %v1943
        %2064 = vmatpush1.msra.mxu0 %v1942
        %2065 = vmatprep.subr.mxu0 %v1947
        %2066 = vmatpush1.msra.mxu0 %v1946
        %2067 = vmatprep.subr.mxu0 %v1951
        %2068 = vmatpush1.msra.mxu0 %v1950
        %2069 = vmatprep.subr.mxu0 %v1955
        %2070 = vmatpush1.msra.mxu0 %v1954
        %2071 = vmatprep.subr.mxu0 %v1959
        %2072 = vmatpush1.msra.mxu0 %v1958
        %2073 = vmatprep.subr.mxu0 %v1963
        %2074 = vmatpush1.msra.mxu0 %v1962
        %2075 = vmatprep.subr.mxu0 %v1967
        %2076 = vmatpush1.msra.mxu0 %v1966
        %2077 = vmatprep.subr.mxu0 %v1971
        %2078 = vmatpush1.msra.mxu0 %v1970
        %2079 = vmatprep.subr.mxu0 %v1975
        %2080 = vmatpush1.msra.mxu0 %v1974
        %2081 = vmatprep.subr.mxu0 %v1979
        %2082 = vmatpush1.msra.mxu0 %v1978
        %2083 = vmatprep.subr.mxu0 0.0
        %2084 = vmatpush1.msra.mxu0 0.0
        %2085 = vmatprep.subr.mxu0 0.0
        %2086 = vmatpush1.msra.mxu0 0.0
        %2087 = vmatprep.subr.mxu0 0.0
        %2088 = vmatpush1.msra.mxu0 0.0
        %2089 = vmatprep.subr.mxu0 0.0
        %2090 = vmatpush1.msra.mxu0 0.0
        %2091 = vmatprep.subr.mxu0 0.0
        %2092 = vmatpush1.msra.mxu0 0.0
        %2093 = vmatprep.subr.mxu0 0.0
        %2094 = vmatpush1.msra.mxu0 0.0
        %2095 = vmatprep.subr.mxu0 0.0
        %2096 = vmatpush1.msra.mxu0 0.0
        %2097 = vmatprep.subr.mxu0 0.0
        %2098 = vmatpush1.msra.mxu0 0.0
        %2099 = vmatprep.subr.mxu0 0.0
        %2100 = vmatpush1.msra.mxu0 0.0
        %2101 = vmatprep.subr.mxu0 0.0
        %2102 = vmatpush1.msra.mxu0 0.0
        %2103 = vmatprep.subr.mxu0 0.0
        %2104 = vmatpush1.msra.mxu0 0.0
        %2105 = vmatprep.subr.mxu0 0.0
        %2106 = vmatpush1.msra.mxu0 0.0
        %2107 = vmatprep.subr.mxu0 0.0
        %2108 = vmatpush1.msra.mxu0 0.0
        %2109 = vmatprep.subr.mxu0 0.0
        %2110 = vmatpush1.msra.mxu0 0.0
        %2111 = vmatprep.subr.mxu0 0.0
        %2112 = vmatpush1.msra.mxu0 0.0
        %2113 = vmatprep.subr.mxu0 0.0
        %2114 = vmatpush1.msra.mxu0 0.0
        %2115 = vmatprep.mubr.f32.mxu0 0.0
        %2116 = vmatmul.mubr.f32.gmra.mrb[0].mxu0 %v1915
        %v2117 = vpop.f32.mrb[0].mxu0
        %v2118 = vadd.f32 0.0, %v2117
        %v2119 = vpop.f32.mrb[0].mxu0
        %v2120 = vadd.f32 0.0, %v2119
        %2121 = vdwg.mxu0
        %v2122 = vadd.f32 %v1911, %v2047
        %v2123 = vadd.f32 %v1912, %v2049
        %v2124 = vadd.f32 %v1913, %v2118
        %v2125 = vadd.f32 %v1914, %v2120
        %v2126 = vld [vmem:[#allocation5] sm:$0xff]
        %v2127 = vxor.u32 %v2122, 2147483648
        %v2128 = vmul.f32 %v2127, 1.442695
        %v2129 = vpow.pop %v2128
        %v2130 = vadd.f32 %v2129, 1.0
        %v2131 = vrcp.pop %v2130
        %v2132 = vmul.f32 1.0, %v2131
        %v2133 = vxor.u32 %v2123, 2147483648
        %v2134 = vmul.f32 %v2133, 1.442695
        %v2135 = vpow.pop %v2134
        %v2136 = vadd.f32 %v2135, 1.0
        %v2137 = vrcp.pop %v2136
        %v2138 = vmul.f32 1.0, %v2137
        %v2139 = vtanh.pop %v2124
        %v2140 = vxor.u32 %v2125, 2147483648
        %v2141 = vmul.f32 %v2140, 1.442695
        %v2142 = vpow.pop %v2141
        %v2143 = vadd.f32 %v2142, 1.0
        %v2144 = vrcp.pop %v2143
        %v2145 = vmul.f32 1.0, %v2144
        %v2146 = vmul.f32 %v2138, %v2126
        %v2147 = vmul.f32 %v2132, %v2139
        %v2148 = vadd.f32 %v2146, %v2147
        %v2149 = vtanh.pop %v2148
        %v2150 = vmul.f32 %v2145, %v2149
        %v2151 = vld [vmem:[#allocation6] sm:$0xff]
        %v2152 = vld [vmem:[#allocation13] sm:$0xff]
        %v2153 = vld [vmem:[#allocation13 + $0x8] sm:$0xff]
        %v2154 = vld [vmem:[#allocation13 + $0x10] sm:$0xff]
        %v2155 = vld [vmem:[#allocation13 + $0x18] sm:$0xff]
        %v2156 = vld [vmem:[#allocation13 + $0x20] sm:$0xff]
        %v2157 = vld [vmem:[#allocation13 + $0x28] sm:$0xff]
        %v2158 = vld [vmem:[#allocation13 + $0x30] sm:$0xff]
        %v2159 = vld [vmem:[#allocation13 + $0x38] sm:$0xff]
        %v2160 = vld [vmem:[#allocation13 + $0x40] sm:$0xff]
        %v2161 = vld [vmem:[#allocation13 + $0x48] sm:$0xff]
        %v2162 = vld [vmem:[#allocation13 + $0x50] sm:$0xff]
        %v2163 = vld [vmem:[#allocation13 + $0x58] sm:$0xff]
        %v2164 = vld [vmem:[#allocation13 + $0x60] sm:$0xff]
        %v2165 = vld [vmem:[#allocation13 + $0x68] sm:$0xff]
        %v2166 = vld [vmem:[#allocation13 + $0x70] sm:$0xff]
        %v2167 = vld [vmem:[#allocation13 + $0x78] sm:$0xff]
        %v2168 = vld [vmem:[#allocation13 + $0x80] sm:$0xff]
        %v2169 = vld [vmem:[#allocation13 + $0x88] sm:$0xff]
        %v2170 = vld [vmem:[#allocation13 + $0x90] sm:$0xff]
        %v2171 = vld [vmem:[#allocation13 + $0x98] sm:$0xff]
        %v2172 = vld [vmem:[#allocation13 + $0xa0] sm:$0xff]
        %v2173 = vld [vmem:[#allocation13 + $0xa8] sm:$0xff]
        %v2174 = vld [vmem:[#allocation13 + $0xb0] sm:$0xff]
        %v2175 = vld [vmem:[#allocation13 + $0xb8] sm:$0xff]
        %v2176 = vld [vmem:[#allocation13 + $0xc0] sm:$0xff]
        %v2177 = vld [vmem:[#allocation13 + $0xc8] sm:$0xff]
        %v2178 = vld [vmem:[#allocation13 + $0xd0] sm:$0xff]
        %v2179 = vld [vmem:[#allocation13 + $0xd8] sm:$0xff]
        %v2180 = vld [vmem:[#allocation13 + $0xe0] sm:$0xff]
        %v2181 = vld [vmem:[#allocation13 + $0xe8] sm:$0xff]
        %v2182 = vld [vmem:[#allocation13 + $0xf0] sm:$0xff]
        %v2183 = vld [vmem:[#allocation13 + $0xf8] sm:$0xff]
        %v2184 = vld [vmem:[#allocation13 + $0x100] sm:$0xff]
        %v2185 = vld [vmem:[#allocation13 + $0x108] sm:$0xff]
        %v2186 = vld [vmem:[#allocation13 + $0x110] sm:$0xff]
        %v2187 = vld [vmem:[#allocation13 + $0x118] sm:$0xff]
        %v2188 = vld [vmem:[#allocation13 + $0x120] sm:$0xff]
        %v2189 = vld [vmem:[#allocation13 + $0x128] sm:$0xff]
        %v2190 = vld [vmem:[#allocation13 + $0x130] sm:$0xff]
        %v2191 = vld [vmem:[#allocation13 + $0x138] sm:$0xff]
        %v2192 = vld [vmem:[#allocation13 + $0x140] sm:$0xff]
        %v2193 = vld [vmem:[#allocation13 + $0x148] sm:$0xff]
        %v2194 = vld [vmem:[#allocation13 + $0x150] sm:$0xff]
        %v2195 = vld [vmem:[#allocation13 + $0x158] sm:$0xff]
        %v2196 = vld [vmem:[#allocation13 + $0x160] sm:$0xff]
        %v2197 = vld [vmem:[#allocation13 + $0x168] sm:$0xff]
        %v2198 = vld [vmem:[#allocation13 + $0x170] sm:$0xff]
        %v2199 = vld [vmem:[#allocation13 + $0x178] sm:$0xff]
        %v2200 = vld [vmem:[#allocation13 + $0x180] sm:$0xff]
        %v2201 = vld [vmem:[#allocation13 + $0x188] sm:$0xff]
        %v2202 = vld [vmem:[#allocation13 + $0x190] sm:$0xff]
        %v2203 = vld [vmem:[#allocation13 + $0x198] sm:$0xff]
        %v2204 = vld [vmem:[#allocation13 + $0x1a0] sm:$0xff]
        %v2205 = vld [vmem:[#allocation13 + $0x1a8] sm:$0xff]
        %v2206 = vld [vmem:[#allocation13 + $0x1b0] sm:$0xff]
        %v2207 = vld [vmem:[#allocation13 + $0x1b8] sm:$0xff]
        %v2208 = vld [vmem:[#allocation13 + $0x1c0] sm:$0xff]
        %v2209 = vld [vmem:[#allocation13 + $0x1c8] sm:$0xff]
        %v2210 = vld [vmem:[#allocation13 + $0x1d0] sm:$0xff]
        %v2211 = vld [vmem:[#allocation13 + $0x1d8] sm:$0xff]
        %v2212 = vld [vmem:[#allocation13 + $0x1e0] sm:$0xff]
        %v2213 = vld [vmem:[#allocation13 + $0x1e8] sm:$0xff]
        %v2214 = vld [vmem:[#allocation13 + $0x1f0] sm:$0xff]
        %v2215 = vld [vmem:[#allocation13 + $0x1f8] sm:$0xff]
        %v2216 = vld [vmem:[#allocation13 + $0x200] sm:$0xff]
        %v2217 = vld [vmem:[#allocation13 + $0x208] sm:$0xff]
        %v2218 = vld [vmem:[#allocation13 + $0x210] sm:$0xff]
        %v2219 = vld [vmem:[#allocation13 + $0x218] sm:$0xff]
        %v2220 = vld [vmem:[#allocation13 + $0x220] sm:$0xff]
        %v2221 = vld [vmem:[#allocation13 + $0x228] sm:$0xff]
        %v2222 = vld [vmem:[#allocation13 + $0x230] sm:$0xff]
        %v2223 = vld [vmem:[#allocation13 + $0x238] sm:$0xff]
        %v2224 = vld [vmem:[#allocation13 + $0x240] sm:$0xff]
        %v2225 = vld [vmem:[#allocation13 + $0x248] sm:$0xff]
        %v2226 = vld [vmem:[#allocation13 + $0x250] sm:$0xff]
        %v2227 = vld [vmem:[#allocation13 + $0x258] sm:$0xff]
        %v2228 = vld [vmem:[#allocation13 + $0x260] sm:$0xff]
        %v2229 = vld [vmem:[#allocation13 + $0x268] sm:$0xff]
        %v2230 = vld [vmem:[#allocation13 + $0x270] sm:$0xff]
        %v2231 = vld [vmem:[#allocation13 + $0x278] sm:$0xff]
        %v2232 = vld [vmem:[#allocation13 + $0x280] sm:$0xff]
        %v2233 = vld [vmem:[#allocation13 + $0x288] sm:$0xff]
        %v2234 = vld [vmem:[#allocation13 + $0x290] sm:$0xff]
        %v2235 = vld [vmem:[#allocation13 + $0x298] sm:$0xff]
        %v2236 = vld [vmem:[#allocation13 + $0x2a0] sm:$0xff]
        %v2237 = vld [vmem:[#allocation13 + $0x2a8] sm:$0xff]
        %v2238 = vld [vmem:[#allocation13 + $0x2b0] sm:$0xff]
        %v2239 = vld [vmem:[#allocation13 + $0x2b8] sm:$0xff]
        %v2240 = vld [vmem:[#allocation13 + $0x2c0] sm:$0xff]
        %v2241 = vld [vmem:[#allocation13 + $0x2c8] sm:$0xff]
        %v2242 = vld [vmem:[#allocation13 + $0x2d0] sm:$0xff]
        %v2243 = vld [vmem:[#allocation13 + $0x2d8] sm:$0xff]
        %v2244 = vld [vmem:[#allocation13 + $0x2e0] sm:$0xff]
        %v2245 = vld [vmem:[#allocation13 + $0x2e8] sm:$0xff]
        %v2246 = vld [vmem:[#allocation13 + $0x2f0] sm:$0xff]
        %v2247 = vld [vmem:[#allocation13 + $0x2f8] sm:$0xff]
        %v2248 = vld [vmem:[#allocation13 + $0x300] sm:$0xff]
        %v2249 = vld [vmem:[#allocation13 + $0x308] sm:$0xff]
        %v2250 = vld [vmem:[#allocation13 + $0x310] sm:$0xff]
        %v2251 = vld [vmem:[#allocation13 + $0x318] sm:$0xff]
        %v2252 = vld [vmem:[#allocation13 + $0x320] sm:$0xff]
        %v2253 = vld [vmem:[#allocation13 + $0x328] sm:$0xff]
        %v2254 = vld [vmem:[#allocation13 + $0x330] sm:$0xff]
        %v2255 = vld [vmem:[#allocation13 + $0x338] sm:$0xff]
        %v2256 = vld [vmem:[#allocation13 + $0x340] sm:$0xff]
        %v2257 = vld [vmem:[#allocation13 + $0x348] sm:$0xff]
        %v2258 = vld [vmem:[#allocation13 + $0x350] sm:$0xff]
        %v2259 = vld [vmem:[#allocation13 + $0x358] sm:$0xff]
        %v2260 = vld [vmem:[#allocation13 + $0x360] sm:$0xff]
        %v2261 = vld [vmem:[#allocation13 + $0x368] sm:$0xff]
        %v2262 = vld [vmem:[#allocation13 + $0x370] sm:$0xff]
        %v2263 = vld [vmem:[#allocation13 + $0x378] sm:$0xff]
        %v2264 = vld [vmem:[#allocation13 + $0x380] sm:$0xff]
        %v2265 = vld [vmem:[#allocation13 + $0x388] sm:$0xff]
        %v2266 = vld [vmem:[#allocation13 + $0x390] sm:$0xff]
        %v2267 = vld [vmem:[#allocation13 + $0x398] sm:$0xff]
        %v2268 = vld [vmem:[#allocation13 + $0x3a0] sm:$0xff]
        %v2269 = vld [vmem:[#allocation13 + $0x3a8] sm:$0xff]
        %v2270 = vld [vmem:[#allocation13 + $0x3b0] sm:$0xff]
        %v2271 = vld [vmem:[#allocation13 + $0x3b8] sm:$0xff]
        %v2272 = vld [vmem:[#allocation13 + $0x3c0] sm:$0xff]
        %v2273 = vld [vmem:[#allocation13 + $0x3c8] sm:$0xff]
        %v2274 = vld [vmem:[#allocation13 + $0x3d0] sm:$0xff]
        %v2275 = vld [vmem:[#allocation13 + $0x3d8] sm:$0xff]
        %v2276 = vld [vmem:[#allocation13 + $0x3e0] sm:$0xff]
        %v2277 = vld [vmem:[#allocation13 + $0x3e8] sm:$0xff]
        %v2278 = vld [vmem:[#allocation13 + $0x3f0] sm:$0xff]
        %v2279 = vld [vmem:[#allocation13 + $0x3f8] sm:$0xff]
        %2280 = vmatprep.subr.mxu0 %v2153
        %2281 = vmatpush1.msra.mxu0 %v2152
        %2282 = vmatprep.subr.mxu0 %v2157
        %2283 = vmatpush1.msra.mxu0 %v2156
        %2284 = vmatprep.subr.mxu0 %v2161
        %2285 = vmatpush1.msra.mxu0 %v2160
        %2286 = vmatprep.subr.mxu0 %v2165
        %2287 = vmatpush1.msra.mxu0 %v2164
        %2288 = vmatprep.subr.mxu0 %v2169
        %2289 = vmatpush1.msra.mxu0 %v2168
        %2290 = vmatprep.subr.mxu0 %v2173
        %2291 = vmatpush1.msra.mxu0 %v2172
        %2292 = vmatprep.subr.mxu0 %v2177
        %2293 = vmatpush1.msra.mxu0 %v2176
        %2294 = vmatprep.subr.mxu0 %v2181
        %2295 = vmatpush1.msra.mxu0 %v2180
        %2296 = vmatprep.subr.mxu0 %v2185
        %2297 = vmatpush1.msra.mxu0 %v2184
        %2298 = vmatprep.subr.mxu0 %v2189
        %2299 = vmatpush1.msra.mxu0 %v2188
        %2300 = vmatprep.subr.mxu0 %v2193
        %2301 = vmatpush1.msra.mxu0 %v2192
        %2302 = vmatprep.subr.mxu0 %v2197
        %2303 = vmatpush1.msra.mxu0 %v2196
        %2304 = vmatprep.subr.mxu0 %v2201
        %2305 = vmatpush1.msra.mxu0 %v2200
        %2306 = vmatprep.subr.mxu0 %v2205
        %2307 = vmatpush1.msra.mxu0 %v2204
        %2308 = vmatprep.subr.mxu0 %v2209
        %2309 = vmatpush1.msra.mxu0 %v2208
        %2310 = vmatprep.subr.mxu0 %v2213
        %2311 = vmatpush1.msra.mxu0 %v2212
        %2312 = vmatprep.subr.mxu0 %v2217
        %2313 = vmatpush1.msra.mxu0 %v2216
        %2314 = vmatprep.subr.mxu0 %v2221
        %2315 = vmatpush1.msra.mxu0 %v2220
        %2316 = vmatprep.subr.mxu0 %v2225
        %2317 = vmatpush1.msra.mxu0 %v2224
        %2318 = vmatprep.subr.mxu0 %v2229
        %2319 = vmatpush1.msra.mxu0 %v2228
        %2320 = vmatprep.subr.mxu0 %v2233
        %2321 = vmatpush1.msra.mxu0 %v2232
        %2322 = vmatprep.subr.mxu0 %v2237
        %2323 = vmatpush1.msra.mxu0 %v2236
        %2324 = vmatprep.subr.mxu0 %v2241
        %2325 = vmatpush1.msra.mxu0 %v2240
        %2326 = vmatprep.subr.mxu0 %v2245
        %2327 = vmatpush1.msra.mxu0 %v2244
        %2328 = vmatprep.subr.mxu0 %v2249
        %2329 = vmatpush1.msra.mxu0 %v2248
        %2330 = vmatprep.subr.mxu0 %v2253
        %2331 = vmatpush1.msra.mxu0 %v2252
        %2332 = vmatprep.subr.mxu0 %v2257
        %2333 = vmatpush1.msra.mxu0 %v2256
        %2334 = vmatprep.subr.mxu0 %v2261
        %2335 = vmatpush1.msra.mxu0 %v2260
        %2336 = vmatprep.subr.mxu0 %v2265
        %2337 = vmatpush1.msra.mxu0 %v2264
        %2338 = vmatprep.subr.mxu0 %v2269
        %2339 = vmatpush1.msra.mxu0 %v2268
        %2340 = vmatprep.subr.mxu0 %v2273
        %2341 = vmatpush1.msra.mxu0 %v2272
        %2342 = vmatprep.subr.mxu0 %v2277
        %2343 = vmatpush1.msra.mxu0 %v2276
        %2344 = vmatprep.mubr.f32.mxu0 %v2151
        %2345 = vmatmul.mubr.f32.gmra.mrb[0].mxu0 %v2150
        %v2346 = vpop.f32.mrb[0].mxu0
        %v2347 = vadd.f32 %v784, %v2346
        %v2348 = vpop.f32.mrb[0].mxu0
        %v2349 = vadd.f32 %v788, %v2348
        %2350 = vdwg.mxu0
        %2351 = vmatprep.subr.mxu0 %v2155
        %2352 = vmatpush1.msra.mxu0 %v2154
        %2353 = vmatprep.subr.mxu0 %v2159
        %2354 = vmatpush1.msra.mxu0 %v2158
        %2355 = vmatprep.subr.mxu0 %v2163
        %2356 = vmatpush1.msra.mxu0 %v2162
        %2357 = vmatprep.subr.mxu0 %v2167
        %2358 = vmatpush1.msra.mxu0 %v2166
        %2359 = vmatprep.subr.mxu0 %v2171
        %2360 = vmatpush1.msra.mxu0 %v2170
        %2361 = vmatprep.subr.mxu0 %v2175
        %2362 = vmatpush1.msra.mxu0 %v2174
        %2363 = vmatprep.subr.mxu0 %v2179
        %2364 = vmatpush1.msra.mxu0 %v2178
        %2365 = vmatprep.subr.mxu0 %v2183
        %2366 = vmatpush1.msra.mxu0 %v2182
        %2367 = vmatprep.subr.mxu0 %v2187
        %2368 = vmatpush1.msra.mxu0 %v2186
        %2369 = vmatprep.subr.mxu0 %v2191
        %2370 = vmatpush1.msra.mxu0 %v2190
        %2371 = vmatprep.subr.mxu0 %v2195
        %2372 = vmatpush1.msra.mxu0 %v2194
        %2373 = vmatprep.subr.mxu0 %v2199
        %2374 = vmatpush1.msra.mxu0 %v2198
        %2375 = vmatprep.subr.mxu0 %v2203
        %2376 = vmatpush1.msra.mxu0 %v2202
        %2377 = vmatprep.subr.mxu0 %v2207
        %2378 = vmatpush1.msra.mxu0 %v2206
        %2379 = vmatprep.subr.mxu0 %v2211
        %2380 = vmatpush1.msra.mxu0 %v2210
        %2381 = vmatprep.subr.mxu0 %v2215
        %2382 = vmatpush1.msra.mxu0 %v2214
        %2383 = vmatprep.subr.mxu0 %v2219
        %2384 = vmatpush1.msra.mxu0 %v2218
        %2385 = vmatprep.subr.mxu0 %v2223
        %2386 = vmatpush1.msra.mxu0 %v2222
        %2387 = vmatprep.subr.mxu0 %v2227
        %2388 = vmatpush1.msra.mxu0 %v2226
        %2389 = vmatprep.subr.mxu0 %v2231
        %2390 = vmatpush1.msra.mxu0 %v2230
        %2391 = vmatprep.subr.mxu0 %v2235
        %2392 = vmatpush1.msra.mxu0 %v2234
        %2393 = vmatprep.subr.mxu0 %v2239
        %2394 = vmatpush1.msra.mxu0 %v2238
        %2395 = vmatprep.subr.mxu0 %v2243
        %2396 = vmatpush1.msra.mxu0 %v2242
        %2397 = vmatprep.subr.mxu0 %v2247
        %2398 = vmatpush1.msra.mxu0 %v2246
        %2399 = vmatprep.subr.mxu0 %v2251
        %2400 = vmatpush1.msra.mxu0 %v2250
        %2401 = vmatprep.subr.mxu0 %v2255
        %2402 = vmatpush1.msra.mxu0 %v2254
        %2403 = vmatprep.subr.mxu0 %v2259
        %2404 = vmatpush1.msra.mxu0 %v2258
        %2405 = vmatprep.subr.mxu0 %v2263
        %2406 = vmatpush1.msra.mxu0 %v2262
        %2407 = vmatprep.subr.mxu0 %v2267
        %2408 = vmatpush1.msra.mxu0 %v2266
        %2409 = vmatprep.subr.mxu0 %v2271
        %2410 = vmatpush1.msra.mxu0 %v2270
        %2411 = vmatprep.subr.mxu0 %v2275
        %2412 = vmatpush1.msra.mxu0 %v2274
        %2413 = vmatprep.subr.mxu0 %v2279
        %2414 = vmatpush1.msra.mxu0 %v2278
        %2415 = vmatprep.mubr.f32.mxu0 %v2151
        %2416 = vmatmul.mubr.f32.gmra.mrb[0].mxu0 %v2150
        %v2417 = vpop.f32.mrb[0].mxu0
        %v2418 = vadd.f32 %v792, %v2417
        %v2419 = vpop.f32.mrb[0].mxu0
        %v2420 = vadd.f32 %v796, %v2419
        %2421 = vdwg.mxu0
        %v2422 = vld [vmem:[#allocation7] sm:$0xff]
        %v2423 = vxor.u32 %v2347, 2147483648
        %v2424 = vmul.f32 %v2423, 1.442695
        %v2425 = vpow.pop %v2424
        %v2426 = vadd.f32 %v2425, 1.0
        %v2427 = vrcp.pop %v2426
        %v2428 = vmul.f32 1.0, %v2427
        %v2429 = vxor.u32 %v2349, 2147483648
        %v2430 = vmul.f32 %v2429, 1.442695
        %v2431 = vpow.pop %v2430
        %v2432 = vadd.f32 %v2431, 1.0
        %v2433 = vrcp.pop %v2432
        %v2434 = vmul.f32 1.0, %v2433
        %v2435 = vtanh.pop %v2418
        %v2436 = vxor.u32 %v2420, 2147483648
        %v2437 = vmul.f32 %v2436, 1.442695
        %v2438 = vpow.pop %v2437
        %v2439 = vadd.f32 %v2438, 1.0
        %v2440 = vrcp.pop %v2439
        %v2441 = vmul.f32 1.0, %v2440
        %v2442 = vmul.f32 %v2434, %v2422
        %v2443 = vmul.f32 %v2428, %v2435
        %v2444 = vadd.f32 %v2442, %v2443
        %v2445 = vtanh.pop %v2444
        %v2446 = vmul.f32 %v2441, %v2445
        %s2447 = sadd.s32 %s1340, 2
        %p2448 = scmp.lt.s32.totalorder %s2447, 8
        %s2449 = scalar_select %p2448, 1, 0
        %v2450 = vstv %s2449
        %vm2451 = vcmp.eq.s32.totalorder %v2450, 1
        %v2452 = vsel %vm2451, %v2150, %v1915
        %v2453 = vsel %vm2451, %v2148, %v2126
        %v2454 = vsel %vm2451, %v2446, %v2151
        %v2455 = vsel %vm2451, %v2444, %v2422
        %2456 = vst [vmem:[#allocation4] sm:$0xff] %v2452
        %2457 = vst [vmem:[#allocation5] sm:$0xff] %v2453
        %2458 = vst [vmem:[#allocation6] sm:$0xff] %v2454
        %2459 = vst [vmem:[#allocation7] sm:$0xff] %v2455
        %s2460 = scalar_lea.vmem [#allocation3], 16
        %2461 = vst [vmem:[%s2460] sm:$0xff] %v2454
        %v2462 = vld [vmem:[#allocation3] sm:$0xff]
        %v2463 = vld [vmem:[#allocation3 + $0x8] sm:$0xff]
        %v2464 = vld [vmem:[#allocation3 + $0x10] sm:$0xff]
        %v2465 = vld [vmem:[#allocation14] sm:$0xff]
        %v2466 = vld [vmem:[#allocation14 + $0x8] sm:$0xff]
        %v2467 = vld [vmem:[#allocation14 + $0x10] sm:$0xff]
        %v2468 = vld [vmem:[#allocation14 + $0x18] sm:$0xff]
        %v2469 = vld [vmem:[#allocation14 + $0x20] sm:$0xff]
        %v2470 = vld [vmem:[#allocation14 + $0x28] sm:$0xff]
        %v2471 = vld [vmem:[#allocation14 + $0x30] sm:$0xff]
        %v2472 = vld [vmem:[#allocation14 + $0x38] sm:$0xff]
        %v2473 = vld [vmem:[#allocation14 + $0x40] sm:$0xff]
        %v2474 = vld [vmem:[#allocation14 + $0x48] sm:$0xff]
        %v2475 = vld [vmem:[#allocation14 + $0x50] sm:$0xff]
        %v2476 = vld [vmem:[#allocation14 + $0x58] sm:$0xff]
        %v2477 = vld [vmem:[#allocation14 + $0x60] sm:$0xff]
        %v2478 = vld [vmem:[#allocation14 + $0x68] sm:$0xff]
        %v2479 = vld [vmem:[#allocation14 + $0x70] sm:$0xff]
        %v2480 = vld [vmem:[#allocation14 + $0x78] sm:$0xff]
        %v2481 = vld [vmem:[%s7] sm:$0x1]
        %v2483 = vlaneseq
        %v2484 = vshrl.u32 %v2483, 7
        %v2485 = vsub.s32 0, %v2484
        %v2486 = vrot.slane %v2481, %v2485
        %2488 = vmatprep.subr.mxu0 0.0
        %2489 = vmatpush1.msra.mxu0 %v2465
        %2490 = vmatprep.subr.mxu0 0.0
        %2491 = vmatpush1.msra.mxu0 %v2466
        %2492 = vmatprep.subr.mxu0 0.0
        %2493 = vmatpush1.msra.mxu0 %v2467
        %2494 = vmatprep.subr.mxu0 0.0
        %2495 = vmatpush1.msra.mxu0 %v2468
        %2496 = vmatprep.subr.mxu0 0.0
        %2497 = vmatpush1.msra.mxu0 %v2469
        %2498 = vmatprep.subr.mxu0 0.0
        %2499 = vmatpush1.msra.mxu0 %v2470
        %2500 = vmatprep.subr.mxu0 0.0
        %2501 = vmatpush1.msra.mxu0 %v2471
        %2502 = vmatprep.subr.mxu0 0.0
        %2503 = vmatpush1.msra.mxu0 %v2472
        %2504 = vmatprep.subr.mxu0 0.0
        %2505 = vmatpush1.msra.mxu0 %v2473
        %2506 = vmatprep.subr.mxu0 0.0
        %2507 = vmatpush1.msra.mxu0 %v2474
        %2508 = vmatprep.subr.mxu0 0.0
        %2509 = vmatpush1.msra.mxu0 %v2475
        %2510 = vmatprep.subr.mxu0 0.0
        %2511 = vmatpush1.msra.mxu0 %v2476
        %2512 = vmatprep.subr.mxu0 0.0
        %2513 = vmatpush1.msra.mxu0 %v2477
        %2514 = vmatprep.subr.mxu0 0.0
        %2515 = vmatpush1.msra.mxu0 %v2478
        %2516 = vmatprep.subr.mxu0 0.0
        %2517 = vmatpush1.msra.mxu0 %v2479
        %2518 = vmatprep.subr.mxu0 0.0
        %2519 = vmatpush1.msra.mxu0 %v2480
        %2520 = vmatprep.subr.mxu0 0.0
        %2521 = vmatpush1.msra.mxu0 0.0
        %2522 = vmatprep.subr.mxu0 0.0
        %2523 = vmatpush1.msra.mxu0 0.0
        %2524 = vmatprep.subr.mxu0 0.0
        %2525 = vmatpush1.msra.mxu0 0.0
        %2526 = vmatprep.subr.mxu0 0.0
        %2527 = vmatpush1.msra.mxu0 0.0
        %2528 = vmatprep.subr.mxu0 0.0
        %2529 = vmatpush1.msra.mxu0 0.0
        %2530 = vmatprep.subr.mxu0 0.0
        %2531 = vmatpush1.msra.mxu0 0.0
        %2532 = vmatprep.subr.mxu0 0.0
        %2533 = vmatpush1.msra.mxu0 0.0
        %2534 = vmatprep.subr.mxu0 0.0
        %2535 = vmatpush1.msra.mxu0 0.0
        %2536 = vmatprep.subr.mxu0 0.0
        %2537 = vmatpush1.msra.mxu0 0.0
        %2538 = vmatprep.subr.mxu0 0.0
        %2539 = vmatpush1.msra.mxu0 0.0
        %2540 = vmatprep.subr.mxu0 0.0
        %2541 = vmatpush1.msra.mxu0 0.0
        %2542 = vmatprep.subr.mxu0 0.0
        %2543 = vmatpush1.msra.mxu0 0.0
        %2544 = vmatprep.subr.mxu0 0.0
        %2545 = vmatpush1.msra.mxu0 0.0
        %2546 = vmatprep.subr.mxu0 0.0
        %2547 = vmatpush1.msra.mxu0 0.0
        %2548 = vmatprep.subr.mxu0 0.0
        %2549 = vmatpush1.msra.mxu0 0.0
        %2550 = vmatprep.subr.mxu0 0.0
        %2551 = vmatpush1.msra.mxu0 0.0
        %2552 = vmatprep.mubr.f32.mxu0 0.0
        %2553 = vmatmul.mubr.f32.gmra.mrb[0].mxu0 %v2462
        %v2554 = vpop.f32.mrb[0].mxu0
        %v2555 = vadd.f32 %v2486, %v2554
        %v2556 = vpop.f32.mrb[0].mxu0
        %2557 = vmatprep.mubr.f32.mxu0 0.0
        %2558 = vmatmul.mubr.f32.gmra.mrb[0].mxu0 %v2463
        %v2559 = vpop.f32.mrb[0].mxu0
        %v2560 = vadd.f32 %v2486, %v2559
        %v2561 = vpop.f32.mrb[0].mxu0
        %2562 = vmatprep.mubr.f32.mxu0 0.0
        %2563 = vmatmul.mubr.f32.gmra.mrb[0].mxu0 %v2464
        %v2564 = vpop.f32.mrb[0].mxu0
        %v2565 = vadd.f32 %v2486, %v2564
        %v2566 = vpop.f32.mrb[0].mxu0
        %2567 = vdwg.mxu0
        %2568 = vst [vmem:[%s518] sm:$0xff] %v2555
        %2569 = vst [vmem:[%s518 + $0x8] sm:$0xff] %v2560
        %2570 = vst [vmem:[%s518 + $0x10] sm:$0xff] %v2565
        %p2571 = scmp.eq.s32.totalorder %s36, 2
        // Predicated region
        $region81: #{tpu_custom_call.1} parent=59 // pred_check
          %p2572 = pneg %p2571
        $region82: #{tpu_custom_call.1} parent=59 // pred_check_branch
          %2574 = sbr.rel (%p2572) target = $region84
        $region83: #{tpu_custom_call.1} parent=59 // pred_region
          %v2575 = vld [vmem:[#allocation4] sm:$0xff]
          %2576 = vst [vmem:[#allocation17] sm:$0xff] %v2575
          %v2577 = vld [vmem:[#allocation6] sm:$0xff]
          %s2578 = scalar_lea.vmem [#allocation17], 8
          %2579 = vst [vmem:[%s2578] sm:$0xff] %v2577
          %v2580 = vld [vmem:[#allocation5] sm:$0xff]
          %2581 = vst [vmem:[#allocation19] sm:$0xff] %v2580
          %v2582 = vld [vmem:[#allocation7] sm:$0xff]
          %s2583 = scalar_lea.vmem [#allocation19], 8
          %2584 = vst [vmem:[%s2583] sm:$0xff] %v2582
        $region84: #{tpu_custom_call.1} parent=59 // pred_fallthru
          _
        %s2585 = sand.u32 %s284, 1
        %s2586 = scalar_lea.sflag [#allocation10], %s2585
        %s2587 = sand.u32 %s284, 1
        %s2588 = smul.addr %s2587, 24
        %s2589 = scalar_lea.vmem [#allocation16], %s2588
        // Predicated region
        $region85: #{tpu_custom_call.1} parent=59 // pred_check
          %p2590 = pneg %p294
        $region86: #{tpu_custom_call.1} parent=59 // pred_check_branch
          %2592 = sbr.rel (%p2590) target = $region88
        $region87: #{tpu_custom_call.1} parent=59 // pred_region
          %s2593 = smul.u32 %s35, 3
          %s2594 = sadd.s32 %s2593, %s36
          %s2595 = smul.u32 3, %s2594
          %s2597 = ssub.s32 384, 384
          %2598 = vsyncadd %s2586, %s2597
          %s2599 = smul.addr %s2595, 128
          %s2600 = scalar_lea.hbm %s10, %s2599
          %s2601 = sshll.u32 %s2589, 4
          %s2602 = int_to_ptr.vmem [resolvable:$true] %s2601
          %2607 = dma.vmem_to_hbm [thread:$0]  %s2602, 384, %s2600, %s2586, 128, 128, 8
        $region88: #{tpu_custom_call.1} parent=59 // pred_fallthru
          _
        // Predicated region
        $region89: #{tpu_custom_call.1} parent=59 // pred_check
          %p2608 = pneg %p320
        $region90: #{tpu_custom_call.1} parent=59 // pred_check_branch
          %2610 = sbr.rel (%p2608) target = $region92
        $region91: #{tpu_custom_call.1} parent=59 // pred_region
          %s2612 = ssub.s32 256, 256
          %2613 = vsyncadd [#allocation18], %s2612
          %s2614 = smul.addr %s35, 128
          %s2615 = scalar_lea.hbm %s11, %s2614
          %s2616 = sshll.u32 [#allocation17], 4
          %s2617 = int_to_ptr.vmem [resolvable:$true] %s2616
          %2622 = dma.vmem_to_hbm [thread:$0]  %s2617, 256, %s2615, [#allocation18], 128, 128, 8
        $region92: #{tpu_custom_call.1} parent=59 // pred_fallthru
          _
        // Predicated region
        $region93: #{tpu_custom_call.1} parent=59 // pred_check
          %p2623 = pneg %p346
        $region94: #{tpu_custom_call.1} parent=59 // pred_check_branch
          %2625 = sbr.rel (%p2623) target = $region96
        $region95: #{tpu_custom_call.1} parent=59 // pred_region
          %s2627 = ssub.s32 256, 256
          %2628 = vsyncadd [#allocation18], %s2627
          %s2629 = smul.addr %s35, 128
          %s2630 = scalar_lea.hbm %s12, %s2629
          %s2631 = sshll.u32 [#allocation19], 4
          %s2632 = int_to_ptr.vmem [resolvable:$true] %s2631
          %2637 = dma.vmem_to_hbm [thread:$0]  %s2632, 256, %s2630, [#allocation18], 128, 128, 8
        $region96: #{tpu_custom_call.1} parent=59 // pred_fallthru
          _
        // Predicated region
        $region97: #{tpu_custom_call.1} parent=59 // pred_check
          %p2638 = pneg %p320
        $region98: #{tpu_custom_call.1} parent=59 // pred_check_branch
          %2640 = sbr.rel (%p2638) target = $region100
        $region99: #{tpu_custom_call.1} parent=59 // pred_region
          %2641 = dma.done [#allocation18], 256
        $region100: #{tpu_custom_call.1} parent=59 // pred_fallthru
          _
        // Predicated region
        $region101: #{tpu_custom_call.1} parent=59 // pred_check
          %p2642 = pneg %p346
        $region102: #{tpu_custom_call.1} parent=59 // pred_check_branch
          %2644 = sbr.rel (%p2642) target = $region104
        $region103: #{tpu_custom_call.1} parent=59 // pred_region
          %2645 = dma.done [#allocation18], 256
        $region104: #{tpu_custom_call.1} parent=59 // pred_fallthru
          _
      $region60: #{tpu_custom_call.1} parent=5 // pred_fallthru
        _
      %p2646 = scmp.le.s32.totalorder 2, %s26
      // Predicated region
      $region105: #{tpu_custom_call.1} parent=5 // pred_check
        %p2647 = pneg %p2646
      $region106: #{tpu_custom_call.1} parent=5 // pred_check_branch
        %2649 = sbr.rel (%p2647) target = $region108
      $region107: #{tpu_custom_call.1} parent=5 // pred_region
        %s2650 = ssub.s32 %s26, 2
        // Predicated region
        $region109: #{tpu_custom_call.1} parent=107 // pred_check
          %p2651 = pneg %p300
        $region110: #{tpu_custom_call.1} parent=107 // pred_check_branch
          %2653 = sbr.rel (%p2651) target = $region112
        $region111: #{tpu_custom_call.1} parent=107 // pred_region
          %s2654 = sand.u32 %s285, 1
          %s2655 = scalar_lea.sflag [#allocation10], %s2654
          %s2656 = sand.u32 %s285, 1
          %s2657 = smul.addr %s2656, 24
          %s2658 = scalar_lea.vmem [#allocation16], %s2657
          %2659 = dma.done %s2655, 384
        $region112: #{tpu_custom_call.1} parent=107 // pred_fallthru
          _
      $region108: #{tpu_custom_call.1} parent=5 // pred_fallthru
        _
    $region6: #{tpu_custom_call.1} parent=1 // loop_footer
      %s30 = sadd.s32 1, %s26
    $region7: #{tpu_custom_call.1} parent=1 // loop_footer_branch
      %25 = sbr.rel target = $region3
    $region8: #{tpu_custom_call.1} parent=1 // loop_exit
      _
    %2660 = vsyncpa [#allocation9], 1
    %s2661 = scalar_lea.sflag [#allocation9], 1
    %2662 = vsyncpa %s2661, 1
    %2663 = vsyncpa [#allocation12], 1
    %2664 = vsyncpa [#allocation15], 1
    %2665 = vsyncpa [#allocation10], 1
    %s2666 = scalar_lea.sflag [#allocation10], 1
    %2667 = vsyncpa %s2666, 1
    %2668 = vsyncpa [#allocation18], 1

// kernel: tpu_custom_call.1
$region0: #{tpu_custom_call.1}
  #allocation0 [shape = 'u32[]', space=smem, size = 0x4, offset = 0x4, fixed_abs, tag = 'smem constant byte address 0x4 - core index']
  #allocation1 [shape = 'u32[144,128]{1,0:T(1,128)}', space=vmem, size = 0x12000, scoped, tag = 'internal scratch']
  #allocation2 [shape = 'f32[24,512]{1,0:T(8,128)}', space=vmem, size = 0xc000, scoped, tag = 'scratch operand']
  #allocation3 [shape = 'f32[24,128]{1,0:T(8,128)}', space=vmem, size = 0x3000, scoped, tag = 'scratch operand']
  #allocation4 [shape = 'f32[8,128]{1,0:T(8,128)}', space=vmem, size = 0x1000, scoped, tag = 'scratch operand']
  #allocation5 [shape = 'f32[8,128]{1,0:T(8,128)}', space=vmem, size = 0x1000, scoped, tag = 'scratch operand']
  #allocation6 [shape = 'f32[8,128]{1,0:T(8,128)}', space=vmem, size = 0x1000, scoped, tag = 'scratch operand']
  #allocation7 [shape = 'f32[8,128]{1,0:T(8,128)}', space=vmem, size = 0x1000, scoped, tag = 'scratch operand']
  %s0 = inlined_call_operand.vmem [shape: f32[72,16], index: 0, kind: input, shape index: {}]
  %s1 = inlined_call_operand.vmem [shape: f32[16,512], index: 1, kind: input, shape index: {}]
  %s2 = inlined_call_operand.hbm [shape: f32[1,512], index: 2, kind: input, shape index: {}]
  %s3 = inlined_call_operand.hbm [shape: f32[128,512], index: 3, kind: input, shape index: {}]
  %s4 = inlined_call_operand.hbm [shape: f32[256,512], index: 4, kind: input, shape index: {}]
  %s5 = inlined_call_operand.vmem [shape: f32[1,512], index: 5, kind: input, shape index: {}]
  %s6 = inlined_call_operand.hbm [shape: f32[128,128], index: 6, kind: input, shape index: {}]
  %s7 = inlined_call_operand.vmem [shape: f32[1,128], index: 7, kind: input, shape index: {}]
  %s8 = inlined_call_operand.vmem [shape: f32[2,8,128], index: 8, kind: input, shape index: {}]
  %s9 = inlined_call_operand.vmem [shape: f32[2,8,128], index: 9, kind: input, shape index: {}]
  %s10 = inlined_call_operand.hbm [shape: f32[72,128], index: 10, kind: output, shape index: {0}]
  %s11 = inlined_call_operand.hbm [shape: f32[2,8,128], index: 11, kind: output, shape index: {1}]
  %s12 = inlined_call_operand.hbm [shape: f32[2,8,128], index: 12, kind: output, shape index: {2}]
  %13 = xla_tuple %s10, %s11, %s12
  %s14 = sld [smem:[#allocation0]]
  $region113: #{tpu_custom_call.1} parent=0
    _
  %s16 = ssub.s32 1, %s14
  %s17 = scalar_select 0, %s16, %s14
  $region1: #{tpu_custom_call.1} parent=0
    #allocation8 [shape = 'u8[2048]{0}', space=vmem, size = 0x800, scoped, tag = 'input window, operand 2, single buffered']
    #allocation9 [shape = 's32[2]{0}', space=sflag, size = 0x8, scoped, tag = 'scoped memory for tpu_custom_call.1']
    #allocation10 [shape = 's32[2]{0}', space=sflag, size = 0x8, scoped, tag = 'scoped memory for tpu_custom_call.1']
    #allocation11 [shape = 'u8[262144]{0}', space=vmem, size = 0x40000, scoped, tag = 'input window, operand 3, single buffered']
    #allocation12 [shape = 's32[1]{0}', space=sflag, size = 0x4, scoped, tag = 'scoped memory for tpu_custom_call.1']
    #allocation13 [shape = 'u8[524288]{0}', space=vmem, size = 0x80000, scoped, tag = 'input window, operand 4, single buffered']
    #allocation14 [shape = 'u8[65536]{0}', space=vmem, size = 0x10000, scoped, tag = 'input window, operand 6, single buffered']
    #allocation15 [shape = 's32[1]{0}', space=sflag, size = 0x4, scoped, tag = 'scoped memory for tpu_custom_call.1']
    #allocation16 [shape = 'u8[24576]{0}', space=vmem, size = 0x6000, scoped, tag = 'output window, operand 0']
    #allocation17 [shape = 'u8[8192]{0}', space=vmem, size = 0x2000, scoped, tag = 'output window, operand 1, single buffered']
    #allocation18 [shape = 's32[1]{0}', space=sflag, size = 0x4, scoped, tag = 'scoped memory for tpu_custom_call.1']
    #allocation19 [shape = 'u8[8192]{0}', space=vmem, size = 0x2000, scoped, tag = 'output window, operand 2, single buffered']
    %18 = vsyncpa [#allocation9], 0
    %19 = vsyncpa [#allocation12], 0
    %20 = vsyncpa [#allocation15], 0
    %21 = vsyncpa [#allocation10], 0
    %s22 = scalar_lea.sflag [#allocation10], 1
    %23 = vsyncpa %s22, 0
    %24 = vsyncpa [#allocation18], 0
    loop: start=0, step=1, limit=5
    $region2: #{tpu_custom_call.1} parent=1 // loop_pre_header
      _
    $region3: #{tpu_custom_call.1} parent=1 // loop_header
      %s26 = sphi 0, %s30
      %p27 = scmp.ge.s32.totalorder %s26, 5
      %s33 = sphi 0, %s45
      %s34 = sphi 0, %s41
      %s35 = sphi 0, %s33
      %s36 = sphi 0, %s34
      %s37 = sphi 0, %s35
      %s38 = sphi 0, %s36
      %s52 = sphi 0, %s54
      %s55 = sphi 0, %s52
      %s56 = sphi 0, %s55
      %s72 = sphi 0, %s56
      %s76 = sphi 0, %s76
      %s78 = sphi 0, %s76
      %s79 = sphi 0, %s78
      %s93 = sphi 0, %s79
      %s97 = sphi 0, %s97
      %s99 = sphi 0, %s97
      %s100 = sphi 0, %s99
      %s114 = sphi 0, %s100
      %s118 = sphi 0, %s118
      %s120 = sphi 0, %s118
      %s121 = sphi 0, %s120
      %s135 = sphi 0, %s121
      %s139 = sphi 0, %s139
      %s141 = sphi 0, %s139
      %s142 = sphi 0, %s141
      %s156 = sphi 0, %s142
      %s160 = sphi 0, %s160
      %s162 = sphi 0, %s160
      %s163 = sphi 0, %s162
      %s177 = sphi 0, %s163
      %s181 = sphi 0, %s181
      %s183 = sphi 0, %s181
      %s184 = sphi 0, %s183
      %s198 = sphi 0, %s184
      %s202 = sphi 0, %s202
      %s204 = sphi 0, %s202
      %s205 = sphi 0, %s204
      %s219 = sphi 0, %s205
      %s225 = sphi 0, %s227
      %s228 = sphi 0, %s225
      %s229 = sphi 0, %s228
      %s245 = sphi 0, %s229
      %s251 = sphi 0, %s253
      %s254 = sphi 0, %s251
      %s255 = sphi 0, %s254
      %s271 = sphi 0, %s255
      %s281 = sphi 0, %s283
      %s284 = sphi 0, %s281
      %s285 = sphi 0, %s284
      %s301 = sphi 0, %s285
      %s307 = sphi 0, %s309
      %s310 = sphi 0, %s307
      %s311 = sphi 0, %s310
      %s327 = sphi 0, %s311
      %s333 = sphi 0, %s335
      %s336 = sphi 0, %s333
      %s337 = sphi 0, %s336
      %s353 = sphi 0, %s337
    $region4: #{tpu_custom_call.1} parent=1 // loop_header_branch
      %29 = sbr.rel (%p27) target = $region8
    $region5: #{tpu_custom_call.1} parent=1 // loop_body
      %s31 = ssub.s32 %s26, 1
      %s32 = ssub.s32 %s26, 2
      %s39 = sadd.s32 1, %s34
      %p40 = scmp.ge.s32.totalorder %s39, 3
      %s41 = scalar_select %p40, 0, %s39
      %s42 = sadd.s32 1, %s33
      %s43 = scalar_select %p40, %s42, %s33
      %p44 = scmp.ge.s32.totalorder %s43, 1
      %s45 = scalar_select %p44, 0, %s43
      %s46 = smul.u32 %s33, 3
      %s47 = sadd.s32 %s46, %s34
      %s48 = smul.u32 %s45, 3
      %s49 = sadd.s32 %s48, %s41
      %s50 = ssub.s32 %s47, %s49
      %p51 = scmp.eq.s32.totalorder %s50, 0
      %s53 = sadd.s32 %s52, 1
      %s54 = scalar_select %p51, %s52, %s53
      %p57 = pneg %p51
      %p58 = scmp.eq.s32.totalorder %s26, 2
      %p59 = por %p57, %p58
      %p60 = scmp.ne.s32.totalorder %s52, %s55
      %p61 = scmp.eq.s32.totalorder %s26, 0
      %p62 = por %p60, %p61
      %p63 = scmp.ne.s32.totalorder %s52, %s55
      %p64 = scmp.eq.s32.totalorder %s31, 2
      %p65 = por %p63, %p64
      %p66 = scmp.ne.s32.totalorder %s55, %s56
      %p67 = scmp.eq.s32.totalorder %s31, 0
      %p68 = por %p66, %p67
      %p69 = scmp.ne.s32.totalorder %s55, %s56
      %p70 = scmp.eq.s32.totalorder %s32, 2
      %p71 = por %p69, %p70
      %p73 = scmp.ne.s32.totalorder %s56, %s72
      %p74 = scmp.eq.s32.totalorder %s32, 0
      %p75 = por %p73, %p74
      %s77 = sadd.s32 %s76, 1
      %p80 = scmp.eq.s32.totalorder %s26, 2
      %p81 = scmp.ne.s32.totalorder %s76, %s78
      %p82 = scmp.eq.s32.totalorder %s26, 0
      %p83 = por %p81, %p82
      %p84 = scmp.ne.s32.totalorder %s76, %s78
      %p85 = scmp.eq.s32.totalorder %s31, 2
      %p86 = por %p84, %p85
      %p87 = scmp.ne.s32.totalorder %s78, %s79
      %p88 = scmp.eq.s32.totalorder %s31, 0
      %p89 = por %p87, %p88
      %p90 = scmp.ne.s32.totalorder %s78, %s79
      %p91 = scmp.eq.s32.totalorder %s32, 2
      %p92 = por %p90, %p91
      %p94 = scmp.ne.s32.totalorder %s79, %s93
      %p95 = scmp.eq.s32.totalorder %s32, 0
      %p96 = por %p94, %p95
      %s98 = sadd.s32 %s97, 1
      %p101 = scmp.eq.s32.totalorder %s26, 2
      %p102 = scmp.ne.s32.totalorder %s97, %s99
      %p103 = scmp.eq.s32.totalorder %s26, 0
      %p104 = por %p102, %p103
      %p105 = scmp.ne.s32.totalorder %s97, %s99
      %p106 = scmp.eq.s32.totalorder %s31, 2
      %p107 = por %p105, %p106
      %p108 = scmp.ne.s32.totalorder %s99, %s100
      %p109 = scmp.eq.s32.totalorder %s31, 0
      %p110 = por %p108, %p109
      %p111 = scmp.ne.s32.totalorder %s99, %s100
      %p112 = scmp.eq.s32.totalorder %s32, 2
      %p113 = por %p111, %p112
      %p115 = scmp.ne.s32.totalorder %s100, %s114
      %p116 = scmp.eq.s32.totalorder %s32, 0
      %p117 = por %p115, %p116
      %s119 = sadd.s32 %s118, 1
      %p122 = scmp.eq.s32.totalorder %s26, 2
      %p123 = scmp.ne.s32.totalorder %s118, %s120
      %p124 = scmp.eq.s32.totalorder %s26, 0
      %p125 = por %p123, %p124
      %p126 = scmp.ne.s32.totalorder %s118, %s120
      %p127 = scmp.eq.s32.totalorder %s31, 2
      %p128 = por %p126, %p127
      %p129 = scmp.ne.s32.totalorder %s120, %s121
      %p130 = scmp.eq.s32.totalorder %s31, 0
      %p131 = por %p129, %p130
      %p132 = scmp.ne.s32.totalorder %s120, %s121
      %p133 = scmp.eq.s32.totalorder %s32, 2
      %p134 = por %p132, %p133
      %p136 = scmp.ne.s32.totalorder %s121, %s135
      %p137 = scmp.eq.s32.totalorder %s32, 0
      %p138 = por %p136, %p137
      %s140 = sadd.s32 %s139, 1
      %p143 = scmp.eq.s32.totalorder %s26, 2
      %p144 = scmp.ne.s32.totalorder %s139, %s141
      %p145 = scmp.eq.s32.totalorder %s26, 0
      %p146 = por %p144, %p145
      %p147 = scmp.ne.s32.totalorder %s139, %s141
      %p148 = scmp.eq.s32.totalorder %s31, 2
      %p149 = por %p147, %p148
      %p150 = scmp.ne.s32.totalorder %s141, %s142
      %p151 = scmp.eq.s32.totalorder %s31, 0
      %p152 = por %p150, %p151
      %p153 = scmp.ne.s32.totalorder %s141, %s142
      %p154 = scmp.eq.s32.totalorder %s32, 2
      %p155 = por %p153, %p154
      %p157 = scmp.ne.s32.totalorder %s142, %s156
      %p158 = scmp.eq.s32.totalorder %s32, 0
      %p159 = por %p157, %p158
      %s161 = sadd.s32 %s160, 1
      %p164 = scmp.eq.s32.totalorder %s26, 2
      %p165 = scmp.ne.s32.totalorder %s160, %s162
      %p166 = scmp.eq.s32.totalorder %s26, 0
      %p167 = por %p165, %p166
      %p168 = scmp.ne.s32.totalorder %s160, %s162
      %p169 = scmp.eq.s32.totalorder %s31, 2
      %p170 = por %p168, %p169
      %p171 = scmp.ne.s32.totalorder %s162, %s163
      %p172 = scmp.eq.s32.totalorder %s31, 0
      %p173 = por %p171, %p172
      %p174 = scmp.ne.s32.totalorder %s162, %s163
      %p175 = scmp.eq.s32.totalorder %s32, 2
      %p176 = por %p174, %p175
      %p178 = scmp.ne.s32.totalorder %s163, %s177
      %p179 = scmp.eq.s32.totalorder %s32, 0
      %p180 = por %p178, %p179
      %s182 = sadd.s32 %s181, 1
      %p185 = scmp.eq.s32.totalorder %s26, 2
      %p186 = scmp.ne.s32.totalorder %s181, %s183
      %p187 = scmp.eq.s32.totalorder %s26, 0
      %p188 = por %p186, %p187
      %p189 = scmp.ne.s32.totalorder %s181, %s183
      %p190 = scmp.eq.s32.totalorder %s31, 2
      %p191 = por %p189, %p190
      %p192 = scmp.ne.s32.totalorder %s183, %s184
      %p193 = scmp.eq.s32.totalorder %s31, 0
      %p194 = por %p192, %p193
      %p195 = scmp.ne.s32.totalorder %s183, %s184
      %p196 = scmp.eq.s32.totalorder %s32, 2
      %p197 = por %p195, %p196
      %p199 = scmp.ne.s32.totalorder %s184, %s198
      %p200 = scmp.eq.s32.totalorder %s32, 0
      %p201 = por %p199, %p200
      %s203 = sadd.s32 %s202, 1
      %p206 = scmp.eq.s32.totalorder %s26, 2
      %p207 = scmp.ne.s32.totalorder %s202, %s204
      %p208 = scmp.eq.s32.totalorder %s26, 0
      %p209 = por %p207, %p208
      %p210 = scmp.ne.s32.totalorder %s202, %s204
      %p211 = scmp.eq.s32.totalorder %s31, 2
      %p212 = por %p210, %p211
      %p213 = scmp.ne.s32.totalorder %s204, %s205
      %p214 = scmp.eq.s32.totalorder %s31, 0
      %p215 = por %p213, %p214
      %p216 = scmp.ne.s32.totalorder %s204, %s205
      %p217 = scmp.eq.s32.totalorder %s32, 2
      %p218 = por %p216, %p217
      %p220 = scmp.ne.s32.totalorder %s205, %s219
      %p221 = scmp.eq.s32.totalorder %s32, 0
      %p222 = por %p220, %p221
      %s223 = ssub.s32 %s33, %s45
      %p224 = scmp.eq.s32.totalorder %s223, 0
      %s226 = sadd.s32 %s225, 1
      %s227 = scalar_select %p224, %s225, %s226
      %p230 = pneg %p224
      %p231 = scmp.eq.s32.totalorder %s26, 2
      %p232 = por %p230, %p231
      %p233 = scmp.ne.s32.totalorder %s225, %s228
      %p234 = scmp.eq.s32.totalorder %s26, 0
      %p235 = por %p233, %p234
      %p236 = scmp.ne.s32.totalorder %s225, %s228
      %p237 = scmp.eq.s32.totalorder %s31, 2
      %p238 = por %p236, %p237
      %p239 = scmp.ne.s32.totalorder %s228, %s229
      %p240 = scmp.eq.s32.totalorder %s31, 0
      %p241 = por %p239, %p240
      %p242 = scmp.ne.s32.totalorder %s228, %s229
      %p243 = scmp.eq.s32.totalorder %s32, 2
      %p244 = por %p242, %p243
      %p246 = scmp.ne.s32.totalorder %s229, %s245
      %p247 = scmp.eq.s32.totalorder %s32, 0
      %p248 = por %p246, %p247
      %s249 = ssub.s32 %s33, %s45
      %p250 = scmp.eq.s32.totalorder %s249, 0
      %s252 = sadd.s32 %s251, 1
      %s253 = scalar_select %p250, %s251, %s252
      %p256 = pneg %p250
      %p257 = scmp.eq.s32.totalorder %s26, 2
      %p258 = por %p256, %p257
      %p259 = scmp.ne.s32.totalorder %s251, %s254
      %p260 = scmp.eq.s32.totalorder %s26, 0
      %p261 = por %p259, %p260
      %p262 = scmp.ne.s32.totalorder %s251, %s254
      %p263 = scmp.eq.s32.totalorder %s31, 2
      %p264 = por %p262, %p263
      %p265 = scmp.ne.s32.totalorder %s254, %s255
      %p266 = scmp.eq.s32.totalorder %s31, 0
      %p267 = por %p265, %p266
      %p268 = scmp.ne.s32.totalorder %s254, %s255
      %p269 = scmp.eq.s32.totalorder %s32, 2
      %p270 = por %p268, %p269
      %p272 = scmp.ne.s32.totalorder %s255, %s271
      %p273 = scmp.eq.s32.totalorder %s32, 0
      %p274 = por %p272, %p273
      %s275 = smul.u32 %s33, 3
      %s276 = sadd.s32 %s275, %s34
      %s277 = smul.u32 %s45, 3
      %s278 = sadd.s32 %s277, %s41
      %s279 = ssub.s32 %s276, %s278
      %p280 = scmp.eq.s32.totalorder %s279, 0
      %s282 = sadd.s32 %s281, 1
      %s283 = scalar_select %p280, %s281, %s282
      %p286 = pneg %p280
      %p287 = scmp.eq.s32.totalorder %s26, 2
      %p288 = por %p286, %p287
      %p289 = scmp.ne.s32.totalorder %s281, %s284
      %p290 = scmp.eq.s32.totalorder %s26, 0
      %p291 = por %p289, %p290
      %p292 = scmp.ne.s32.totalorder %s281, %s284
      %p293 = scmp.eq.s32.totalorder %s31, 2
      %p294 = por %p292, %p293
      %p295 = scmp.ne.s32.totalorder %s284, %s285
      %p296 = scmp.eq.s32.totalorder %s31, 0
      %p297 = por %p295, %p296
      %p298 = scmp.ne.s32.totalorder %s284, %s285
      %p299 = scmp.eq.s32.totalorder %s32, 2
      %p300 = por %p298, %p299
      %p302 = scmp.ne.s32.totalorder %s285, %s301
      %p303 = scmp.eq.s32.totalorder %s32, 0
      %p304 = por %p302, %p303
      %s305 = ssub.s32 %s33, %s45
      %p306 = scmp.eq.s32.totalorder %s305, 0
      %s308 = sadd.s32 %s307, 1
      %s309 = scalar_select %p306, %s307, %s308
      %p312 = pneg %p306
      %p313 = scmp.eq.s32.totalorder %s26, 2
      %p314 = por %p312, %p313
      %p315 = scmp.ne.s32.totalorder %s307, %s310
      %p316 = scmp.eq.s32.totalorder %s26, 0
      %p317 = por %p315, %p316
      %p318 = scmp.ne.s32.totalorder %s307, %s310
      %p319 = scmp.eq.s32.totalorder %s31, 2
      %p320 = por %p318, %p319
      %p321 = scmp.ne.s32.totalorder %s310, %s311
      %p322 = scmp.eq.s32.totalorder %s31, 0
      %p323 = por %p321, %p322
      %p324 = scmp.ne.s32.totalorder %s310, %s311
      %p325 = scmp.eq.s32.totalorder %s32, 2
      %p326 = por %p324, %p325
      %p328 = scmp.ne.s32.totalorder %s311, %s327
      %p329 = scmp.eq.s32.totalorder %s32, 0
      %p330 = por %p328, %p329
      %s331 = ssub.s32 %s33, %s45
      %p332 = scmp.eq.s32.totalorder %s331, 0
      %s334 = sadd.s32 %s333, 1
      %s335 = scalar_select %p332, %s333, %s334
      %p338 = pneg %p332
      %p339 = scmp.eq.s32.totalorder %s26, 2
      %p340 = por %p338, %p339
      %p341 = scmp.ne.s32.totalorder %s333, %s336
      %p342 = scmp.eq.s32.totalorder %s26, 0
      %p343 = por %p341, %p342
      %p344 = scmp.ne.s32.totalorder %s333, %s336
      %p345 = scmp.eq.s32.totalorder %s31, 2
      %p346 = por %p344, %p345
      %p347 = scmp.ne.s32.totalorder %s336, %s337
      %p348 = scmp.eq.s32.totalorder %s31, 0
      %p349 = por %p347, %p348
      %p350 = scmp.ne.s32.totalorder %s336, %s337
      %p351 = scmp.eq.s32.totalorder %s32, 2
      %p352 = por %p350, %p351
      %p354 = scmp.ne.s32.totalorder %s337, %s353
      %p355 = scmp.eq.s32.totalorder %s32, 0
      %p356 = por %p354, %p355
      %p357 = scmp.le.s32.totalorder 1, %s26
      %p358 = scmp.lt.s32.totalorder %s26, 4
      %p359 = pnand %p357, %p358
      %p360 = pneg %p359
      // Predicated region
      $region9: #{tpu_custom_call.1} parent=5 // pred_check
        _
      $region10: #{tpu_custom_call.1} parent=5 // pred_check_branch
        %362 = sbr.rel (%p359) target = $region12
      $region11: #{tpu_custom_call.1} parent=5 // pred_region
        %s363 = ssub.s32 %s26, 1
        // Predicated region
        $region13: #{tpu_custom_call.1} parent=11 // pred_check
          %p364 = pneg %p89
        $region14: #{tpu_custom_call.1} parent=11 // pred_check_branch
          %366 = sbr.rel (%p364) target = $region16
        $region15: #{tpu_custom_call.1} parent=11 // pred_region
          _
        $region16: #{tpu_custom_call.1} parent=11 // pred_fallthru
          _
        // Predicated region
        $region17: #{tpu_custom_call.1} parent=11 // pred_check
          %p367 = pneg %p110
        $region18: #{tpu_custom_call.1} parent=11 // pred_check_branch
          %369 = sbr.rel (%p367) target = $region20
        $region19: #{tpu_custom_call.1} parent=11 // pred_region
          %s371 = ssub.s32 64, 64
          %372 = vsyncadd [#allocation9], %s371
          %s374 = sshll.u32 [#allocation8], 4
          %s375 = int_to_ptr.vmem [resolvable:$true] %s374
          %377 = dma.hbm_to_vmem [thread:$0]  %s2, 64, %s375, [#allocation9]
        $region20: #{tpu_custom_call.1} parent=11 // pred_fallthru
          _
        // Predicated region
        $region21: #{tpu_custom_call.1} parent=11 // pred_check
          %p378 = pneg %p131
        $region22: #{tpu_custom_call.1} parent=11 // pred_check_branch
          %380 = sbr.rel (%p378) target = $region24
        $region23: #{tpu_custom_call.1} parent=11 // pred_region
          %s382 = ssub.s32 8192, 8192
          %383 = vsyncadd [#allocation12], %s382
          %s384 = sshll.u32 [#allocation11], 4
          %s385 = int_to_ptr.vmem [resolvable:$true] %s384
          %390 = dma.hbm_to_vmem [thread:$0]  %s3, 8192, %s385, [#allocation12], 512, 512, 32
        $region24: #{tpu_custom_call.1} parent=11 // pred_fallthru
          _
        // Predicated region
        $region25: #{tpu_custom_call.1} parent=11 // pred_check
          %p391 = pneg %p152
        $region26: #{tpu_custom_call.1} parent=11 // pred_check_branch
          %393 = sbr.rel (%p391) target = $region28
        $region27: #{tpu_custom_call.1} parent=11 // pred_region
          %s395 = ssub.s32 16384, 16384
          %396 = vsyncadd [#allocation12], %s395
          %s397 = sshll.u32 [#allocation13], 4
          %s398 = int_to_ptr.vmem [resolvable:$true] %s397
          %403 = dma.hbm_to_vmem [thread:$0]  %s4, 16384, %s398, [#allocation12], 512, 512, 32
        $region28: #{tpu_custom_call.1} parent=11 // pred_fallthru
          _
        // Predicated region
        $region29: #{tpu_custom_call.1} parent=11 // pred_check
          %p404 = pneg %p173
        $region30: #{tpu_custom_call.1} parent=11 // pred_check_branch
          %406 = sbr.rel (%p404) target = $region32
        $region31: #{tpu_custom_call.1} parent=11 // pred_region
          _
        $region32: #{tpu_custom_call.1} parent=11 // pred_fallthru
          _
        // Predicated region
        $region33: #{tpu_custom_call.1} parent=11 // pred_check
          %p407 = pneg %p194
        $region34: #{tpu_custom_call.1} parent=11 // pred_check_branch
          %409 = sbr.rel (%p407) target = $region36
        $region35: #{tpu_custom_call.1} parent=11 // pred_region
          %s411 = ssub.s32 2048, 2048
          %412 = vsyncadd [#allocation15], %s411
          %s413 = sshll.u32 [#allocation14], 4
          %s414 = int_to_ptr.vmem [resolvable:$true] %s413
          %419 = dma.hbm_to_vmem [thread:$0]  %s6, 2048, %s414, [#allocation15], 128, 128, 8
        $region36: #{tpu_custom_call.1} parent=11 // pred_fallthru
          _
        // Predicated region
        $region37: #{tpu_custom_call.1} parent=11 // pred_check
          %p420 = pneg %p215
        $region38: #{tpu_custom_call.1} parent=11 // pred_check_branch
          %422 = sbr.rel (%p420) target = $region40
        $region39: #{tpu_custom_call.1} parent=11 // pred_region
          _
        $region40: #{tpu_custom_call.1} parent=11 // pred_fallthru
          _
        // Predicated region
        $region41: #{tpu_custom_call.1} parent=11 // pred_check
          %p423 = pneg %p241
        $region42: #{tpu_custom_call.1} parent=11 // pred_check_branch
          %425 = sbr.rel (%p423) target = $region44
        $region43: #{tpu_custom_call.1} parent=11 // pred_region
          %p426 = scmp.lt.s32.totalorder %s35, 0
          %s427 = scalar_select %p426, %s35, 0
          %s428 = smul.addr %s427, 8
          %s429 = scalar_lea.vmem %s8, %s428
        $region44: #{tpu_custom_call.1} parent=11 // pred_fallthru
          _
        // Predicated region
        $region45: #{tpu_custom_call.1} parent=11 // pred_check
          %p430 = pneg %p267
        $region46: #{tpu_custom_call.1} parent=11 // pred_check_branch
          %432 = sbr.rel (%p430) target = $region48
        $region47: #{tpu_custom_call.1} parent=11 // pred_region
          %p433 = scmp.lt.s32.totalorder %s35, 0
          %s434 = scalar_select %p433, %s35, 0
          %s435 = smul.addr %s434, 8
          %s436 = scalar_lea.vmem %s9, %s435
        $region48: #{tpu_custom_call.1} parent=11 // pred_fallthru
          _
      $region12: #{tpu_custom_call.1} parent=5 // pred_fallthru
        _
      %p437 = scmp.lt.s32.totalorder %s26, 3
      // Predicated region
      $region49: #{tpu_custom_call.1} parent=5 // pred_check
        %p438 = pneg %p437
      $region50: #{tpu_custom_call.1} parent=5 // pred_check_branch
        %440 = sbr.rel (%p438) target = $region52
      $region51: #{tpu_custom_call.1} parent=5 // pred_region
        // Predicated region
        $region53: #{tpu_custom_call.1} parent=51 // pred_check
          %p441 = pneg %p62
        $region54: #{tpu_custom_call.1} parent=51 // pred_check_branch
          %443 = sbr.rel (%p441) target = $region56
        $region55: #{tpu_custom_call.1} parent=51 // pred_region
          %s444 = smul.u32 %s33, 3
          %s445 = sadd.s32 %s444, %s34
          %s446 = smul.u32 3, %s445
          %p447 = scmp.lt.s32.totalorder %s446, 8
          %s448 = scalar_select %p447, %s446, 8
          %s449 = smul.addr %s448, 8
          %s450 = scalar_lea.vmem %s0, %s449
          %s451 = smul.u32 %s33, 3
          %s452 = sadd.s32 %s451, %s34
          %s453 = smul.u32 3, %s452
        $region56: #{tpu_custom_call.1} parent=51 // pred_fallthru
          _
      $region52: #{tpu_custom_call.1} parent=5 // pred_fallthru
        _
      %p454 = scmp.le.s32.totalorder 1, %s26
      %p455 = scmp.lt.s32.totalorder %s26, 4
      %p456 = pnand %p454, %p455
      %p457 = pneg %p456
      // Predicated region
      $region57: #{tpu_custom_call.1} parent=5 // pred_check
        _
      $region58: #{tpu_custom_call.1} parent=5 // pred_check_branch
        %459 = sbr.rel (%p456) target = $region60
      $region59: #{tpu_custom_call.1} parent=5 // pred_region
        %s460 = ssub.s32 %s26, 1
        // Predicated region
        $region61: #{tpu_custom_call.1} parent=59 // pred_check
          %p461 = pneg %p110
        $region62: #{tpu_custom_call.1} parent=59 // pred_check_branch
          %463 = sbr.rel (%p461) target = $region64
        $region63: #{tpu_custom_call.1} parent=59 // pred_region
          %464 = dma.done [#allocation9], 64
        $region64: #{tpu_custom_call.1} parent=59 // pred_fallthru
          _
        // Predicated region
        $region65: #{tpu_custom_call.1} parent=59 // pred_check
          %p465 = pneg %p131
        $region66: #{tpu_custom_call.1} parent=59 // pred_check_branch
          %467 = sbr.rel (%p465) target = $region68
        $region67: #{tpu_custom_call.1} parent=59 // pred_region
          %468 = dma.done [#allocation12], 8192
        $region68: #{tpu_custom_call.1} parent=59 // pred_fallthru
          _
        // Predicated region
        $region69: #{tpu_custom_call.1} parent=59 // pred_check
          %p469 = pneg %p152
        $region70: #{tpu_custom_call.1} parent=59 // pred_check_branch
          %471 = sbr.rel (%p469) target = $region72
        $region71: #{tpu_custom_call.1} parent=59 // pred_region
          %472 = dma.done [#allocation12], 16384
        $region72: #{tpu_custom_call.1} parent=59 // pred_fallthru
          _
        // Predicated region
        $region73: #{tpu_custom_call.1} parent=59 // pred_check
          %p473 = pneg %p194
        $region74: #{tpu_custom_call.1} parent=59 // pred_check_branch
          %475 = sbr.rel (%p473) target = $region76
        $region75: #{tpu_custom_call.1} parent=59 // pred_region
          %476 = dma.done [#allocation15], 2048
        $region76: #{tpu_custom_call.1} parent=59 // pred_fallthru
          _
        %s477 = smul.u32 %s35, 3
        %s478 = sadd.s32 %s477, %s36
        %s479 = smul.u32 3, %s478
        %p480 = scmp.lt.s32.totalorder %s479, 8
        %s481 = scalar_select %p480, %s479, 8
        %s482 = smul.addr %s481, 8
        %s483 = scalar_lea.vmem %s0, %s482
        %p484 = pneg %p68
        %p485 = pneg %p65
        %p486 = pneg %p89
        %p487 = pneg %p86
        %p488 = pneg %p110
        %p489 = pneg %p107
        %p490 = pneg %p131
        %p491 = pneg %p128
        %p492 = pneg %p152
        %p493 = pneg %p149
        %p494 = pneg %p173
        %p495 = pneg %p170
        %p496 = pneg %p194
        %p497 = pneg %p191
        %p498 = pneg %p215
        %p499 = pneg %p212
        %p500 = scmp.lt.s32.totalorder %s35, 0
        %s501 = scalar_select %p500, %s35, 0
        %s502 = smul.addr %s501, 8
        %s503 = scalar_lea.vmem %s8, %s502
        %p504 = pneg %p241
        %p505 = pneg %p238
        %p506 = scmp.lt.s32.totalorder %s35, 0
        %s507 = scalar_select %p506, %s35, 0
        %s508 = smul.addr %s507, 8
        %s509 = scalar_lea.vmem %s9, %s508
        %p510 = pneg %p267
        %p511 = pneg %p264
        %p512 = pneg %p297
        %p513 = pneg %p294
        %s514 = sand.u32 %s284, 1
        %s515 = scalar_lea.sflag [#allocation10], %s514
        %s516 = sand.u32 %s284, 1
        %s517 = smul.addr %s516, 24
        %s518 = scalar_lea.vmem [#allocation16], %s517
        %p519 = pneg %p323
        %p520 = pneg %p320
        %p521 = pneg %p349
        %p522 = pneg %p346
        %s523 = smul.u32 %s35, 3
        %s524 = sadd.s32 %s523, %s36
        %s525 = smul.u32 3, %s524
        %p526 = scmp.lt.s32.totalorder %s525, 8
        %s527 = scalar_select %p526, %s525, 8
        %s528 = smul.addr %s527, 8
        %s529 = scalar_lea.vmem %s0, %s528
        %s530 = smul.u32 %s35, 3
        %s531 = sadd.s32 %s530, %s36
        %s532 = smul.u32 3, %s531
        %p533 = scmp.lt.s32.totalorder %s35, 0
        %s534 = scalar_select %p533, %s35, 0
        %s535 = smul.addr %s534, 8
        %s536 = scalar_lea.vmem %s8, %s535
        %p537 = scmp.lt.s32.totalorder %s35, 0
        %s538 = scalar_select %p537, %s35, 0
        %s539 = smul.addr %s538, 8
        %s540 = scalar_lea.vmem %s9, %s539
        %s541 = smul.u32 %s35, 3
        %s542 = sadd.s32 %s541, %s36
        %s543 = smul.u32 3, %s542
        %p544 = scmp.eq.s32.totalorder %s36, 0
        // Predicated region
        $region77: #{tpu_custom_call.1} parent=59 // pred_check
          %p545 = pneg %p544
        $region78: #{tpu_custom_call.1} parent=59 // pred_check_branch
          %547 = sbr.rel (%p545) target = $region80
        $region79: #{tpu_custom_call.1} parent=59 // pred_region
          %v548 = vld [vmem:[%s536] sm:$0xff]
          %549 = vst [vmem:[#allocation4] sm:$0xff] %v548
          %v550 = vld [vmem:[%s540] sm:$0xff]
          %551 = vst [vmem:[#allocation5] sm:$0xff] %v550
          %s552 = scalar_lea.vmem %s536, 8
          %v553 = vld [vmem:[%s552] sm:$0xff]
          %554 = vst [vmem:[#allocation6] sm:$0xff] %v553
          %s555 = scalar_lea.vmem %s540, 8
          %v556 = vld [vmem:[%s555] sm:$0xff]
          %557 = vst [vmem:[#allocation7] sm:$0xff] %v556
        $region80: #{tpu_custom_call.1} parent=59 // pred_fallthru
          _
        %v558 = vld [vmem:[%s529] sm:$0xff]
        %v559 = vld [vmem:[%s529 + $0x8] sm:$0xff]
        %v560 = vld [vmem:[%s529 + $0x10] sm:$0xff]
        %v561 = vld [vmem:[%s1] sm:$0xff]
        %v562 = vld [vmem:[%s1 + $0x8] sm:$0xff]
        %v563 = vld [vmem:[%s1 + $0x10] sm:$0xff]
        %v564 = vld [vmem:[%s1 + $0x18] sm:$0xff]
        %v565 = vld [vmem:[%s1 + $0x20] sm:$0xff]
        %v566 = vld [vmem:[%s1 + $0x28] sm:$0xff]
        %v567 = vld [vmem:[%s1 + $0x30] sm:$0xff]
        %v568 = vld [vmem:[%s1 + $0x38] sm:$0xff]
        %v569 = vld [vmem:[#allocation8] sm:$0xf]
        %v571 = vlaneseq
        %v572 = vshrl.u32 %v571, 7
        %v573 = vsub.s32 0, %v572
        %v574 = vrot.slane %v569, %v573
        %v575 = vlaneseq
        %v576 = vshrl.u32 %v575, 7
        %v577 = vsub.s32 1, %v576
        %v578 = vrot.slane %v569, %v577
        %v579 = vlaneseq
        %v580 = vshrl.u32 %v579, 7
        %v581 = vsub.s32 2, %v580
        %v582 = vrot.slane %v569, %v581
        %v583 = vlaneseq
        %v584 = vshrl.u32 %v583, 7
        %v585 = vsub.s32 3, %v584
        %v586 = vrot.slane %v569, %v585
        %vm591 = vcmask 130048
        %v593 = vsel %vm591, %v558, 0
        %v596 = vsel %vm591, %v559, 0
        %v599 = vsel %vm591, %v560, 0
        %601 = vmatprep.subr.mxu0 %v562
        %602 = vmatpush1.msra.mxu0 %v561
        %603 = vmatprep.subr.mxu0 %v566
        %604 = vmatpush1.msra.mxu0 %v565
        %605 = vmatprep.subr.mxu0 0.0
        %606 = vmatpush1.msra.mxu0 0.0
        %607 = vmatprep.subr.mxu0 0.0
        %608 = vmatpush1.msra.mxu0 0.0
        %609 = vmatprep.subr.mxu0 0.0
        %610 = vmatpush1.msra.mxu0 0.0
        %611 = vmatprep.subr.mxu0 0.0
        %612 = vmatpush1.msra.mxu0 0.0
        %613 = vmatprep.subr.mxu0 0.0
        %614 = vmatpush1.msra.mxu0 0.0
        %615 = vmatprep.subr.mxu0 0.0
        %616 = vmatpush1.msra.mxu0 0.0
        %617 = vmatprep.subr.mxu0 0.0
        %618 = vmatpush1.msra.mxu0 0.0
        %619 = vmatprep.subr.mxu0 0.0
        %620 = vmatpush1.msra.mxu0 0.0
        %621 = vmatprep.subr.mxu0 0.0
        %622 = vmatpush1.msra.mxu0 0.0
        %623 = vmatprep.subr.mxu0 0.0
        %624 = vmatpush1.msra.mxu0 0.0
        %625 = vmatprep.subr.mxu0 0.0
        %626 = vmatpush1.msra.mxu0 0.0
        %627 = vmatprep.subr.mxu0 0.0
        %628 = vmatpush1.msra.mxu0 0.0
        %629 = vmatprep.subr.mxu0 0.0
        %630 = vmatpush1.msra.mxu0 0.0
        %631 = vmatprep.subr.mxu0 0.0
        %632 = vmatpush1.msra.mxu0 0.0
        %633 = vmatprep.subr.mxu0 0.0
        %634 = vmatpush1.msra.mxu0 0.0
        %635 = vmatprep.subr.mxu0 0.0
        %636 = vmatpush1.msra.mxu0 0.0
        %637 = vmatprep.subr.mxu0 0.0
        %638 = vmatpush1.msra.mxu0 0.0
        %639 = vmatprep.subr.mxu0 0.0
        %640 = vmatpush1.msra.mxu0 0.0
        %641 = vmatprep.subr.mxu0 0.0
        %642 = vmatpush1.msra.mxu0 0.0
        %643 = vmatprep.subr.mxu0 0.0
        %644 = vmatpush1.msra.mxu0 0.0
        %645 = vmatprep.subr.mxu0 0.0
        %646 = vmatpush1.msra.mxu0 0.0
        %647 = vmatprep.subr.mxu0 0.0
        %648 = vmatpush1.msra.mxu0 0.0
        %649 = vmatprep.subr.mxu0 0.0
        %650 = vmatpush1.msra.mxu0 0.0
        %651 = vmatprep.subr.mxu0 0.0
        %652 = vmatpush1.msra.mxu0 0.0
        %653 = vmatprep.subr.mxu0 0.0
        %654 = vmatpush1.msra.mxu0 0.0
        %655 = vmatprep.subr.mxu0 0.0
        %656 = vmatpush1.msra.mxu0 0.0
        %657 = vmatprep.subr.mxu0 0.0
        %658 = vmatpush1.msra.mxu0 0.0
        %659 = vmatprep.subr.mxu0 0.0
        %660 = vmatpush1.msra.mxu0 0.0
        %661 = vmatprep.subr.mxu0 0.0
        %662 = vmatpush1.msra.mxu0 0.0
        %663 = vmatprep.subr.mxu0 0.0
        %664 = vmatpush1.msra.mxu0 0.0
        %665 = vmatprep.mubr.f32.mxu0 0.0
        %666 = vmatmul.mubr.f32.gmra.mrb[0].mxu0 %v593
        %v667 = vpop.f32.mrb[0].mxu0
        %v668 = vadd.f32 %v574, %v667
        %v669 = vpop.f32.mrb[0].mxu0
        %v670 = vadd.f32 %v578, %v669
        %671 = vmatprep.mubr.f32.mxu0 0.0
        %672 = vmatmul.mubr.f32.gmra.mrb[0].mxu0 %v596
        %v673 = vpop.f32.mrb[0].mxu0
        %v674 = vadd.f32 %v574, %v673
        %v675 = vpop.f32.mrb[0].mxu0
        %v676 = vadd.f32 %v578, %v675
        %677 = vmatprep.mubr.f32.mxu0 0.0
        %678 = vmatmul.mubr.f32.gmra.mrb[0].mxu0 %v599
        %v679 = vpop.f32.mrb[0].mxu0
        %v680 = vadd.f32 %v574, %v679
        %v681 = vpop.f32.mrb[0].mxu0
        %v682 = vadd.f32 %v578, %v681
        %683 = vdwg.mxu0
        %684 = vmatprep.subr.mxu0 %v564
        %685 = vmatpush1.msra.mxu0 %v563
        %686 = vmatprep.subr.mxu0 %v568
        %687 = vmatpush1.msra.mxu0 %v567
        %688 = vmatprep.subr.mxu0 0.0
        %689 = vmatpush1.msra.mxu0 0.0
        %690 = vmatprep.subr.mxu0 0.0
        %691 = vmatpush1.msra.mxu0 0.0
        %692 = vmatprep.subr.mxu0 0.0
        %693 = vmatpush1.msra.mxu0 0.0
        %694 = vmatprep.subr.mxu0 0.0
        %695 = vmatpush1.msra.mxu0 0.0
        %696 = vmatprep.subr.mxu0 0.0
        %697 = vmatpush1.msra.mxu0 0.0
        %698 = vmatprep.subr.mxu0 0.0
        %699 = vmatpush1.msra.mxu0 0.0
        %700 = vmatprep.subr.mxu0 0.0
        %701 = vmatpush1.msra.mxu0 0.0
        %702 = vmatprep.subr.mxu0 0.0
        %703 = vmatpush1.msra.mxu0 0.0
        %704 = vmatprep.subr.mxu0 0.0
        %705 = vmatpush1.msra.mxu0 0.0
        %706 = vmatprep.subr.mxu0 0.0
        %707 = vmatpush1.msra.mxu0 0.0
        %708 = vmatprep.subr.mxu0 0.0
        %709 = vmatpush1.msra.mxu0 0.0
        %710 = vmatprep.subr.mxu0 0.0
        %711 = vmatpush1.msra.mxu0 0.0
        %712 = vmatprep.subr.mxu0 0.0
        %713 = vmatpush1.msra.mxu0 0.0
        %714 = vmatprep.subr.mxu0 0.0
        %715 = vmatpush1.msra.mxu0 0.0
        %716 = vmatprep.subr.mxu0 0.0
        %717 = vmatpush1.msra.mxu0 0.0
        %718 = vmatprep.subr.mxu0 0.0
        %719 = vmatpush1.msra.mxu0 0.0
        %720 = vmatprep.subr.mxu0 0.0
        %721 = vmatpush1.msra.mxu0 0.0
        %722 = vmatprep.subr.mxu0 0.0
        %723 = vmatpush1.msra.mxu0 0.0
        %724 = vmatprep.subr.mxu0 0.0
        %725 = vmatpush1.msra.mxu0 0.0
        %726 = vmatprep.subr.mxu0 0.0
        %727 = vmatpush1.msra.mxu0 0.0
        %728 = vmatprep.subr.mxu0 0.0
        %729 = vmatpush1.msra.mxu0 0.0
        %730 = vmatprep.subr.mxu0 0.0
        %731 = vmatpush1.msra.mxu0 0.0
        %732 = vmatprep.subr.mxu0 0.0
        %733 = vmatpush1.msra.mxu0 0.0
        %734 = vmatprep.subr.mxu0 0.0
        %735 = vmatpush1.msra.mxu0 0.0
        %736 = vmatprep.subr.mxu0 0.0
        %737 = vmatpush1.msra.mxu0 0.0
        %738 = vmatprep.subr.mxu0 0.0
        %739 = vmatpush1.msra.mxu0 0.0
        %740 = vmatprep.subr.mxu0 0.0
        %741 = vmatpush1.msra.mxu0 0.0
        %742 = vmatprep.subr.mxu0 0.0
        %743 = vmatpush1.msra.mxu0 0.0
        %744 = vmatprep.subr.mxu0 0.0
        %745 = vmatpush1.msra.mxu0 0.0
        %746 = vmatprep.subr.mxu0 0.0
        %747 = vmatpush1.msra.mxu0 0.0
        %748 = vmatprep.mubr.f32.mxu0 0.0
        %749 = vmatmul.mubr.f32.gmra.mrb[0].mxu0 %v593
        %v750 = vpop.f32.mrb[0].mxu0
        %v751 = vadd.f32 %v582, %v750
        %v752 = vpop.f32.mrb[0].mxu0
        %v753 = vadd.f32 %v586, %v752
        %754 = vmatprep.mubr.f32.mxu0 0.0
        %755 = vmatmul.mubr.f32.gmra.mrb[0].mxu0 %v596
        %v756 = vpop.f32.mrb[0].mxu0
        %v757 = vadd.f32 %v582, %v756
        %v758 = vpop.f32.mrb[0].mxu0
        %v759 = vadd.f32 %v586, %v758
        %760 = vmatprep.mubr.f32.mxu0 0.0
        %761 = vmatmul.mubr.f32.gmra.mrb[0].mxu0 %v599
        %v762 = vpop.f32.mrb[0].mxu0
        %v763 = vadd.f32 %v582, %v762
        %v764 = vpop.f32.mrb[0].mxu0
        %v765 = vadd.f32 %v586, %v764
        %766 = vdwg.mxu0
        %767 = vst [vmem:[#allocation2] sm:$0xff] %v668
        %768 = vst [vmem:[#allocation2 + $0x8] sm:$0xff] %v670
        %769 = vst [vmem:[#allocation2 + $0x10] sm:$0xff] %v751
        %770 = vst [vmem:[#allocation2 + $0x18] sm:$0xff] %v753
        %771 = vst [vmem:[#allocation2 + $0x20] sm:$0xff] %v674
        %772 = vst [vmem:[#allocation2 + $0x28] sm:$0xff] %v676
        %773 = vst [vmem:[#allocation2 + $0x30] sm:$0xff] %v757
        %774 = vst [vmem:[#allocation2 + $0x38] sm:$0xff] %v759
        %775 = vst [vmem:[#allocation2 + $0x40] sm:$0xff] %v680
        %776 = vst [vmem:[#allocation2 + $0x48] sm:$0xff] %v682
        %777 = vst [vmem:[#allocation2 + $0x50] sm:$0xff] %v763
        %778 = vst [vmem:[#allocation2 + $0x58] sm:$0xff] %v765
        %v779 = vld [vmem:[%s5] sm:$0xf]
        %v781 = vlaneseq
        %v782 = vshrl.u32 %v781, 7
        %v783 = vsub.s32 0, %v782
        %v784 = vrot.slane %v779, %v783
        %v785 = vlaneseq
        %v786 = vshrl.u32 %v785, 7
        %v787 = vsub.s32 1, %v786
        %v788 = vrot.slane %v779, %v787
        %v789 = vlaneseq
        %v790 = vshrl.u32 %v789, 7
        %v791 = vsub.s32 2, %v790
        %v792 = vrot.slane %v779, %v791
        %v793 = vlaneseq
        %v794 = vshrl.u32 %v793, 7
        %v795 = vsub.s32 3, %v794
        %v796 = vrot.slane %v779, %v795
        %s801 = smul.u32 0, 4
        %s802 = smul.addr %s801, 8
        %s803 = scalar_lea.vmem [#allocation2], %s802
        %v804 = vld [vmem:[%s803] sm:$0xff]
        %v805 = vld [vmem:[%s803 + $0x8] sm:$0xff]
        %v806 = vld [vmem:[%s803 + $0x10] sm:$0xff]
        %v807 = vld [vmem:[%s803 + $0x18] sm:$0xff]
        %v808 = vld [vmem:[#allocation4] sm:$0xff]
        %v809 = vld [vmem:[#allocation11] sm:$0xff]
        %v810 = vld [vmem:[#allocation11 + $0x8] sm:$0xff]
        %v811 = vld [vmem:[#allocation11 + $0x10] sm:$0xff]
        %v812 = vld [vmem:[#allocation11 + $0x18] sm:$0xff]
        %v813 = vld [vmem:[#allocation11 + $0x20] sm:$0xff]
        %v814 = vld [vmem:[#allocation11 + $0x28] sm:$0xff]
        %v815 = vld [vmem:[#allocation11 + $0x30] sm:$0xff]
        %v816 = vld [vmem:[#allocation11 + $0x38] sm:$0xff]
        %v817 = vld [vmem:[#allocation11 + $0x40] sm:$0xff]
        %v818 = vld [vmem:[#allocation11 + $0x48] sm:$0xff]
        %v819 = vld [vmem:[#allocation11 + $0x50] sm:$0xff]
        %v820 = vld [vmem:[#allocation11 + $0x58] sm:$0xff]
        %v821 = vld [vmem:[#allocation11 + $0x60] sm:$0xff]
        %v822 = vld [vmem:[#allocation11 + $0x68] sm:$0xff]
        %v823 = vld [vmem:[#allocation11 + $0x70] sm:$0xff]
        %v824 = vld [vmem:[#allocation11 + $0x78] sm:$0xff]
        %v825 = vld [vmem:[#allocation11 + $0x80] sm:$0xff]
        %v826 = vld [vmem:[#allocation11 + $0x88] sm:$0xff]
        %v827 = vld [vmem:[#allocation11 + $0x90] sm:$0xff]
        %v828 = vld [vmem:[#allocation11 + $0x98] sm:$0xff]
        %v829 = vld [vmem:[#allocation11 + $0xa0] sm:$0xff]
        %v830 = vld [vmem:[#allocation11 + $0xa8] sm:$0xff]
        %v831 = vld [vmem:[#allocation11 + $0xb0] sm:$0xff]
        %v832 = vld [vmem:[#allocation11 + $0xb8] sm:$0xff]
        %v833 = vld [vmem:[#allocation11 + $0xc0] sm:$0xff]
        %v834 = vld [vmem:[#allocation11 + $0xc8] sm:$0xff]
        %v835 = vld [vmem:[#allocation11 + $0xd0] sm:$0xff]
        %v836 = vld [vmem:[#allocation11 + $0xd8] sm:$0xff]
        %v837 = vld [vmem:[#allocation11 + $0xe0] sm:$0xff]
        %v838 = vld [vmem:[#allocation11 + $0xe8] sm:$0xff]
        %v839 = vld [vmem:[#allocation11 + $0xf0] sm:$0xff]
        %v840 = vld [vmem:[#allocation11 + $0xf8] sm:$0xff]
        %v841 = vld [vmem:[#allocation11 + $0x100] sm:$0xff]
        %v842 = vld [vmem:[#allocation11 + $0x108] sm:$0xff]
        %v843 = vld [vmem:[#allocation11 + $0x110] sm:$0xff]
        %v844 = vld [vmem:[#allocation11 + $0x118] sm:$0xff]
        %v845 = vld [vmem:[#allocation11 + $0x120] sm:$0xff]
        %v846 = vld [vmem:[#allocation11 + $0x128] sm:$0xff]
        %v847 = vld [vmem:[#allocation11 + $0x130] sm:$0xff]
        %v848 = vld [vmem:[#allocation11 + $0x138] sm:$0xff]
        %v849 = vld [vmem:[#allocation11 + $0x140] sm:$0xff]
        %v850 = vld [vmem:[#allocation11 + $0x148] sm:$0xff]
        %v851 = vld [vmem:[#allocation11 + $0x150] sm:$0xff]
        %v852 = vld [vmem:[#allocation11 + $0x158] sm:$0xff]
        %v853 = vld [vmem:[#allocation11 + $0x160] sm:$0xff]
        %v854 = vld [vmem:[#allocation11 + $0x168] sm:$0xff]
        %v855 = vld [vmem:[#allocation11 + $0x170] sm:$0xff]
        %v856 = vld [vmem:[#allocation11 + $0x178] sm:$0xff]
        %v857 = vld [vmem:[#allocation11 + $0x180] sm:$0xff]
        %v858 = vld [vmem:[#allocation11 + $0x188] sm:$0xff]
        %v859 = vld [vmem:[#allocation11 + $0x190] sm:$0xff]
        %v860 = vld [vmem:[#allocation11 + $0x198] sm:$0xff]
        %v861 = vld [vmem:[#allocation11 + $0x1a0] sm:$0xff]
        %v862 = vld [vmem:[#allocation11 + $0x1a8] sm:$0xff]
        %v863 = vld [vmem:[#allocation11 + $0x1b0] sm:$0xff]
        %v864 = vld [vmem:[#allocation11 + $0x1b8] sm:$0xff]
        %v865 = vld [vmem:[#allocation11 + $0x1c0] sm:$0xff]
        %v866 = vld [vmem:[#allocation11 + $0x1c8] sm:$0xff]
        %v867 = vld [vmem:[#allocation11 + $0x1d0] sm:$0xff]
        %v868 = vld [vmem:[#allocation11 + $0x1d8] sm:$0xff]
        %v869 = vld [vmem:[#allocation11 + $0x1e0] sm:$0xff]
        %v870 = vld [vmem:[#allocation11 + $0x1e8] sm:$0xff]
        %v871 = vld [vmem:[#allocation11 + $0x1f0] sm:$0xff]
        %v872 = vld [vmem:[#allocation11 + $0x1f8] sm:$0xff]
        %873 = vmatprep.subr.mxu0 %v810
        %874 = vmatpush1.msra.mxu0 %v809
        %875 = vmatprep.subr.mxu0 %v814
        %876 = vmatpush1.msra.mxu0 %v813
        %877 = vmatprep.subr.mxu0 %v818
        %878 = vmatpush1.msra.mxu0 %v817
        %879 = vmatprep.subr.mxu0 %v822
        %880 = vmatpush1.msra.mxu0 %v821
        %881 = vmatprep.subr.mxu0 %v826
        %882 = vmatpush1.msra.mxu0 %v825
        %883 = vmatprep.subr.mxu0 %v830
        %884 = vmatpush1.msra.mxu0 %v829
        %885 = vmatprep.subr.mxu0 %v834
        %886 = vmatpush1.msra.mxu0 %v833
        %887 = vmatprep.subr.mxu0 %v838
        %888 = vmatpush1.msra.mxu0 %v837
        %889 = vmatprep.subr.mxu0 %v842
        %890 = vmatpush1.msra.mxu0 %v841
        %891 = vmatprep.subr.mxu0 %v846
        %892 = vmatpush1.msra.mxu0 %v845
        %893 = vmatprep.subr.mxu0 %v850
        %894 = vmatpush1.msra.mxu0 %v849
        %895 = vmatprep.subr.mxu0 %v854
        %896 = vmatpush1.msra.mxu0 %v853
        %897 = vmatprep.subr.mxu0 %v858
        %898 = vmatpush1.msra.mxu0 %v857
        %899 = vmatprep.subr.mxu0 %v862
        %900 = vmatpush1.msra.mxu0 %v861
        %901 = vmatprep.subr.mxu0 %v866
        %902 = vmatpush1.msra.mxu0 %v865
        %903 = vmatprep.subr.mxu0 %v870
        %904 = vmatpush1.msra.mxu0 %v869
        %905 = vmatprep.subr.mxu0 0.0
        %906 = vmatpush1.msra.mxu0 0.0
        %907 = vmatprep.subr.mxu0 0.0
        %908 = vmatpush1.msra.mxu0 0.0
        %909 = vmatprep.subr.mxu0 0.0
        %910 = vmatpush1.msra.mxu0 0.0
        %911 = vmatprep.subr.mxu0 0.0
        %912 = vmatpush1.msra.mxu0 0.0
        %913 = vmatprep.subr.mxu0 0.0
        %914 = vmatpush1.msra.mxu0 0.0
        %915 = vmatprep.subr.mxu0 0.0
        %916 = vmatpush1.msra.mxu0 0.0
        %917 = vmatprep.subr.mxu0 0.0
        %918 = vmatpush1.msra.mxu0 0.0
        %919 = vmatprep.subr.mxu0 0.0
        %920 = vmatpush1.msra.mxu0 0.0
        %921 = vmatprep.subr.mxu0 0.0
        %922 = vmatpush1.msra.mxu0 0.0
        %923 = vmatprep.subr.mxu0 0.0
        %924 = vmatpush1.msra.mxu0 0.0
        %925 = vmatprep.subr.mxu0 0.0
        %926 = vmatpush1.msra.mxu0 0.0
        %927 = vmatprep.subr.mxu0 0.0
        %928 = vmatpush1.msra.mxu0 0.0
        %929 = vmatprep.subr.mxu0 0.0
        %930 = vmatpush1.msra.mxu0 0.0
        %931 = vmatprep.subr.mxu0 0.0
        %932 = vmatpush1.msra.mxu0 0.0
        %933 = vmatprep.subr.mxu0 0.0
        %934 = vmatpush1.msra.mxu0 0.0
        %935 = vmatprep.subr.mxu0 0.0
        %936 = vmatpush1.msra.mxu0 0.0
        %937 = vmatprep.mubr.f32.mxu0 0.0
        %938 = vmatmul.mubr.f32.gmra.mrb[0].mxu0 %v808
        %v939 = vpop.f32.mrb[0].mxu0
        %v940 = vadd.f32 0.0, %v939
        %v941 = vpop.f32.mrb[0].mxu0
        %v942 = vadd.f32 0.0, %v941
        %943 = vdwg.mxu0
        %944 = vmatprep.subr.mxu0 %v812
        %945 = vmatpush1.msra.mxu0 %v811
        %946 = vmatprep.subr.mxu0 %v816
        %947 = vmatpush1.msra.mxu0 %v815
        %948 = vmatprep.subr.mxu0 %v820
        %949 = vmatpush1.msra.mxu0 %v819
        %950 = vmatprep.subr.mxu0 %v824
        %951 = vmatpush1.msra.mxu0 %v823
        %952 = vmatprep.subr.mxu0 %v828
        %953 = vmatpush1.msra.mxu0 %v827
        %954 = vmatprep.subr.mxu0 %v832
        %955 = vmatpush1.msra.mxu0 %v831
        %956 = vmatprep.subr.mxu0 %v836
        %957 = vmatpush1.msra.mxu0 %v835
        %958 = vmatprep.subr.mxu0 %v840
        %959 = vmatpush1.msra.mxu0 %v839
        %960 = vmatprep.subr.mxu0 %v844
        %961 = vmatpush1.msra.mxu0 %v843
        %962 = vmatprep.subr.mxu0 %v848
        %963 = vmatpush1.msra.mxu0 %v847
        %964 = vmatprep.subr.mxu0 %v852
        %965 = vmatpush1.msra.mxu0 %v851
        %966 = vmatprep.subr.mxu0 %v856
        %967 = vmatpush1.msra.mxu0 %v855
        %968 = vmatprep.subr.mxu0 %v860
        %969 = vmatpush1.msra.mxu0 %v859
        %970 = vmatprep.subr.mxu0 %v864
        %971 = vmatpush1.msra.mxu0 %v863
        %972 = vmatprep.subr.mxu0 %v868
        %973 = vmatpush1.msra.mxu0 %v867
        %974 = vmatprep.subr.mxu0 %v872
        %975 = vmatpush1.msra.mxu0 %v871
        %976 = vmatprep.subr.mxu0 0.0
        %977 = vmatpush1.msra.mxu0 0.0
        %978 = vmatprep.subr.mxu0 0.0
        %979 = vmatpush1.msra.mxu0 0.0
        %980 = vmatprep.subr.mxu0 0.0
        %981 = vmatpush1.msra.mxu0 0.0
        %982 = vmatprep.subr.mxu0 0.0
        %983 = vmatpush1.msra.mxu0 0.0
        %984 = vmatprep.subr.mxu0 0.0
        %985 = vmatpush1.msra.mxu0 0.0
        %986 = vmatprep.subr.mxu0 0.0
        %987 = vmatpush1.msra.mxu0 0.0
        %988 = vmatprep.subr.mxu0 0.0
        %989 = vmatpush1.msra.mxu0 0.0
        %990 = vmatprep.subr.mxu0 0.0
        %991 = vmatpush1.msra.mxu0 0.0
        %992 = vmatprep.subr.mxu0 0.0
        %993 = vmatpush1.msra.mxu0 0.0
        %994 = vmatprep.subr.mxu0 0.0
        %995 = vmatpush1.msra.mxu0 0.0
        %996 = vmatprep.subr.mxu0 0.0
        %997 = vmatpush1.msra.mxu0 0.0
        %998 = vmatprep.subr.mxu0 0.0
        %999 = vmatpush1.msra.mxu0 0.0
        %1000 = vmatprep.subr.mxu0 0.0
        %1001 = vmatpush1.msra.mxu0 0.0
        %1002 = vmatprep.subr.mxu0 0.0
        %1003 = vmatpush1.msra.mxu0 0.0
        %1004 = vmatprep.subr.mxu0 0.0
        %1005 = vmatpush1.msra.mxu0 0.0
        %1006 = vmatprep.subr.mxu0 0.0
        %1007 = vmatpush1.msra.mxu0 0.0
        %1008 = vmatprep.mubr.f32.mxu0 0.0
        %1009 = vmatmul.mubr.f32.gmra.mrb[0].mxu0 %v808
        %v1010 = vpop.f32.mrb[0].mxu0
        %v1011 = vadd.f32 0.0, %v1010
        %v1012 = vpop.f32.mrb[0].mxu0
        %v1013 = vadd.f32 0.0, %v1012
        %1014 = vdwg.mxu0
        %v1015 = vadd.f32 %v804, %v940
        %v1016 = vadd.f32 %v805, %v942
        %v1017 = vadd.f32 %v806, %v1011
        %v1018 = vadd.f32 %v807, %v1013
        %v1019 = vld [vmem:[#allocation5] sm:$0xff]
        %v1020 = vxor.u32 %v1015, 2147483648
        %v1021 = vmul.f32 %v1020, 1.442695
        %v1022 = vpow.pop %v1021
        %v1023 = vadd.f32 %v1022, 1.0
        %v1024 = vrcp.pop %v1023
        %v1025 = vmul.f32 1.0, %v1024
        %v1026 = vxor.u32 %v1016, 2147483648
        %v1027 = vmul.f32 %v1026, 1.442695
        %v1028 = vpow.pop %v1027
        %v1029 = vadd.f32 %v1028, 1.0
        %v1030 = vrcp.pop %v1029
        %v1031 = vmul.f32 1.0, %v1030
        %v1032 = vtanh.pop %v1017
        %v1033 = vxor.u32 %v1018, 2147483648
        %v1034 = vmul.f32 %v1033, 1.442695
        %v1035 = vpow.pop %v1034
        %v1036 = vadd.f32 %v1035, 1.0
        %v1037 = vrcp.pop %v1036
        %v1038 = vmul.f32 1.0, %v1037
        %v1039 = vmul.f32 %v1031, %v1019
        %v1040 = vmul.f32 %v1025, %v1032
        %v1041 = vadd.f32 %v1039, %v1040
        %v1042 = vtanh.pop %v1041
        %v1043 = vmul.f32 %v1038, %v1042
        %v1044 = vld [vmem:[#allocation6] sm:$0xff]
        %v1045 = vld [vmem:[#allocation13] sm:$0xff]
        %v1046 = vld [vmem:[#allocation13 + $0x8] sm:$0xff]
        %v1047 = vld [vmem:[#allocation13 + $0x10] sm:$0xff]
        %v1048 = vld [vmem:[#allocation13 + $0x18] sm:$0xff]
        %v1049 = vld [vmem:[#allocation13 + $0x20] sm:$0xff]
        %v1050 = vld [vmem:[#allocation13 + $0x28] sm:$0xff]
        %v1051 = vld [vmem:[#allocation13 + $0x30] sm:$0xff]
        %v1052 = vld [vmem:[#allocation13 + $0x38] sm:$0xff]
        %v1053 = vld [vmem:[#allocation13 + $0x40] sm:$0xff]
        %v1054 = vld [vmem:[#allocation13 + $0x48] sm:$0xff]
        %v1055 = vld [vmem:[#allocation13 + $0x50] sm:$0xff]
        %v1056 = vld [vmem:[#allocation13 + $0x58] sm:$0xff]
        %v1057 = vld [vmem:[#allocation13 + $0x60] sm:$0xff]
        %v1058 = vld [vmem:[#allocation13 + $0x68] sm:$0xff]
        %v1059 = vld [vmem:[#allocation13 + $0x70] sm:$0xff]
        %v1060 = vld [vmem:[#allocation13 + $0x78] sm:$0xff]
        %v1061 = vld [vmem:[#allocation13 + $0x80] sm:$0xff]
        %v1062 = vld [vmem:[#allocation13 + $0x88] sm:$0xff]
        %v1063 = vld [vmem:[#allocation13 + $0x90] sm:$0xff]
        %v1064 = vld [vmem:[#allocation13 + $0x98] sm:$0xff]
        %v1065 = vld [vmem:[#allocation13 + $0xa0] sm:$0xff]
        %v1066 = vld [vmem:[#allocation13 + $0xa8] sm:$0xff]
        %v1067 = vld [vmem:[#allocation13 + $0xb0] sm:$0xff]
        %v1068 = vld [vmem:[#allocation13 + $0xb8] sm:$0xff]
        %v1069 = vld [vmem:[#allocation13 + $0xc0] sm:$0xff]
        %v1070 = vld [vmem:[#allocation13 + $0xc8] sm:$0xff]
        %v1071 = vld [vmem:[#allocation13 + $0xd0] sm:$0xff]
        %v1072 = vld [vmem:[#allocation13 + $0xd8] sm:$0xff]
        %v1073 = vld [vmem:[#allocation13 + $0xe0] sm:$0xff]
        %v1074 = vld [vmem:[#allocation13 + $0xe8] sm:$0xff]
        %v1075 = vld [vmem:[#allocation13 + $0xf0] sm:$0xff]
        %v1076 = vld [vmem:[#allocation13 + $0xf8] sm:$0xff]
        %v1077 = vld [vmem:[#allocation13 + $0x100] sm:$0xff]
        %v1078 = vld [vmem:[#allocation13 + $0x108] sm:$0xff]
        %v1079 = vld [vmem:[#allocation13 + $0x110] sm:$0xff]
        %v1080 = vld [vmem:[#allocation13 + $0x118] sm:$0xff]
        %v1081 = vld [vmem:[#allocation13 + $0x120] sm:$0xff]
        %v1082 = vld [vmem:[#allocation13 + $0x128] sm:$0xff]
        %v1083 = vld [vmem:[#allocation13 + $0x130] sm:$0xff]
        %v1084 = vld [vmem:[#allocation13 + $0x138] sm:$0xff]
        %v1085 = vld [vmem:[#allocation13 + $0x140] sm:$0xff]
        %v1086 = vld [vmem:[#allocation13 + $0x148] sm:$0xff]
        %v1087 = vld [vmem:[#allocation13 + $0x150] sm:$0xff]
        %v1088 = vld [vmem:[#allocation13 + $0x158] sm:$0xff]
        %v1089 = vld [vmem:[#allocation13 + $0x160] sm:$0xff]
        %v1090 = vld [vmem:[#allocation13 + $0x168] sm:$0xff]
        %v1091 = vld [vmem:[#allocation13 + $0x170] sm:$0xff]
        %v1092 = vld [vmem:[#allocation13 + $0x178] sm:$0xff]
        %v1093 = vld [vmem:[#allocation13 + $0x180] sm:$0xff]
        %v1094 = vld [vmem:[#allocation13 + $0x188] sm:$0xff]
        %v1095 = vld [vmem:[#allocation13 + $0x190] sm:$0xff]
        %v1096 = vld [vmem:[#allocation13 + $0x198] sm:$0xff]
        %v1097 = vld [vmem:[#allocation13 + $0x1a0] sm:$0xff]
        %v1098 = vld [vmem:[#allocation13 + $0x1a8] sm:$0xff]
        %v1099 = vld [vmem:[#allocation13 + $0x1b0] sm:$0xff]
        %v1100 = vld [vmem:[#allocation13 + $0x1b8] sm:$0xff]
        %v1101 = vld [vmem:[#allocation13 + $0x1c0] sm:$0xff]
        %v1102 = vld [vmem:[#allocation13 + $0x1c8] sm:$0xff]
        %v1103 = vld [vmem:[#allocation13 + $0x1d0] sm:$0xff]
        %v1104 = vld [vmem:[#allocation13 + $0x1d8] sm:$0xff]
        %v1105 = vld [vmem:[#allocation13 + $0x1e0] sm:$0xff]
        %v1106 = vld [vmem:[#allocation13 + $0x1e8] sm:$0xff]
        %v1107 = vld [vmem:[#allocation13 + $0x1f0] sm:$0xff]
        %v1108 = vld [vmem:[#allocation13 + $0x1f8] sm:$0xff]
        %v1109 = vld [vmem:[#allocation13 + $0x200] sm:$0xff]
        %v1110 = vld [vmem:[#allocation13 + $0x208] sm:$0xff]
        %v1111 = vld [vmem:[#allocation13 + $0x210] sm:$0xff]
        %v1112 = vld [vmem:[#allocation13 + $0x218] sm:$0xff]
        %v1113 = vld [vmem:[#allocation13 + $0x220] sm:$0xff]
        %v1114 = vld [vmem:[#allocation13 + $0x228] sm:$0xff]
        %v1115 = vld [vmem:[#allocation13 + $0x230] sm:$0xff]
        %v1116 = vld [vmem:[#allocation13 + $0x238] sm:$0xff]
        %v1117 = vld [vmem:[#allocation13 + $0x240] sm:$0xff]
        %v1118 = vld [vmem:[#allocation13 + $0x248] sm:$0xff]
        %v1119 = vld [vmem:[#allocation13 + $0x250] sm:$0xff]
        %v1120 = vld [vmem:[#allocation13 + $0x258] sm:$0xff]
        %v1121 = vld [vmem:[#allocation13 + $0x260] sm:$0xff]
        %v1122 = vld [vmem:[#allocation13 + $0x268] sm:$0xff]
        %v1123 = vld [vmem:[#allocation13 + $0x270] sm:$0xff]
        %v1124 = vld [vmem:[#allocation13 + $0x278] sm:$0xff]
        %v1125 = vld [vmem:[#allocation13 + $0x280] sm:$0xff]
        %v1126 = vld [vmem:[#allocation13 + $0x288] sm:$0xff]
        %v1127 = vld [vmem:[#allocation13 + $0x290] sm:$0xff]
        %v1128 = vld [vmem:[#allocation13 + $0x298] sm:$0xff]
        %v1129 = vld [vmem:[#allocation13 + $0x2a0] sm:$0xff]
        %v1130 = vld [vmem:[#allocation13 + $0x2a8] sm:$0xff]
        %v1131 = vld [vmem:[#allocation13 + $0x2b0] sm:$0xff]
        %v1132 = vld [vmem:[#allocation13 + $0x2b8] sm:$0xff]
        %v1133 = vld [vmem:[#allocation13 + $0x2c0] sm:$0xff]
        %v1134 = vld [vmem:[#allocation13 + $0x2c8] sm:$0xff]
        %v1135 = vld [vmem:[#allocation13 + $0x2d0] sm:$0xff]
        %v1136 = vld [vmem:[#allocation13 + $0x2d8] sm:$0xff]
        %v1137 = vld [vmem:[#allocation13 + $0x2e0] sm:$0xff]
        %v1138 = vld [vmem:[#allocation13 + $0x2e8] sm:$0xff]
        %v1139 = vld [vmem:[#allocation13 + $0x2f0] sm:$0xff]
        %v1140 = vld [vmem:[#allocation13 + $0x2f8] sm:$0xff]
        %v1141 = vld [vmem:[#allocation13 + $0x300] sm:$0xff]
        %v1142 = vld [vmem:[#allocation13 + $0x308] sm:$0xff]
        %v1143 = vld [vmem:[#allocation13 + $0x310] sm:$0xff]
        %v1144 = vld [vmem:[#allocation13 + $0x318] sm:$0xff]
        %v1145 = vld [vmem:[#allocation13 + $0x320] sm:$0xff]
        %v1146 = vld [vmem:[#allocation13 + $0x328] sm:$0xff]
        %v1147 = vld [vmem:[#allocation13 + $0x330] sm:$0xff]
        %v1148 = vld [vmem:[#allocation13 + $0x338] sm:$0xff]
        %v1149 = vld [vmem:[#allocation13 + $0x340] sm:$0xff]
        %v1150 = vld [vmem:[#allocation13 + $0x348] sm:$0xff]
        %v1151 = vld [vmem:[#allocation13 + $0x350] sm:$0xff]
        %v1152 = vld [vmem:[#allocation13 + $0x358] sm:$0xff]
        %v1153 = vld [vmem:[#allocation13 + $0x360] sm:$0xff]
        %v1154 = vld [vmem:[#allocation13 + $0x368] sm:$0xff]
        %v1155 = vld [vmem:[#allocation13 + $0x370] sm:$0xff]
        %v1156 = vld [vmem:[#allocation13 + $0x378] sm:$0xff]
        %v1157 = vld [vmem:[#allocation13 + $0x380] sm:$0xff]
        %v1158 = vld [vmem:[#allocation13 + $0x388] sm:$0xff]
        %v1159 = vld [vmem:[#allocation13 + $0x390] sm:$0xff]
        %v1160 = vld [vmem:[#allocation13 + $0x398] sm:$0xff]
        %v1161 = vld [vmem:[#allocation13 + $0x3a0] sm:$0xff]
        %v1162 = vld [vmem:[#allocation13 + $0x3a8] sm:$0xff]
        %v1163 = vld [vmem:[#allocation13 + $0x3b0] sm:$0xff]
        %v1164 = vld [vmem:[#allocation13 + $0x3b8] sm:$0xff]
        %v1165 = vld [vmem:[#allocation13 + $0x3c0] sm:$0xff]
        %v1166 = vld [vmem:[#allocation13 + $0x3c8] sm:$0xff]
        %v1167 = vld [vmem:[#allocation13 + $0x3d0] sm:$0xff]
        %v1168 = vld [vmem:[#allocation13 + $0x3d8] sm:$0xff]
        %v1169 = vld [vmem:[#allocation13 + $0x3e0] sm:$0xff]
        %v1170 = vld [vmem:[#allocation13 + $0x3e8] sm:$0xff]
        %v1171 = vld [vmem:[#allocation13 + $0x3f0] sm:$0xff]
        %v1172 = vld [vmem:[#allocation13 + $0x3f8] sm:$0xff]
        %1173 = vmatprep.subr.mxu0 %v1046
        %1174 = vmatpush1.msra.mxu0 %v1045
        %1175 = vmatprep.subr.mxu0 %v1050
        %1176 = vmatpush1.msra.mxu0 %v1049
        %1177 = vmatprep.subr.mxu0 %v1054
        %1178 = vmatpush1.msra.mxu0 %v1053
        %1179 = vmatprep.subr.mxu0 %v1058
        %1180 = vmatpush1.msra.mxu0 %v1057
        %1181 = vmatprep.subr.mxu0 %v1062
        %1182 = vmatpush1.msra.mxu0 %v1061
        %1183 = vmatprep.subr.mxu0 %v1066
        %1184 = vmatpush1.msra.mxu0 %v1065
        %1185 = vmatprep.subr.mxu0 %v1070
        %1186 = vmatpush1.msra.mxu0 %v1069
        %1187 = vmatprep.subr.mxu0 %v1074
        %1188 = vmatpush1.msra.mxu0 %v1073
        %1189 = vmatprep.subr.mxu0 %v1078
        %1190 = vmatpush1.msra.mxu0 %v1077
        %1191 = vmatprep.subr.mxu0 %v1082
        %1192 = vmatpush1.msra.mxu0 %v1081
        %1193 = vmatprep.subr.mxu0 %v1086
        %1194 = vmatpush1.msra.mxu0 %v1085
        %1195 = vmatprep.subr.mxu0 %v1090
        %1196 = vmatpush1.msra.mxu0 %v1089
        %1197 = vmatprep.subr.mxu0 %v1094
        %1198 = vmatpush1.msra.mxu0 %v1093
        %1199 = vmatprep.subr.mxu0 %v1098
        %1200 = vmatpush1.msra.mxu0 %v1097
        %1201 = vmatprep.subr.mxu0 %v1102
        %1202 = vmatpush1.msra.mxu0 %v1101
        %1203 = vmatprep.subr.mxu0 %v1106
        %1204 = vmatpush1.msra.mxu0 %v1105
        %1205 = vmatprep.subr.mxu0 %v1110
        %1206 = vmatpush1.msra.mxu0 %v1109
        %1207 = vmatprep.subr.mxu0 %v1114
        %1208 = vmatpush1.msra.mxu0 %v1113
        %1209 = vmatprep.subr.mxu0 %v1118
        %1210 = vmatpush1.msra.mxu0 %v1117
        %1211 = vmatprep.subr.mxu0 %v1122
        %1212 = vmatpush1.msra.mxu0 %v1121
        %1213 = vmatprep.subr.mxu0 %v1126
        %1214 = vmatpush1.msra.mxu0 %v1125
        %1215 = vmatprep.subr.mxu0 %v1130
        %1216 = vmatpush1.msra.mxu0 %v1129
        %1217 = vmatprep.subr.mxu0 %v1134
        %1218 = vmatpush1.msra.mxu0 %v1133
        %1219 = vmatprep.subr.mxu0 %v1138
        %1220 = vmatpush1.msra.mxu0 %v1137
        %1221 = vmatprep.subr.mxu0 %v1142
        %1222 = vmatpush1.msra.mxu0 %v1141
        %1223 = vmatprep.subr.mxu0 %v1146
        %1224 = vmatpush1.msra.mxu0 %v1145
        %1225 = vmatprep.subr.mxu0 %v1150
        %1226 = vmatpush1.msra.mxu0 %v1149
        %1227 = vmatprep.subr.mxu0 %v1154
        %1228 = vmatpush1.msra.mxu0 %v1153
        %1229 = vmatprep.subr.mxu0 %v1158
        %1230 = vmatpush1.msra.mxu0 %v1157
        %1231 = vmatprep.subr.mxu0 %v1162
        %1232 = vmatpush1.msra.mxu0 %v1161
        %1233 = vmatprep.subr.mxu0 %v1166
        %1234 = vmatpush1.msra.mxu0 %v1165
        %1235 = vmatprep.subr.mxu0 %v1170
        %1236 = vmatpush1.msra.mxu0 %v1169
        %1237 = vmatprep.mubr.f32.mxu0 %v1044
        %1238 = vmatmul.mubr.f32.gmra.mrb[0].mxu0 %v1043
        %v1239 = vpop.f32.mrb[0].mxu0
        %v1240 = vadd.f32 %v784, %v1239
        %v1241 = vpop.f32.mrb[0].mxu0
        %v1242 = vadd.f32 %v788, %v1241
        %1243 = vdwg.mxu0
        %1244 = vmatprep.subr.mxu0 %v1048
        %1245 = vmatpush1.msra.mxu0 %v1047
        %1246 = vmatprep.subr.mxu0 %v1052
        %1247 = vmatpush1.msra.mxu0 %v1051
        %1248 = vmatprep.subr.mxu0 %v1056
        %1249 = vmatpush1.msra.mxu0 %v1055
        %1250 = vmatprep.subr.mxu0 %v1060
        %1251 = vmatpush1.msra.mxu0 %v1059
        %1252 = vmatprep.subr.mxu0 %v1064
        %1253 = vmatpush1.msra.mxu0 %v1063
        %1254 = vmatprep.subr.mxu0 %v1068
        %1255 = vmatpush1.msra.mxu0 %v1067
        %1256 = vmatprep.subr.mxu0 %v1072
        %1257 = vmatpush1.msra.mxu0 %v1071
        %1258 = vmatprep.subr.mxu0 %v1076
        %1259 = vmatpush1.msra.mxu0 %v1075
        %1260 = vmatprep.subr.mxu0 %v1080
        %1261 = vmatpush1.msra.mxu0 %v1079
        %1262 = vmatprep.subr.mxu0 %v1084
        %1263 = vmatpush1.msra.mxu0 %v1083
        %1264 = vmatprep.subr.mxu0 %v1088
        %1265 = vmatpush1.msra.mxu0 %v1087
        %1266 = vmatprep.subr.mxu0 %v1092
        %1267 = vmatpush1.msra.mxu0 %v1091
        %1268 = vmatprep.subr.mxu0 %v1096
        %1269 = vmatpush1.msra.mxu0 %v1095
        %1270 = vmatprep.subr.mxu0 %v1100
        %1271 = vmatpush1.msra.mxu0 %v1099
        %1272 = vmatprep.subr.mxu0 %v1104
        %1273 = vmatpush1.msra.mxu0 %v1103
        %1274 = vmatprep.subr.mxu0 %v1108
        %1275 = vmatpush1.msra.mxu0 %v1107
        %1276 = vmatprep.subr.mxu0 %v1112
        %1277 = vmatpush1.msra.mxu0 %v1111
        %1278 = vmatprep.subr.mxu0 %v1116
        %1279 = vmatpush1.msra.mxu0 %v1115
        %1280 = vmatprep.subr.mxu0 %v1120
        %1281 = vmatpush1.msra.mxu0 %v1119
        %1282 = vmatprep.subr.mxu0 %v1124
        %1283 = vmatpush1.msra.mxu0 %v1123
        %1284 = vmatprep.subr.mxu0 %v1128
        %1285 = vmatpush1.msra.mxu0 %v1127
        %1286 = vmatprep.subr.mxu0 %v1132
        %1287 = vmatpush1.msra.mxu0 %v1131
        %1288 = vmatprep.subr.mxu0 %v1136
        %1289 = vmatpush1.msra.mxu0 %v1135
        %1290 = vmatprep.subr.mxu0 %v1140
        %1291 = vmatpush1.msra.mxu0 %v1139
        %1292 = vmatprep.subr.mxu0 %v1144
        %1293 = vmatpush1.msra.mxu0 %v1143
        %1294 = vmatprep.subr.mxu0 %v1148
        %1295 = vmatpush1.msra.mxu0 %v1147
        %1296 = vmatprep.subr.mxu0 %v1152
        %1297 = vmatpush1.msra.mxu0 %v1151
        %1298 = vmatprep.subr.mxu0 %v1156
        %1299 = vmatpush1.msra.mxu0 %v1155
        %1300 = vmatprep.subr.mxu0 %v1160
        %1301 = vmatpush1.msra.mxu0 %v1159
        %1302 = vmatprep.subr.mxu0 %v1164
        %1303 = vmatpush1.msra.mxu0 %v1163
        %1304 = vmatprep.subr.mxu0 %v1168
        %1305 = vmatpush1.msra.mxu0 %v1167
        %1306 = vmatprep.subr.mxu0 %v1172
        %1307 = vmatpush1.msra.mxu0 %v1171
        %1308 = vmatprep.mubr.f32.mxu0 %v1044
        %1309 = vmatmul.mubr.f32.gmra.mrb[0].mxu0 %v1043
        %v1310 = vpop.f32.mrb[0].mxu0
        %v1311 = vadd.f32 %v792, %v1310
        %v1312 = vpop.f32.mrb[0].mxu0
        %v1313 = vadd.f32 %v796, %v1312
        %1314 = vdwg.mxu0
        %v1315 = vld [vmem:[#allocation7] sm:$0xff]
        %v1316 = vxor.u32 %v1240, 2147483648
        %v1317 = vmul.f32 %v1316, 1.442695
        %v1318 = vpow.pop %v1317
        %v1319 = vadd.f32 %v1318, 1.0
        %v1320 = vrcp.pop %v1319
        %v1321 = vmul.f32 1.0, %v1320
        %v1322 = vxor.u32 %v1242, 2147483648
        %v1323 = vmul.f32 %v1322, 1.442695
        %v1324 = vpow.pop %v1323
        %v1325 = vadd.f32 %v1324, 1.0
        %v1326 = vrcp.pop %v1325
        %v1327 = vmul.f32 1.0, %v1326
        %v1328 = vtanh.pop %v1311
        %v1329 = vxor.u32 %v1313, 2147483648
        %v1330 = vmul.f32 %v1329, 1.442695
        %v1331 = vpow.pop %v1330
        %v1332 = vadd.f32 %v1331, 1.0
        %v1333 = vrcp.pop %v1332
        %v1334 = vmul.f32 1.0, %v1333
        %v1335 = vmul.f32 %v1327, %v1315
        %v1336 = vmul.f32 %v1321, %v1328
        %v1337 = vadd.f32 %v1335, %v1336
        %v1338 = vtanh.pop %v1337
        %v1339 = vmul.f32 %v1334, %v1338
        %s1340 = smul.u32 %s36, 3
        %p1341 = scmp.lt.s32.totalorder %s1340, 8
        %s1342 = scalar_select %p1341, 1, 0
        %v1343 = vstv %s1342
        %vm1344 = vcmp.eq.s32.totalorder %v1343, 1
        %v1345 = vsel %vm1344, %v1043, %v808
        %v1346 = vsel %vm1344, %v1041, %v1019
        %v1347 = vsel %vm1344, %v1339, %v1044
        %v1348 = vsel %vm1344, %v1337, %v1315
        %1349 = vst [vmem:[#allocation4] sm:$0xff] %v1345
        %1350 = vst [vmem:[#allocation5] sm:$0xff] %v1346
        %1351 = vst [vmem:[#allocation6] sm:$0xff] %v1347
        %1352 = vst [vmem:[#allocation7] sm:$0xff] %v1348
        %1353 = vst [vmem:[#allocation3] sm:$0xff] %v1347
        %s1354 = smul.u32 1, 4
        %s1355 = smul.addr %s1354, 8
        %s1356 = scalar_lea.vmem [#allocation2], %s1355
        %v1357 = vld [vmem:[%s1356] sm:$0xff]
        %v1358 = vld [vmem:[%s1356 + $0x8] sm:$0xff]
        %v1359 = vld [vmem:[%s1356 + $0x10] sm:$0xff]
        %v1360 = vld [vmem:[%s1356 + $0x18] sm:$0xff]
        %v1361 = vld [vmem:[#allocation4] sm:$0xff]
        %v1362 = vld [vmem:[#allocation11] sm:$0xff]
        %v1363 = vld [vmem:[#allocation11 + $0x8] sm:$0xff]
        %v1364 = vld [vmem:[#allocation11 + $0x10] sm:$0xff]
        %v1365 = vld [vmem:[#allocation11 + $0x18] sm:$0xff]
        %v1366 = vld [vmem:[#allocation11 + $0x20] sm:$0xff]
        %v1367 = vld [vmem:[#allocation11 + $0x28] sm:$0xff]
        %v1368 = vld [vmem:[#allocation11 + $0x30] sm:$0xff]
        %v1369 = vld [vmem:[#allocation11 + $0x38] sm:$0xff]
        %v1370 = vld [vmem:[#allocation11 + $0x40] sm:$0xff]
        %v1371 = vld [vmem:[#allocation11 + $0x48] sm:$0xff]
        %v1372 = vld [vmem:[#allocation11 + $0x50] sm:$0xff]
        %v1373 = vld [vmem:[#allocation11 + $0x58] sm:$0xff]
        %v1374 = vld [vmem:[#allocation11 + $0x60] sm:$0xff]
        %v1375 = vld [vmem:[#allocation11 + $0x68] sm:$0xff]
        %v1376 = vld [vmem:[#allocation11 + $0x70] sm:$0xff]
        %v1377 = vld [vmem:[#allocation11 + $0x78] sm:$0xff]
        %v1378 = vld [vmem:[#allocation11 + $0x80] sm:$0xff]
        %v1379 = vld [vmem:[#allocation11 + $0x88] sm:$0xff]
        %v1380 = vld [vmem:[#allocation11 + $0x90] sm:$0xff]
        %v1381 = vld [vmem:[#allocation11 + $0x98] sm:$0xff]
        %v1382 = vld [vmem:[#allocation11 + $0xa0] sm:$0xff]
        %v1383 = vld [vmem:[#allocation11 + $0xa8] sm:$0xff]
        %v1384 = vld [vmem:[#allocation11 + $0xb0] sm:$0xff]
        %v1385 = vld [vmem:[#allocation11 + $0xb8] sm:$0xff]
        %v1386 = vld [vmem:[#allocation11 + $0xc0] sm:$0xff]
        %v1387 = vld [vmem:[#allocation11 + $0xc8] sm:$0xff]
        %v1388 = vld [vmem:[#allocation11 + $0xd0] sm:$0xff]
        %v1389 = vld [vmem:[#allocation11 + $0xd8] sm:$0xff]
        %v1390 = vld [vmem:[#allocation11 + $0xe0] sm:$0xff]
        %v1391 = vld [vmem:[#allocation11 + $0xe8] sm:$0xff]
        %v1392 = vld [vmem:[#allocation11 + $0xf0] sm:$0xff]
        %v1393 = vld [vmem:[#allocation11 + $0xf8] sm:$0xff]
        %v1394 = vld [vmem:[#allocation11 + $0x100] sm:$0xff]
        %v1395 = vld [vmem:[#allocation11 + $0x108] sm:$0xff]
        %v1396 = vld [vmem:[#allocation11 + $0x110] sm:$0xff]
        %v1397 = vld [vmem:[#allocation11 + $0x118] sm:$0xff]
        %v1398 = vld [vmem:[#allocation11 + $0x120] sm:$0xff]
        %v1399 = vld [vmem:[#allocation11 + $0x128] sm:$0xff]
        %v1400 = vld [vmem:[#allocation11 + $0x130] sm:$0xff]
        %v1401 = vld [vmem:[#allocation11 + $0x138] sm:$0xff]
        %v1402 = vld [vmem:[#allocation11 + $0x140] sm:$0xff]
        %v1403 = vld [vmem:[#allocation11 + $0x148] sm:$0xff]
        %v1404 = vld [vmem:[#allocation11 + $0x150] sm:$0xff]
        %v1405 = vld [vmem:[#allocation11 + $0x158] sm:$0xff]
        %v1406 = vld [vmem:[#allocation11 + $0x160] sm:$0xff]
        %v1407 = vld [vmem:[#allocation11 + $0x168] sm:$0xff]
        %v1408 = vld [vmem:[#allocation11 + $0x170] sm:$0xff]
        %v1409 = vld [vmem:[#allocation11 + $0x178] sm:$0xff]
        %v1410 = vld [vmem:[#allocation11 + $0x180] sm:$0xff]
        %v1411 = vld [vmem:[#allocation11 + $0x188] sm:$0xff]
        %v1412 = vld [vmem:[#allocation11 + $0x190] sm:$0xff]
        %v1413 = vld [vmem:[#allocation11 + $0x198] sm:$0xff]
        %v1414 = vld [vmem:[#allocation11 + $0x1a0] sm:$0xff]
        %v1415 = vld [vmem:[#allocation11 + $0x1a8] sm:$0xff]
        %v1416 = vld [vmem:[#allocation11 + $0x1b0] sm:$0xff]
        %v1417 = vld [vmem:[#allocation11 + $0x1b8] sm:$0xff]
        %v1418 = vld [vmem:[#allocation11 + $0x1c0] sm:$0xff]
        %v1419 = vld [vmem:[#allocation11 + $0x1c8] sm:$0xff]
        %v1420 = vld [vmem:[#allocation11 + $0x1d0] sm:$0xff]
        %v1421 = vld [vmem:[#allocation11 + $0x1d8] sm:$0xff]
        %v1422 = vld [vmem:[#allocation11 + $0x1e0] sm:$0xff]
        %v1423 = vld [vmem:[#allocation11 + $0x1e8] sm:$0xff]
        %v1424 = vld [vmem:[#allocation11 + $0x1f0] sm:$0xff]
        %v1425 = vld [vmem:[#allocation11 + $0x1f8] sm:$0xff]
        %1426 = vmatprep.subr.mxu0 %v1363
        %1427 = vmatpush1.msra.mxu0 %v1362
        %1428 = vmatprep.subr.mxu0 %v1367
        %1429 = vmatpush1.msra.mxu0 %v1366
        %1430 = vmatprep.subr.mxu0 %v1371
        %1431 = vmatpush1.msra.mxu0 %v1370
        %1432 = vmatprep.subr.mxu0 %v1375
        %1433 = vmatpush1.msra.mxu0 %v1374
        %1434 = vmatprep.subr.mxu0 %v1379
        %1435 = vmatpush1.msra.mxu0 %v1378
        %1436 = vmatprep.subr.mxu0 %v1383
        %1437 = vmatpush1.msra.mxu0 %v1382
        %1438 = vmatprep.subr.mxu0 %v1387
        %1439 = vmatpush1.msra.mxu0 %v1386
        %1440 = vmatprep.subr.mxu0 %v1391
        %1441 = vmatpush1.msra.mxu0 %v1390
        %1442 = vmatprep.subr.mxu0 %v1395
        %1443 = vmatpush1.msra.mxu0 %v1394
        %1444 = vmatprep.subr.mxu0 %v1399
        %1445 = vmatpush1.msra.mxu0 %v1398
        %1446 = vmatprep.subr.mxu0 %v1403
        %1447 = vmatpush1.msra.mxu0 %v1402
        %1448 = vmatprep.subr.mxu0 %v1407
        %1449 = vmatpush1.msra.mxu0 %v1406
        %1450 = vmatprep.subr.mxu0 %v1411
        %1451 = vmatpush1.msra.mxu0 %v1410
        %1452 = vmatprep.subr.mxu0 %v1415
        %1453 = vmatpush1.msra.mxu0 %v1414
        %1454 = vmatprep.subr.mxu0 %v1419
        %1455 = vmatpush1.msra.mxu0 %v1418
        %1456 = vmatprep.subr.mxu0 %v1423
        %1457 = vmatpush1.msra.mxu0 %v1422
        %1458 = vmatprep.subr.mxu0 0.0
        %1459 = vmatpush1.msra.mxu0 0.0
        %1460 = vmatprep.subr.mxu0 0.0
        %1461 = vmatpush1.msra.mxu0 0.0
        %1462 = vmatprep.subr.mxu0 0.0
        %1463 = vmatpush1.msra.mxu0 0.0
        %1464 = vmatprep.subr.mxu0 0.0
        %1465 = vmatpush1.msra.mxu0 0.0
        %1466 = vmatprep.subr.mxu0 0.0
        %1467 = vmatpush1.msra.mxu0 0.0
        %1468 = vmatprep.subr.mxu0 0.0
        %1469 = vmatpush1.msra.mxu0 0.0
        %1470 = vmatprep.subr.mxu0 0.0
        %1471 = vmatpush1.msra.mxu0 0.0
        %1472 = vmatprep.subr.mxu0 0.0
        %1473 = vmatpush1.msra.mxu0 0.0
        %1474 = vmatprep.subr.mxu0 0.0
        %1475 = vmatpush1.msra.mxu0 0.0
        %1476 = vmatprep.subr.mxu0 0.0
        %1477 = vmatpush1.msra.mxu0 0.0
        %1478 = vmatprep.subr.mxu0 0.0
        %1479 = vmatpush1.msra.mxu0 0.0
        %1480 = vmatprep.subr.mxu0 0.0
        %1481 = vmatpush1.msra.mxu0 0.0
        %1482 = vmatprep.subr.mxu0 0.0
        %1483 = vmatpush1.msra.mxu0 0.0
        %1484 = vmatprep.subr.mxu0 0.0
        %1485 = vmatpush1.msra.mxu0 0.0
        %1486 = vmatprep.subr.mxu0 0.0
        %1487 = vmatpush1.msra.mxu0 0.0
        %1488 = vmatprep.subr.mxu0 0.0
        %1489 = vmatpush1.msra.mxu0 0.0
        %1490 = vmatprep.mubr.f32.mxu0 0.0
        %1491 = vmatmul.mubr.f32.gmra.mrb[0].mxu0 %v1361
        %v1492 = vpop.f32.mrb[0].mxu0
        %v1493 = vadd.f32 0.0, %v1492
        %v1494 = vpop.f32.mrb[0].mxu0
        %v1495 = vadd.f32 0.0, %v1494
        %1496 = vdwg.mxu0
        %1497 = vmatprep.subr.mxu0 %v1365
        %1498 = vmatpush1.msra.mxu0 %v1364
        %1499 = vmatprep.subr.mxu0 %v1369
        %1500 = vmatpush1.msra.mxu0 %v1368
        %1501 = vmatprep.subr.mxu0 %v1373
        %1502 = vmatpush1.msra.mxu0 %v1372
        %1503 = vmatprep.subr.mxu0 %v1377
        %1504 = vmatpush1.msra.mxu0 %v1376
        %1505 = vmatprep.subr.mxu0 %v1381
        %1506 = vmatpush1.msra.mxu0 %v1380
        %1507 = vmatprep.subr.mxu0 %v1385
        %1508 = vmatpush1.msra.mxu0 %v1384
        %1509 = vmatprep.subr.mxu0 %v1389
        %1510 = vmatpush1.msra.mxu0 %v1388
        %1511 = vmatprep.subr.mxu0 %v1393
        %1512 = vmatpush1.msra.mxu0 %v1392
        %1513 = vmatprep.subr.mxu0 %v1397
        %1514 = vmatpush1.msra.mxu0 %v1396
        %1515 = vmatprep.subr.mxu0 %v1401
        %1516 = vmatpush1.msra.mxu0 %v1400
        %1517 = vmatprep.subr.mxu0 %v1405
        %1518 = vmatpush1.msra.mxu0 %v1404
        %1519 = vmatprep.subr.mxu0 %v1409
        %1520 = vmatpush1.msra.mxu0 %v1408
        %1521 = vmatprep.subr.mxu0 %v1413
        %1522 = vmatpush1.msra.mxu0 %v1412
        %1523 = vmatprep.subr.mxu0 %v1417
        %1524 = vmatpush1.msra.mxu0 %v1416
        %1525 = vmatprep.subr.mxu0 %v1421
        %1526 = vmatpush1.msra.mxu0 %v1420
        %1527 = vmatprep.subr.mxu0 %v1425
        %1528 = vmatpush1.msra.mxu0 %v1424
        %1529 = vmatprep.subr.mxu0 0.0
        %1530 = vmatpush1.msra.mxu0 0.0
        %1531 = vmatprep.subr.mxu0 0.0
        %1532 = vmatpush1.msra.mxu0 0.0
        %1533 = vmatprep.subr.mxu0 0.0
        %1534 = vmatpush1.msra.mxu0 0.0
        %1535 = vmatprep.subr.mxu0 0.0
        %1536 = vmatpush1.msra.mxu0 0.0
        %1537 = vmatprep.subr.mxu0 0.0
        %1538 = vmatpush1.msra.mxu0 0.0
        %1539 = vmatprep.subr.mxu0 0.0
        %1540 = vmatpush1.msra.mxu0 0.0
        %1541 = vmatprep.subr.mxu0 0.0
        %1542 = vmatpush1.msra.mxu0 0.0
        %1543 = vmatprep.subr.mxu0 0.0
        %1544 = vmatpush1.msra.mxu0 0.0
        %1545 = vmatprep.subr.mxu0 0.0
        %1546 = vmatpush1.msra.mxu0 0.0
        %1547 = vmatprep.subr.mxu0 0.0
        %1548 = vmatpush1.msra.mxu0 0.0
        %1549 = vmatprep.subr.mxu0 0.0
        %1550 = vmatpush1.msra.mxu0 0.0
        %1551 = vmatprep.subr.mxu0 0.0
        %1552 = vmatpush1.msra.mxu0 0.0
        %1553 = vmatprep.subr.mxu0 0.0
        %1554 = vmatpush1.msra.mxu0 0.0
        %1555 = vmatprep.subr.mxu0 0.0
        %1556 = vmatpush1.msra.mxu0 0.0
        %1557 = vmatprep.subr.mxu0 0.0
        %1558 = vmatpush1.msra.mxu0 0.0
        %1559 = vmatprep.subr.mxu0 0.0
        %1560 = vmatpush1.msra.mxu0 0.0
        %1561 = vmatprep.mubr.f32.mxu0 0.0
        %1562 = vmatmul.mubr.f32.gmra.mrb[0].mxu0 %v1361
        %v1563 = vpop.f32.mrb[0].mxu0
        %v1564 = vadd.f32 0.0, %v1563
        %v1565 = vpop.f32.mrb[0].mxu0
        %v1566 = vadd.f32 0.0, %v1565
        %1567 = vdwg.mxu0
        %v1568 = vadd.f32 %v1357, %v1493
        %v1569 = vadd.f32 %v1358, %v1495
        %v1570 = vadd.f32 %v1359, %v1564
        %v1571 = vadd.f32 %v1360, %v1566
        %v1572 = vld [vmem:[#allocation5] sm:$0xff]
        %v1573 = vxor.u32 %v1568, 2147483648
        %v1574 = vmul.f32 %v1573, 1.442695
        %v1575 = vpow.pop %v1574
        %v1576 = vadd.f32 %v1575, 1.0
        %v1577 = vrcp.pop %v1576
        %v1578 = vmul.f32 1.0, %v1577
        %v1579 = vxor.u32 %v1569, 2147483648
        %v1580 = vmul.f32 %v1579, 1.442695
        %v1581 = vpow.pop %v1580
        %v1582 = vadd.f32 %v1581, 1.0
        %v1583 = vrcp.pop %v1582
        %v1584 = vmul.f32 1.0, %v1583
        %v1585 = vtanh.pop %v1570
        %v1586 = vxor.u32 %v1571, 2147483648
        %v1587 = vmul.f32 %v1586, 1.442695
        %v1588 = vpow.pop %v1587
        %v1589 = vadd.f32 %v1588, 1.0
        %v1590 = vrcp.pop %v1589
        %v1591 = vmul.f32 1.0, %v1590
        %v1592 = vmul.f32 %v1584, %v1572
        %v1593 = vmul.f32 %v1578, %v1585
        %v1594 = vadd.f32 %v1592, %v1593
        %v1595 = vtanh.pop %v1594
        %v1596 = vmul.f32 %v1591, %v1595
        %v1597 = vld [vmem:[#allocation6] sm:$0xff]
        %v1598 = vld [vmem:[#allocation13] sm:$0xff]
        %v1599 = vld [vmem:[#allocation13 + $0x8] sm:$0xff]
        %v1600 = vld [vmem:[#allocation13 + $0x10] sm:$0xff]
        %v1601 = vld [vmem:[#allocation13 + $0x18] sm:$0xff]
        %v1602 = vld [vmem:[#allocation13 + $0x20] sm:$0xff]
        %v1603 = vld [vmem:[#allocation13 + $0x28] sm:$0xff]
        %v1604 = vld [vmem:[#allocation13 + $0x30] sm:$0xff]
        %v1605 = vld [vmem:[#allocation13 + $0x38] sm:$0xff]
        %v1606 = vld [vmem:[#allocation13 + $0x40] sm:$0xff]
        %v1607 = vld [vmem:[#allocation13 + $0x48] sm:$0xff]
        %v1608 = vld [vmem:[#allocation13 + $0x50] sm:$0xff]
        %v1609 = vld [vmem:[#allocation13 + $0x58] sm:$0xff]
        %v1610 = vld [vmem:[#allocation13 + $0x60] sm:$0xff]
        %v1611 = vld [vmem:[#allocation13 + $0x68] sm:$0xff]
        %v1612 = vld [vmem:[#allocation13 + $0x70] sm:$0xff]
        %v1613 = vld [vmem:[#allocation13 + $0x78] sm:$0xff]
        %v1614 = vld [vmem:[#allocation13 + $0x80] sm:$0xff]
        %v1615 = vld [vmem:[#allocation13 + $0x88] sm:$0xff]
        %v1616 = vld [vmem:[#allocation13 + $0x90] sm:$0xff]
        %v1617 = vld [vmem:[#allocation13 + $0x98] sm:$0xff]
        %v1618 = vld [vmem:[#allocation13 + $0xa0] sm:$0xff]
        %v1619 = vld [vmem:[#allocation13 + $0xa8] sm:$0xff]
        %v1620 = vld [vmem:[#allocation13 + $0xb0] sm:$0xff]
        %v1621 = vld [vmem:[#allocation13 + $0xb8] sm:$0xff]
        %v1622 = vld [vmem:[#allocation13 + $0xc0] sm:$0xff]
        %v1623 = vld [vmem:[#allocation13 + $0xc8] sm:$0xff]
        %v1624 = vld [vmem:[#allocation13 + $0xd0] sm:$0xff]
        %v1625 = vld [vmem:[#allocation13 + $0xd8] sm:$0xff]
        %v1626 = vld [vmem:[#allocation13 + $0xe0] sm:$0xff]
        %v1627 = vld [vmem:[#allocation13 + $0xe8] sm:$0xff]
        %v1628 = vld [vmem:[#allocation13 + $0xf0] sm:$0xff]
        %v1629 = vld [vmem:[#allocation13 + $0xf8] sm:$0xff]
        %v1630 = vld [vmem:[#allocation13 + $0x100] sm:$0xff]
        %v1631 = vld [vmem:[#allocation13 + $0x108] sm:$0xff]
        %v1632 = vld [vmem:[#allocation13 + $0x110] sm:$0xff]
        %v1633 = vld [vmem:[#allocation13 + $0x118] sm:$0xff]
        %v1634 = vld [vmem:[#allocation13 + $0x120] sm:$0xff]
        %v1635 = vld [vmem:[#allocation13 + $0x128] sm:$0xff]
        %v1636 = vld [vmem:[#allocation13 + $0x130] sm:$0xff]
        %v1637 = vld [vmem:[#allocation13 + $0x138] sm:$0xff]
        %v1638 = vld [vmem:[#allocation13 + $0x140] sm:$0xff]
        %v1639 = vld [vmem:[#allocation13 + $0x148] sm:$0xff]
        %v1640 = vld [vmem:[#allocation13 + $0x150] sm:$0xff]
        %v1641 = vld [vmem:[#allocation13 + $0x158] sm:$0xff]
        %v1642 = vld [vmem:[#allocation13 + $0x160] sm:$0xff]
        %v1643 = vld [vmem:[#allocation13 + $0x168] sm:$0xff]
        %v1644 = vld [vmem:[#allocation13 + $0x170] sm:$0xff]
        %v1645 = vld [vmem:[#allocation13 + $0x178] sm:$0xff]
        %v1646 = vld [vmem:[#allocation13 + $0x180] sm:$0xff]
        %v1647 = vld [vmem:[#allocation13 + $0x188] sm:$0xff]
        %v1648 = vld [vmem:[#allocation13 + $0x190] sm:$0xff]
        %v1649 = vld [vmem:[#allocation13 + $0x198] sm:$0xff]
        %v1650 = vld [vmem:[#allocation13 + $0x1a0] sm:$0xff]
        %v1651 = vld [vmem:[#allocation13 + $0x1a8] sm:$0xff]
        %v1652 = vld [vmem:[#allocation13 + $0x1b0] sm:$0xff]
        %v1653 = vld [vmem:[#allocation13 + $0x1b8] sm:$0xff]
        %v1654 = vld [vmem:[#allocation13 + $0x1c0] sm:$0xff]
        %v1655 = vld [vmem:[#allocation13 + $0x1c8] sm:$0xff]
        %v1656 = vld [vmem:[#allocation13 + $0x1d0] sm:$0xff]
        %v1657 = vld [vmem:[#allocation13 + $0x1d8] sm:$0xff]
        %v1658 = vld [vmem:[#allocation13 + $0x1e0] sm:$0xff]
        %v1659 = vld [vmem:[#allocation13 + $0x1e8] sm:$0xff]
        %v1660 = vld [vmem:[#allocation13 + $0x1f0] sm:$0xff]
        %v1661 = vld [vmem:[#allocation13 + $0x1f8] sm:$0xff]
        %v1662 = vld [vmem:[#allocation13 + $0x200] sm:$0xff]
        %v1663 = vld [vmem:[#allocation13 + $0x208] sm:$0xff]
        %v1664 = vld [vmem:[#allocation13 + $0x210] sm:$0xff]
        %v1665 = vld [vmem:[#allocation13 + $0x218] sm:$0xff]
        %v1666 = vld [vmem:[#allocation13 + $0x220] sm:$0xff]
        %v1667 = vld [vmem:[#allocation13 + $0x228] sm:$0xff]
        %v1668 = vld [vmem:[#allocation13 + $0x230] sm:$0xff]
        %v1669 = vld [vmem:[#allocation13 + $0x238] sm:$0xff]
        %v1670 = vld [vmem:[#allocation13 + $0x240] sm:$0xff]
        %v1671 = vld [vmem:[#allocation13 + $0x248] sm:$0xff]
        %v1672 = vld [vmem:[#allocation13 + $0x250] sm:$0xff]
        %v1673 = vld [vmem:[#allocation13 + $0x258] sm:$0xff]
        %v1674 = vld [vmem:[#allocation13 + $0x260] sm:$0xff]
        %v1675 = vld [vmem:[#allocation13 + $0x268] sm:$0xff]
        %v1676 = vld [vmem:[#allocation13 + $0x270] sm:$0xff]
        %v1677 = vld [vmem:[#allocation13 + $0x278] sm:$0xff]
        %v1678 = vld [vmem:[#allocation13 + $0x280] sm:$0xff]
        %v1679 = vld [vmem:[#allocation13 + $0x288] sm:$0xff]
        %v1680 = vld [vmem:[#allocation13 + $0x290] sm:$0xff]
        %v1681 = vld [vmem:[#allocation13 + $0x298] sm:$0xff]
        %v1682 = vld [vmem:[#allocation13 + $0x2a0] sm:$0xff]
        %v1683 = vld [vmem:[#allocation13 + $0x2a8] sm:$0xff]
        %v1684 = vld [vmem:[#allocation13 + $0x2b0] sm:$0xff]
        %v1685 = vld [vmem:[#allocation13 + $0x2b8] sm:$0xff]
        %v1686 = vld [vmem:[#allocation13 + $0x2c0] sm:$0xff]
        %v1687 = vld [vmem:[#allocation13 + $0x2c8] sm:$0xff]
        %v1688 = vld [vmem:[#allocation13 + $0x2d0] sm:$0xff]
        %v1689 = vld [vmem:[#allocation13 + $0x2d8] sm:$0xff]
        %v1690 = vld [vmem:[#allocation13 + $0x2e0] sm:$0xff]
        %v1691 = vld [vmem:[#allocation13 + $0x2e8] sm:$0xff]
        %v1692 = vld [vmem:[#allocation13 + $0x2f0] sm:$0xff]
        %v1693 = vld [vmem:[#allocation13 + $0x2f8] sm:$0xff]
        %v1694 = vld [vmem:[#allocation13 + $0x300] sm:$0xff]
        %v1695 = vld [vmem:[#allocation13 + $0x308] sm:$0xff]
        %v1696 = vld [vmem:[#allocation13 + $0x310] sm:$0xff]
        %v1697 = vld [vmem:[#allocation13 + $0x318] sm:$0xff]
        %v1698 = vld [vmem:[#allocation13 + $0x320] sm:$0xff]
        %v1699 = vld [vmem:[#allocation13 + $0x328] sm:$0xff]
        %v1700 = vld [vmem:[#allocation13 + $0x330] sm:$0xff]
        %v1701 = vld [vmem:[#allocation13 + $0x338] sm:$0xff]
        %v1702 = vld [vmem:[#allocation13 + $0x340] sm:$0xff]
        %v1703 = vld [vmem:[#allocation13 + $0x348] sm:$0xff]
        %v1704 = vld [vmem:[#allocation13 + $0x350] sm:$0xff]
        %v1705 = vld [vmem:[#allocation13 + $0x358] sm:$0xff]
        %v1706 = vld [vmem:[#allocation13 + $0x360] sm:$0xff]
        %v1707 = vld [vmem:[#allocation13 + $0x368] sm:$0xff]
        %v1708 = vld [vmem:[#allocation13 + $0x370] sm:$0xff]
        %v1709 = vld [vmem:[#allocation13 + $0x378] sm:$0xff]
        %v1710 = vld [vmem:[#allocation13 + $0x380] sm:$0xff]
        %v1711 = vld [vmem:[#allocation13 + $0x388] sm:$0xff]
        %v1712 = vld [vmem:[#allocation13 + $0x390] sm:$0xff]
        %v1713 = vld [vmem:[#allocation13 + $0x398] sm:$0xff]
        %v1714 = vld [vmem:[#allocation13 + $0x3a0] sm:$0xff]
        %v1715 = vld [vmem:[#allocation13 + $0x3a8] sm:$0xff]
        %v1716 = vld [vmem:[#allocation13 + $0x3b0] sm:$0xff]
        %v1717 = vld [vmem:[#allocation13 + $0x3b8] sm:$0xff]
        %v1718 = vld [vmem:[#allocation13 + $0x3c0] sm:$0xff]
        %v1719 = vld [vmem:[#allocation13 + $0x3c8] sm:$0xff]
        %v1720 = vld [vmem:[#allocation13 + $0x3d0] sm:$0xff]
        %v1721 = vld [vmem:[#allocation13 + $0x3d8] sm:$0xff]
        %v1722 = vld [vmem:[#allocation13 + $0x3e0] sm:$0xff]
        %v1723 = vld [vmem:[#allocation13 + $0x3e8] sm:$0xff]
        %v1724 = vld [vmem:[#allocation13 + $0x3f0] sm:$0xff]
        %v1725 = vld [vmem:[#allocation13 + $0x3f8] sm:$0xff]
        %1726 = vmatprep.subr.mxu0 %v1599
        %1727 = vmatpush1.msra.mxu0 %v1598
        %1728 = vmatprep.subr.mxu0 %v1603
        %1729 = vmatpush1.msra.mxu0 %v1602
        %1730 = vmatprep.subr.mxu0 %v1607
        %1731 = vmatpush1.msra.mxu0 %v1606
        %1732 = vmatprep.subr.mxu0 %v1611
        %1733 = vmatpush1.msra.mxu0 %v1610
        %1734 = vmatprep.subr.mxu0 %v1615
        %1735 = vmatpush1.msra.mxu0 %v1614
        %1736 = vmatprep.subr.mxu0 %v1619
        %1737 = vmatpush1.msra.mxu0 %v1618
        %1738 = vmatprep.subr.mxu0 %v1623
        %1739 = vmatpush1.msra.mxu0 %v1622
        %1740 = vmatprep.subr.mxu0 %v1627
        %1741 = vmatpush1.msra.mxu0 %v1626
        %1742 = vmatprep.subr.mxu0 %v1631
        %1743 = vmatpush1.msra.mxu0 %v1630
        %1744 = vmatprep.subr.mxu0 %v1635
        %1745 = vmatpush1.msra.mxu0 %v1634
        %1746 = vmatprep.subr.mxu0 %v1639
        %1747 = vmatpush1.msra.mxu0 %v1638
        %1748 = vmatprep.subr.mxu0 %v1643
        %1749 = vmatpush1.msra.mxu0 %v1642
        %1750 = vmatprep.subr.mxu0 %v1647
        %1751 = vmatpush1.msra.mxu0 %v1646
        %1752 = vmatprep.subr.mxu0 %v1651
        %1753 = vmatpush1.msra.mxu0 %v1650
        %1754 = vmatprep.subr.mxu0 %v1655
        %1755 = vmatpush1.msra.mxu0 %v1654
        %1756 = vmatprep.subr.mxu0 %v1659
        %1757 = vmatpush1.msra.mxu0 %v1658
        %1758 = vmatprep.subr.mxu0 %v1663
        %1759 = vmatpush1.msra.mxu0 %v1662
        %1760 = vmatprep.subr.mxu0 %v1667
        %1761 = vmatpush1.msra.mxu0 %v1666
        %1762 = vmatprep.subr.mxu0 %v1671
        %1763 = vmatpush1.msra.mxu0 %v1670
        %1764 = vmatprep.subr.mxu0 %v1675
        %1765 = vmatpush1.msra.mxu0 %v1674
        %1766 = vmatprep.subr.mxu0 %v1679
        %1767 = vmatpush1.msra.mxu0 %v1678
        %1768 = vmatprep.subr.mxu0 %v1683
        %1769 = vmatpush1.msra.mxu0 %v1682
        %1770 = vmatprep.subr.mxu0 %v1687
        %1771 = vmatpush1.msra.mxu0 %v1686
        %1772 = vmatprep.subr.mxu0 %v1691
        %1773 = vmatpush1.msra.mxu0 %v1690
        %1774 = vmatprep.subr.mxu0 %v1695
        %1775 = vmatpush1.msra.mxu0 %v1694
        %1776 = vmatprep.subr.mxu0 %v1699
        %1777 = vmatpush1.msra.mxu0 %v1698
        %1778 = vmatprep.subr.mxu0 %v1703
        %1779 = vmatpush1.msra.mxu0 %v1702
        %1780 = vmatprep.subr.mxu0 %v1707
        %1781 = vmatpush1.msra.mxu0 %v1706
        %1782 = vmatprep.subr.mxu0 %v1711
        %1783 = vmatpush1.msra.mxu0 %v1710
        %1784 = vmatprep.subr.mxu0 %v1715
        %1785 = vmatpush1.msra.mxu0 %v1714
        %1786 = vmatprep.subr.mxu0 %v1719
        %1787 = vmatpush1.msra.mxu0 %v1718
        %1788 = vmatprep.subr.mxu0 %v1723
        %1789 = vmatpush1.msra.mxu0 %v1722
        %1790 = vmatprep.mubr.f32.mxu0 %v1597
        %1791 = vmatmul.mubr.f32.gmra.mrb[0].mxu0 %v1596
        %v1792 = vpop.f32.mrb[0].mxu0
        %v1793 = vadd.f32 %v784, %v1792
        %v1794 = vpop.f32.mrb[0].mxu0
        %v1795 = vadd.f32 %v788, %v1794
        %1796 = vdwg.mxu0
        %1797 = vmatprep.subr.mxu0 %v1601
        %1798 = vmatpush1.msra.mxu0 %v1600
        %1799 = vmatprep.subr.mxu0 %v1605
        %1800 = vmatpush1.msra.mxu0 %v1604
        %1801 = vmatprep.subr.mxu0 %v1609
        %1802 = vmatpush1.msra.mxu0 %v1608
        %1803 = vmatprep.subr.mxu0 %v1613
        %1804 = vmatpush1.msra.mxu0 %v1612
        %1805 = vmatprep.subr.mxu0 %v1617
        %1806 = vmatpush1.msra.mxu0 %v1616
        %1807 = vmatprep.subr.mxu0 %v1621
        %1808 = vmatpush1.msra.mxu0 %v1620
        %1809 = vmatprep.subr.mxu0 %v1625
        %1810 = vmatpush1.msra.mxu0 %v1624
        %1811 = vmatprep.subr.mxu0 %v1629
        %1812 = vmatpush1.msra.mxu0 %v1628
        %1813 = vmatprep.subr.mxu0 %v1633
        %1814 = vmatpush1.msra.mxu0 %v1632
        %1815 = vmatprep.subr.mxu0 %v1637
        %1816 = vmatpush1.msra.mxu0 %v1636
        %1817 = vmatprep.subr.mxu0 %v1641
        %1818 = vmatpush1.msra.mxu0 %v1640
        %1819 = vmatprep.subr.mxu0 %v1645
        %1820 = vmatpush1.msra.mxu0 %v1644
        %1821 = vmatprep.subr.mxu0 %v1649
        %1822 = vmatpush1.msra.mxu0 %v1648
        %1823 = vmatprep.subr.mxu0 %v1653
        %1824 = vmatpush1.msra.mxu0 %v1652
        %1825 = vmatprep.subr.mxu0 %v1657
        %1826 = vmatpush1.msra.mxu0 %v1656
        %1827 = vmatprep.subr.mxu0 %v1661
        %1828 = vmatpush1.msra.mxu0 %v1660
        %1829 = vmatprep.subr.mxu0 %v1665
        %1830 = vmatpush1.msra.mxu0 %v1664
        %1831 = vmatprep.subr.mxu0 %v1669
        %1832 = vmatpush1.msra.mxu0 %v1668
        %1833 = vmatprep.subr.mxu0 %v1673
        %1834 = vmatpush1.msra.mxu0 %v1672
        %1835 = vmatprep.subr.mxu0 %v1677
        %1836 = vmatpush1.msra.mxu0 %v1676
        %1837 = vmatprep.subr.mxu0 %v1681
        %1838 = vmatpush1.msra.mxu0 %v1680
        %1839 = vmatprep.subr.mxu0 %v1685
        %1840 = vmatpush1.msra.mxu0 %v1684
        %1841 = vmatprep.subr.mxu0 %v1689
        %1842 = vmatpush1.msra.mxu0 %v1688
        %1843 = vmatprep.subr.mxu0 %v1693
        %1844 = vmatpush1.msra.mxu0 %v1692
        %1845 = vmatprep.subr.mxu0 %v1697
        %1846 = vmatpush1.msra.mxu0 %v1696
        %1847 = vmatprep.subr.mxu0 %v1701
        %1848 = vmatpush1.msra.mxu0 %v1700
        %1849 = vmatprep.subr.mxu0 %v1705
        %1850 = vmatpush1.msra.mxu0 %v1704
        %1851 = vmatprep.subr.mxu0 %v1709
        %1852 = vmatpush1.msra.mxu0 %v1708
        %1853 = vmatprep.subr.mxu0 %v1713
        %1854 = vmatpush1.msra.mxu0 %v1712
        %1855 = vmatprep.subr.mxu0 %v1717
        %1856 = vmatpush1.msra.mxu0 %v1716
        %1857 = vmatprep.subr.mxu0 %v1721
        %1858 = vmatpush1.msra.mxu0 %v1720
        %1859 = vmatprep.subr.mxu0 %v1725
        %1860 = vmatpush1.msra.mxu0 %v1724
        %1861 = vmatprep.mubr.f32.mxu0 %v1597
        %1862 = vmatmul.mubr.f32.gmra.mrb[0].mxu0 %v1596
        %v1863 = vpop.f32.mrb[0].mxu0
        %v1864 = vadd.f32 %v792, %v1863
        %v1865 = vpop.f32.mrb[0].mxu0
        %v1866 = vadd.f32 %v796, %v1865
        %1867 = vdwg.mxu0
        %v1868 = vld [vmem:[#allocation7] sm:$0xff]
        %v1869 = vxor.u32 %v1793, 2147483648
        %v1870 = vmul.f32 %v1869, 1.442695
        %v1871 = vpow.pop %v1870
        %v1872 = vadd.f32 %v1871, 1.0
        %v1873 = vrcp.pop %v1872
        %v1874 = vmul.f32 1.0, %v1873
        %v1875 = vxor.u32 %v1795, 2147483648
        %v1876 = vmul.f32 %v1875, 1.442695
        %v1877 = vpow.pop %v1876
        %v1878 = vadd.f32 %v1877, 1.0
        %v1879 = vrcp.pop %v1878
        %v1880 = vmul.f32 1.0, %v1879
        %v1881 = vtanh.pop %v1864
        %v1882 = vxor.u32 %v1866, 2147483648
        %v1883 = vmul.f32 %v1882, 1.442695
        %v1884 = vpow.pop %v1883
        %v1885 = vadd.f32 %v1884, 1.0
        %v1886 = vrcp.pop %v1885
        %v1887 = vmul.f32 1.0, %v1886
        %v1888 = vmul.f32 %v1880, %v1868
        %v1889 = vmul.f32 %v1874, %v1881
        %v1890 = vadd.f32 %v1888, %v1889
        %v1891 = vtanh.pop %v1890
        %v1892 = vmul.f32 %v1887, %v1891
        %s1893 = sadd.s32 %s1340, 1
        %p1894 = scmp.lt.s32.totalorder %s1893, 8
        %s1895 = scalar_select %p1894, 1, 0
        %v1896 = vstv %s1895
        %vm1897 = vcmp.eq.s32.totalorder %v1896, 1
        %v1898 = vsel %vm1897, %v1596, %v1361
        %v1899 = vsel %vm1897, %v1594, %v1572
        %v1900 = vsel %vm1897, %v1892, %v1597
        %v1901 = vsel %vm1897, %v1890, %v1868
        %1902 = vst [vmem:[#allocation4] sm:$0xff] %v1898
        %1903 = vst [vmem:[#allocation5] sm:$0xff] %v1899
        %1904 = vst [vmem:[#allocation6] sm:$0xff] %v1900
        %1905 = vst [vmem:[#allocation7] sm:$0xff] %v1901
        %s1906 = scalar_lea.vmem [#allocation3], 8
        %1907 = vst [vmem:[%s1906] sm:$0xff] %v1900
        %s1908 = smul.u32 2, 4
        %s1909 = smul.addr %s1908, 8
        %s1910 = scalar_lea.vmem [#allocation2], %s1909
        %v1911 = vld [vmem:[%s1910] sm:$0xff]
        %v1912 = vld [vmem:[%s1910 + $0x8] sm:$0xff]
        %v1913 = vld [vmem:[%s1910 + $0x10] sm:$0xff]
        %v1914 = vld [vmem:[%s1910 + $0x18] sm:$0xff]
        %v1915 = vld [vmem:[#allocation4] sm:$0xff]
        %v1916 = vld [vmem:[#allocation11] sm:$0xff]
        %v1917 = vld [vmem:[#allocation11 + $0x8] sm:$0xff]
        %v1918 = vld [vmem:[#allocation11 + $0x10] sm:$0xff]
        %v1919 = vld [vmem:[#allocation11 + $0x18] sm:$0xff]
        %v1920 = vld [vmem:[#allocation11 + $0x20] sm:$0xff]
        %v1921 = vld [vmem:[#allocation11 + $0x28] sm:$0xff]
        %v1922 = vld [vmem:[#allocation11 + $0x30] sm:$0xff]
        %v1923 = vld [vmem:[#allocation11 + $0x38] sm:$0xff]
        %v1924 = vld [vmem:[#allocation11 + $0x40] sm:$0xff]
        %v1925 = vld [vmem:[#allocation11 + $0x48] sm:$0xff]
        %v1926 = vld [vmem:[#allocation11 + $0x50] sm:$0xff]
        %v1927 = vld [vmem:[#allocation11 + $0x58] sm:$0xff]
        %v1928 = vld [vmem:[#allocation11 + $0x60] sm:$0xff]
        %v1929 = vld [vmem:[#allocation11 + $0x68] sm:$0xff]
        %v1930 = vld [vmem:[#allocation11 + $0x70] sm:$0xff]
        %v1931 = vld [vmem:[#allocation11 + $0x78] sm:$0xff]
        %v1932 = vld [vmem:[#allocation11 + $0x80] sm:$0xff]
        %v1933 = vld [vmem:[#allocation11 + $0x88] sm:$0xff]
        %v1934 = vld [vmem:[#allocation11 + $0x90] sm:$0xff]
        %v1935 = vld [vmem:[#allocation11 + $0x98] sm:$0xff]
        %v1936 = vld [vmem:[#allocation11 + $0xa0] sm:$0xff]
        %v1937 = vld [vmem:[#allocation11 + $0xa8] sm:$0xff]
        %v1938 = vld [vmem:[#allocation11 + $0xb0] sm:$0xff]
        %v1939 = vld [vmem:[#allocation11 + $0xb8] sm:$0xff]
        %v1940 = vld [vmem:[#allocation11 + $0xc0] sm:$0xff]
        %v1941 = vld [vmem:[#allocation11 + $0xc8] sm:$0xff]
        %v1942 = vld [vmem:[#allocation11 + $0xd0] sm:$0xff]
        %v1943 = vld [vmem:[#allocation11 + $0xd8] sm:$0xff]
        %v1944 = vld [vmem:[#allocation11 + $0xe0] sm:$0xff]
        %v1945 = vld [vmem:[#allocation11 + $0xe8] sm:$0xff]
        %v1946 = vld [vmem:[#allocation11 + $0xf0] sm:$0xff]
        %v1947 = vld [vmem:[#allocation11 + $0xf8] sm:$0xff]
        %v1948 = vld [vmem:[#allocation11 + $0x100] sm:$0xff]
        %v1949 = vld [vmem:[#allocation11 + $0x108] sm:$0xff]
        %v1950 = vld [vmem:[#allocation11 + $0x110] sm:$0xff]
        %v1951 = vld [vmem:[#allocation11 + $0x118] sm:$0xff]
        %v1952 = vld [vmem:[#allocation11 + $0x120] sm:$0xff]
        %v1953 = vld [vmem:[#allocation11 + $0x128] sm:$0xff]
        %v1954 = vld [vmem:[#allocation11 + $0x130] sm:$0xff]
        %v1955 = vld [vmem:[#allocation11 + $0x138] sm:$0xff]
        %v1956 = vld [vmem:[#allocation11 + $0x140] sm:$0xff]
        %v1957 = vld [vmem:[#allocation11 + $0x148] sm:$0xff]
        %v1958 = vld [vmem:[#allocation11 + $0x150] sm:$0xff]
        %v1959 = vld [vmem:[#allocation11 + $0x158] sm:$0xff]
        %v1960 = vld [vmem:[#allocation11 + $0x160] sm:$0xff]
        %v1961 = vld [vmem:[#allocation11 + $0x168] sm:$0xff]
        %v1962 = vld [vmem:[#allocation11 + $0x170] sm:$0xff]
        %v1963 = vld [vmem:[#allocation11 + $0x178] sm:$0xff]
        %v1964 = vld [vmem:[#allocation11 + $0x180] sm:$0xff]
        %v1965 = vld [vmem:[#allocation11 + $0x188] sm:$0xff]
        %v1966 = vld [vmem:[#allocation11 + $0x190] sm:$0xff]
        %v1967 = vld [vmem:[#allocation11 + $0x198] sm:$0xff]
        %v1968 = vld [vmem:[#allocation11 + $0x1a0] sm:$0xff]
        %v1969 = vld [vmem:[#allocation11 + $0x1a8] sm:$0xff]
        %v1970 = vld [vmem:[#allocation11 + $0x1b0] sm:$0xff]
        %v1971 = vld [vmem:[#allocation11 + $0x1b8] sm:$0xff]
        %v1972 = vld [vmem:[#allocation11 + $0x1c0] sm:$0xff]
        %v1973 = vld [vmem:[#allocation11 + $0x1c8] sm:$0xff]
        %v1974 = vld [vmem:[#allocation11 + $0x1d0] sm:$0xff]
        %v1975 = vld [vmem:[#allocation11 + $0x1d8] sm:$0xff]
        %v1976 = vld [vmem:[#allocation11 + $0x1e0] sm:$0xff]
        %v1977 = vld [vmem:[#allocation11 + $0x1e8] sm:$0xff]
        %v1978 = vld [vmem:[#allocation11 + $0x1f0] sm:$0xff]
        %v1979 = vld [vmem:[#allocation11 + $0x1f8] sm:$0xff]
        %1980 = vmatprep.subr.mxu0 %v1917
        %1981 = vmatpush1.msra.mxu0 %v1916
        %1982 = vmatprep.subr.mxu0 %v1921
        %1983 = vmatpush1.msra.mxu0 %v1920
        %1984 = vmatprep.subr.mxu0 %v1925
        %1985 = vmatpush1.msra.mxu0 %v1924
        %1986 = vmatprep.subr.mxu0 %v1929
        %1987 = vmatpush1.msra.mxu0 %v1928
        %1988 = vmatprep.subr.mxu0 %v1933
        %1989 = vmatpush1.msra.mxu0 %v1932
        %1990 = vmatprep.subr.mxu0 %v1937
        %1991 = vmatpush1.msra.mxu0 %v1936
        %1992 = vmatprep.subr.mxu0 %v1941
        %1993 = vmatpush1.msra.mxu0 %v1940
        %1994 = vmatprep.subr.mxu0 %v1945
        %1995 = vmatpush1.msra.mxu0 %v1944
        %1996 = vmatprep.subr.mxu0 %v1949
        %1997 = vmatpush1.msra.mxu0 %v1948
        %1998 = vmatprep.subr.mxu0 %v1953
        %1999 = vmatpush1.msra.mxu0 %v1952
        %2000 = vmatprep.subr.mxu0 %v1957
        %2001 = vmatpush1.msra.mxu0 %v1956
        %2002 = vmatprep.subr.mxu0 %v1961
        %2003 = vmatpush1.msra.mxu0 %v1960
        %2004 = vmatprep.subr.mxu0 %v1965
        %2005 = vmatpush1.msra.mxu0 %v1964
        %2006 = vmatprep.subr.mxu0 %v1969
        %2007 = vmatpush1.msra.mxu0 %v1968
        %2008 = vmatprep.subr.mxu0 %v1973
        %2009 = vmatpush1.msra.mxu0 %v1972
        %2010 = vmatprep.subr.mxu0 %v1977
        %2011 = vmatpush1.msra.mxu0 %v1976
        %2012 = vmatprep.subr.mxu0 0.0
        %2013 = vmatpush1.msra.mxu0 0.0
        %2014 = vmatprep.subr.mxu0 0.0
        %2015 = vmatpush1.msra.mxu0 0.0
        %2016 = vmatprep.subr.mxu0 0.0
        %2017 = vmatpush1.msra.mxu0 0.0
        %2018 = vmatprep.subr.mxu0 0.0
        %2019 = vmatpush1.msra.mxu0 0.0
        %2020 = vmatprep.subr.mxu0 0.0
        %2021 = vmatpush1.msra.mxu0 0.0
        %2022 = vmatprep.subr.mxu0 0.0
        %2023 = vmatpush1.msra.mxu0 0.0
        %2024 = vmatprep.subr.mxu0 0.0
        %2025 = vmatpush1.msra.mxu0 0.0
        %2026 = vmatprep.subr.mxu0 0.0
        %2027 = vmatpush1.msra.mxu0 0.0
        %2028 = vmatprep.subr.mxu0 0.0
        %2029 = vmatpush1.msra.mxu0 0.0
        %2030 = vmatprep.subr.mxu0 0.0
        %2031 = vmatpush1.msra.mxu0 0.0
        %2032 = vmatprep.subr.mxu0 0.0
        %2033 = vmatpush1.msra.mxu0 0.0
        %2034 = vmatprep.subr.mxu0 0.0
        %2035 = vmatpush1.msra.mxu0 0.0
        %2036 = vmatprep.subr.mxu0 0.0
        %2037 = vmatpush1.msra.mxu0 0.0
        %2038 = vmatprep.subr.mxu0 0.0
        %2039 = vmatpush1.msra.mxu0 0.0
        %2040 = vmatprep.subr.mxu0 0.0
        %2041 = vmatpush1.msra.mxu0 0.0
        %2042 = vmatprep.subr.mxu0 0.0
        %2043 = vmatpush1.msra.mxu0 0.0
        %2044 = vmatprep.mubr.f32.mxu0 0.0
        %2045 = vmatmul.mubr.f32.gmra.mrb[0].mxu0 %v1915
        %v2046 = vpop.f32.mrb[0].mxu0
        %v2047 = vadd.f32 0.0, %v2046
        %v2048 = vpop.f32.mrb[0].mxu0
        %v2049 = vadd.f32 0.0, %v2048
        %2050 = vdwg.mxu0
        %2051 = vmatprep.subr.mxu0 %v1919
        %2052 = vmatpush1.msra.mxu0 %v1918
        %2053 = vmatprep.subr.mxu0 %v1923
        %2054 = vmatpush1.msra.mxu0 %v1922
        %2055 = vmatprep.subr.mxu0 %v1927
        %2056 = vmatpush1.msra.mxu0 %v1926
        %2057 = vmatprep.subr.mxu0 %v1931
        %2058 = vmatpush1.msra.mxu0 %v1930
        %2059 = vmatprep.subr.mxu0 %v1935
        %2060 = vmatpush1.msra.mxu0 %v1934
        %2061 = vmatprep.subr.mxu0 %v1939
        %2062 = vmatpush1.msra.mxu0 %v1938
        %2063 = vmatprep.subr.mxu0 %v1943
        %2064 = vmatpush1.msra.mxu0 %v1942
        %2065 = vmatprep.subr.mxu0 %v1947
        %2066 = vmatpush1.msra.mxu0 %v1946
        %2067 = vmatprep.subr.mxu0 %v1951
        %2068 = vmatpush1.msra.mxu0 %v1950
        %2069 = vmatprep.subr.mxu0 %v1955
        %2070 = vmatpush1.msra.mxu0 %v1954
        %2071 = vmatprep.subr.mxu0 %v1959
        %2072 = vmatpush1.msra.mxu0 %v1958
        %2073 = vmatprep.subr.mxu0 %v1963
        %2074 = vmatpush1.msra.mxu0 %v1962
        %2075 = vmatprep.subr.mxu0 %v1967
        %2076 = vmatpush1.msra.mxu0 %v1966
        %2077 = vmatprep.subr.mxu0 %v1971
        %2078 = vmatpush1.msra.mxu0 %v1970
        %2079 = vmatprep.subr.mxu0 %v1975
        %2080 = vmatpush1.msra.mxu0 %v1974
        %2081 = vmatprep.subr.mxu0 %v1979
        %2082 = vmatpush1.msra.mxu0 %v1978
        %2083 = vmatprep.subr.mxu0 0.0
        %2084 = vmatpush1.msra.mxu0 0.0
        %2085 = vmatprep.subr.mxu0 0.0
        %2086 = vmatpush1.msra.mxu0 0.0
        %2087 = vmatprep.subr.mxu0 0.0
        %2088 = vmatpush1.msra.mxu0 0.0
        %2089 = vmatprep.subr.mxu0 0.0
        %2090 = vmatpush1.msra.mxu0 0.0
        %2091 = vmatprep.subr.mxu0 0.0
        %2092 = vmatpush1.msra.mxu0 0.0
        %2093 = vmatprep.subr.mxu0 0.0
        %2094 = vmatpush1.msra.mxu0 0.0
        %2095 = vmatprep.subr.mxu0 0.0
        %2096 = vmatpush1.msra.mxu0 0.0
        %2097 = vmatprep.subr.mxu0 0.0
        %2098 = vmatpush1.msra.mxu0 0.0
        %2099 = vmatprep.subr.mxu0 0.0
        %2100 = vmatpush1.msra.mxu0 0.0
        %2101 = vmatprep.subr.mxu0 0.0
        %2102 = vmatpush1.msra.mxu0 0.0
        %2103 = vmatprep.subr.mxu0 0.0
        %2104 = vmatpush1.msra.mxu0 0.0
        %2105 = vmatprep.subr.mxu0 0.0
        %2106 = vmatpush1.msra.mxu0 0.0
        %2107 = vmatprep.subr.mxu0 0.0
        %2108 = vmatpush1.msra.mxu0 0.0
        %2109 = vmatprep.subr.mxu0 0.0
        %2110 = vmatpush1.msra.mxu0 0.0
        %2111 = vmatprep.subr.mxu0 0.0
        %2112 = vmatpush1.msra.mxu0 0.0
        %2113 = vmatprep.subr.mxu0 0.0
        %2114 = vmatpush1.msra.mxu0 0.0
        %2115 = vmatprep.mubr.f32.mxu0 0.0
        %2116 = vmatmul.mubr.f32.gmra.mrb[0].mxu0 %v1915
        %v2117 = vpop.f32.mrb[0].mxu0
        %v2118 = vadd.f32 0.0, %v2117
        %v2119 = vpop.f32.mrb[0].mxu0
        %v2120 = vadd.f32 0.0, %v2119
        %2121 = vdwg.mxu0
        %v2122 = vadd.f32 %v1911, %v2047
        %v2123 = vadd.f32 %v1912, %v2049
        %v2124 = vadd.f32 %v1913, %v2118
        %v2125 = vadd.f32 %v1914, %v2120
        %v2126 = vld [vmem:[#allocation5] sm:$0xff]
        %v2127 = vxor.u32 %v2122, 2147483648
        %v2128 = vmul.f32 %v2127, 1.442695
        %v2129 = vpow.pop %v2128
        %v2130 = vadd.f32 %v2129, 1.0
        %v2131 = vrcp.pop %v2130
        %v2132 = vmul.f32 1.0, %v2131
        %v2133 = vxor.u32 %v2123, 2147483648
        %v2134 = vmul.f32 %v2133, 1.442695
        %v2135 = vpow.pop %v2134
        %v2136 = vadd.f32 %v2135, 1.0
        %v2137 = vrcp.pop %v2136
        %v2138 = vmul.f32 1.0, %v2137
        %v2139 = vtanh.pop %v2124
        %v2140 = vxor.u32 %v2125, 2147483648
        %v2141 = vmul.f32 %v2140, 1.442695
        %v2142 = vpow.pop %v2141
        %v2143 = vadd.f32 %v2142, 1.0
        %v2144 = vrcp.pop %v2143
        %v2145 = vmul.f32 1.0, %v2144
        %v2146 = vmul.f32 %v2138, %v2126
        %v2147 = vmul.f32 %v2132, %v2139
        %v2148 = vadd.f32 %v2146, %v2147
        %v2149 = vtanh.pop %v2148
        %v2150 = vmul.f32 %v2145, %v2149
        %v2151 = vld [vmem:[#allocation6] sm:$0xff]
        %v2152 = vld [vmem:[#allocation13] sm:$0xff]
        %v2153 = vld [vmem:[#allocation13 + $0x8] sm:$0xff]
        %v2154 = vld [vmem:[#allocation13 + $0x10] sm:$0xff]
        %v2155 = vld [vmem:[#allocation13 + $0x18] sm:$0xff]
        %v2156 = vld [vmem:[#allocation13 + $0x20] sm:$0xff]
        %v2157 = vld [vmem:[#allocation13 + $0x28] sm:$0xff]
        %v2158 = vld [vmem:[#allocation13 + $0x30] sm:$0xff]
        %v2159 = vld [vmem:[#allocation13 + $0x38] sm:$0xff]
        %v2160 = vld [vmem:[#allocation13 + $0x40] sm:$0xff]
        %v2161 = vld [vmem:[#allocation13 + $0x48] sm:$0xff]
        %v2162 = vld [vmem:[#allocation13 + $0x50] sm:$0xff]
        %v2163 = vld [vmem:[#allocation13 + $0x58] sm:$0xff]
        %v2164 = vld [vmem:[#allocation13 + $0x60] sm:$0xff]
        %v2165 = vld [vmem:[#allocation13 + $0x68] sm:$0xff]
        %v2166 = vld [vmem:[#allocation13 + $0x70] sm:$0xff]
        %v2167 = vld [vmem:[#allocation13 + $0x78] sm:$0xff]
        %v2168 = vld [vmem:[#allocation13 + $0x80] sm:$0xff]
        %v2169 = vld [vmem:[#allocation13 + $0x88] sm:$0xff]
        %v2170 = vld [vmem:[#allocation13 + $0x90] sm:$0xff]
        %v2171 = vld [vmem:[#allocation13 + $0x98] sm:$0xff]
        %v2172 = vld [vmem:[#allocation13 + $0xa0] sm:$0xff]
        %v2173 = vld [vmem:[#allocation13 + $0xa8] sm:$0xff]
        %v2174 = vld [vmem:[#allocation13 + $0xb0] sm:$0xff]
        %v2175 = vld [vmem:[#allocation13 + $0xb8] sm:$0xff]
        %v2176 = vld [vmem:[#allocation13 + $0xc0] sm:$0xff]
        %v2177 = vld [vmem:[#allocation13 + $0xc8] sm:$0xff]
        %v2178 = vld [vmem:[#allocation13 + $0xd0] sm:$0xff]
        %v2179 = vld [vmem:[#allocation13 + $0xd8] sm:$0xff]
        %v2180 = vld [vmem:[#allocation13 + $0xe0] sm:$0xff]
        %v2181 = vld [vmem:[#allocation13 + $0xe8] sm:$0xff]
        %v2182 = vld [vmem:[#allocation13 + $0xf0] sm:$0xff]
        %v2183 = vld [vmem:[#allocation13 + $0xf8] sm:$0xff]
        %v2184 = vld [vmem:[#allocation13 + $0x100] sm:$0xff]
        %v2185 = vld [vmem:[#allocation13 + $0x108] sm:$0xff]
        %v2186 = vld [vmem:[#allocation13 + $0x110] sm:$0xff]
        %v2187 = vld [vmem:[#allocation13 + $0x118] sm:$0xff]
        %v2188 = vld [vmem:[#allocation13 + $0x120] sm:$0xff]
        %v2189 = vld [vmem:[#allocation13 + $0x128] sm:$0xff]
        %v2190 = vld [vmem:[#allocation13 + $0x130] sm:$0xff]
        %v2191 = vld [vmem:[#allocation13 + $0x138] sm:$0xff]
        %v2192 = vld [vmem:[#allocation13 + $0x140] sm:$0xff]
        %v2193 = vld [vmem:[#allocation13 + $0x148] sm:$0xff]
        %v2194 = vld [vmem:[#allocation13 + $0x150] sm:$0xff]
        %v2195 = vld [vmem:[#allocation13 + $0x158] sm:$0xff]
        %v2196 = vld [vmem:[#allocation13 + $0x160] sm:$0xff]
        %v2197 = vld [vmem:[#allocation13 + $0x168] sm:$0xff]
        %v2198 = vld [vmem:[#allocation13 + $0x170] sm:$0xff]
        %v2199 = vld [vmem:[#allocation13 + $0x178] sm:$0xff]
        %v2200 = vld [vmem:[#allocation13 + $0x180] sm:$0xff]
        %v2201 = vld [vmem:[#allocation13 + $0x188] sm:$0xff]
        %v2202 = vld [vmem:[#allocation13 + $0x190] sm:$0xff]
        %v2203 = vld [vmem:[#allocation13 + $0x198] sm:$0xff]
        %v2204 = vld [vmem:[#allocation13 + $0x1a0] sm:$0xff]
        %v2205 = vld [vmem:[#allocation13 + $0x1a8] sm:$0xff]
        %v2206 = vld [vmem:[#allocation13 + $0x1b0] sm:$0xff]
        %v2207 = vld [vmem:[#allocation13 + $0x1b8] sm:$0xff]
        %v2208 = vld [vmem:[#allocation13 + $0x1c0] sm:$0xff]
        %v2209 = vld [vmem:[#allocation13 + $0x1c8] sm:$0xff]
        %v2210 = vld [vmem:[#allocation13 + $0x1d0] sm:$0xff]
        %v2211 = vld [vmem:[#allocation13 + $0x1d8] sm:$0xff]
        %v2212 = vld [vmem:[#allocation13 + $0x1e0] sm:$0xff]
        %v2213 = vld [vmem:[#allocation13 + $0x1e8] sm:$0xff]
        %v2214 = vld [vmem:[#allocation13 + $0x1f0] sm:$0xff]
        %v2215 = vld [vmem:[#allocation13 + $0x1f8] sm:$0xff]
        %v2216 = vld [vmem:[#allocation13 + $0x200] sm:$0xff]
        %v2217 = vld [vmem:[#allocation13 + $0x208] sm:$0xff]
        %v2218 = vld [vmem:[#allocation13 + $0x210] sm:$0xff]
        %v2219 = vld [vmem:[#allocation13 + $0x218] sm:$0xff]
        %v2220 = vld [vmem:[#allocation13 + $0x220] sm:$0xff]
        %v2221 = vld [vmem:[#allocation13 + $0x228] sm:$0xff]
        %v2222 = vld [vmem:[#allocation13 + $0x230] sm:$0xff]
        %v2223 = vld [vmem:[#allocation13 + $0x238] sm:$0xff]
        %v2224 = vld [vmem:[#allocation13 + $0x240] sm:$0xff]
        %v2225 = vld [vmem:[#allocation13 + $0x248] sm:$0xff]
        %v2226 = vld [vmem:[#allocation13 + $0x250] sm:$0xff]
        %v2227 = vld [vmem:[#allocation13 + $0x258] sm:$0xff]
        %v2228 = vld [vmem:[#allocation13 + $0x260] sm:$0xff]
        %v2229 = vld [vmem:[#allocation13 + $0x268] sm:$0xff]
        %v2230 = vld [vmem:[#allocation13 + $0x270] sm:$0xff]
        %v2231 = vld [vmem:[#allocation13 + $0x278] sm:$0xff]
        %v2232 = vld [vmem:[#allocation13 + $0x280] sm:$0xff]
        %v2233 = vld [vmem:[#allocation13 + $0x288] sm:$0xff]
        %v2234 = vld [vmem:[#allocation13 + $0x290] sm:$0xff]
        %v2235 = vld [vmem:[#allocation13 + $0x298] sm:$0xff]
        %v2236 = vld [vmem:[#allocation13 + $0x2a0] sm:$0xff]
        %v2237 = vld [vmem:[#allocation13 + $0x2a8] sm:$0xff]
        %v2238 = vld [vmem:[#allocation13 + $0x2b0] sm:$0xff]
        %v2239 = vld [vmem:[#allocation13 + $0x2b8] sm:$0xff]
        %v2240 = vld [vmem:[#allocation13 + $0x2c0] sm:$0xff]
        %v2241 = vld [vmem:[#allocation13 + $0x2c8] sm:$0xff]
        %v2242 = vld [vmem:[#allocation13 + $0x2d0] sm:$0xff]
        %v2243 = vld [vmem:[#allocation13 + $0x2d8] sm:$0xff]
        %v2244 = vld [vmem:[#allocation13 + $0x2e0] sm:$0xff]
        %v2245 = vld [vmem:[#allocation13 + $0x2e8] sm:$0xff]
        %v2246 = vld [vmem:[#allocation13 + $0x2f0] sm:$0xff]
        %v2247 = vld [vmem:[#allocation13 + $0x2f8] sm:$0xff]
        %v2248 = vld [vmem:[#allocation13 + $0x300] sm:$0xff]
        %v2249 = vld [vmem:[#allocation13 + $0x308] sm:$0xff]
        %v2250 = vld [vmem:[#allocation13 + $0x310] sm:$0xff]
        %v2251 = vld [vmem:[#allocation13 + $0x318] sm:$0xff]
        %v2252 = vld [vmem:[#allocation13 + $0x320] sm:$0xff]
        %v2253 = vld [vmem:[#allocation13 + $0x328] sm:$0xff]
        %v2254 = vld [vmem:[#allocation13 + $0x330] sm:$0xff]
        %v2255 = vld [vmem:[#allocation13 + $0x338] sm:$0xff]
        %v2256 = vld [vmem:[#allocation13 + $0x340] sm:$0xff]
        %v2257 = vld [vmem:[#allocation13 + $0x348] sm:$0xff]
        %v2258 = vld [vmem:[#allocation13 + $0x350] sm:$0xff]
        %v2259 = vld [vmem:[#allocation13 + $0x358] sm:$0xff]
        %v2260 = vld [vmem:[#allocation13 + $0x360] sm:$0xff]
        %v2261 = vld [vmem:[#allocation13 + $0x368] sm:$0xff]
        %v2262 = vld [vmem:[#allocation13 + $0x370] sm:$0xff]
        %v2263 = vld [vmem:[#allocation13 + $0x378] sm:$0xff]
        %v2264 = vld [vmem:[#allocation13 + $0x380] sm:$0xff]
        %v2265 = vld [vmem:[#allocation13 + $0x388] sm:$0xff]
        %v2266 = vld [vmem:[#allocation13 + $0x390] sm:$0xff]
        %v2267 = vld [vmem:[#allocation13 + $0x398] sm:$0xff]
        %v2268 = vld [vmem:[#allocation13 + $0x3a0] sm:$0xff]
        %v2269 = vld [vmem:[#allocation13 + $0x3a8] sm:$0xff]
        %v2270 = vld [vmem:[#allocation13 + $0x3b0] sm:$0xff]
        %v2271 = vld [vmem:[#allocation13 + $0x3b8] sm:$0xff]
        %v2272 = vld [vmem:[#allocation13 + $0x3c0] sm:$0xff]
        %v2273 = vld [vmem:[#allocation13 + $0x3c8] sm:$0xff]
        %v2274 = vld [vmem:[#allocation13 + $0x3d0] sm:$0xff]
        %v2275 = vld [vmem:[#allocation13 + $0x3d8] sm:$0xff]
        %v2276 = vld [vmem:[#allocation13 + $0x3e0] sm:$0xff]
        %v2277 = vld [vmem:[#allocation13 + $0x3e8] sm:$0xff]
        %v2278 = vld [vmem:[#allocation13 + $0x3f0] sm:$0xff]
        %v2279 = vld [vmem:[#allocation13 + $0x3f8] sm:$0xff]
        %2280 = vmatprep.subr.mxu0 %v2153
        %2281 = vmatpush1.msra.mxu0 %v2152
        %2282 = vmatprep.subr.mxu0 %v2157
        %2283 = vmatpush1.msra.mxu0 %v2156
        %2284 = vmatprep.subr.mxu0 %v2161
        %2285 = vmatpush1.msra.mxu0 %v2160
        %2286 = vmatprep.subr.mxu0 %v2165
        %2287 = vmatpush1.msra.mxu0 %v2164
        %2288 = vmatprep.subr.mxu0 %v2169
        %2289 = vmatpush1.msra.mxu0 %v2168
        %2290 = vmatprep.subr.mxu0 %v2173
        %2291 = vmatpush1.msra.mxu0 %v2172
        %2292 = vmatprep.subr.mxu0 %v2177
        %2293 = vmatpush1.msra.mxu0 %v2176
        %2294 = vmatprep.subr.mxu0 %v2181
        %2295 = vmatpush1.msra.mxu0 %v2180
        %2296 = vmatprep.subr.mxu0 %v2185
        %2297 = vmatpush1.msra.mxu0 %v2184
        %2298 = vmatprep.subr.mxu0 %v2189
        %2299 = vmatpush1.msra.mxu0 %v2188
        %2300 = vmatprep.subr.mxu0 %v2193
        %2301 = vmatpush1.msra.mxu0 %v2192
        %2302 = vmatprep.subr.mxu0 %v2197
        %2303 = vmatpush1.msra.mxu0 %v2196
        %2304 = vmatprep.subr.mxu0 %v2201
        %2305 = vmatpush1.msra.mxu0 %v2200
        %2306 = vmatprep.subr.mxu0 %v2205
        %2307 = vmatpush1.msra.mxu0 %v2204
        %2308 = vmatprep.subr.mxu0 %v2209
        %2309 = vmatpush1.msra.mxu0 %v2208
        %2310 = vmatprep.subr.mxu0 %v2213
        %2311 = vmatpush1.msra.mxu0 %v2212
        %2312 = vmatprep.subr.mxu0 %v2217
        %2313 = vmatpush1.msra.mxu0 %v2216
        %2314 = vmatprep.subr.mxu0 %v2221
        %2315 = vmatpush1.msra.mxu0 %v2220
        %2316 = vmatprep.subr.mxu0 %v2225
        %2317 = vmatpush1.msra.mxu0 %v2224
        %2318 = vmatprep.subr.mxu0 %v2229
        %2319 = vmatpush1.msra.mxu0 %v2228
        %2320 = vmatprep.subr.mxu0 %v2233
        %2321 = vmatpush1.msra.mxu0 %v2232
        %2322 = vmatprep.subr.mxu0 %v2237
        %2323 = vmatpush1.msra.mxu0 %v2236
        %2324 = vmatprep.subr.mxu0 %v2241
        %2325 = vmatpush1.msra.mxu0 %v2240
        %2326 = vmatprep.subr.mxu0 %v2245
        %2327 = vmatpush1.msra.mxu0 %v2244
        %2328 = vmatprep.subr.mxu0 %v2249
        %2329 = vmatpush1.msra.mxu0 %v2248
        %2330 = vmatprep.subr.mxu0 %v2253
        %2331 = vmatpush1.msra.mxu0 %v2252
        %2332 = vmatprep.subr.mxu0 %v2257
        %2333 = vmatpush1.msra.mxu0 %v2256
        %2334 = vmatprep.subr.mxu0 %v2261
        %2335 = vmatpush1.msra.mxu0 %v2260
        %2336 = vmatprep.subr.mxu0 %v2265
        %2337 = vmatpush1.msra.mxu0 %v2264
        %2338 = vmatprep.subr.mxu0 %v2269
        %2339 = vmatpush1.msra.mxu0 %v2268
        %2340 = vmatprep.subr.mxu0 %v2273
        %2341 = vmatpush1.msra.mxu0 %v2272
        %2342 = vmatprep.subr.mxu0 %v2277
        %2343 = vmatpush1.msra.mxu0 %v2276
        %2344 = vmatprep.mubr.f32.mxu0 %v2151
        %2345 = vmatmul.mubr.f32.gmra.mrb[0].mxu0 %v2150
        %v2346 = vpop.f32.mrb[0].mxu0
        %v2347 = vadd.f32 %v784, %v2346
        %v2348 = vpop.f32.mrb[0].mxu0
        %v2349 = vadd.f32 %v788, %v2348
        %2350 = vdwg.mxu0
        %2351 = vmatprep.subr.mxu0 %v2155
        %2352 = vmatpush1.msra.mxu0 %v2154
        %2353 = vmatprep.subr.mxu0 %v2159
        %2354 = vmatpush1.msra.mxu0 %v2158
        %2355 = vmatprep.subr.mxu0 %v2163
        %2356 = vmatpush1.msra.mxu0 %v2162
        %2357 = vmatprep.subr.mxu0 %v2167
        %2358 = vmatpush1.msra.mxu0 %v2166
        %2359 = vmatprep.subr.mxu0 %v2171
        %2360 = vmatpush1.msra.mxu0 %v2170
        %2361 = vmatprep.subr.mxu0 %v2175
        %2362 = vmatpush1.msra.mxu0 %v2174
        %2363 = vmatprep.subr.mxu0 %v2179
        %2364 = vmatpush1.msra.mxu0 %v2178
        %2365 = vmatprep.subr.mxu0 %v2183
        %2366 = vmatpush1.msra.mxu0 %v2182
        %2367 = vmatprep.subr.mxu0 %v2187
        %2368 = vmatpush1.msra.mxu0 %v2186
        %2369 = vmatprep.subr.mxu0 %v2191
        %2370 = vmatpush1.msra.mxu0 %v2190
        %2371 = vmatprep.subr.mxu0 %v2195
        %2372 = vmatpush1.msra.mxu0 %v2194
        %2373 = vmatprep.subr.mxu0 %v2199
        %2374 = vmatpush1.msra.mxu0 %v2198
        %2375 = vmatprep.subr.mxu0 %v2203
        %2376 = vmatpush1.msra.mxu0 %v2202
        %2377 = vmatprep.subr.mxu0 %v2207
        %2378 = vmatpush1.msra.mxu0 %v2206
        %2379 = vmatprep.subr.mxu0 %v2211
        %2380 = vmatpush1.msra.mxu0 %v2210
        %2381 = vmatprep.subr.mxu0 %v2215
        %2382 = vmatpush1.msra.mxu0 %v2214
        %2383 = vmatprep.subr.mxu0 %v2219
        %2384 = vmatpush1.msra.mxu0 %v2218
        %2385 = vmatprep.subr.mxu0 %v2223
        %2386 = vmatpush1.msra.mxu0 %v2222
        %2387 = vmatprep.subr.mxu0 %v2227
        %2388 = vmatpush1.msra.mxu0 %v2226
        %2389 = vmatprep.subr.mxu0 %v2231
        %2390 = vmatpush1.msra.mxu0 %v2230
        %2391 = vmatprep.subr.mxu0 %v2235
        %2392 = vmatpush1.msra.mxu0 %v2234
        %2393 = vmatprep.subr.mxu0 %v2239
        %2394 = vmatpush1.msra.mxu0 %v2238
        %2395 = vmatprep.subr.mxu0 %v2243
        %2396 = vmatpush1.msra.mxu0 %v2242
        %2397 = vmatprep.subr.mxu0 %v2247
        %2398 = vmatpush1.msra.mxu0 %v2246
        %2399 = vmatprep.subr.mxu0 %v2251
        %2400 = vmatpush1.msra.mxu0 %v2250
        %2401 = vmatprep.subr.mxu0 %v2255
        %2402 = vmatpush1.msra.mxu0 %v2254
        %2403 = vmatprep.subr.mxu0 %v2259
        %2404 = vmatpush1.msra.mxu0 %v2258
        %2405 = vmatprep.subr.mxu0 %v2263
        %2406 = vmatpush1.msra.mxu0 %v2262
        %2407 = vmatprep.subr.mxu0 %v2267
        %2408 = vmatpush1.msra.mxu0 %v2266
        %2409 = vmatprep.subr.mxu0 %v2271
        %2410 = vmatpush1.msra.mxu0 %v2270
        %2411 = vmatprep.subr.mxu0 %v2275
        %2412 = vmatpush1.msra.mxu0 %v2274
        %2413 = vmatprep.subr.mxu0 %v2279
        %2414 = vmatpush1.msra.mxu0 %v2278
        %2415 = vmatprep.mubr.f32.mxu0 %v2151
        %2416 = vmatmul.mubr.f32.gmra.mrb[0].mxu0 %v2150
        %v2417 = vpop.f32.mrb[0].mxu0
        %v2418 = vadd.f32 %v792, %v2417
        %v2419 = vpop.f32.mrb[0].mxu0
        %v2420 = vadd.f32 %v796, %v2419
        %2421 = vdwg.mxu0
        %v2422 = vld [vmem:[#allocation7] sm:$0xff]
        %v2423 = vxor.u32 %v2347, 2147483648
        %v2424 = vmul.f32 %v2423, 1.442695
        %v2425 = vpow.pop %v2424
        %v2426 = vadd.f32 %v2425, 1.0
        %v2427 = vrcp.pop %v2426
        %v2428 = vmul.f32 1.0, %v2427
        %v2429 = vxor.u32 %v2349, 2147483648
        %v2430 = vmul.f32 %v2429, 1.442695
        %v2431 = vpow.pop %v2430
        %v2432 = vadd.f32 %v2431, 1.0
        %v2433 = vrcp.pop %v2432
        %v2434 = vmul.f32 1.0, %v2433
        %v2435 = vtanh.pop %v2418
        %v2436 = vxor.u32 %v2420, 2147483648
        %v2437 = vmul.f32 %v2436, 1.442695
        %v2438 = vpow.pop %v2437
        %v2439 = vadd.f32 %v2438, 1.0
        %v2440 = vrcp.pop %v2439
        %v2441 = vmul.f32 1.0, %v2440
        %v2442 = vmul.f32 %v2434, %v2422
        %v2443 = vmul.f32 %v2428, %v2435
        %v2444 = vadd.f32 %v2442, %v2443
        %v2445 = vtanh.pop %v2444
        %v2446 = vmul.f32 %v2441, %v2445
        %s2447 = sadd.s32 %s1340, 2
        %p2448 = scmp.lt.s32.totalorder %s2447, 8
        %s2449 = scalar_select %p2448, 1, 0
        %v2450 = vstv %s2449
        %vm2451 = vcmp.eq.s32.totalorder %v2450, 1
        %v2452 = vsel %vm2451, %v2150, %v1915
        %v2453 = vsel %vm2451, %v2148, %v2126
        %v2454 = vsel %vm2451, %v2446, %v2151
        %v2455 = vsel %vm2451, %v2444, %v2422
        %2456 = vst [vmem:[#allocation4] sm:$0xff] %v2452
        %2457 = vst [vmem:[#allocation5] sm:$0xff] %v2453
        %2458 = vst [vmem:[#allocation6] sm:$0xff] %v2454
        %2459 = vst [vmem:[#allocation7] sm:$0xff] %v2455
        %s2460 = scalar_lea.vmem [#allocation3], 16
        %2461 = vst [vmem:[%s2460] sm:$0xff] %v2454
        %v2462 = vld [vmem:[#allocation3] sm:$0xff]
        %v2463 = vld [vmem:[#allocation3 + $0x8] sm:$0xff]
        %v2464 = vld [vmem:[#allocation3 + $0x10] sm:$0xff]
        %v2465 = vld [vmem:[#allocation14] sm:$0xff]
        %v2466 = vld [vmem:[#allocation14 + $0x8] sm:$0xff]
        %v2467 = vld [vmem:[#allocation14 + $0x10] sm:$0xff]
        %v2468 = vld [vmem:[#allocation14 + $0x18] sm:$0xff]
        %v2469 = vld [vmem:[#allocation14 + $0x20] sm:$0xff]
        %v2470 = vld [vmem:[#allocation14 + $0x28] sm:$0xff]
        %v2471 = vld [vmem:[#allocation14 + $0x30] sm:$0xff]
        %v2472 = vld [vmem:[#allocation14 + $0x38] sm:$0xff]
        %v2473 = vld [vmem:[#allocation14 + $0x40] sm:$0xff]
        %v2474 = vld [vmem:[#allocation14 + $0x48] sm:$0xff]
        %v2475 = vld [vmem:[#allocation14 + $0x50] sm:$0xff]
        %v2476 = vld [vmem:[#allocation14 + $0x58] sm:$0xff]
        %v2477 = vld [vmem:[#allocation14 + $0x60] sm:$0xff]
        %v2478 = vld [vmem:[#allocation14 + $0x68] sm:$0xff]
        %v2479 = vld [vmem:[#allocation14 + $0x70] sm:$0xff]
        %v2480 = vld [vmem:[#allocation14 + $0x78] sm:$0xff]
        %v2481 = vld [vmem:[%s7] sm:$0x1]
        %v2483 = vlaneseq
        %v2484 = vshrl.u32 %v2483, 7
        %v2485 = vsub.s32 0, %v2484
        %v2486 = vrot.slane %v2481, %v2485
        %2488 = vmatprep.subr.mxu0 0.0
        %2489 = vmatpush1.msra.mxu0 %v2465
        %2490 = vmatprep.subr.mxu0 0.0
        %2491 = vmatpush1.msra.mxu0 %v2466
        %2492 = vmatprep.subr.mxu0 0.0
        %2493 = vmatpush1.msra.mxu0 %v2467
        %2494 = vmatprep.subr.mxu0 0.0
        %2495 = vmatpush1.msra.mxu0 %v2468
        %2496 = vmatprep.subr.mxu0 0.0
        %2497 = vmatpush1.msra.mxu0 %v2469
        %2498 = vmatprep.subr.mxu0 0.0
        %2499 = vmatpush1.msra.mxu0 %v2470
        %2500 = vmatprep.subr.mxu0 0.0
        %2501 = vmatpush1.msra.mxu0 %v2471
        %2502 = vmatprep.subr.mxu0 0.0
        %2503 = vmatpush1.msra.mxu0 %v2472
        %2504 = vmatprep.subr.mxu0 0.0
        %2505 = vmatpush1.msra.mxu0 %v2473
        %2506 = vmatprep.subr.mxu0 0.0
        %2507 = vmatpush1.msra.mxu0 %v2474
        %2508 = vmatprep.subr.mxu0 0.0
        %2509 = vmatpush1.msra.mxu0 %v2475
        %2510 = vmatprep.subr.mxu0 0.0
        %2511 = vmatpush1.msra.mxu0 %v2476
        %2512 = vmatprep.subr.mxu0 0.0
        %2513 = vmatpush1.msra.mxu0 %v2477
        %2514 = vmatprep.subr.mxu0 0.0
        %2515 = vmatpush1.msra.mxu0 %v2478
        %2516 = vmatprep.subr.mxu0 0.0
        %2517 = vmatpush1.msra.mxu0 %v2479
        %2518 = vmatprep.subr.mxu0 0.0
        %2519 = vmatpush1.msra.mxu0 %v2480
        %2520 = vmatprep.subr.mxu0 0.0
        %2521 = vmatpush1.msra.mxu0 0.0
        %2522 = vmatprep.subr.mxu0 0.0
        %2523 = vmatpush1.msra.mxu0 0.0
        %2524 = vmatprep.subr.mxu0 0.0
        %2525 = vmatpush1.msra.mxu0 0.0
        %2526 = vmatprep.subr.mxu0 0.0
        %2527 = vmatpush1.msra.mxu0 0.0
        %2528 = vmatprep.subr.mxu0 0.0
        %2529 = vmatpush1.msra.mxu0 0.0
        %2530 = vmatprep.subr.mxu0 0.0
        %2531 = vmatpush1.msra.mxu0 0.0
        %2532 = vmatprep.subr.mxu0 0.0
        %2533 = vmatpush1.msra.mxu0 0.0
        %2534 = vmatprep.subr.mxu0 0.0
        %2535 = vmatpush1.msra.mxu0 0.0
        %2536 = vmatprep.subr.mxu0 0.0
        %2537 = vmatpush1.msra.mxu0 0.0
        %2538 = vmatprep.subr.mxu0 0.0
        %2539 = vmatpush1.msra.mxu0 0.0
        %2540 = vmatprep.subr.mxu0 0.0
        %2541 = vmatpush1.msra.mxu0 0.0
        %2542 = vmatprep.subr.mxu0 0.0
        %2543 = vmatpush1.msra.mxu0 0.0
        %2544 = vmatprep.subr.mxu0 0.0
        %2545 = vmatpush1.msra.mxu0 0.0
        %2546 = vmatprep.subr.mxu0 0.0
        %2547 = vmatpush1.msra.mxu0 0.0
        %2548 = vmatprep.subr.mxu0 0.0
        %2549 = vmatpush1.msra.mxu0 0.0
        %2550 = vmatprep.subr.mxu0 0.0
        %2551 = vmatpush1.msra.mxu0 0.0
        %2552 = vmatprep.mubr.f32.mxu0 0.0
        %2553 = vmatmul.mubr.f32.gmra.mrb[0].mxu0 %v2462
        %v2554 = vpop.f32.mrb[0].mxu0
        %v2555 = vadd.f32 %v2486, %v2554
        %v2556 = vpop.f32.mrb[0].mxu0
        %2557 = vmatprep.mubr.f32.mxu0 0.0
        %2558 = vmatmul.mubr.f32.gmra.mrb[0].mxu0 %v2463
        %v2559 = vpop.f32.mrb[0].mxu0
        %v2560 = vadd.f32 %v2486, %v2559
        %v2561 = vpop.f32.mrb[0].mxu0
        %2562 = vmatprep.mubr.f32.mxu0 0.0
        %2563 = vmatmul.mubr.f32.gmra.mrb[0].mxu0 %v2464
        %v2564 = vpop.f32.mrb[0].mxu0
        %v2565 = vadd.f32 %v2486, %v2564
        %v2566 = vpop.f32.mrb[0].mxu0
        %2567 = vdwg.mxu0
        %2568 = vst [vmem:[%s518] sm:$0xff] %v2555
        %2569 = vst [vmem:[%s518 + $0x8] sm:$0xff] %v2560
        %2570 = vst [vmem:[%s518 + $0x10] sm:$0xff] %v2565
        %p2571 = scmp.eq.s32.totalorder %s36, 2
        // Predicated region
        $region81: #{tpu_custom_call.1} parent=59 // pred_check
          %p2572 = pneg %p2571
        $region82: #{tpu_custom_call.1} parent=59 // pred_check_branch
          %2574 = sbr.rel (%p2572) target = $region84
        $region83: #{tpu_custom_call.1} parent=59 // pred_region
          %v2575 = vld [vmem:[#allocation4] sm:$0xff]
          %2576 = vst [vmem:[#allocation17] sm:$0xff] %v2575
          %v2577 = vld [vmem:[#allocation6] sm:$0xff]
          %s2578 = scalar_lea.vmem [#allocation17], 8
          %2579 = vst [vmem:[%s2578] sm:$0xff] %v2577
          %v2580 = vld [vmem:[#allocation5] sm:$0xff]
          %2581 = vst [vmem:[#allocation19] sm:$0xff] %v2580
          %v2582 = vld [vmem:[#allocation7] sm:$0xff]
          %s2583 = scalar_lea.vmem [#allocation19], 8
          %2584 = vst [vmem:[%s2583] sm:$0xff] %v2582
        $region84: #{tpu_custom_call.1} parent=59 // pred_fallthru
          _
        %s2585 = sand.u32 %s284, 1
        %s2586 = scalar_lea.sflag [#allocation10], %s2585
        %s2587 = sand.u32 %s284, 1
        %s2588 = smul.addr %s2587, 24
        %s2589 = scalar_lea.vmem [#allocation16], %s2588
        // Predicated region
        $region85: #{tpu_custom_call.1} parent=59 // pred_check
          %p2590 = pneg %p294
        $region86: #{tpu_custom_call.1} parent=59 // pred_check_branch
          %2592 = sbr.rel (%p2590) target = $region88
        $region87: #{tpu_custom_call.1} parent=59 // pred_region
          %s2593 = smul.u32 %s35, 3
          %s2594 = sadd.s32 %s2593, %s36
          %s2595 = smul.u32 3, %s2594
          %s2597 = ssub.s32 384, 384
          %2598 = vsyncadd %s2586, %s2597
          %s2599 = smul.addr %s2595, 128
          %s2600 = scalar_lea.hbm %s10, %s2599
          %s2601 = sshll.u32 %s2589, 4
          %s2602 = int_to_ptr.vmem [resolvable:$true] %s2601
          %2607 = dma.vmem_to_hbm [thread:$0]  %s2602, 384, %s2600, %s2586, 128, 128, 8
        $region88: #{tpu_custom_call.1} parent=59 // pred_fallthru
          _
        // Predicated region
        $region89: #{tpu_custom_call.1} parent=59 // pred_check
          %p2608 = pneg %p320
        $region90: #{tpu_custom_call.1} parent=59 // pred_check_branch
          %2610 = sbr.rel (%p2608) target = $region92
        $region91: #{tpu_custom_call.1} parent=59 // pred_region
          %s2612 = ssub.s32 256, 256
          %2613 = vsyncadd [#allocation18], %s2612
          %s2614 = smul.addr %s35, 128
          %s2615 = scalar_lea.hbm %s11, %s2614
          %s2616 = sshll.u32 [#allocation17], 4
          %s2617 = int_to_ptr.vmem [resolvable:$true] %s2616
          %2622 = dma.vmem_to_hbm [thread:$0]  %s2617, 256, %s2615, [#allocation18], 128, 128, 8
        $region92: #{tpu_custom_call.1} parent=59 // pred_fallthru
          _
        // Predicated region
        $region93: #{tpu_custom_call.1} parent=59 // pred_check
          %p2623 = pneg %p346
        $region94: #{tpu_custom_call.1} parent=59 // pred_check_branch
          %2625 = sbr.rel (%p2623) target = $region96
        $region95: #{tpu_custom_call.1} parent=59 // pred_region
          %s2627 = ssub.s32 256, 256
          %2628 = vsyncadd [#allocation18], %s2627
          %s2629 = smul.addr %s35, 128
          %s2630 = scalar_lea.hbm %s12, %s2629
          %s2631 = sshll.u32 [#allocation19], 4
          %s2632 = int_to_ptr.vmem [resolvable:$true] %s2631
          %2637 = dma.vmem_to_hbm [thread:$0]  %s2632, 256, %s2630, [#allocation18], 128, 128, 8
        $region96: #{tpu_custom_call.1} parent=59 // pred_fallthru
          _
        // Predicated region
        $region97: #{tpu_custom_call.1} parent=59 // pred_check
          %p2638 = pneg %p320
        $region98: #{tpu_custom_call.1} parent=59 // pred_check_branch
          %2640 = sbr.rel (%p2638) target = $region100
        $region99: #{tpu_custom_call.1} parent=59 // pred_region
          %2641 = dma.done [#allocation18], 256
        $region100: #{tpu_custom_call.1} parent=59 // pred_fallthru
          _
        // Predicated region
        $region101: #{tpu_custom_call.1} parent=59 // pred_check
          %p2642 = pneg %p346
        $region102: #{tpu_custom_call.1} parent=59 // pred_check_branch
          %2644 = sbr.rel (%p2642) target = $region104
        $region103: #{tpu_custom_call.1} parent=59 // pred_region
          %2645 = dma.done [#allocation18], 256
        $region104: #{tpu_custom_call.1} parent=59 // pred_fallthru
          _
      $region60: #{tpu_custom_call.1} parent=5 // pred_fallthru
        _
      %p2646 = scmp.le.s32.totalorder 2, %s26
      // Predicated region
      $region105: #{tpu_custom_call.1} parent=5 // pred_check
        %p2647 = pneg %p2646
      $region106: #{tpu_custom_call.1} parent=5 // pred_check_branch
        %2649 = sbr.rel (%p2647) target = $region108
      $region107: #{tpu_custom_call.1} parent=5 // pred_region
        %s2650 = ssub.s32 %s26, 2
        // Predicated region
        $region109: #{tpu_custom_call.1} parent=107 // pred_check
          %p2651 = pneg %p300
        $region110: #{tpu_custom_call.1} parent=107 // pred_check_branch
          %2653 = sbr.rel (%p2651) target = $region112
        $region111: #{tpu_custom_call.1} parent=107 // pred_region
          %s2654 = sand.u32 %s285, 1
          %s2655 = scalar_lea.sflag [#allocation10], %s2654
          %s2656 = sand.u32 %s285, 1
          %s2657 = smul.addr %s2656, 24
          %s2658 = scalar_lea.vmem [#allocation16], %s2657
          %2659 = dma.done %s2655, 384
        $region112: #{tpu_custom_call.1} parent=107 // pred_fallthru
          _
      $region108: #{tpu_custom_call.1} parent=5 // pred_fallthru
        _
    $region6: #{tpu_custom_call.1} parent=1 // loop_footer
      %s30 = sadd.s32 1, %s26
    $region7: #{tpu_custom_call.1} parent=1 // loop_footer_branch
      %25 = sbr.rel target = $region3
    $region8: #{tpu_custom_call.1} parent=1 // loop_exit
      _
    %2660 = vsyncpa [#allocation9], 1
    %s2661 = scalar_lea.sflag [#allocation9], 1
    %2662 = vsyncpa %s2661, 1
    %2663 = vsyncpa [#allocation12], 1
    %2664 = vsyncpa [#allocation15], 1
    %2665 = vsyncpa [#allocation10], 1
    %s2666 = scalar_lea.sflag [#allocation10], 1
    %2667 = vsyncpa %s2666, 1
    %2668 = vsyncpa [#allocation18], 1

</llo_original>
